<compile_context>
chip_gen: v5e
topology: v5e:2x2
jax: 0.10.0
libtpu: 0.0.40
codegen_flags: <defaults>
</compile_context>

<pallas_src>
import numpy as np
import jax
import jax.numpy as jnp
from jax.experimental import pallas as pl
from jax.experimental.pallas import tpu as pltpu

BN_EPS = 1e-5
CPAD = 128      # lane padding for every channel-like dimension
KSZ = 5
STRIDE = 2


def conv2d_size_out(size, kernel_size=KSZ, stride=STRIDE):
    return (size - (kernel_size - 1) - 1) // stride + 1


def _round_up(v, m):
    return -(-v // m) * m


# --------------------------- static layout planning ---------------------------

def _build_plan(h, w, n_batch):
    """All static index tables.  Every map is machine-checked with asserts."""
    h1, w1 = conv2d_size_out(h), conv2d_size_out(w)
    h2, w2 = conv2d_size_out(h1), conv2d_size_out(w1)
    h3, w3 = conv2d_size_out(h2), conv2d_size_out(w2)
    assert min(h3, w3) >= 1, "input too small for three stride-2 convs"

    # ----- stage-1 activation layout: (n, h-parity, w-parity, h//2, w//2) -----
    w1p = max((w1 + 1) // 2, w2 + 2)
    h1p = max((h1 + 1) // 2, h2 + 2)
    seg1 = h1p * w1p
    len2 = h2 * w1p                                      # conv2 slice length
    nblk1 = _round_up(max(4 * seg1, 3 * seg1 + 2 * w1p + 2 + len2), 8)
    r1 = n_batch * nblk1

    def row1(n, y, x):
        return n * nblk1 + ((y % 2) * 2 + (x % 2)) * seg1 + (y // 2) * w1p + (x // 2)

    # ----- conv2 raw-output (acc2) layout -----
    r2 = n_batch * len2

    def arow2(n, y, x):
        return n * len2 + y * w1p + x

    # ----- stage-2 (conv3 input) phase layout -----
    w2p = max((w2 + 1) // 2, w3 + 2)
    h2p = max((h2 + 1) // 2, h3 + 2)
    seg2 = h2p * w2p
    len3 = h3 * w2p                                      # conv3 slice length
    nblk2 = _round_up(max(4 * seg2, 3 * seg2 + 2 * w2p + 2 + len3), 8)
    r2p = n_batch * nblk2

    def row2(n, y, x):
        return n * nblk2 + ((y % 2) * 2 + (x % 2)) * seg2 + (y // 2) * w2p + (x // 2)

    # ----- conv3 raw-output (acc3) layout -----
    r3 = n_batch * len3

    def arow3(n, y, x):
        return n * len3 + y * w2p + x

    # stage-1 occupancy + conv1-patch gather map + BN1 mask
    occ1 = np.full(r1, -1, np.int64)
    mask1 = np.zeros((r1, 1), np.float32)
    gather1 = np.full((r1,), n_batch * h1 * w1, np.int32)   # default -> zero row
    for n in range(n_batch):
        for y in range(h1):
            for x in range(w1):
                r = row1(n, y, x)
                assert 0 <= r < r1 and occ1[r] == -1
                occ1[r] = (n * h1 + y) * w1 + x
                mask1[r, 0] = 1.0
                gather1[r] = (n * h1 + y) * w1 + x

    # conv2 tap bases + end-to-end read check
    bases2 = []
    for i in range(KSZ):
        for j in range(KSZ):
            b = [n * nblk1 + ((i % 2) * 2 + (j % 2)) * seg1 + (i // 2) * w1p + (j // 2)
                 for n in range(n_batch)]
            for n in range(n_batch):
                assert 0 <= b[n] and b[n] + len2 <= r1
                for oy in range(h2):
                    for ox in range(w2):
                        r = b[n] + oy * w1p + ox
                        assert 0 <= r < r1
                        assert occ1[r] == (n * h1 + 2 * oy + i) * w1 + (2 * ox + j)
            bases2.append(tuple(int(v) for v in b))

    # acc2 occupancy + BN2 mask
    occ2 = np.full(r2, -1, np.int64)
    mask2 = np.zeros((r2, 1), np.float32)
    for n in range(n_batch):
        for y in range(h2):
            for x in range(w2):
                r = arow2(n, y, x)
                assert 0 <= r < r2 and occ2[r] == -1
                occ2[r] = (n * h2 + y) * w2 + x
                mask2[r, 0] = 1.0

    # acc2 -> conv3-input (a2p) layout conversion
    occ2p = np.full(r2p, -1, np.int64)
    src23 = np.zeros((r2p, 1), np.int32)
    for n in range(n_batch):
        for y in range(h2):
            for x in range(w2):
                r = row2(n, y, x)
                assert 0 <= r < r2p and occ2p[r] == -1
                occ2p[r] = (n * h2 + y) * w2 + x
                src23[r, 0] = arow2(n, y, x)
                assert occ2[src23[r, 0]] == occ2p[r]

    # conv3 tap bases + end-to-end read check
    bases3 = []
    for i in range(KSZ):
        for j in range(KSZ):
            b = [n * nblk2 + ((i % 2) * 2 + (j % 2)) * seg2 + (i // 2) * w2p + (j // 2)
                 for n in range(n_batch)]
            for n in range(n_batch):
                assert 0 <= b[n] and b[n] + len3 <= r2p
                for oy in range(h3):
                    for ox in range(w3):
                        r = b[n] + oy * w2p + ox
                        assert 0 <= r < r2p
                        assert occ2p[r] == (n * h2 + 2 * oy + i) * w2 + (2 * ox + j)
            bases3.append(tuple(int(v) for v in b))

    # acc3 occupancy + BN3 mask + fc1 spatial row map (torch CHW flatten)
    occ3 = np.full(r3, -1, np.int64)
    mask3 = np.zeros((r3, 1), np.float32)
    for n in range(n_batch):
        for y in range(h3):
            for x in range(w3):
                r = arow3(n, y, x)
                assert 0 <= r < r3 and occ3[r] == -1
                occ3[r] = (n * h3 + y) * w3 + x
                mask3[r, 0] = 1.0
    fc_rows = []
    for s in range(h3 * w3):
        y, x = divmod(s, w3)
        rows = tuple(int(arow3(n, y, x)) for n in range(n_batch))
        for n in range(n_batch):
            assert occ3[rows[n]] == (n * h3 + y) * w3 + x
        fc_rows.append(rows)

    return dict(
        h1=h1, w1=w1, h2=h2, w2=w2, h3=h3, w3=w3, n=n_batch,
        c1=16, c2=32, c3=32,
        r1=r1, r2=r2, r2pad=_round_up(r2, 8), r2p=r2p, r3=r3,
        len2=len2, len3=len3,
        bases2=bases2, bases3=bases3, fc_rows=fc_rows,
        inv1=1.0 / float(n_batch * h1 * w1),
        inv2=1.0 / float(n_batch * h2 * w2),
        inv3=1.0 / float(n_batch * h3 * w3),
        m_out=max(_round_up(n_batch, 8), 8),
        mask1=mask1, mask2=mask2, mask3=mask3, src23=src23, gather1=gather1,
        w2_rows=(KSZ * KSZ - 1) * 16 + CPAD,
        w3_rows=(KSZ * KSZ - 1) * 32 + CPAD,
        wf1_rows=(h3 * w3 - 1) * 32 + CPAD,
    )


# --------------------------------- the kernel ---------------------------------

def _make_kernel(plan):
    c1, c2, c3 = plan["c1"], plan["c2"], plan["c3"]
    len2, len3 = plan["len2"], plan["len3"]
    n_batch, m_out = plan["n"], plan["m_out"]
    r2, r2pad, r2p = plan["r2"], plan["r2pad"], plan["r2p"]

    def bn_relu(y, mask, inv_cnt, gamma, beta):
        # training-mode BatchNorm2d (biased batch variance), two-pass, fp32.
        mean = jnp.sum(y * mask, axis=0, keepdims=True) * inv_cnt
        yc = y - mean
        var = jnp.sum(yc * yc * mask, axis=0, keepdims=True) * inv_cnt
        return jnp.maximum(yc * jax.lax.rsqrt(var + BN_EPS) * gamma + beta, 0.0)

    def kernel(p1_ref, w1_ref, w2_ref, w3_ref, wf1_ref, wf2_ref, vecs_ref,
               m1_ref, m2_ref, m3_ref, src_ref, out_ref):
        vecs = vecs_ref[...]
        g1, b1 = vecs[0:1], vecs[1:2]
        g2, b2 = vecs[2:3], vecs[3:4]
        g3, b3 = vecs[4:5], vecs[5:6]
        fb1, fb2 = vecs[6:7], vecs[7:8]

        # conv1 + bn1 + relu (rows already phase-ordered; lanes >= 16 stay 0,
        # which makes the dense-window weight trick below exact).
        y1 = jnp.dot(p1_ref[...], w1_ref[...], preferred_element_type=jnp.float32)
        a1 = bn_relu(y1, m1_ref[...], plan["inv1"], g1, b1)          # (r1,128) f32

        # conv2: per-tap contiguous slice of a1 + 128-row window of the dense
        # weight (rows >= 16 in the window belong to later taps and multiply
        # the identically-zero upper lanes of a1).
        w2 = w2_ref[...]
        acc2 = [jnp.zeros((len2, CPAD), jnp.float32) for _ in range(n_batch)]
        for t, bases in enumerate(plan["bases2"]):
            wwin = w2[t * c1:t * c1 + CPAD, :]
            for n, b in enumerate(bases):
                xs = a1[b:b + len2, :].astype(jnp.bfloat16)
                acc2[n] = acc2[n] + jnp.dot(xs, wwin,
                                            preferred_element_type=jnp.float32)
        acc2 = jnp.concatenate(acc2, axis=0)                          # (r2,128)
        a2 = bn_relu(acc2, m2_ref[...], plan["inv2"], g2, b2)

        # tiny one-hot re-layout of conv2's output into conv3's phase order
        a2z = a2
        if r2pad > r2:
            a2z = jnp.concatenate(
                [a2, jnp.zeros((r2pad - r2, CPAD), jnp.float32)], axis=0)
        col = jax.lax.broadcasted_iota(jnp.int32, (r2p, r2pad), 1)
        sel = jnp.where(col == src_ref[...], 1.0, 0.0).astype(jnp.bfloat16)
        a2p = jnp.dot(sel, a2z.astype(jnp.bfloat16),
                      preferred_element_type=jnp.float32)             # (r2p,128)

        # conv3: same per-tap slice + dense-window weight scheme
        w3 = w3_ref[...]
        acc3 = [jnp.zeros((len3, CPAD), jnp.float32) for _ in range(n_batch)]
        for t, bases in enumerate(plan["bases3"]):
            wwin = w3[t * c2:t * c2 + CPAD, :]
            for n, b in enumerate(bases):
                xs = a2p[b:b + len3, :].astype(jnp.bfloat16)
                acc3[n] = acc3[n] + jnp.dot(xs, wwin,
                                            preferred_element_type=jnp.float32)
        acc3 = jnp.concatenate(acc3, axis=0)                          # (r3,128)
        a3 = bn_relu(acc3, m3_ref[...], plan["inv3"], g3, b3)

        # fc1 (torch CHW flatten folded into the weight windows), no ReLU
        wf1 = wf1_ref[...]
        hidden = jnp.zeros((n_batch, CPAD), jnp.float32)
        for s, rows in enumerate(plan["fc_rows"]):
            xs = jnp.concatenate([a3[r:r + 1, :] for r in rows],
                                 axis=0).astype(jnp.bfloat16)
            hidden = hidden + jnp.dot(xs, wf1[s * c3:s * c3 + CPAD, :],
                                      preferred_element_type=jnp.float32)
        hidden = hidden + fb1
        if m_out > n_batch:
            hidden = jnp.concatenate(
                [hidden, jnp.zeros((m_out - n_batch, CPAD), jnp.float32)], axis=0)

        # fc2 (output padded to (8, 128) -> unmasked, lane-dense store)
        out_ref[...] = jnp.dot(hidden.astype(jnp.bfloat16), wf2_ref[...],
                               preferred_element_type=jnp.float32) + fb2

    return kernel


# --------------------------------- wrappers -----------------------------------

def _full_spec(shape):
    return pl.BlockSpec(shape, lambda i: (0,) * len(shape))


def build_forward(h, w, output_size, n_batch):
    plan = _build_plan(h, w, n_batch)
    kernel = _make_kernel(plan)

    in_shapes = [
        (plan["r1"], CPAD),        # p1 (conv1 im2col, phase-ordered rows)
        (CPAD, CPAD),              # w1
        (plan["w2_rows"], CPAD),   # w2 (dense K, windowed per tap)
        (plan["w3_rows"], CPAD),   # w3
        (plan["wf1_rows"], CPAD),  # wf1
        (CPAD, CPAD),              # wf2
        (8, CPAD),                 # vecs (bn gammas/betas, fc biases)
        (plan["r1"], 1),           # mask1
        (plan["r2"], 1),           # mask2
        (plan["r3"], 1),           # mask3
        (plan["r2p"], 1),          # src23 (conv2->conv3 layout map)
    ]
    fused = pl.pallas_call(
        kernel,
        out_shape=jax.ShapeDtypeStruct((plan["m_out"], CPAD), jnp.float32),
        grid=(1,),
        in_specs=[_full_spec(s) for s in in_shapes],
        out_specs=_full_spec((plan["m_out"], CPAD)),
        compiler_params=pltpu.CompilerParams(
            dimension_semantics=("arbitrary",),
            vmem_limit_bytes=32 * 1024 * 1024,
        ),
    )

    mask1 = jnp.asarray(plan["mask1"])
    mask2 = jnp.asarray(plan["mask2"])
    mask3 = jnp.asarray(plan["mask3"])
    src23 = jnp.asarray(plan["src23"])
    gather1 = jnp.asarray(plan["gather1"])
    h1, w1 = plan["h1"], plan["w1"]

    def conv1_patches(x_nchw):
        xs = x_nchw[:, 0, :, :]
        taps = [xs[:, i:i + STRIDE * h1:STRIDE, j:j + STRIDE * w1:STRIDE]
                for i in range(KSZ) for j in range(KSZ)]
        p = jnp.stack(taps, axis=-1).reshape(n_batch * h1 * w1, KSZ * KSZ)
        p = jnp.concatenate([p, jnp.zeros((1, KSZ * KSZ), p.dtype)], axis=0)
        p = jnp.take(p, gather1, axis=0)                  # phase-ordered rows
        p = jnp.pad(p, ((0, 0), (0, CPAD - KSZ * KSZ)))
        return p.astype(jnp.bfloat16)

    def forward(packed, x_nchw):
        p1 = conv1_patches(x_nchw)
        out = fused(p1, packed["w1"], packed["w2"], packed["w3"],
                    packed["wf1"], packed["wf2"], packed["vecs"],
                    mask1, mask2, mask3, src23)
        return out[:n_batch, :output_size]

    return jax.jit(forward)


# ----------------------- parameters (PyTorch layout) ---------------------------

def init_params(key, h, w, output_size):
    h1, w1 = conv2d_size_out(h), conv2d_size_out(w)
    h2, w2 = conv2d_size_out(h1), conv2d_size_out(w1)
    h3, w3 = conv2d_size_out(h2), conv2d_size_out(w2)
    fc1_in = h3 * w3 * 32
    ks = jax.random.split(key, 10)

    def rnd(k, shape):
        return jax.random.normal(k, shape, jnp.float32) * 0.05

    return {
        "conv1_w": rnd(ks[0], (16, 1, KSZ, KSZ)), "conv1_b": rnd(ks[1], (16,)),
        "bn1_g": jnp.ones((16,), jnp.float32), "bn1_b": jnp.zeros((16,), jnp.float32),
        "conv2_w": rnd(ks[2], (32, 16, KSZ, KSZ)), "conv2_b": rnd(ks[3], (32,)),
        "bn2_g": jnp.ones((32,), jnp.float32), "bn2_b": jnp.zeros((32,), jnp.float32),
        "conv3_w": rnd(ks[4], (32, 32, KSZ, KSZ)), "conv3_b": rnd(ks[5], (32,)),
        "bn3_g": jnp.ones((32,), jnp.float32), "bn3_b": jnp.zeros((32,), jnp.float32),
        "fc1_w": rnd(ks[6], (128, fc1_in)), "fc1_b": rnd(ks[7], (128,)),
        "fc2_w": rnd(ks[8], (output_size, 128)), "fc2_b": rnd(ks[9], (output_size,)),
    }


def pack_params(params, h, w, output_size):
    """One-time repack into dense, lane-padded bf16 kernel layouts."""
    h1, w1 = conv2d_size_out(h), conv2d_size_out(w)
    h2, w2 = conv2d_size_out(h1), conv2d_size_out(w1)
    h3, w3 = conv2d_size_out(h2), conv2d_size_out(w2)
    s3 = h3 * w3
    t = KSZ * KSZ
    bf16 = jnp.bfloat16

    # conv1: rows = tap t = i*5+j, cols = cout, both padded to 128
    w1m = jnp.transpose(params["conv1_w"], (2, 3, 1, 0)).reshape(t, 16)
    w1m = jnp.pad(w1m, ((0, CPAD - t), (0, CPAD - 16)))

    # conv2/conv3: dense K rows = t*cin + ci, cols = cout padded to 128.
    # Row padding lets the kernel read an overlapping 128-row window per tap.
    w2m = jnp.transpose(params["conv2_w"], (2, 3, 1, 0)).reshape(t * 16, 32)
    w2m = jnp.pad(w2m, ((0, CPAD - 16), (0, CPAD - 32)))
    w3m = jnp.transpose(params["conv3_w"], (2, 3, 1, 0)).reshape(t * 32, 32)
    w3m = jnp.pad(w3m, ((0, CPAD - 32), (0, CPAD - 32)))

    # fc1: torch flatten index f = c*s3 + s -> dense rows s*32 + c
    wf1 = params["fc1_w"].reshape(128, 32, s3)               # (out, c, s)
    wf1 = jnp.transpose(wf1, (2, 1, 0)).reshape(s3 * 32, 128)
    wf1 = jnp.pad(wf1, ((0, CPAD - 32), (0, 0)))

    wf2 = jnp.pad(jnp.transpose(params["fc2_w"], (1, 0)),
                  ((0, 0), (0, CPAD - output_size)))

    vecs = jnp.zeros((8, CPAD), jnp.float32)

    def put(v, row, val):
        return v.at[row, :val.shape[0]].set(val)

    vecs = put(vecs, 0, params["bn1_g"]); vecs = put(vecs, 1, params["bn1_b"])
    vecs = put(vecs, 2, params["bn2_g"]); vecs = put(vecs, 3, params["bn2_b"])
    vecs = put(vecs, 4, params["bn3_g"]); vecs = put(vecs, 5, params["bn3_b"])
    vecs = put(vecs, 6, params["fc1_b"]); vecs = put(vecs, 7, params["fc2_b"])
    # conv1_b/conv2_b/conv3_b intentionally unused: exactly cancelled by the
    # mean subtraction of training-mode BatchNorm.

    return {"w1": w1m.astype(bf16), "w2": w2m.astype(bf16), "w3": w3m.astype(bf16),
            "wf1": wf1.astype(bf16), "wf2": wf2.astype(bf16), "vecs": vecs}


# ----------------------------------- main --------------------------------------

if __name__ == "__main__":
    H, W = 40, 40          # 40 -> 18 -> 7 -> 2  (2*2*32 = 128 flat features)
    BATCH = 2
    OUTPUT_SIZE = 4

    key = jax.random.PRNGKey(0)
    kx, kp = jax.random.split(key)
    x = jax.random.normal(kx, (BATCH, 1, H, W), jnp.float32)   # NCHW like PyTorch
    params = init_params(kp, H, W, OUTPUT_SIZE)
    packed = pack_params(params, H, W, OUTPUT_SIZE)

    forward = build_forward(H, W, OUTPUT_SIZE, BATCH)
    out = forward(packed, x)
    jax.block_until_ready(out)

    assert out.shape == (BATCH, OUTPUT_SIZE)
    assert bool(jnp.all(jnp.isfinite(out)))
    print("KERNEL_OK")
</pallas_src>

<mosaic_0001>
module attributes {stable_mosaic.version = 11 : i64} {
  func.func @kernel(%arg0: i32, %arg1: memref<656x128xbf16, #tpu.memory_space<vmem>>, %arg2: memref<128x128xbf16, #tpu.memory_space<vmem>>, %arg3: memref<512x128xbf16, #tpu.memory_space<vmem>>, %arg4: memref<896x128xbf16, #tpu.memory_space<vmem>>, %arg5: memref<224x128xbf16, #tpu.memory_space<vmem>>, %arg6: memref<128x128xbf16, #tpu.memory_space<vmem>>, %arg7: memref<8x128xf32, #tpu.memory_space<vmem>>, %arg8: memref<656x1xf32, #tpu.memory_space<vmem>>, %arg9: memref<126x1xf32, #tpu.memory_space<vmem>>, %arg10: memref<16x1xf32, #tpu.memory_space<vmem>>, %arg11: memref<144x1xi32, #tpu.memory_space<vmem>>, %arg12: memref<8x128xf32, #tpu.memory_space<vmem>>) attributes {dimension_semantics = [#tpu.dimension_semantics<arbitrary>], iteration_bounds = array<i64: 1>, scalar_prefetch = 0 : i64, scratch_operands = 0 : i64, tpu.core_type = #tpu.core_type<tc>, window_params = [{pipeline_mode = #tpu.pipeline_mode<synchronous>, transform_indices = @transform_0, window_bounds = array<i64: 656, 128>}, {pipeline_mode = #tpu.pipeline_mode<synchronous>, transform_indices = @transform_1, window_bounds = array<i64: 128, 128>}, {pipeline_mode = #tpu.pipeline_mode<synchronous>, transform_indices = @transform_2, window_bounds = array<i64: 512, 128>}, {pipeline_mode = #tpu.pipeline_mode<synchronous>, transform_indices = @transform_3, window_bounds = array<i64: 896, 128>}, {pipeline_mode = #tpu.pipeline_mode<synchronous>, transform_indices = @transform_4, window_bounds = array<i64: 224, 128>}, {pipeline_mode = #tpu.pipeline_mode<synchronous>, transform_indices = @transform_5, window_bounds = array<i64: 128, 128>}, {pipeline_mode = #tpu.pipeline_mode<synchronous>, transform_indices = @transform_6, window_bounds = array<i64: 8, 128>}, {pipeline_mode = #tpu.pipeline_mode<synchronous>, transform_indices = @transform_7, window_bounds = array<i64: 656, 1>}, {pipeline_mode = #tpu.pipeline_mode<synchronous>, transform_indices = @transform_8, window_bounds = array<i64: 126, 1>}, {pipeline_mode = #tpu.pipeline_mode<synchronous>, transform_indices = @transform_9, window_bounds = array<i64: 16, 1>}, {pipeline_mode = #tpu.pipeline_mode<synchronous>, transform_indices = @transform_10, window_bounds = array<i64: 144, 1>}, {pipeline_mode = #tpu.pipeline_mode<synchronous>, transform_indices = @transform_11, window_bounds = array<i64: 8, 128>}]} {
    %c0 = arith.constant 0 : index
    %c0_0 = arith.constant 0 : index
    %0 = vector.load %arg7[%c0, %c0_0] : memref<8x128xf32, #tpu.memory_space<vmem>>, vector<8x128xf32>
    %1 = vector.extract_strided_slice %0 {offsets = [0, 0], sizes = [1, 128], strides = [1, 1]} : vector<8x128xf32> to vector<1x128xf32>
    %2 = vector.extract_strided_slice %0 {offsets = [1, 0], sizes = [1, 128], strides = [1, 1]} : vector<8x128xf32> to vector<1x128xf32>
    %3 = vector.extract_strided_slice %0 {offsets = [2, 0], sizes = [1, 128], strides = [1, 1]} : vector<8x128xf32> to vector<1x128xf32>
    %4 = vector.extract_strided_slice %0 {offsets = [3, 0], sizes = [1, 128], strides = [1, 1]} : vector<8x128xf32> to vector<1x128xf32>
    %5 = vector.extract_strided_slice %0 {offsets = [4, 0], sizes = [1, 128], strides = [1, 1]} : vector<8x128xf32> to vector<1x128xf32>
    %6 = vector.extract_strided_slice %0 {offsets = [5, 0], sizes = [1, 128], strides = [1, 1]} : vector<8x128xf32> to vector<1x128xf32>
    %7 = vector.extract_strided_slice %0 {offsets = [6, 0], sizes = [1, 128], strides = [1, 1]} : vector<8x128xf32> to vector<1x128xf32>
    %8 = vector.extract_strided_slice %0 {offsets = [7, 0], sizes = [1, 128], strides = [1, 1]} : vector<8x128xf32> to vector<1x128xf32>
    %c0_1 = arith.constant 0 : index
    %c0_2 = arith.constant 0 : index
    %9 = vector.load %arg1[%c0_1, %c0_2] : memref<656x128xbf16, #tpu.memory_space<vmem>>, vector<656x128xbf16>
    %c0_3 = arith.constant 0 : index
    %c0_4 = arith.constant 0 : index
    %10 = vector.load %arg2[%c0_3, %c0_4] : memref<128x128xbf16, #tpu.memory_space<vmem>>, vector<128x128xbf16>
    %cst = arith.constant dense<0.000000e+00> : vector<656x128xf32>
    %11 = tpu.matmul %9, %10, %cst {dimension_numbers = #tpu.dot_dimension_numbers<[1], [0], [0], [1], [0, 0, 1, 1], [], []>} : vector<656x128xbf16>, vector<128x128xbf16>, vector<656x128xf32> -> vector<656x128xf32>
    %c0_5 = arith.constant 0 : index
    %c0_6 = arith.constant 0 : index
    %12 = vector.load %arg8[%c0_5, %c0_6] : memref<656x1xf32, #tpu.memory_space<vmem>>, vector<656x1xf32>
    %13 = vector.broadcast %12 : vector<656x1xf32> to vector<656x128xf32>
    %14 = arith.mulf %11, %13 : vector<656x128xf32>
    %cst_7 = arith.constant dense<0.000000e+00> : vector<128xf32>
    %15 = vector.multi_reduction <add>, %14, %cst_7 [0] : vector<656x128xf32> to vector<128xf32>
    %16 = vector.shape_cast %15 : vector<128xf32> to vector<1x128xf32>
    %cst_8 = arith.constant 0.00154320989 : f32
    %17 = vector.broadcast %cst_8 : f32 to vector<1x128xf32>
    %18 = arith.mulf %16, %17 : vector<1x128xf32>
    %19 = vector.broadcast %18 : vector<1x128xf32> to vector<656x128xf32>
    %20 = arith.subf %11, %19 : vector<656x128xf32>
    %21 = arith.mulf %20, %20 : vector<656x128xf32>
    %22 = vector.broadcast %12 : vector<656x1xf32> to vector<656x128xf32>
    %23 = arith.mulf %21, %22 : vector<656x128xf32>
    %cst_9 = arith.constant dense<0.000000e+00> : vector<128xf32>
    %24 = vector.multi_reduction <add>, %23, %cst_9 [0] : vector<656x128xf32> to vector<128xf32>
    %25 = vector.shape_cast %24 : vector<128xf32> to vector<1x128xf32>
    %cst_10 = arith.constant 0.00154320989 : f32
    %26 = vector.broadcast %cst_10 : f32 to vector<1x128xf32>
    %27 = arith.mulf %25, %26 : vector<1x128xf32>
    %cst_11 = arith.constant 9.99999974E-6 : f32
    %28 = vector.broadcast %cst_11 : f32 to vector<1x128xf32>
    %29 = arith.addf %27, %28 : vector<1x128xf32>
    %30 = math.rsqrt %29 : vector<1x128xf32>
    %31 = vector.broadcast %30 : vector<1x128xf32> to vector<656x128xf32>
    %32 = arith.mulf %20, %31 : vector<656x128xf32>
    %33 = vector.broadcast %1 : vector<1x128xf32> to vector<656x128xf32>
    %34 = arith.mulf %32, %33 : vector<656x128xf32>
    %35 = vector.broadcast %2 : vector<1x128xf32> to vector<656x128xf32>
    %36 = arith.addf %34, %35 : vector<656x128xf32>
    %cst_12 = arith.constant 0.000000e+00 : f32
    %37 = vector.broadcast %cst_12 : f32 to vector<656x128xf32>
    %38 = arith.maximumf %36, %37 : vector<656x128xf32>
    %c0_13 = arith.constant 0 : index
    %c0_14 = arith.constant 0 : index
    %39 = vector.load %arg3[%c0_13, %c0_14] : memref<512x128xbf16, #tpu.memory_space<vmem>>, vector<512x128xbf16>
    %cst_15 = arith.constant 0.000000e+00 : f32
    %40 = vector.broadcast %cst_15 : f32 to vector<63x128xf32>
    %cst_16 = arith.constant 0.000000e+00 : f32
    %41 = vector.broadcast %cst_16 : f32 to vector<63x128xf32>
    %42 = vector.extract_strided_slice %39 {offsets = [0, 0], sizes = [128, 128], strides = [1, 1]} : vector<512x128xbf16> to vector<128x128xbf16>
    %43 = vector.extract_strided_slice %38 {offsets = [0, 0], sizes = [63, 128], strides = [1, 1]} : vector<656x128xf32> to vector<63x128xf32>
    %44 = arith.truncf %43 : vector<63x128xf32> to vector<63x128xbf16>
    %cst_17 = arith.constant dense<0.000000e+00> : vector<63x128xf32>
    %45 = tpu.matmul %44, %42, %cst_17 {dimension_numbers = #tpu.dot_dimension_numbers<[1], [0], [0], [1], [0, 0, 1, 1], [], []>} : vector<63x128xbf16>, vector<128x128xbf16>, vector<63x128xf32> -> vector<63x128xf32>
    %46 = arith.addf %40, %45 : vector<63x128xf32>
    %47 = vector.extract_strided_slice %38 {offsets = [328, 0], sizes = [63, 128], strides = [1, 1]} : vector<656x128xf32> to vector<63x128xf32>
    %48 = arith.truncf %47 : vector<63x128xf32> to vector<63x128xbf16>
    %cst_18 = arith.constant dense<0.000000e+00> : vector<63x128xf32>
    %49 = tpu.matmul %48, %42, %cst_18 {dimension_numbers = #tpu.dot_dimension_numbers<[1], [0], [0], [1], [0, 0, 1, 1], [], []>} : vector<63x128xbf16>, vector<128x128xbf16>, vector<63x128xf32> -> vector<63x128xf32>
    %50 = arith.addf %41, %49 : vector<63x128xf32>
    %51 = vector.extract_strided_slice %39 {offsets = [16, 0], sizes = [128, 128], strides = [1, 1]} : vector<512x128xbf16> to vector<128x128xbf16>
    %52 = vector.extract_strided_slice %38 {offsets = [81, 0], sizes = [63, 128], strides = [1, 1]} : vector<656x128xf32> to vector<63x128xf32>
    %53 = arith.truncf %52 : vector<63x128xf32> to vector<63x128xbf16>
    %cst_19 = arith.constant dense<0.000000e+00> : vector<63x128xf32>
    %54 = tpu.matmul %53, %51, %cst_19 {dimension_numbers = #tpu.dot_dimension_numbers<[1], [0], [0], [1], [0, 0, 1, 1], [], []>} : vector<63x128xbf16>, vector<128x128xbf16>, vector<63x128xf32> -> vector<63x128xf32>
    %55 = arith.addf %46, %54 : vector<63x128xf32>
    %56 = vector.extract_strided_slice %38 {offsets = [409, 0], sizes = [63, 128], strides = [1, 1]} : vector<656x128xf32> to vector<63x128xf32>
    %57 = arith.truncf %56 : vector<63x128xf32> to vector<63x128xbf16>
    %cst_20 = arith.constant dense<0.000000e+00> : vector<63x128xf32>
    %58 = tpu.matmul %57, %51, %cst_20 {dimension_numbers = #tpu.dot_dimension_numbers<[1], [0], [0], [1], [0, 0, 1, 1], [], []>} : vector<63x128xbf16>, vector<128x128xbf16>, vector<63x128xf32> -> vector<63x128xf32>
    %59 = arith.addf %50, %58 : vector<63x128xf32>
    %60 = vector.extract_strided_slice %39 {offsets = [32, 0], sizes = [128, 128], strides = [1, 1]} : vector<512x128xbf16> to vector<128x128xbf16>
    %61 = vector.extract_strided_slice %38 {offsets = [1, 0], sizes = [63, 128], strides = [1, 1]} : vector<656x128xf32> to vector<63x128xf32>
    %62 = arith.truncf %61 : vector<63x128xf32> to vector<63x128xbf16>
    %cst_21 = arith.constant dense<0.000000e+00> : vector<63x128xf32>
    %63 = tpu.matmul %62, %60, %cst_21 {dimension_numbers = #tpu.dot_dimension_numbers<[1], [0], [0], [1], [0, 0, 1, 1], [], []>} : vector<63x128xbf16>, vector<128x128xbf16>, vector<63x128xf32> -> vector<63x128xf32>
    %64 = arith.addf %55, %63 : vector<63x128xf32>
    %65 = vector.extract_strided_slice %38 {offsets = [329, 0], sizes = [63, 128], strides = [1, 1]} : vector<656x128xf32> to vector<63x128xf32>
    %66 = arith.truncf %65 : vector<63x128xf32> to vector<63x128xbf16>
    %cst_22 = arith.constant dense<0.000000e+00> : vector<63x128xf32>
    %67 = tpu.matmul %66, %60, %cst_22 {dimension_numbers = #tpu.dot_dimension_numbers<[1], [0], [0], [1], [0, 0, 1, 1], [], []>} : vector<63x128xbf16>, vector<128x128xbf16>, vector<63x128xf32> -> vector<63x128xf32>
    %68 = arith.addf %59, %67 : vector<63x128xf32>
    %69 = vector.extract_strided_slice %39 {offsets = [48, 0], sizes = [128, 128], strides = [1, 1]} : vector<512x128xbf16> to vector<128x128xbf16>
    %70 = vector.extract_strided_slice %38 {offsets = [82, 0], sizes = [63, 128], strides = [1, 1]} : vector<656x128xf32> to vector<63x128xf32>
    %71 = arith.truncf %70 : vector<63x128xf32> to vector<63x128xbf16>
    %cst_23 = arith.constant dense<0.000000e+00> : vector<63x128xf32>
    %72 = tpu.matmul %71, %69, %cst_23 {dimension_numbers = #tpu.dot_dimension_numbers<[1], [0], [0], [1], [0, 0, 1, 1], [], []>} : vector<63x128xbf16>, vector<128x128xbf16>, vector<63x128xf32> -> vector<63x128xf32>
    %73 = arith.addf %64, %72 : vector<63x128xf32>
    %74 = vector.extract_strided_slice %38 {offsets = [410, 0], sizes = [63, 128], strides = [1, 1]} : vector<656x128xf32> to vector<63x128xf32>
    %75 = arith.truncf %74 : vector<63x128xf32> to vector<63x128xbf16>
    %cst_24 = arith.constant dense<0.000000e+00> : vector<63x128xf32>
    %76 = tpu.matmul %75, %69, %cst_24 {dimension_numbers = #tpu.dot_dimension_numbers<[1], [0], [0], [1], [0, 0, 1, 1], [], []>} : vector<63x128xbf16>, vector<128x128xbf16>, vector<63x128xf32> -> vector<63x128xf32>
    %77 = arith.addf %68, %76 : vector<63x128xf32>
    %78 = vector.extract_strided_slice %39 {offsets = [64, 0], sizes = [128, 128], strides = [1, 1]} : vector<512x128xbf16> to vector<128x128xbf16>
    %79 = vector.extract_strided_slice %38 {offsets = [2, 0], sizes = [63, 128], strides = [1, 1]} : vector<656x128xf32> to vector<63x128xf32>
    %80 = arith.truncf %79 : vector<63x128xf32> to vector<63x128xbf16>
    %cst_25 = arith.constant dense<0.000000e+00> : vector<63x128xf32>
    %81 = tpu.matmul %80, %78, %cst_25 {dimension_numbers = #tpu.dot_dimension_numbers<[1], [0], [0], [1], [0, 0, 1, 1], [], []>} : vector<63x128xbf16>, vector<128x128xbf16>, vector<63x128xf32> -> vector<63x128xf32>
    %82 = arith.addf %73, %81 : vector<63x128xf32>
    %83 = vector.extract_strided_slice %38 {offsets = [330, 0], sizes = [63, 128], strides = [1, 1]} : vector<656x128xf32> to vector<63x128xf32>
    %84 = arith.truncf %83 : vector<63x128xf32> to vector<63x128xbf16>
    %cst_26 = arith.constant dense<0.000000e+00> : vector<63x128xf32>
    %85 = tpu.matmul %84, %78, %cst_26 {dimension_numbers = #tpu.dot_dimension_numbers<[1], [0], [0], [1], [0, 0, 1, 1], [], []>} : vector<63x128xbf16>, vector<128x128xbf16>, vector<63x128xf32> -> vector<63x128xf32>
    %86 = arith.addf %77, %85 : vector<63x128xf32>
    %87 = vector.extract_strided_slice %39 {offsets = [80, 0], sizes = [128, 128], strides = [1, 1]} : vector<512x128xbf16> to vector<128x128xbf16>
    %88 = vector.extract_strided_slice %38 {offsets = [162, 0], sizes = [63, 128], strides = [1, 1]} : vector<656x128xf32> to vector<63x128xf32>
    %89 = arith.truncf %88 : vector<63x128xf32> to vector<63x128xbf16>
    %cst_27 = arith.constant dense<0.000000e+00> : vector<63x128xf32>
    %90 = tpu.matmul %89, %87, %cst_27 {dimension_numbers = #tpu.dot_dimension_numbers<[1], [0], [0], [1], [0, 0, 1, 1], [], []>} : vector<63x128xbf16>, vector<128x128xbf16>, vector<63x128xf32> -> vector<63x128xf32>
    %91 = arith.addf %82, %90 : vector<63x128xf32>
    %92 = vector.extract_strided_slice %38 {offsets = [490, 0], sizes = [63, 128], strides = [1, 1]} : vector<656x128xf32> to vector<63x128xf32>
    %93 = arith.truncf %92 : vector<63x128xf32> to vector<63x128xbf16>
    %cst_28 = arith.constant dense<0.000000e+00> : vector<63x128xf32>
    %94 = tpu.matmul %93, %87, %cst_28 {dimension_numbers = #tpu.dot_dimension_numbers<[1], [0], [0], [1], [0, 0, 1, 1], [], []>} : vector<63x128xbf16>, vector<128x128xbf16>, vector<63x128xf32> -> vector<63x128xf32>
    %95 = arith.addf %86, %94 : vector<63x128xf32>
    %96 = vector.extract_strided_slice %39 {offsets = [96, 0], sizes = [128, 128], strides = [1, 1]} : vector<512x128xbf16> to vector<128x128xbf16>
    %97 = vector.extract_strided_slice %38 {offsets = [243, 0], sizes = [63, 128], strides = [1, 1]} : vector<656x128xf32> to vector<63x128xf32>
    %98 = arith.truncf %97 : vector<63x128xf32> to vector<63x128xbf16>
    %cst_29 = arith.constant dense<0.000000e+00> : vector<63x128xf32>
    %99 = tpu.matmul %98, %96, %cst_29 {dimension_numbers = #tpu.dot_dimension_numbers<[1], [0], [0], [1], [0, 0, 1, 1], [], []>} : vector<63x128xbf16>, vector<128x128xbf16>, vector<63x128xf32> -> vector<63x128xf32>
    %100 = arith.addf %91, %99 : vector<63x128xf32>
    %101 = vector.extract_strided_slice %38 {offsets = [571, 0], sizes = [63, 128], strides = [1, 1]} : vector<656x128xf32> to vector<63x128xf32>
    %102 = arith.truncf %101 : vector<63x128xf32> to vector<63x128xbf16>
    %cst_30 = arith.constant dense<0.000000e+00> : vector<63x128xf32>
    %103 = tpu.matmul %102, %96, %cst_30 {dimension_numbers = #tpu.dot_dimension_numbers<[1], [0], [0], [1], [0, 0, 1, 1], [], []>} : vector<63x128xbf16>, vector<128x128xbf16>, vector<63x128xf32> -> vector<63x128xf32>
    %104 = arith.addf %95, %103 : vector<63x128xf32>
    %105 = vector.extract_strided_slice %39 {offsets = [112, 0], sizes = [128, 128], strides = [1, 1]} : vector<512x128xbf16> to vector<128x128xbf16>
    %106 = vector.extract_strided_slice %38 {offsets = [163, 0], sizes = [63, 128], strides = [1, 1]} : vector<656x128xf32> to vector<63x128xf32>
    %107 = arith.truncf %106 : vector<63x128xf32> to vector<63x128xbf16>
    %cst_31 = arith.constant dense<0.000000e+00> : vector<63x128xf32>
    %108 = tpu.matmul %107, %105, %cst_31 {dimension_numbers = #tpu.dot_dimension_numbers<[1], [0], [0], [1], [0, 0, 1, 1], [], []>} : vector<63x128xbf16>, vector<128x128xbf16>, vector<63x128xf32> -> vector<63x128xf32>
    %109 = arith.addf %100, %108 : vector<63x128xf32>
    %110 = vector.extract_strided_slice %38 {offsets = [491, 0], sizes = [63, 128], strides = [1, 1]} : vector<656x128xf32> to vector<63x128xf32>
    %111 = arith.truncf %110 : vector<63x128xf32> to vector<63x128xbf16>
    %cst_32 = arith.constant dense<0.000000e+00> : vector<63x128xf32>
    %112 = tpu.matmul %111, %105, %cst_32 {dimension_numbers = #tpu.dot_dimension_numbers<[1], [0], [0], [1], [0, 0, 1, 1], [], []>} : vector<63x128xbf16>, vector<128x128xbf16>, vector<63x128xf32> -> vector<63x128xf32>
    %113 = arith.addf %104, %112 : vector<63x128xf32>
    %114 = vector.extract_strided_slice %39 {offsets = [128, 0], sizes = [128, 128], strides = [1, 1]} : vector<512x128xbf16> to vector<128x128xbf16>
    %115 = vector.extract_strided_slice %38 {offsets = [244, 0], sizes = [63, 128], strides = [1, 1]} : vector<656x128xf32> to vector<63x128xf32>
    %116 = arith.truncf %115 : vector<63x128xf32> to vector<63x128xbf16>
    %cst_33 = arith.constant dense<0.000000e+00> : vector<63x128xf32>
    %117 = tpu.matmul %116, %114, %cst_33 {dimension_numbers = #tpu.dot_dimension_numbers<[1], [0], [0], [1], [0, 0, 1, 1], [], []>} : vector<63x128xbf16>, vector<128x128xbf16>, vector<63x128xf32> -> vector<63x128xf32>
    %118 = arith.addf %109, %117 : vector<63x128xf32>
    %119 = vector.extract_strided_slice %38 {offsets = [572, 0], sizes = [63, 128], strides = [1, 1]} : vector<656x128xf32> to vector<63x128xf32>
    %120 = arith.truncf %119 : vector<63x128xf32> to vector<63x128xbf16>
    %cst_34 = arith.constant dense<0.000000e+00> : vector<63x128xf32>
    %121 = tpu.matmul %120, %114, %cst_34 {dimension_numbers = #tpu.dot_dimension_numbers<[1], [0], [0], [1], [0, 0, 1, 1], [], []>} : vector<63x128xbf16>, vector<128x128xbf16>, vector<63x128xf32> -> vector<63x128xf32>
    %122 = arith.addf %113, %121 : vector<63x128xf32>
    %123 = vector.extract_strided_slice %39 {offsets = [144, 0], sizes = [128, 128], strides = [1, 1]} : vector<512x128xbf16> to vector<128x128xbf16>
    %124 = vector.extract_strided_slice %38 {offsets = [164, 0], sizes = [63, 128], strides = [1, 1]} : vector<656x128xf32> to vector<63x128xf32>
    %125 = arith.truncf %124 : vector<63x128xf32> to vector<63x128xbf16>
    %cst_35 = arith.constant dense<0.000000e+00> : vector<63x128xf32>
    %126 = tpu.matmul %125, %123, %cst_35 {dimension_numbers = #tpu.dot_dimension_numbers<[1], [0], [0], [1], [0, 0, 1, 1], [], []>} : vector<63x128xbf16>, vector<128x128xbf16>, vector<63x128xf32> -> vector<63x128xf32>
    %127 = arith.addf %118, %126 : vector<63x128xf32>
    %128 = vector.extract_strided_slice %38 {offsets = [492, 0], sizes = [63, 128], strides = [1, 1]} : vector<656x128xf32> to vector<63x128xf32>
    %129 = arith.truncf %128 : vector<63x128xf32> to vector<63x128xbf16>
    %cst_36 = arith.constant dense<0.000000e+00> : vector<63x128xf32>
    %130 = tpu.matmul %129, %123, %cst_36 {dimension_numbers = #tpu.dot_dimension_numbers<[1], [0], [0], [1], [0, 0, 1, 1], [], []>} : vector<63x128xbf16>, vector<128x128xbf16>, vector<63x128xf32> -> vector<63x128xf32>
    %131 = arith.addf %122, %130 : vector<63x128xf32>
    %132 = vector.extract_strided_slice %39 {offsets = [160, 0], sizes = [128, 128], strides = [1, 1]} : vector<512x128xbf16> to vector<128x128xbf16>
    %133 = vector.extract_strided_slice %38 {offsets = [9, 0], sizes = [63, 128], strides = [1, 1]} : vector<656x128xf32> to vector<63x128xf32>
    %134 = arith.truncf %133 : vector<63x128xf32> to vector<63x128xbf16>
    %cst_37 = arith.constant dense<0.000000e+00> : vector<63x128xf32>
    %135 = tpu.matmul %134, %132, %cst_37 {dimension_numbers = #tpu.dot_dimension_numbers<[1], [0], [0], [1], [0, 0, 1, 1], [], []>} : vector<63x128xbf16>, vector<128x128xbf16>, vector<63x128xf32> -> vector<63x128xf32>
    %136 = arith.addf %127, %135 : vector<63x128xf32>
    %137 = vector.extract_strided_slice %38 {offsets = [337, 0], sizes = [63, 128], strides = [1, 1]} : vector<656x128xf32> to vector<63x128xf32>
    %138 = arith.truncf %137 : vector<63x128xf32> to vector<63x128xbf16>
    %cst_38 = arith.constant dense<0.000000e+00> : vector<63x128xf32>
    %139 = tpu.matmul %138, %132, %cst_38 {dimension_numbers = #tpu.dot_dimension_numbers<[1], [0], [0], [1], [0, 0, 1, 1], [], []>} : vector<63x128xbf16>, vector<128x128xbf16>, vector<63x128xf32> -> vector<63x128xf32>
    %140 = arith.addf %131, %139 : vector<63x128xf32>
    %141 = vector.extract_strided_slice %39 {offsets = [176, 0], sizes = [128, 128], strides = [1, 1]} : vector<512x128xbf16> to vector<128x128xbf16>
    %142 = vector.extract_strided_slice %38 {offsets = [90, 0], sizes = [63, 128], strides = [1, 1]} : vector<656x128xf32> to vector<63x128xf32>
    %143 = arith.truncf %142 : vector<63x128xf32> to vector<63x128xbf16>
    %cst_39 = arith.constant dense<0.000000e+00> : vector<63x128xf32>
    %144 = tpu.matmul %143, %141, %cst_39 {dimension_numbers = #tpu.dot_dimension_numbers<[1], [0], [0], [1], [0, 0, 1, 1], [], []>} : vector<63x128xbf16>, vector<128x128xbf16>, vector<63x128xf32> -> vector<63x128xf32>
    %145 = arith.addf %136, %144 : vector<63x128xf32>
    %146 = vector.extract_strided_slice %38 {offsets = [418, 0], sizes = [63, 128], strides = [1, 1]} : vector<656x128xf32> to vector<63x128xf32>
    %147 = arith.truncf %146 : vector<63x128xf32> to vector<63x128xbf16>
    %cst_40 = arith.constant dense<0.000000e+00> : vector<63x128xf32>
    %148 = tpu.matmul %147, %141, %cst_40 {dimension_numbers = #tpu.dot_dimension_numbers<[1], [0], [0], [1], [0, 0, 1, 1], [], []>} : vector<63x128xbf16>, vector<128x128xbf16>, vector<63x128xf32> -> vector<63x128xf32>
    %149 = arith.addf %140, %148 : vector<63x128xf32>
    %150 = vector.extract_strided_slice %39 {offsets = [192, 0], sizes = [128, 128], strides = [1, 1]} : vector<512x128xbf16> to vector<128x128xbf16>
    %151 = vector.extract_strided_slice %38 {offsets = [10, 0], sizes = [63, 128], strides = [1, 1]} : vector<656x128xf32> to vector<63x128xf32>
    %152 = arith.truncf %151 : vector<63x128xf32> to vector<63x128xbf16>
    %cst_41 = arith.constant dense<0.000000e+00> : vector<63x128xf32>
    %153 = tpu.matmul %152, %150, %cst_41 {dimension_numbers = #tpu.dot_dimension_numbers<[1], [0], [0], [1], [0, 0, 1, 1], [], []>} : vector<63x128xbf16>, vector<128x128xbf16>, vector<63x128xf32> -> vector<63x128xf32>
    %154 = arith.addf %145, %153 : vector<63x128xf32>
    %155 = vector.extract_strided_slice %38 {offsets = [338, 0], sizes = [63, 128], strides = [1, 1]} : vector<656x128xf32> to vector<63x128xf32>
    %156 = arith.truncf %155 : vector<63x128xf32> to vector<63x128xbf16>
    %cst_42 = arith.constant dense<0.000000e+00> : vector<63x128xf32>
    %157 = tpu.matmul %156, %150, %cst_42 {dimension_numbers = #tpu.dot_dimension_numbers<[1], [0], [0], [1], [0, 0, 1, 1], [], []>} : vector<63x128xbf16>, vector<128x128xbf16>, vector<63x128xf32> -> vector<63x128xf32>
    %158 = arith.addf %149, %157 : vector<63x128xf32>
    %159 = vector.extract_strided_slice %39 {offsets = [208, 0], sizes = [128, 128], strides = [1, 1]} : vector<512x128xbf16> to vector<128x128xbf16>
    %160 = vector.extract_strided_slice %38 {offsets = [91, 0], sizes = [63, 128], strides = [1, 1]} : vector<656x128xf32> to vector<63x128xf32>
    %161 = arith.truncf %160 : vector<63x128xf32> to vector<63x128xbf16>
    %cst_43 = arith.constant dense<0.000000e+00> : vector<63x128xf32>
    %162 = tpu.matmul %161, %159, %cst_43 {dimension_numbers = #tpu.dot_dimension_numbers<[1], [0], [0], [1], [0, 0, 1, 1], [], []>} : vector<63x128xbf16>, vector<128x128xbf16>, vector<63x128xf32> -> vector<63x128xf32>
    %163 = arith.addf %154, %162 : vector<63x128xf32>
    %164 = vector.extract_strided_slice %38 {offsets = [419, 0], sizes = [63, 128], strides = [1, 1]} : vector<656x128xf32> to vector<63x128xf32>
    %165 = arith.truncf %164 : vector<63x128xf32> to vector<63x128xbf16>
    %cst_44 = arith.constant dense<0.000000e+00> : vector<63x128xf32>
    %166 = tpu.matmul %165, %159, %cst_44 {dimension_numbers = #tpu.dot_dimension_numbers<[1], [0], [0], [1], [0, 0, 1, 1], [], []>} : vector<63x128xbf16>, vector<128x128xbf16>, vector<63x128xf32> -> vector<63x128xf32>
    %167 = arith.addf %158, %166 : vector<63x128xf32>
    %168 = vector.extract_strided_slice %39 {offsets = [224, 0], sizes = [128, 128], strides = [1, 1]} : vector<512x128xbf16> to vector<128x128xbf16>
    %169 = vector.extract_strided_slice %38 {offsets = [11, 0], sizes = [63, 128], strides = [1, 1]} : vector<656x128xf32> to vector<63x128xf32>
    %170 = arith.truncf %169 : vector<63x128xf32> to vector<63x128xbf16>
    %cst_45 = arith.constant dense<0.000000e+00> : vector<63x128xf32>
    %171 = tpu.matmul %170, %168, %cst_45 {dimension_numbers = #tpu.dot_dimension_numbers<[1], [0], [0], [1], [0, 0, 1, 1], [], []>} : vector<63x128xbf16>, vector<128x128xbf16>, vector<63x128xf32> -> vector<63x128xf32>
    %172 = arith.addf %163, %171 : vector<63x128xf32>
    %173 = vector.extract_strided_slice %38 {offsets = [339, 0], sizes = [63, 128], strides = [1, 1]} : vector<656x128xf32> to vector<63x128xf32>
    %174 = arith.truncf %173 : vector<63x128xf32> to vector<63x128xbf16>
    %cst_46 = arith.constant dense<0.000000e+00> : vector<63x128xf32>
    %175 = tpu.matmul %174, %168, %cst_46 {dimension_numbers = #tpu.dot_dimension_numbers<[1], [0], [0], [1], [0, 0, 1, 1], [], []>} : vector<63x128xbf16>, vector<128x128xbf16>, vector<63x128xf32> -> vector<63x128xf32>
    %176 = arith.addf %167, %175 : vector<63x128xf32>
    %177 = vector.extract_strided_slice %39 {offsets = [240, 0], sizes = [128, 128], strides = [1, 1]} : vector<512x128xbf16> to vector<128x128xbf16>
    %178 = vector.extract_strided_slice %38 {offsets = [171, 0], sizes = [63, 128], strides = [1, 1]} : vector<656x128xf32> to vector<63x128xf32>
    %179 = arith.truncf %178 : vector<63x128xf32> to vector<63x128xbf16>
    %cst_47 = arith.constant dense<0.000000e+00> : vector<63x128xf32>
    %180 = tpu.matmul %179, %177, %cst_47 {dimension_numbers = #tpu.dot_dimension_numbers<[1], [0], [0], [1], [0, 0, 1, 1], [], []>} : vector<63x128xbf16>, vector<128x128xbf16>, vector<63x128xf32> -> vector<63x128xf32>
    %181 = arith.addf %172, %180 : vector<63x128xf32>
    %182 = vector.extract_strided_slice %38 {offsets = [499, 0], sizes = [63, 128], strides = [1, 1]} : vector<656x128xf32> to vector<63x128xf32>
    %183 = arith.truncf %182 : vector<63x128xf32> to vector<63x128xbf16>
    %cst_48 = arith.constant dense<0.000000e+00> : vector<63x128xf32>
    %184 = tpu.matmul %183, %177, %cst_48 {dimension_numbers = #tpu.dot_dimension_numbers<[1], [0], [0], [1], [0, 0, 1, 1], [], []>} : vector<63x128xbf16>, vector<128x128xbf16>, vector<63x128xf32> -> vector<63x128xf32>
    %185 = arith.addf %176, %184 : vector<63x128xf32>
    %186 = vector.extract_strided_slice %39 {offsets = [256, 0], sizes = [128, 128], strides = [1, 1]} : vector<512x128xbf16> to vector<128x128xbf16>
    %187 = vector.extract_strided_slice %38 {offsets = [252, 0], sizes = [63, 128], strides = [1, 1]} : vector<656x128xf32> to vector<63x128xf32>
    %188 = arith.truncf %187 : vector<63x128xf32> to vector<63x128xbf16>
    %cst_49 = arith.constant dense<0.000000e+00> : vector<63x128xf32>
    %189 = tpu.matmul %188, %186, %cst_49 {dimension_numbers = #tpu.dot_dimension_numbers<[1], [0], [0], [1], [0, 0, 1, 1], [], []>} : vector<63x128xbf16>, vector<128x128xbf16>, vector<63x128xf32> -> vector<63x128xf32>
    %190 = arith.addf %181, %189 : vector<63x128xf32>
    %191 = vector.extract_strided_slice %38 {offsets = [580, 0], sizes = [63, 128], strides = [1, 1]} : vector<656x128xf32> to vector<63x128xf32>
    %192 = arith.truncf %191 : vector<63x128xf32> to vector<63x128xbf16>
    %cst_50 = arith.constant dense<0.000000e+00> : vector<63x128xf32>
    %193 = tpu.matmul %192, %186, %cst_50 {dimension_numbers = #tpu.dot_dimension_numbers<[1], [0], [0], [1], [0, 0, 1, 1], [], []>} : vector<63x128xbf16>, vector<128x128xbf16>, vector<63x128xf32> -> vector<63x128xf32>
    %194 = arith.addf %185, %193 : vector<63x128xf32>
    %195 = vector.extract_strided_slice %39 {offsets = [272, 0], sizes = [128, 128], strides = [1, 1]} : vector<512x128xbf16> to vector<128x128xbf16>
    %196 = vector.extract_strided_slice %38 {offsets = [172, 0], sizes = [63, 128], strides = [1, 1]} : vector<656x128xf32> to vector<63x128xf32>
    %197 = arith.truncf %196 : vector<63x128xf32> to vector<63x128xbf16>
    %cst_51 = arith.constant dense<0.000000e+00> : vector<63x128xf32>
    %198 = tpu.matmul %197, %195, %cst_51 {dimension_numbers = #tpu.dot_dimension_numbers<[1], [0], [0], [1], [0, 0, 1, 1], [], []>} : vector<63x128xbf16>, vector<128x128xbf16>, vector<63x128xf32> -> vector<63x128xf32>
    %199 = arith.addf %190, %198 : vector<63x128xf32>
    %200 = vector.extract_strided_slice %38 {offsets = [500, 0], sizes = [63, 128], strides = [1, 1]} : vector<656x128xf32> to vector<63x128xf32>
    %201 = arith.truncf %200 : vector<63x128xf32> to vector<63x128xbf16>
    %cst_52 = arith.constant dense<0.000000e+00> : vector<63x128xf32>
    %202 = tpu.matmul %201, %195, %cst_52 {dimension_numbers = #tpu.dot_dimension_numbers<[1], [0], [0], [1], [0, 0, 1, 1], [], []>} : vector<63x128xbf16>, vector<128x128xbf16>, vector<63x128xf32> -> vector<63x128xf32>
    %203 = arith.addf %194, %202 : vector<63x128xf32>
    %204 = vector.extract_strided_slice %39 {offsets = [288, 0], sizes = [128, 128], strides = [1, 1]} : vector<512x128xbf16> to vector<128x128xbf16>
    %205 = vector.extract_strided_slice %38 {offsets = [253, 0], sizes = [63, 128], strides = [1, 1]} : vector<656x128xf32> to vector<63x128xf32>
    %206 = arith.truncf %205 : vector<63x128xf32> to vector<63x128xbf16>
    %cst_53 = arith.constant dense<0.000000e+00> : vector<63x128xf32>
    %207 = tpu.matmul %206, %204, %cst_53 {dimension_numbers = #tpu.dot_dimension_numbers<[1], [0], [0], [1], [0, 0, 1, 1], [], []>} : vector<63x128xbf16>, vector<128x128xbf16>, vector<63x128xf32> -> vector<63x128xf32>
    %208 = arith.addf %199, %207 : vector<63x128xf32>
    %209 = vector.extract_strided_slice %38 {offsets = [581, 0], sizes = [63, 128], strides = [1, 1]} : vector<656x128xf32> to vector<63x128xf32>
    %210 = arith.truncf %209 : vector<63x128xf32> to vector<63x128xbf16>
    %cst_54 = arith.constant dense<0.000000e+00> : vector<63x128xf32>
    %211 = tpu.matmul %210, %204, %cst_54 {dimension_numbers = #tpu.dot_dimension_numbers<[1], [0], [0], [1], [0, 0, 1, 1], [], []>} : vector<63x128xbf16>, vector<128x128xbf16>, vector<63x128xf32> -> vector<63x128xf32>
    %212 = arith.addf %203, %211 : vector<63x128xf32>
    %213 = vector.extract_strided_slice %39 {offsets = [304, 0], sizes = [128, 128], strides = [1, 1]} : vector<512x128xbf16> to vector<128x128xbf16>
    %214 = vector.extract_strided_slice %38 {offsets = [173, 0], sizes = [63, 128], strides = [1, 1]} : vector<656x128xf32> to vector<63x128xf32>
    %215 = arith.truncf %214 : vector<63x128xf32> to vector<63x128xbf16>
    %cst_55 = arith.constant dense<0.000000e+00> : vector<63x128xf32>
    %216 = tpu.matmul %215, %213, %cst_55 {dimension_numbers = #tpu.dot_dimension_numbers<[1], [0], [0], [1], [0, 0, 1, 1], [], []>} : vector<63x128xbf16>, vector<128x128xbf16>, vector<63x128xf32> -> vector<63x128xf32>
    %217 = arith.addf %208, %216 : vector<63x128xf32>
    %218 = vector.extract_strided_slice %38 {offsets = [501, 0], sizes = [63, 128], strides = [1, 1]} : vector<656x128xf32> to vector<63x128xf32>
    %219 = arith.truncf %218 : vector<63x128xf32> to vector<63x128xbf16>
    %cst_56 = arith.constant dense<0.000000e+00> : vector<63x128xf32>
    %220 = tpu.matmul %219, %213, %cst_56 {dimension_numbers = #tpu.dot_dimension_numbers<[1], [0], [0], [1], [0, 0, 1, 1], [], []>} : vector<63x128xbf16>, vector<128x128xbf16>, vector<63x128xf32> -> vector<63x128xf32>
    %221 = arith.addf %212, %220 : vector<63x128xf32>
    %222 = vector.extract_strided_slice %39 {offsets = [320, 0], sizes = [128, 128], strides = [1, 1]} : vector<512x128xbf16> to vector<128x128xbf16>
    %223 = vector.extract_strided_slice %38 {offsets = [18, 0], sizes = [63, 128], strides = [1, 1]} : vector<656x128xf32> to vector<63x128xf32>
    %224 = arith.truncf %223 : vector<63x128xf32> to vector<63x128xbf16>
    %cst_57 = arith.constant dense<0.000000e+00> : vector<63x128xf32>
    %225 = tpu.matmul %224, %222, %cst_57 {dimension_numbers = #tpu.dot_dimension_numbers<[1], [0], [0], [1], [0, 0, 1, 1], [], []>} : vector<63x128xbf16>, vector<128x128xbf16>, vector<63x128xf32> -> vector<63x128xf32>
    %226 = arith.addf %217, %225 : vector<63x128xf32>
    %227 = vector.extract_strided_slice %38 {offsets = [346, 0], sizes = [63, 128], strides = [1, 1]} : vector<656x128xf32> to vector<63x128xf32>
    %228 = arith.truncf %227 : vector<63x128xf32> to vector<63x128xbf16>
    %cst_58 = arith.constant dense<0.000000e+00> : vector<63x128xf32>
    %229 = tpu.matmul %228, %222, %cst_58 {dimension_numbers = #tpu.dot_dimension_numbers<[1], [0], [0], [1], [0, 0, 1, 1], [], []>} : vector<63x128xbf16>, vector<128x128xbf16>, vector<63x128xf32> -> vector<63x128xf32>
    %230 = arith.addf %221, %229 : vector<63x128xf32>
    %231 = vector.extract_strided_slice %39 {offsets = [336, 0], sizes = [128, 128], strides = [1, 1]} : vector<512x128xbf16> to vector<128x128xbf16>
    %232 = vector.extract_strided_slice %38 {offsets = [99, 0], sizes = [63, 128], strides = [1, 1]} : vector<656x128xf32> to vector<63x128xf32>
    %233 = arith.truncf %232 : vector<63x128xf32> to vector<63x128xbf16>
    %cst_59 = arith.constant dense<0.000000e+00> : vector<63x128xf32>
    %234 = tpu.matmul %233, %231, %cst_59 {dimension_numbers = #tpu.dot_dimension_numbers<[1], [0], [0], [1], [0, 0, 1, 1], [], []>} : vector<63x128xbf16>, vector<128x128xbf16>, vector<63x128xf32> -> vector<63x128xf32>
    %235 = arith.addf %226, %234 : vector<63x128xf32>
    %236 = vector.extract_strided_slice %38 {offsets = [427, 0], sizes = [63, 128], strides = [1, 1]} : vector<656x128xf32> to vector<63x128xf32>
    %237 = arith.truncf %236 : vector<63x128xf32> to vector<63x128xbf16>
    %cst_60 = arith.constant dense<0.000000e+00> : vector<63x128xf32>
    %238 = tpu.matmul %237, %231, %cst_60 {dimension_numbers = #tpu.dot_dimension_numbers<[1], [0], [0], [1], [0, 0, 1, 1], [], []>} : vector<63x128xbf16>, vector<128x128xbf16>, vector<63x128xf32> -> vector<63x128xf32>
    %239 = arith.addf %230, %238 : vector<63x128xf32>
    %240 = vector.extract_strided_slice %39 {offsets = [352, 0], sizes = [128, 128], strides = [1, 1]} : vector<512x128xbf16> to vector<128x128xbf16>
    %241 = vector.extract_strided_slice %38 {offsets = [19, 0], sizes = [63, 128], strides = [1, 1]} : vector<656x128xf32> to vector<63x128xf32>
    %242 = arith.truncf %241 : vector<63x128xf32> to vector<63x128xbf16>
    %cst_61 = arith.constant dense<0.000000e+00> : vector<63x128xf32>
    %243 = tpu.matmul %242, %240, %cst_61 {dimension_numbers = #tpu.dot_dimension_numbers<[1], [0], [0], [1], [0, 0, 1, 1], [], []>} : vector<63x128xbf16>, vector<128x128xbf16>, vector<63x128xf32> -> vector<63x128xf32>
    %244 = arith.addf %235, %243 : vector<63x128xf32>
    %245 = vector.extract_strided_slice %38 {offsets = [347, 0], sizes = [63, 128], strides = [1, 1]} : vector<656x128xf32> to vector<63x128xf32>
    %246 = arith.truncf %245 : vector<63x128xf32> to vector<63x128xbf16>
    %cst_62 = arith.constant dense<0.000000e+00> : vector<63x128xf32>
    %247 = tpu.matmul %246, %240, %cst_62 {dimension_numbers = #tpu.dot_dimension_numbers<[1], [0], [0], [1], [0, 0, 1, 1], [], []>} : vector<63x128xbf16>, vector<128x128xbf16>, vector<63x128xf32> -> vector<63x128xf32>
    %248 = arith.addf %239, %247 : vector<63x128xf32>
    %249 = vector.extract_strided_slice %39 {offsets = [368, 0], sizes = [128, 128], strides = [1, 1]} : vector<512x128xbf16> to vector<128x128xbf16>
    %250 = vector.extract_strided_slice %38 {offsets = [100, 0], sizes = [63, 128], strides = [1, 1]} : vector<656x128xf32> to vector<63x128xf32>
    %251 = arith.truncf %250 : vector<63x128xf32> to vector<63x128xbf16>
    %cst_63 = arith.constant dense<0.000000e+00> : vector<63x128xf32>
    %252 = tpu.matmul %251, %249, %cst_63 {dimension_numbers = #tpu.dot_dimension_numbers<[1], [0], [0], [1], [0, 0, 1, 1], [], []>} : vector<63x128xbf16>, vector<128x128xbf16>, vector<63x128xf32> -> vector<63x128xf32>
    %253 = arith.addf %244, %252 : vector<63x128xf32>
    %254 = vector.extract_strided_slice %38 {offsets = [428, 0], sizes = [63, 128], strides = [1, 1]} : vector<656x128xf32> to vector<63x128xf32>
    %255 = arith.truncf %254 : vector<63x128xf32> to vector<63x128xbf16>
    %cst_64 = arith.constant dense<0.000000e+00> : vector<63x128xf32>
    %256 = tpu.matmul %255, %249, %cst_64 {dimension_numbers = #tpu.dot_dimension_numbers<[1], [0], [0], [1], [0, 0, 1, 1], [], []>} : vector<63x128xbf16>, vector<128x128xbf16>, vector<63x128xf32> -> vector<63x128xf32>
    %257 = arith.addf %248, %256 : vector<63x128xf32>
    %258 = vector.extract_strided_slice %39 {offsets = [384, 0], sizes = [128, 128], strides = [1, 1]} : vector<512x128xbf16> to vector<128x128xbf16>
    %259 = vector.extract_strided_slice %38 {offsets = [20, 0], sizes = [63, 128], strides = [1, 1]} : vector<656x128xf32> to vector<63x128xf32>
    %260 = arith.truncf %259 : vector<63x128xf32> to vector<63x128xbf16>
    %cst_65 = arith.constant dense<0.000000e+00> : vector<63x128xf32>
    %261 = tpu.matmul %260, %258, %cst_65 {dimension_numbers = #tpu.dot_dimension_numbers<[1], [0], [0], [1], [0, 0, 1, 1], [], []>} : vector<63x128xbf16>, vector<128x128xbf16>, vector<63x128xf32> -> vector<63x128xf32>
    %262 = arith.addf %253, %261 : vector<63x128xf32>
    %263 = vector.extract_strided_slice %38 {offsets = [348, 0], sizes = [63, 128], strides = [1, 1]} : vector<656x128xf32> to vector<63x128xf32>
    %264 = arith.truncf %263 : vector<63x128xf32> to vector<63x128xbf16>
    %cst_66 = arith.constant dense<0.000000e+00> : vector<63x128xf32>
    %265 = tpu.matmul %264, %258, %cst_66 {dimension_numbers = #tpu.dot_dimension_numbers<[1], [0], [0], [1], [0, 0, 1, 1], [], []>} : vector<63x128xbf16>, vector<128x128xbf16>, vector<63x128xf32> -> vector<63x128xf32>
    %266 = arith.addf %257, %265 : vector<63x128xf32>
    %267 = tpu.concatenate %262, %266 in 0 : vector<63x128xf32>, vector<63x128xf32> -> vector<126x128xf32>
    %c0_67 = arith.constant 0 : index
    %c0_68 = arith.constant 0 : index
    %268 = vector.load %arg9[%c0_67, %c0_68] : memref<126x1xf32, #tpu.memory_space<vmem>>, vector<126x1xf32>
    %269 = vector.broadcast %268 : vector<126x1xf32> to vector<126x128xf32>
    %270 = arith.mulf %267, %269 : vector<126x128xf32>
    %cst_69 = arith.constant dense<0.000000e+00> : vector<128xf32>
    %271 = vector.multi_reduction <add>, %270, %cst_69 [0] : vector<126x128xf32> to vector<128xf32>
    %272 = vector.shape_cast %271 : vector<128xf32> to vector<1x128xf32>
    %cst_70 = arith.constant 0.0102040814 : f32
    %273 = vector.broadcast %cst_70 : f32 to vector<1x128xf32>
    %274 = arith.mulf %272, %273 : vector<1x128xf32>
    %275 = vector.broadcast %274 : vector<1x128xf32> to vector<126x128xf32>
    %276 = arith.subf %267, %275 : vector<126x128xf32>
    %277 = arith.mulf %276, %276 : vector<126x128xf32>
    %278 = vector.broadcast %268 : vector<126x1xf32> to vector<126x128xf32>
    %279 = arith.mulf %277, %278 : vector<126x128xf32>
    %cst_71 = arith.constant dense<0.000000e+00> : vector<128xf32>
    %280 = vector.multi_reduction <add>, %279, %cst_71 [0] : vector<126x128xf32> to vector<128xf32>
    %281 = vector.shape_cast %280 : vector<128xf32> to vector<1x128xf32>
    %cst_72 = arith.constant 0.0102040814 : f32
    %282 = vector.broadcast %cst_72 : f32 to vector<1x128xf32>
    %283 = arith.mulf %281, %282 : vector<1x128xf32>
    %cst_73 = arith.constant 9.99999974E-6 : f32
    %284 = vector.broadcast %cst_73 : f32 to vector<1x128xf32>
    %285 = arith.addf %283, %284 : vector<1x128xf32>
    %286 = math.rsqrt %285 : vector<1x128xf32>
    %287 = vector.broadcast %286 : vector<1x128xf32> to vector<126x128xf32>
    %288 = arith.mulf %276, %287 : vector<126x128xf32>
    %289 = vector.broadcast %3 : vector<1x128xf32> to vector<126x128xf32>
    %290 = arith.mulf %288, %289 : vector<126x128xf32>
    %291 = vector.broadcast %4 : vector<1x128xf32> to vector<126x128xf32>
    %292 = arith.addf %290, %291 : vector<126x128xf32>
    %cst_74 = arith.constant 0.000000e+00 : f32
    %293 = vector.broadcast %cst_74 : f32 to vector<126x128xf32>
    %294 = arith.maximumf %292, %293 : vector<126x128xf32>
    %cst_75 = arith.constant 0.000000e+00 : f32
    %295 = vector.broadcast %cst_75 : f32 to vector<2x128xf32>
    %296 = tpu.concatenate %294, %295 in 0 : vector<126x128xf32>, vector<2x128xf32> -> vector<128x128xf32>
    %297 = tpu.iota {dimensions = array<i32: 1>} : vector<144x128xi32>
    %c0_76 = arith.constant 0 : index
    %c0_77 = arith.constant 0 : index
    %298 = vector.load %arg11[%c0_76, %c0_77] : memref<144x1xi32, #tpu.memory_space<vmem>>, vector<144x1xi32>
    %299 = vector.broadcast %298 : vector<144x1xi32> to vector<144x128xi32>
    %300 = arith.cmpi eq, %297, %299 : vector<144x128xi32>
    %cst_78 = arith.constant 1.000000e+00 : f32
    %cst_79 = arith.constant 0.000000e+00 : f32
    %301 = vector.broadcast %cst_78 : f32 to vector<144x128xf32>
    %302 = vector.broadcast %cst_79 : f32 to vector<144x128xf32>
    %303 = arith.select %300, %301, %302 : vector<144x128xi1>, vector<144x128xf32>
    %304 = arith.truncf %303 : vector<144x128xf32> to vector<144x128xbf16>
    %305 = arith.truncf %296 : vector<128x128xf32> to vector<128x128xbf16>
    %cst_80 = arith.constant dense<0.000000e+00> : vector<144x128xf32>
    %306 = tpu.matmul %304, %305, %cst_80 {dimension_numbers = #tpu.dot_dimension_numbers<[1], [0], [0], [1], [0, 0, 1, 1], [], []>} : vector<144x128xbf16>, vector<128x128xbf16>, vector<144x128xf32> -> vector<144x128xf32>
    %c0_81 = arith.constant 0 : index
    %c0_82 = arith.constant 0 : index
    %307 = vector.load %arg4[%c0_81, %c0_82] : memref<896x128xbf16, #tpu.memory_space<vmem>>, vector<896x128xbf16>
    %cst_83 = arith.constant 0.000000e+00 : f32
    %308 = vector.broadcast %cst_83 : f32 to vector<8x128xf32>
    %cst_84 = arith.constant 0.000000e+00 : f32
    %309 = vector.broadcast %cst_84 : f32 to vector<8x128xf32>
    %310 = vector.extract_strided_slice %307 {offsets = [0, 0], sizes = [128, 128], strides = [1, 1]} : vector<896x128xbf16> to vector<128x128xbf16>
    %311 = vector.extract_strided_slice %306 {offsets = [0, 0], sizes = [8, 128], strides = [1, 1]} : vector<144x128xf32> to vector<8x128xf32>
    %312 = arith.truncf %311 : vector<8x128xf32> to vector<8x128xbf16>
    %cst_85 = arith.constant dense<0.000000e+00> : vector<8x128xf32>
    %313 = tpu.matmul %312, %310, %cst_85 {dimension_numbers = #tpu.dot_dimension_numbers<[1], [0], [0], [1], [0, 0, 1, 1], [], []>} : vector<8x128xbf16>, vector<128x128xbf16>, vector<8x128xf32> -> vector<8x128xf32>
    %314 = arith.addf %308, %313 : vector<8x128xf32>
    %315 = vector.extract_strided_slice %306 {offsets = [72, 0], sizes = [8, 128], strides = [1, 1]} : vector<144x128xf32> to vector<8x128xf32>
    %316 = arith.truncf %315 : vector<8x128xf32> to vector<8x128xbf16>
    %cst_86 = arith.constant dense<0.000000e+00> : vector<8x128xf32>
    %317 = tpu.matmul %316, %310, %cst_86 {dimension_numbers = #tpu.dot_dimension_numbers<[1], [0], [0], [1], [0, 0, 1, 1], [], []>} : vector<8x128xbf16>, vector<128x128xbf16>, vector<8x128xf32> -> vector<8x128xf32>
    %318 = arith.addf %309, %317 : vector<8x128xf32>
    %319 = vector.extract_strided_slice %307 {offsets = [32, 0], sizes = [128, 128], strides = [1, 1]} : vector<896x128xbf16> to vector<128x128xbf16>
    %320 = vector.extract_strided_slice %306 {offsets = [16, 0], sizes = [8, 128], strides = [1, 1]} : vector<144x128xf32> to vector<8x128xf32>
    %321 = arith.truncf %320 : vector<8x128xf32> to vector<8x128xbf16>
    %cst_87 = arith.constant dense<0.000000e+00> : vector<8x128xf32>
    %322 = tpu.matmul %321, %319, %cst_87 {dimension_numbers = #tpu.dot_dimension_numbers<[1], [0], [0], [1], [0, 0, 1, 1], [], []>} : vector<8x128xbf16>, vector<128x128xbf16>, vector<8x128xf32> -> vector<8x128xf32>
    %323 = arith.addf %314, %322 : vector<8x128xf32>
    %324 = vector.extract_strided_slice %306 {offsets = [88, 0], sizes = [8, 128], strides = [1, 1]} : vector<144x128xf32> to vector<8x128xf32>
    %325 = arith.truncf %324 : vector<8x128xf32> to vector<8x128xbf16>
    %cst_88 = arith.constant dense<0.000000e+00> : vector<8x128xf32>
    %326 = tpu.matmul %325, %319, %cst_88 {dimension_numbers = #tpu.dot_dimension_numbers<[1], [0], [0], [1], [0, 0, 1, 1], [], []>} : vector<8x128xbf16>, vector<128x128xbf16>, vector<8x128xf32> -> vector<8x128xf32>
    %327 = arith.addf %318, %326 : vector<8x128xf32>
    %328 = vector.extract_strided_slice %307 {offsets = [64, 0], sizes = [128, 128], strides = [1, 1]} : vector<896x128xbf16> to vector<128x128xbf16>
    %329 = vector.extract_strided_slice %306 {offsets = [1, 0], sizes = [8, 128], strides = [1, 1]} : vector<144x128xf32> to vector<8x128xf32>
    %330 = arith.truncf %329 : vector<8x128xf32> to vector<8x128xbf16>
    %cst_89 = arith.constant dense<0.000000e+00> : vector<8x128xf32>
    %331 = tpu.matmul %330, %328, %cst_89 {dimension_numbers = #tpu.dot_dimension_numbers<[1], [0], [0], [1], [0, 0, 1, 1], [], []>} : vector<8x128xbf16>, vector<128x128xbf16>, vector<8x128xf32> -> vector<8x128xf32>
    %332 = arith.addf %323, %331 : vector<8x128xf32>
    %333 = vector.extract_strided_slice %306 {offsets = [73, 0], sizes = [8, 128], strides = [1, 1]} : vector<144x128xf32> to vector<8x128xf32>
    %334 = arith.truncf %333 : vector<8x128xf32> to vector<8x128xbf16>
    %cst_90 = arith.constant dense<0.000000e+00> : vector<8x128xf32>
    %335 = tpu.matmul %334, %328, %cst_90 {dimension_numbers = #tpu.dot_dimension_numbers<[1], [0], [0], [1], [0, 0, 1, 1], [], []>} : vector<8x128xbf16>, vector<128x128xbf16>, vector<8x128xf32> -> vector<8x128xf32>
    %336 = arith.addf %327, %335 : vector<8x128xf32>
    %337 = vector.extract_strided_slice %307 {offsets = [96, 0], sizes = [128, 128], strides = [1, 1]} : vector<896x128xbf16> to vector<128x128xbf16>
    %338 = vector.extract_strided_slice %306 {offsets = [17, 0], sizes = [8, 128], strides = [1, 1]} : vector<144x128xf32> to vector<8x128xf32>
    %339 = arith.truncf %338 : vector<8x128xf32> to vector<8x128xbf16>
    %cst_91 = arith.constant dense<0.000000e+00> : vector<8x128xf32>
    %340 = tpu.matmul %339, %337, %cst_91 {dimension_numbers = #tpu.dot_dimension_numbers<[1], [0], [0], [1], [0, 0, 1, 1], [], []>} : vector<8x128xbf16>, vector<128x128xbf16>, vector<8x128xf32> -> vector<8x128xf32>
    %341 = arith.addf %332, %340 : vector<8x128xf32>
    %342 = vector.extract_strided_slice %306 {offsets = [89, 0], sizes = [8, 128], strides = [1, 1]} : vector<144x128xf32> to vector<8x128xf32>
    %343 = arith.truncf %342 : vector<8x128xf32> to vector<8x128xbf16>
    %cst_92 = arith.constant dense<0.000000e+00> : vector<8x128xf32>
    %344 = tpu.matmul %343, %337, %cst_92 {dimension_numbers = #tpu.dot_dimension_numbers<[1], [0], [0], [1], [0, 0, 1, 1], [], []>} : vector<8x128xbf16>, vector<128x128xbf16>, vector<8x128xf32> -> vector<8x128xf32>
    %345 = arith.addf %336, %344 : vector<8x128xf32>
    %346 = vector.extract_strided_slice %307 {offsets = [128, 0], sizes = [128, 128], strides = [1, 1]} : vector<896x128xbf16> to vector<128x128xbf16>
    %347 = vector.extract_strided_slice %306 {offsets = [2, 0], sizes = [8, 128], strides = [1, 1]} : vector<144x128xf32> to vector<8x128xf32>
    %348 = arith.truncf %347 : vector<8x128xf32> to vector<8x128xbf16>
    %cst_93 = arith.constant dense<0.000000e+00> : vector<8x128xf32>
    %349 = tpu.matmul %348, %346, %cst_93 {dimension_numbers = #tpu.dot_dimension_numbers<[1], [0], [0], [1], [0, 0, 1, 1], [], []>} : vector<8x128xbf16>, vector<128x128xbf16>, vector<8x128xf32> -> vector<8x128xf32>
    %350 = arith.addf %341, %349 : vector<8x128xf32>
    %351 = vector.extract_strided_slice %306 {offsets = [74, 0], sizes = [8, 128], strides = [1, 1]} : vector<144x128xf32> to vector<8x128xf32>
    %352 = arith.truncf %351 : vector<8x128xf32> to vector<8x128xbf16>
    %cst_94 = arith.constant dense<0.000000e+00> : vector<8x128xf32>
    %353 = tpu.matmul %352, %346, %cst_94 {dimension_numbers = #tpu.dot_dimension_numbers<[1], [0], [0], [1], [0, 0, 1, 1], [], []>} : vector<8x128xbf16>, vector<128x128xbf16>, vector<8x128xf32> -> vector<8x128xf32>
    %354 = arith.addf %345, %353 : vector<8x128xf32>
    %355 = vector.extract_strided_slice %307 {offsets = [160, 0], sizes = [128, 128], strides = [1, 1]} : vector<896x128xbf16> to vector<128x128xbf16>
    %356 = vector.extract_strided_slice %306 {offsets = [32, 0], sizes = [8, 128], strides = [1, 1]} : vector<144x128xf32> to vector<8x128xf32>
    %357 = arith.truncf %356 : vector<8x128xf32> to vector<8x128xbf16>
    %cst_95 = arith.constant dense<0.000000e+00> : vector<8x128xf32>
    %358 = tpu.matmul %357, %355, %cst_95 {dimension_numbers = #tpu.dot_dimension_numbers<[1], [0], [0], [1], [0, 0, 1, 1], [], []>} : vector<8x128xbf16>, vector<128x128xbf16>, vector<8x128xf32> -> vector<8x128xf32>
    %359 = arith.addf %350, %358 : vector<8x128xf32>
    %360 = vector.extract_strided_slice %306 {offsets = [104, 0], sizes = [8, 128], strides = [1, 1]} : vector<144x128xf32> to vector<8x128xf32>
    %361 = arith.truncf %360 : vector<8x128xf32> to vector<8x128xbf16>
    %cst_96 = arith.constant dense<0.000000e+00> : vector<8x128xf32>
    %362 = tpu.matmul %361, %355, %cst_96 {dimension_numbers = #tpu.dot_dimension_numbers<[1], [0], [0], [1], [0, 0, 1, 1], [], []>} : vector<8x128xbf16>, vector<128x128xbf16>, vector<8x128xf32> -> vector<8x128xf32>
    %363 = arith.addf %354, %362 : vector<8x128xf32>
    %364 = vector.extract_strided_slice %307 {offsets = [192, 0], sizes = [128, 128], strides = [1, 1]} : vector<896x128xbf16> to vector<128x128xbf16>
    %365 = vector.extract_strided_slice %306 {offsets = [48, 0], sizes = [8, 128], strides = [1, 1]} : vector<144x128xf32> to vector<8x128xf32>
    %366 = arith.truncf %365 : vector<8x128xf32> to vector<8x128xbf16>
    %cst_97 = arith.constant dense<0.000000e+00> : vector<8x128xf32>
    %367 = tpu.matmul %366, %364, %cst_97 {dimension_numbers = #tpu.dot_dimension_numbers<[1], [0], [0], [1], [0, 0, 1, 1], [], []>} : vector<8x128xbf16>, vector<128x128xbf16>, vector<8x128xf32> -> vector<8x128xf32>
    %368 = arith.addf %359, %367 : vector<8x128xf32>
    %369 = vector.extract_strided_slice %306 {offsets = [120, 0], sizes = [8, 128], strides = [1, 1]} : vector<144x128xf32> to vector<8x128xf32>
    %370 = arith.truncf %369 : vector<8x128xf32> to vector<8x128xbf16>
    %cst_98 = arith.constant dense<0.000000e+00> : vector<8x128xf32>
    %371 = tpu.matmul %370, %364, %cst_98 {dimension_numbers = #tpu.dot_dimension_numbers<[1], [0], [0], [1], [0, 0, 1, 1], [], []>} : vector<8x128xbf16>, vector<128x128xbf16>, vector<8x128xf32> -> vector<8x128xf32>
    %372 = arith.addf %363, %371 : vector<8x128xf32>
    %373 = vector.extract_strided_slice %307 {offsets = [224, 0], sizes = [128, 128], strides = [1, 1]} : vector<896x128xbf16> to vector<128x128xbf16>
    %374 = vector.extract_strided_slice %306 {offsets = [33, 0], sizes = [8, 128], strides = [1, 1]} : vector<144x128xf32> to vector<8x128xf32>
    %375 = arith.truncf %374 : vector<8x128xf32> to vector<8x128xbf16>
    %cst_99 = arith.constant dense<0.000000e+00> : vector<8x128xf32>
    %376 = tpu.matmul %375, %373, %cst_99 {dimension_numbers = #tpu.dot_dimension_numbers<[1], [0], [0], [1], [0, 0, 1, 1], [], []>} : vector<8x128xbf16>, vector<128x128xbf16>, vector<8x128xf32> -> vector<8x128xf32>
    %377 = arith.addf %368, %376 : vector<8x128xf32>
    %378 = vector.extract_strided_slice %306 {offsets = [105, 0], sizes = [8, 128], strides = [1, 1]} : vector<144x128xf32> to vector<8x128xf32>
    %379 = arith.truncf %378 : vector<8x128xf32> to vector<8x128xbf16>
    %cst_100 = arith.constant dense<0.000000e+00> : vector<8x128xf32>
    %380 = tpu.matmul %379, %373, %cst_100 {dimension_numbers = #tpu.dot_dimension_numbers<[1], [0], [0], [1], [0, 0, 1, 1], [], []>} : vector<8x128xbf16>, vector<128x128xbf16>, vector<8x128xf32> -> vector<8x128xf32>
    %381 = arith.addf %372, %380 : vector<8x128xf32>
    %382 = vector.extract_strided_slice %307 {offsets = [256, 0], sizes = [128, 128], strides = [1, 1]} : vector<896x128xbf16> to vector<128x128xbf16>
    %383 = vector.extract_strided_slice %306 {offsets = [49, 0], sizes = [8, 128], strides = [1, 1]} : vector<144x128xf32> to vector<8x128xf32>
    %384 = arith.truncf %383 : vector<8x128xf32> to vector<8x128xbf16>
    %cst_101 = arith.constant dense<0.000000e+00> : vector<8x128xf32>
    %385 = tpu.matmul %384, %382, %cst_101 {dimension_numbers = #tpu.dot_dimension_numbers<[1], [0], [0], [1], [0, 0, 1, 1], [], []>} : vector<8x128xbf16>, vector<128x128xbf16>, vector<8x128xf32> -> vector<8x128xf32>
    %386 = arith.addf %377, %385 : vector<8x128xf32>
    %387 = vector.extract_strided_slice %306 {offsets = [121, 0], sizes = [8, 128], strides = [1, 1]} : vector<144x128xf32> to vector<8x128xf32>
    %388 = arith.truncf %387 : vector<8x128xf32> to vector<8x128xbf16>
    %cst_102 = arith.constant dense<0.000000e+00> : vector<8x128xf32>
    %389 = tpu.matmul %388, %382, %cst_102 {dimension_numbers = #tpu.dot_dimension_numbers<[1], [0], [0], [1], [0, 0, 1, 1], [], []>} : vector<8x128xbf16>, vector<128x128xbf16>, vector<8x128xf32> -> vector<8x128xf32>
    %390 = arith.addf %381, %389 : vector<8x128xf32>
    %391 = vector.extract_strided_slice %307 {offsets = [288, 0], sizes = [128, 128], strides = [1, 1]} : vector<896x128xbf16> to vector<128x128xbf16>
    %392 = vector.extract_strided_slice %306 {offsets = [34, 0], sizes = [8, 128], strides = [1, 1]} : vector<144x128xf32> to vector<8x128xf32>
    %393 = arith.truncf %392 : vector<8x128xf32> to vector<8x128xbf16>
    %cst_103 = arith.constant dense<0.000000e+00> : vector<8x128xf32>
    %394 = tpu.matmul %393, %391, %cst_103 {dimension_numbers = #tpu.dot_dimension_numbers<[1], [0], [0], [1], [0, 0, 1, 1], [], []>} : vector<8x128xbf16>, vector<128x128xbf16>, vector<8x128xf32> -> vector<8x128xf32>
    %395 = arith.addf %386, %394 : vector<8x128xf32>
    %396 = vector.extract_strided_slice %306 {offsets = [106, 0], sizes = [8, 128], strides = [1, 1]} : vector<144x128xf32> to vector<8x128xf32>
    %397 = arith.truncf %396 : vector<8x128xf32> to vector<8x128xbf16>
    %cst_104 = arith.constant dense<0.000000e+00> : vector<8x128xf32>
    %398 = tpu.matmul %397, %391, %cst_104 {dimension_numbers = #tpu.dot_dimension_numbers<[1], [0], [0], [1], [0, 0, 1, 1], [], []>} : vector<8x128xbf16>, vector<128x128xbf16>, vector<8x128xf32> -> vector<8x128xf32>
    %399 = arith.addf %390, %398 : vector<8x128xf32>
    %400 = vector.extract_strided_slice %307 {offsets = [320, 0], sizes = [128, 128], strides = [1, 1]} : vector<896x128xbf16> to vector<128x128xbf16>
    %401 = vector.extract_strided_slice %306 {offsets = [4, 0], sizes = [8, 128], strides = [1, 1]} : vector<144x128xf32> to vector<8x128xf32>
    %402 = arith.truncf %401 : vector<8x128xf32> to vector<8x128xbf16>
    %cst_105 = arith.constant dense<0.000000e+00> : vector<8x128xf32>
    %403 = tpu.matmul %402, %400, %cst_105 {dimension_numbers = #tpu.dot_dimension_numbers<[1], [0], [0], [1], [0, 0, 1, 1], [], []>} : vector<8x128xbf16>, vector<128x128xbf16>, vector<8x128xf32> -> vector<8x128xf32>
    %404 = arith.addf %395, %403 : vector<8x128xf32>
    %405 = vector.extract_strided_slice %306 {offsets = [76, 0], sizes = [8, 128], strides = [1, 1]} : vector<144x128xf32> to vector<8x128xf32>
    %406 = arith.truncf %405 : vector<8x128xf32> to vector<8x128xbf16>
    %cst_106 = arith.constant dense<0.000000e+00> : vector<8x128xf32>
    %407 = tpu.matmul %406, %400, %cst_106 {dimension_numbers = #tpu.dot_dimension_numbers<[1], [0], [0], [1], [0, 0, 1, 1], [], []>} : vector<8x128xbf16>, vector<128x128xbf16>, vector<8x128xf32> -> vector<8x128xf32>
    %408 = arith.addf %399, %407 : vector<8x128xf32>
    %409 = vector.extract_strided_slice %307 {offsets = [352, 0], sizes = [128, 128], strides = [1, 1]} : vector<896x128xbf16> to vector<128x128xbf16>
    %410 = vector.extract_strided_slice %306 {offsets = [20, 0], sizes = [8, 128], strides = [1, 1]} : vector<144x128xf32> to vector<8x128xf32>
    %411 = arith.truncf %410 : vector<8x128xf32> to vector<8x128xbf16>
    %cst_107 = arith.constant dense<0.000000e+00> : vector<8x128xf32>
    %412 = tpu.matmul %411, %409, %cst_107 {dimension_numbers = #tpu.dot_dimension_numbers<[1], [0], [0], [1], [0, 0, 1, 1], [], []>} : vector<8x128xbf16>, vector<128x128xbf16>, vector<8x128xf32> -> vector<8x128xf32>
    %413 = arith.addf %404, %412 : vector<8x128xf32>
    %414 = vector.extract_strided_slice %306 {offsets = [92, 0], sizes = [8, 128], strides = [1, 1]} : vector<144x128xf32> to vector<8x128xf32>
    %415 = arith.truncf %414 : vector<8x128xf32> to vector<8x128xbf16>
    %cst_108 = arith.constant dense<0.000000e+00> : vector<8x128xf32>
    %416 = tpu.matmul %415, %409, %cst_108 {dimension_numbers = #tpu.dot_dimension_numbers<[1], [0], [0], [1], [0, 0, 1, 1], [], []>} : vector<8x128xbf16>, vector<128x128xbf16>, vector<8x128xf32> -> vector<8x128xf32>
    %417 = arith.addf %408, %416 : vector<8x128xf32>
    %418 = vector.extract_strided_slice %307 {offsets = [384, 0], sizes = [128, 128], strides = [1, 1]} : vector<896x128xbf16> to vector<128x128xbf16>
    %419 = vector.extract_strided_slice %306 {offsets = [5, 0], sizes = [8, 128], strides = [1, 1]} : vector<144x128xf32> to vector<8x128xf32>
    %420 = arith.truncf %419 : vector<8x128xf32> to vector<8x128xbf16>
    %cst_109 = arith.constant dense<0.000000e+00> : vector<8x128xf32>
    %421 = tpu.matmul %420, %418, %cst_109 {dimension_numbers = #tpu.dot_dimension_numbers<[1], [0], [0], [1], [0, 0, 1, 1], [], []>} : vector<8x128xbf16>, vector<128x128xbf16>, vector<8x128xf32> -> vector<8x128xf32>
    %422 = arith.addf %413, %421 : vector<8x128xf32>
    %423 = vector.extract_strided_slice %306 {offsets = [77, 0], sizes = [8, 128], strides = [1, 1]} : vector<144x128xf32> to vector<8x128xf32>
    %424 = arith.truncf %423 : vector<8x128xf32> to vector<8x128xbf16>
    %cst_110 = arith.constant dense<0.000000e+00> : vector<8x128xf32>
    %425 = tpu.matmul %424, %418, %cst_110 {dimension_numbers = #tpu.dot_dimension_numbers<[1], [0], [0], [1], [0, 0, 1, 1], [], []>} : vector<8x128xbf16>, vector<128x128xbf16>, vector<8x128xf32> -> vector<8x128xf32>
    %426 = arith.addf %417, %425 : vector<8x128xf32>
    %427 = vector.extract_strided_slice %307 {offsets = [416, 0], sizes = [128, 128], strides = [1, 1]} : vector<896x128xbf16> to vector<128x128xbf16>
    %428 = vector.extract_strided_slice %306 {offsets = [21, 0], sizes = [8, 128], strides = [1, 1]} : vector<144x128xf32> to vector<8x128xf32>
    %429 = arith.truncf %428 : vector<8x128xf32> to vector<8x128xbf16>
    %cst_111 = arith.constant dense<0.000000e+00> : vector<8x128xf32>
    %430 = tpu.matmul %429, %427, %cst_111 {dimension_numbers = #tpu.dot_dimension_numbers<[1], [0], [0], [1], [0, 0, 1, 1], [], []>} : vector<8x128xbf16>, vector<128x128xbf16>, vector<8x128xf32> -> vector<8x128xf32>
    %431 = arith.addf %422, %430 : vector<8x128xf32>
    %432 = vector.extract_strided_slice %306 {offsets = [93, 0], sizes = [8, 128], strides = [1, 1]} : vector<144x128xf32> to vector<8x128xf32>
    %433 = arith.truncf %432 : vector<8x128xf32> to vector<8x128xbf16>
    %cst_112 = arith.constant dense<0.000000e+00> : vector<8x128xf32>
    %434 = tpu.matmul %433, %427, %cst_112 {dimension_numbers = #tpu.dot_dimension_numbers<[1], [0], [0], [1], [0, 0, 1, 1], [], []>} : vector<8x128xbf16>, vector<128x128xbf16>, vector<8x128xf32> -> vector<8x128xf32>
    %435 = arith.addf %426, %434 : vector<8x128xf32>
    %436 = vector.extract_strided_slice %307 {offsets = [448, 0], sizes = [128, 128], strides = [1, 1]} : vector<896x128xbf16> to vector<128x128xbf16>
    %437 = vector.extract_strided_slice %306 {offsets = [6, 0], sizes = [8, 128], strides = [1, 1]} : vector<144x128xf32> to vector<8x128xf32>
    %438 = arith.truncf %437 : vector<8x128xf32> to vector<8x128xbf16>
    %cst_113 = arith.constant dense<0.000000e+00> : vector<8x128xf32>
    %439 = tpu.matmul %438, %436, %cst_113 {dimension_numbers = #tpu.dot_dimension_numbers<[1], [0], [0], [1], [0, 0, 1, 1], [], []>} : vector<8x128xbf16>, vector<128x128xbf16>, vector<8x128xf32> -> vector<8x128xf32>
    %440 = arith.addf %431, %439 : vector<8x128xf32>
    %441 = vector.extract_strided_slice %306 {offsets = [78, 0], sizes = [8, 128], strides = [1, 1]} : vector<144x128xf32> to vector<8x128xf32>
    %442 = arith.truncf %441 : vector<8x128xf32> to vector<8x128xbf16>
    %cst_114 = arith.constant dense<0.000000e+00> : vector<8x128xf32>
    %443 = tpu.matmul %442, %436, %cst_114 {dimension_numbers = #tpu.dot_dimension_numbers<[1], [0], [0], [1], [0, 0, 1, 1], [], []>} : vector<8x128xbf16>, vector<128x128xbf16>, vector<8x128xf32> -> vector<8x128xf32>
    %444 = arith.addf %435, %443 : vector<8x128xf32>
    %445 = vector.extract_strided_slice %307 {offsets = [480, 0], sizes = [128, 128], strides = [1, 1]} : vector<896x128xbf16> to vector<128x128xbf16>
    %446 = vector.extract_strided_slice %306 {offsets = [36, 0], sizes = [8, 128], strides = [1, 1]} : vector<144x128xf32> to vector<8x128xf32>
    %447 = arith.truncf %446 : vector<8x128xf32> to vector<8x128xbf16>
    %cst_115 = arith.constant dense<0.000000e+00> : vector<8x128xf32>
    %448 = tpu.matmul %447, %445, %cst_115 {dimension_numbers = #tpu.dot_dimension_numbers<[1], [0], [0], [1], [0, 0, 1, 1], [], []>} : vector<8x128xbf16>, vector<128x128xbf16>, vector<8x128xf32> -> vector<8x128xf32>
    %449 = arith.addf %440, %448 : vector<8x128xf32>
    %450 = vector.extract_strided_slice %306 {offsets = [108, 0], sizes = [8, 128], strides = [1, 1]} : vector<144x128xf32> to vector<8x128xf32>
    %451 = arith.truncf %450 : vector<8x128xf32> to vector<8x128xbf16>
    %cst_116 = arith.constant dense<0.000000e+00> : vector<8x128xf32>
    %452 = tpu.matmul %451, %445, %cst_116 {dimension_numbers = #tpu.dot_dimension_numbers<[1], [0], [0], [1], [0, 0, 1, 1], [], []>} : vector<8x128xbf16>, vector<128x128xbf16>, vector<8x128xf32> -> vector<8x128xf32>
    %453 = arith.addf %444, %452 : vector<8x128xf32>
    %454 = vector.extract_strided_slice %307 {offsets = [512, 0], sizes = [128, 128], strides = [1, 1]} : vector<896x128xbf16> to vector<128x128xbf16>
    %455 = vector.extract_strided_slice %306 {offsets = [52, 0], sizes = [8, 128], strides = [1, 1]} : vector<144x128xf32> to vector<8x128xf32>
    %456 = arith.truncf %455 : vector<8x128xf32> to vector<8x128xbf16>
    %cst_117 = arith.constant dense<0.000000e+00> : vector<8x128xf32>
    %457 = tpu.matmul %456, %454, %cst_117 {dimension_numbers = #tpu.dot_dimension_numbers<[1], [0], [0], [1], [0, 0, 1, 1], [], []>} : vector<8x128xbf16>, vector<128x128xbf16>, vector<8x128xf32> -> vector<8x128xf32>
    %458 = arith.addf %449, %457 : vector<8x128xf32>
    %459 = vector.extract_strided_slice %306 {offsets = [124, 0], sizes = [8, 128], strides = [1, 1]} : vector<144x128xf32> to vector<8x128xf32>
    %460 = arith.truncf %459 : vector<8x128xf32> to vector<8x128xbf16>
    %cst_118 = arith.constant dense<0.000000e+00> : vector<8x128xf32>
    %461 = tpu.matmul %460, %454, %cst_118 {dimension_numbers = #tpu.dot_dimension_numbers<[1], [0], [0], [1], [0, 0, 1, 1], [], []>} : vector<8x128xbf16>, vector<128x128xbf16>, vector<8x128xf32> -> vector<8x128xf32>
    %462 = arith.addf %453, %461 : vector<8x128xf32>
    %463 = vector.extract_strided_slice %307 {offsets = [544, 0], sizes = [128, 128], strides = [1, 1]} : vector<896x128xbf16> to vector<128x128xbf16>
    %464 = vector.extract_strided_slice %306 {offsets = [37, 0], sizes = [8, 128], strides = [1, 1]} : vector<144x128xf32> to vector<8x128xf32>
    %465 = arith.truncf %464 : vector<8x128xf32> to vector<8x128xbf16>
    %cst_119 = arith.constant dense<0.000000e+00> : vector<8x128xf32>
    %466 = tpu.matmul %465, %463, %cst_119 {dimension_numbers = #tpu.dot_dimension_numbers<[1], [0], [0], [1], [0, 0, 1, 1], [], []>} : vector<8x128xbf16>, vector<128x128xbf16>, vector<8x128xf32> -> vector<8x128xf32>
    %467 = arith.addf %458, %466 : vector<8x128xf32>
    %468 = vector.extract_strided_slice %306 {offsets = [109, 0], sizes = [8, 128], strides = [1, 1]} : vector<144x128xf32> to vector<8x128xf32>
    %469 = arith.truncf %468 : vector<8x128xf32> to vector<8x128xbf16>
    %cst_120 = arith.constant dense<0.000000e+00> : vector<8x128xf32>
    %470 = tpu.matmul %469, %463, %cst_120 {dimension_numbers = #tpu.dot_dimension_numbers<[1], [0], [0], [1], [0, 0, 1, 1], [], []>} : vector<8x128xbf16>, vector<128x128xbf16>, vector<8x128xf32> -> vector<8x128xf32>
    %471 = arith.addf %462, %470 : vector<8x128xf32>
    %472 = vector.extract_strided_slice %307 {offsets = [576, 0], sizes = [128, 128], strides = [1, 1]} : vector<896x128xbf16> to vector<128x128xbf16>
    %473 = vector.extract_strided_slice %306 {offsets = [53, 0], sizes = [8, 128], strides = [1, 1]} : vector<144x128xf32> to vector<8x128xf32>
    %474 = arith.truncf %473 : vector<8x128xf32> to vector<8x128xbf16>
    %cst_121 = arith.constant dense<0.000000e+00> : vector<8x128xf32>
    %475 = tpu.matmul %474, %472, %cst_121 {dimension_numbers = #tpu.dot_dimension_numbers<[1], [0], [0], [1], [0, 0, 1, 1], [], []>} : vector<8x128xbf16>, vector<128x128xbf16>, vector<8x128xf32> -> vector<8x128xf32>
    %476 = arith.addf %467, %475 : vector<8x128xf32>
    %477 = vector.extract_strided_slice %306 {offsets = [125, 0], sizes = [8, 128], strides = [1, 1]} : vector<144x128xf32> to vector<8x128xf32>
    %478 = arith.truncf %477 : vector<8x128xf32> to vector<8x128xbf16>
    %cst_122 = arith.constant dense<0.000000e+00> : vector<8x128xf32>
    %479 = tpu.matmul %478, %472, %cst_122 {dimension_numbers = #tpu.dot_dimension_numbers<[1], [0], [0], [1], [0, 0, 1, 1], [], []>} : vector<8x128xbf16>, vector<128x128xbf16>, vector<8x128xf32> -> vector<8x128xf32>
    %480 = arith.addf %471, %479 : vector<8x128xf32>
    %481 = vector.extract_strided_slice %307 {offsets = [608, 0], sizes = [128, 128], strides = [1, 1]} : vector<896x128xbf16> to vector<128x128xbf16>
    %482 = vector.extract_strided_slice %306 {offsets = [38, 0], sizes = [8, 128], strides = [1, 1]} : vector<144x128xf32> to vector<8x128xf32>
    %483 = arith.truncf %482 : vector<8x128xf32> to vector<8x128xbf16>
    %cst_123 = arith.constant dense<0.000000e+00> : vector<8x128xf32>
    %484 = tpu.matmul %483, %481, %cst_123 {dimension_numbers = #tpu.dot_dimension_numbers<[1], [0], [0], [1], [0, 0, 1, 1], [], []>} : vector<8x128xbf16>, vector<128x128xbf16>, vector<8x128xf32> -> vector<8x128xf32>
    %485 = arith.addf %476, %484 : vector<8x128xf32>
    %486 = vector.extract_strided_slice %306 {offsets = [110, 0], sizes = [8, 128], strides = [1, 1]} : vector<144x128xf32> to vector<8x128xf32>
    %487 = arith.truncf %486 : vector<8x128xf32> to vector<8x128xbf16>
    %cst_124 = arith.constant dense<0.000000e+00> : vector<8x128xf32>
    %488 = tpu.matmul %487, %481, %cst_124 {dimension_numbers = #tpu.dot_dimension_numbers<[1], [0], [0], [1], [0, 0, 1, 1], [], []>} : vector<8x128xbf16>, vector<128x128xbf16>, vector<8x128xf32> -> vector<8x128xf32>
    %489 = arith.addf %480, %488 : vector<8x128xf32>
    %490 = vector.extract_strided_slice %307 {offsets = [640, 0], sizes = [128, 128], strides = [1, 1]} : vector<896x128xbf16> to vector<128x128xbf16>
    %491 = vector.extract_strided_slice %306 {offsets = [8, 0], sizes = [8, 128], strides = [1, 1]} : vector<144x128xf32> to vector<8x128xf32>
    %492 = arith.truncf %491 : vector<8x128xf32> to vector<8x128xbf16>
    %cst_125 = arith.constant dense<0.000000e+00> : vector<8x128xf32>
    %493 = tpu.matmul %492, %490, %cst_125 {dimension_numbers = #tpu.dot_dimension_numbers<[1], [0], [0], [1], [0, 0, 1, 1], [], []>} : vector<8x128xbf16>, vector<128x128xbf16>, vector<8x128xf32> -> vector<8x128xf32>
    %494 = arith.addf %485, %493 : vector<8x128xf32>
    %495 = vector.extract_strided_slice %306 {offsets = [80, 0], sizes = [8, 128], strides = [1, 1]} : vector<144x128xf32> to vector<8x128xf32>
    %496 = arith.truncf %495 : vector<8x128xf32> to vector<8x128xbf16>
    %cst_126 = arith.constant dense<0.000000e+00> : vector<8x128xf32>
    %497 = tpu.matmul %496, %490, %cst_126 {dimension_numbers = #tpu.dot_dimension_numbers<[1], [0], [0], [1], [0, 0, 1, 1], [], []>} : vector<8x128xbf16>, vector<128x128xbf16>, vector<8x128xf32> -> vector<8x128xf32>
    %498 = arith.addf %489, %497 : vector<8x128xf32>
    %499 = vector.extract_strided_slice %307 {offsets = [672, 0], sizes = [128, 128], strides = [1, 1]} : vector<896x128xbf16> to vector<128x128xbf16>
    %500 = vector.extract_strided_slice %306 {offsets = [24, 0], sizes = [8, 128], strides = [1, 1]} : vector<144x128xf32> to vector<8x128xf32>
    %501 = arith.truncf %500 : vector<8x128xf32> to vector<8x128xbf16>
    %cst_127 = arith.constant dense<0.000000e+00> : vector<8x128xf32>
    %502 = tpu.matmul %501, %499, %cst_127 {dimension_numbers = #tpu.dot_dimension_numbers<[1], [0], [0], [1], [0, 0, 1, 1], [], []>} : vector<8x128xbf16>, vector<128x128xbf16>, vector<8x128xf32> -> vector<8x128xf32>
    %503 = arith.addf %494, %502 : vector<8x128xf32>
    %504 = vector.extract_strided_slice %306 {offsets = [96, 0], sizes = [8, 128], strides = [1, 1]} : vector<144x128xf32> to vector<8x128xf32>
    %505 = arith.truncf %504 : vector<8x128xf32> to vector<8x128xbf16>
    %cst_128 = arith.constant dense<0.000000e+00> : vector<8x128xf32>
    %506 = tpu.matmul %505, %499, %cst_128 {dimension_numbers = #tpu.dot_dimension_numbers<[1], [0], [0], [1], [0, 0, 1, 1], [], []>} : vector<8x128xbf16>, vector<128x128xbf16>, vector<8x128xf32> -> vector<8x128xf32>
    %507 = arith.addf %498, %506 : vector<8x128xf32>
    %508 = vector.extract_strided_slice %307 {offsets = [704, 0], sizes = [128, 128], strides = [1, 1]} : vector<896x128xbf16> to vector<128x128xbf16>
    %509 = vector.extract_strided_slice %306 {offsets = [9, 0], sizes = [8, 128], strides = [1, 1]} : vector<144x128xf32> to vector<8x128xf32>
    %510 = arith.truncf %509 : vector<8x128xf32> to vector<8x128xbf16>
    %cst_129 = arith.constant dense<0.000000e+00> : vector<8x128xf32>
    %511 = tpu.matmul %510, %508, %cst_129 {dimension_numbers = #tpu.dot_dimension_numbers<[1], [0], [0], [1], [0, 0, 1, 1], [], []>} : vector<8x128xbf16>, vector<128x128xbf16>, vector<8x128xf32> -> vector<8x128xf32>
    %512 = arith.addf %503, %511 : vector<8x128xf32>
    %513 = vector.extract_strided_slice %306 {offsets = [81, 0], sizes = [8, 128], strides = [1, 1]} : vector<144x128xf32> to vector<8x128xf32>
    %514 = arith.truncf %513 : vector<8x128xf32> to vector<8x128xbf16>
    %cst_130 = arith.constant dense<0.000000e+00> : vector<8x128xf32>
    %515 = tpu.matmul %514, %508, %cst_130 {dimension_numbers = #tpu.dot_dimension_numbers<[1], [0], [0], [1], [0, 0, 1, 1], [], []>} : vector<8x128xbf16>, vector<128x128xbf16>, vector<8x128xf32> -> vector<8x128xf32>
    %516 = arith.addf %507, %515 : vector<8x128xf32>
    %517 = vector.extract_strided_slice %307 {offsets = [736, 0], sizes = [128, 128], strides = [1, 1]} : vector<896x128xbf16> to vector<128x128xbf16>
    %518 = vector.extract_strided_slice %306 {offsets = [25, 0], sizes = [8, 128], strides = [1, 1]} : vector<144x128xf32> to vector<8x128xf32>
    %519 = arith.truncf %518 : vector<8x128xf32> to vector<8x128xbf16>
    %cst_131 = arith.constant dense<0.000000e+00> : vector<8x128xf32>
    %520 = tpu.matmul %519, %517, %cst_131 {dimension_numbers = #tpu.dot_dimension_numbers<[1], [0], [0], [1], [0, 0, 1, 1], [], []>} : vector<8x128xbf16>, vector<128x128xbf16>, vector<8x128xf32> -> vector<8x128xf32>
    %521 = arith.addf %512, %520 : vector<8x128xf32>
    %522 = vector.extract_strided_slice %306 {offsets = [97, 0], sizes = [8, 128], strides = [1, 1]} : vector<144x128xf32> to vector<8x128xf32>
    %523 = arith.truncf %522 : vector<8x128xf32> to vector<8x128xbf16>
    %cst_132 = arith.constant dense<0.000000e+00> : vector<8x128xf32>
    %524 = tpu.matmul %523, %517, %cst_132 {dimension_numbers = #tpu.dot_dimension_numbers<[1], [0], [0], [1], [0, 0, 1, 1], [], []>} : vector<8x128xbf16>, vector<128x128xbf16>, vector<8x128xf32> -> vector<8x128xf32>
    %525 = arith.addf %516, %524 : vector<8x128xf32>
    %526 = vector.extract_strided_slice %307 {offsets = [768, 0], sizes = [128, 128], strides = [1, 1]} : vector<896x128xbf16> to vector<128x128xbf16>
    %527 = vector.extract_strided_slice %306 {offsets = [10, 0], sizes = [8, 128], strides = [1, 1]} : vector<144x128xf32> to vector<8x128xf32>
    %528 = arith.truncf %527 : vector<8x128xf32> to vector<8x128xbf16>
    %cst_133 = arith.constant dense<0.000000e+00> : vector<8x128xf32>
    %529 = tpu.matmul %528, %526, %cst_133 {dimension_numbers = #tpu.dot_dimension_numbers<[1], [0], [0], [1], [0, 0, 1, 1], [], []>} : vector<8x128xbf16>, vector<128x128xbf16>, vector<8x128xf32> -> vector<8x128xf32>
    %530 = arith.addf %521, %529 : vector<8x128xf32>
    %531 = vector.extract_strided_slice %306 {offsets = [82, 0], sizes = [8, 128], strides = [1, 1]} : vector<144x128xf32> to vector<8x128xf32>
    %532 = arith.truncf %531 : vector<8x128xf32> to vector<8x128xbf16>
    %cst_134 = arith.constant dense<0.000000e+00> : vector<8x128xf32>
    %533 = tpu.matmul %532, %526, %cst_134 {dimension_numbers = #tpu.dot_dimension_numbers<[1], [0], [0], [1], [0, 0, 1, 1], [], []>} : vector<8x128xbf16>, vector<128x128xbf16>, vector<8x128xf32> -> vector<8x128xf32>
    %534 = arith.addf %525, %533 : vector<8x128xf32>
    %535 = tpu.concatenate %530, %534 in 0 : vector<8x128xf32>, vector<8x128xf32> -> vector<16x128xf32>
    %c0_135 = arith.constant 0 : index
    %c0_136 = arith.constant 0 : index
    %536 = vector.load %arg10[%c0_135, %c0_136] : memref<16x1xf32, #tpu.memory_space<vmem>>, vector<16x1xf32>
    %537 = vector.broadcast %536 : vector<16x1xf32> to vector<16x128xf32>
    %538 = arith.mulf %535, %537 : vector<16x128xf32>
    %cst_137 = arith.constant dense<0.000000e+00> : vector<128xf32>
    %539 = vector.multi_reduction <add>, %538, %cst_137 [0] : vector<16x128xf32> to vector<128xf32>
    %540 = vector.shape_cast %539 : vector<128xf32> to vector<1x128xf32>
    %cst_138 = arith.constant 1.250000e-01 : f32
    %541 = vector.broadcast %cst_138 : f32 to vector<1x128xf32>
    %542 = arith.mulf %540, %541 : vector<1x128xf32>
    %543 = vector.broadcast %542 : vector<1x128xf32> to vector<16x128xf32>
    %544 = arith.subf %535, %543 : vector<16x128xf32>
    %545 = arith.mulf %544, %544 : vector<16x128xf32>
    %546 = vector.broadcast %536 : vector<16x1xf32> to vector<16x128xf32>
    %547 = arith.mulf %545, %546 : vector<16x128xf32>
    %cst_139 = arith.constant dense<0.000000e+00> : vector<128xf32>
    %548 = vector.multi_reduction <add>, %547, %cst_139 [0] : vector<16x128xf32> to vector<128xf32>
    %549 = vector.shape_cast %548 : vector<128xf32> to vector<1x128xf32>
    %cst_140 = arith.constant 1.250000e-01 : f32
    %550 = vector.broadcast %cst_140 : f32 to vector<1x128xf32>
    %551 = arith.mulf %549, %550 : vector<1x128xf32>
    %cst_141 = arith.constant 9.99999974E-6 : f32
    %552 = vector.broadcast %cst_141 : f32 to vector<1x128xf32>
    %553 = arith.addf %551, %552 : vector<1x128xf32>
    %554 = math.rsqrt %553 : vector<1x128xf32>
    %555 = vector.broadcast %554 : vector<1x128xf32> to vector<16x128xf32>
    %556 = arith.mulf %544, %555 : vector<16x128xf32>
    %557 = vector.broadcast %5 : vector<1x128xf32> to vector<16x128xf32>
    %558 = arith.mulf %556, %557 : vector<16x128xf32>
    %559 = vector.broadcast %6 : vector<1x128xf32> to vector<16x128xf32>
    %560 = arith.addf %558, %559 : vector<16x128xf32>
    %cst_142 = arith.constant 0.000000e+00 : f32
    %561 = vector.broadcast %cst_142 : f32 to vector<16x128xf32>
    %562 = arith.maximumf %560, %561 : vector<16x128xf32>
    %c0_143 = arith.constant 0 : index
    %c0_144 = arith.constant 0 : index
    %563 = vector.load %arg5[%c0_143, %c0_144] : memref<224x128xbf16, #tpu.memory_space<vmem>>, vector<224x128xbf16>
    %cst_145 = arith.constant 0.000000e+00 : f32
    %564 = vector.broadcast %cst_145 : f32 to vector<2x128xf32>
    %565 = vector.extract_strided_slice %562 {offsets = [0, 0], sizes = [1, 128], strides = [1, 1]} : vector<16x128xf32> to vector<1x128xf32>
    %566 = vector.extract_strided_slice %562 {offsets = [8, 0], sizes = [1, 128], strides = [1, 1]} : vector<16x128xf32> to vector<1x128xf32>
    %567 = tpu.concatenate %565, %566 in 0 : vector<1x128xf32>, vector<1x128xf32> -> vector<2x128xf32>
    %568 = arith.truncf %567 : vector<2x128xf32> to vector<2x128xbf16>
    %569 = vector.extract_strided_slice %563 {offsets = [0, 0], sizes = [128, 128], strides = [1, 1]} : vector<224x128xbf16> to vector<128x128xbf16>
    %cst_146 = arith.constant dense<0.000000e+00> : vector<2x128xf32>
    %570 = tpu.matmul %568, %569, %cst_146 {dimension_numbers = #tpu.dot_dimension_numbers<[1], [0], [0], [1], [0, 0, 1, 1], [], []>} : vector<2x128xbf16>, vector<128x128xbf16>, vector<2x128xf32> -> vector<2x128xf32>
    %571 = arith.addf %564, %570 : vector<2x128xf32>
    %572 = vector.extract_strided_slice %562 {offsets = [1, 0], sizes = [1, 128], strides = [1, 1]} : vector<16x128xf32> to vector<1x128xf32>
    %573 = vector.extract_strided_slice %562 {offsets = [9, 0], sizes = [1, 128], strides = [1, 1]} : vector<16x128xf32> to vector<1x128xf32>
    %574 = tpu.concatenate %572, %573 in 0 : vector<1x128xf32>, vector<1x128xf32> -> vector<2x128xf32>
    %575 = arith.truncf %574 : vector<2x128xf32> to vector<2x128xbf16>
    %576 = vector.extract_strided_slice %563 {offsets = [32, 0], sizes = [128, 128], strides = [1, 1]} : vector<224x128xbf16> to vector<128x128xbf16>
    %cst_147 = arith.constant dense<0.000000e+00> : vector<2x128xf32>
    %577 = tpu.matmul %575, %576, %cst_147 {dimension_numbers = #tpu.dot_dimension_numbers<[1], [0], [0], [1], [0, 0, 1, 1], [], []>} : vector<2x128xbf16>, vector<128x128xbf16>, vector<2x128xf32> -> vector<2x128xf32>
    %578 = arith.addf %571, %577 : vector<2x128xf32>
    %579 = vector.extract_strided_slice %562 {offsets = [4, 0], sizes = [1, 128], strides = [1, 1]} : vector<16x128xf32> to vector<1x128xf32>
    %580 = vector.extract_strided_slice %562 {offsets = [12, 0], sizes = [1, 128], strides = [1, 1]} : vector<16x128xf32> to vector<1x128xf32>
    %581 = tpu.concatenate %579, %580 in 0 : vector<1x128xf32>, vector<1x128xf32> -> vector<2x128xf32>
    %582 = arith.truncf %581 : vector<2x128xf32> to vector<2x128xbf16>
    %583 = vector.extract_strided_slice %563 {offsets = [64, 0], sizes = [128, 128], strides = [1, 1]} : vector<224x128xbf16> to vector<128x128xbf16>
    %cst_148 = arith.constant dense<0.000000e+00> : vector<2x128xf32>
    %584 = tpu.matmul %582, %583, %cst_148 {dimension_numbers = #tpu.dot_dimension_numbers<[1], [0], [0], [1], [0, 0, 1, 1], [], []>} : vector<2x128xbf16>, vector<128x128xbf16>, vector<2x128xf32> -> vector<2x128xf32>
    %585 = arith.addf %578, %584 : vector<2x128xf32>
    %586 = vector.extract_strided_slice %562 {offsets = [5, 0], sizes = [1, 128], strides = [1, 1]} : vector<16x128xf32> to vector<1x128xf32>
    %587 = vector.extract_strided_slice %562 {offsets = [13, 0], sizes = [1, 128], strides = [1, 1]} : vector<16x128xf32> to vector<1x128xf32>
    %588 = tpu.concatenate %586, %587 in 0 : vector<1x128xf32>, vector<1x128xf32> -> vector<2x128xf32>
    %589 = arith.truncf %588 : vector<2x128xf32> to vector<2x128xbf16>
    %590 = vector.extract_strided_slice %563 {offsets = [96, 0], sizes = [128, 128], strides = [1, 1]} : vector<224x128xbf16> to vector<128x128xbf16>
    %cst_149 = arith.constant dense<0.000000e+00> : vector<2x128xf32>
    %591 = tpu.matmul %589, %590, %cst_149 {dimension_numbers = #tpu.dot_dimension_numbers<[1], [0], [0], [1], [0, 0, 1, 1], [], []>} : vector<2x128xbf16>, vector<128x128xbf16>, vector<2x128xf32> -> vector<2x128xf32>
    %592 = arith.addf %585, %591 : vector<2x128xf32>
    %593 = vector.broadcast %7 : vector<1x128xf32> to vector<2x128xf32>
    %594 = arith.addf %592, %593 : vector<2x128xf32>
    %cst_150 = arith.constant 0.000000e+00 : f32
    %595 = vector.broadcast %cst_150 : f32 to vector<6x128xf32>
    %596 = tpu.concatenate %594, %595 in 0 : vector<2x128xf32>, vector<6x128xf32> -> vector<8x128xf32>
    %597 = arith.truncf %596 : vector<8x128xf32> to vector<8x128xbf16>
    %c0_151 = arith.constant 0 : index
    %c0_152 = arith.constant 0 : index
    %598 = vector.load %arg6[%c0_151, %c0_152] : memref<128x128xbf16, #tpu.memory_space<vmem>>, vector<128x128xbf16>
    %cst_153 = arith.constant dense<0.000000e+00> : vector<8x128xf32>
    %599 = tpu.matmul %597, %598, %cst_153 {dimension_numbers = #tpu.dot_dimension_numbers<[1], [0], [0], [1], [0, 0, 1, 1], [], []>} : vector<8x128xbf16>, vector<128x128xbf16>, vector<8x128xf32> -> vector<8x128xf32>
    %600 = vector.broadcast %8 : vector<1x128xf32> to vector<8x128xf32>
    %601 = arith.addf %599, %600 : vector<8x128xf32>
    %c0_154 = arith.constant 0 : index
    %c0_155 = arith.constant 0 : index
    %602 = vector.load %arg12[%c0_154, %c0_155] : memref<8x128xf32, #tpu.memory_space<vmem>>, vector<8x128xf32>
    tpu.vector_store %arg12[%c0_154, %c0_155], %601 {strides = array<i32>} : memref<8x128xf32, #tpu.memory_space<vmem>>, vector<8x128xf32>,
    return
  }
  func.func @transform_0(%arg0: i32) -> (i32, i32) {
    %c0_i32 = arith.constant 0 : i32
    %c0_i32_0 = arith.constant 0 : i32
    %c0_i32_1 = arith.constant 0 : i32
    return %c0_i32, %c0_i32_0 : i32, i32
  }
  func.func @transform_1(%arg0: i32) -> (i32, i32) {
    %c0_i32 = arith.constant 0 : i32
    %c0_i32_0 = arith.constant 0 : i32
    %c0_i32_1 = arith.constant 0 : i32
    return %c0_i32, %c0_i32_0 : i32, i32
  }
  func.func @transform_2(%arg0: i32) -> (i32, i32) {
    %c0_i32 = arith.constant 0 : i32
    %c0_i32_0 = arith.constant 0 : i32
    %c0_i32_1 = arith.constant 0 : i32
    return %c0_i32, %c0_i32_0 : i32, i32
  }
  func.func @transform_3(%arg0: i32) -> (i32, i32) {
    %c0_i32 = arith.constant 0 : i32
    %c0_i32_0 = arith.constant 0 : i32
    %c0_i32_1 = arith.constant 0 : i32
    return %c0_i32, %c0_i32_0 : i32, i32
  }
  func.func @transform_4(%arg0: i32) -> (i32, i32) {
    %c0_i32 = arith.constant 0 : i32
    %c0_i32_0 = arith.constant 0 : i32
    %c0_i32_1 = arith.constant 0 : i32
    return %c0_i32, %c0_i32_0 : i32, i32
  }
  func.func @transform_5(%arg0: i32) -> (i32, i32) {
    %c0_i32 = arith.constant 0 : i32
    %c0_i32_0 = arith.constant 0 : i32
    %c0_i32_1 = arith.constant 0 : i32
    return %c0_i32, %c0_i32_0 : i32, i32
  }
  func.func @transform_6(%arg0: i32) -> (i32, i32) {
    %c0_i32 = arith.constant 0 : i32
    %c0_i32_0 = arith.constant 0 : i32
    %c0_i32_1 = arith.constant 0 : i32
    return %c0_i32, %c0_i32_0 : i32, i32
  }
  func.func @transform_7(%arg0: i32) -> (i32, i32) {
    %c0_i32 = arith.constant 0 : i32
    %c0_i32_0 = arith.constant 0 : i32
    %c0_i32_1 = arith.constant 0 : i32
    return %c0_i32, %c0_i32_0 : i32, i32
  }
  func.func @transform_8(%arg0: i32) -> (i32, i32) {
    %c0_i32 = arith.constant 0 : i32
    %c0_i32_0 = arith.constant 0 : i32
    %c0_i32_1 = arith.constant 0 : i32
    return %c0_i32, %c0_i32_0 : i32, i32
  }
  func.func @transform_9(%arg0: i32) -> (i32, i32) {
    %c0_i32 = arith.constant 0 : i32
    %c0_i32_0 = arith.constant 0 : i32
    %c0_i32_1 = arith.constant 0 : i32
    return %c0_i32, %c0_i32_0 : i32, i32
  }
  func.func @transform_10(%arg0: i32) -> (i32, i32) {
    %c0_i32 = arith.constant 0 : i32
    %c0_i32_0 = arith.constant 0 : i32
    %c0_i32_1 = arith.constant 0 : i32
    return %c0_i32, %c0_i32_0 : i32, i32
  }
  func.func @transform_11(%arg0: i32) -> (i32, i32) {
    %c0_i32 = arith.constant 0 : i32
    %c0_i32_0 = arith.constant 0 : i32
    %c0_i32_1 = arith.constant 0 : i32
    return %c0_i32, %c0_i32_0 : i32, i32
  }
}

</mosaic_0001>

<llo_original>
// kernel: forward.1
$region0: #{forward.1}
  #allocation0 [shape = 'u32[]', space=smem, size = 0x4, offset = 0x4, fixed_abs, tag = 'smem constant byte address 0x4 - core index']
  #allocation1 [shape = 'u32[72,128]{1,0:T(1,128)}', space=vmem, size = 0x9000, scoped, tag = 'internal scratch']
  %s0 = inlined_call_operand.vmem [shape: bf16[656,128], index: 0, kind: input, shape index: {}]
  %s1 = inlined_call_operand.vmem [shape: bf16[128,128], index: 1, kind: input, shape index: {}]
  %s2 = inlined_call_operand.vmem [shape: bf16[512,128], index: 2, kind: input, shape index: {}]
  %s3 = inlined_call_operand.vmem [shape: bf16[896,128], index: 3, kind: input, shape index: {}]
  %s4 = inlined_call_operand.vmem [shape: bf16[224,128], index: 4, kind: input, shape index: {}]
  %s5 = inlined_call_operand.vmem [shape: bf16[128,128], index: 5, kind: input, shape index: {}]
  %s6 = inlined_call_operand.vmem [shape: f32[8,128], index: 6, kind: input, shape index: {}]
  %s7 = inlined_call_operand.vmem [shape: f32[656,1], index: 7, kind: input, shape index: {}]
  %s8 = inlined_call_operand.vmem [shape: f32[126,1], index: 8, kind: input, shape index: {}]
  %s9 = inlined_call_operand.vmem [shape: f32[16,1], index: 9, kind: input, shape index: {}]
  %s10 = inlined_call_operand.vmem [shape: s32[144,1], index: 10, kind: input, shape index: {}]
  %s11 = inlined_call_operand.vmem [shape: f32[8,128], index: 11, kind: output, shape index: {}]
  %s12 = sld [smem:[#allocation0]]
  $region54: #{forward.1} parent=0
    _
  %s14 = ssub.s32 1, %s12
  %s15 = scalar_select 0, %s14, %s12
  // Predicated region
  $region2: #{forward.1} parent=0 // pred_check
    _
  $region3: #{forward.1} parent=0 // pred_check_branch
    %17 = sbr.rel (0) target = $region5
  $region4: #{forward.1} parent=0 // pred_region
    _
  $region5: #{forward.1} parent=0 // pred_fallthru
    _
  // Predicated region
  $region6: #{forward.1} parent=0 // pred_check
    _
  $region7: #{forward.1} parent=0 // pred_check_branch
    %19 = sbr.rel (0) target = $region9
  $region8: #{forward.1} parent=0 // pred_region
    _
  $region9: #{forward.1} parent=0 // pred_fallthru
    _
  // Predicated region
  $region10: #{forward.1} parent=0 // pred_check
    _
  $region11: #{forward.1} parent=0 // pred_check_branch
    %21 = sbr.rel (0) target = $region13
  $region12: #{forward.1} parent=0 // pred_region
    _
  $region13: #{forward.1} parent=0 // pred_fallthru
    _
  // Predicated region
  $region14: #{forward.1} parent=0 // pred_check
    _
  $region15: #{forward.1} parent=0 // pred_check_branch
    %23 = sbr.rel (0) target = $region17
  $region16: #{forward.1} parent=0 // pred_region
    _
  $region17: #{forward.1} parent=0 // pred_fallthru
    _
  // Predicated region
  $region18: #{forward.1} parent=0 // pred_check
    _
  $region19: #{forward.1} parent=0 // pred_check_branch
    %25 = sbr.rel (0) target = $region21
  $region20: #{forward.1} parent=0 // pred_region
    _
  $region21: #{forward.1} parent=0 // pred_fallthru
    _
  // Predicated region
  $region22: #{forward.1} parent=0 // pred_check
    _
  $region23: #{forward.1} parent=0 // pred_check_branch
    %27 = sbr.rel (0) target = $region25
  $region24: #{forward.1} parent=0 // pred_region
    _
  $region25: #{forward.1} parent=0 // pred_fallthru
    _
  // Predicated region
  $region26: #{forward.1} parent=0 // pred_check
    _
  $region27: #{forward.1} parent=0 // pred_check_branch
    %29 = sbr.rel (0) target = $region29
  $region28: #{forward.1} parent=0 // pred_region
    _
  $region29: #{forward.1} parent=0 // pred_fallthru
    _
  // Predicated region
  $region30: #{forward.1} parent=0 // pred_check
    _
  $region31: #{forward.1} parent=0 // pred_check_branch
    %31 = sbr.rel (0) target = $region33
  $region32: #{forward.1} parent=0 // pred_region
    _
  $region33: #{forward.1} parent=0 // pred_fallthru
    _
  // Predicated region
  $region34: #{forward.1} parent=0 // pred_check
    _
  $region35: #{forward.1} parent=0 // pred_check_branch
    %33 = sbr.rel (0) target = $region37
  $region36: #{forward.1} parent=0 // pred_region
    _
  $region37: #{forward.1} parent=0 // pred_fallthru
    _
  // Predicated region
  $region38: #{forward.1} parent=0 // pred_check
    _
  $region39: #{forward.1} parent=0 // pred_check_branch
    %35 = sbr.rel (0) target = $region41
  $region40: #{forward.1} parent=0 // pred_region
    _
  $region41: #{forward.1} parent=0 // pred_fallthru
    _
  // Predicated region
  $region42: #{forward.1} parent=0 // pred_check
    _
  $region43: #{forward.1} parent=0 // pred_check_branch
    %37 = sbr.rel (0) target = $region45
  $region44: #{forward.1} parent=0 // pred_region
    _
  $region45: #{forward.1} parent=0 // pred_fallthru
    _
  %v38 = vld [vmem:[%s6] sm:$0xff]
  %v39 = vld [vmem:[%s0] sm:$0xf]
  %v40 = vld [vmem:[%s0 + $0x4] sm:$0xf]
  %v41 = vld [vmem:[%s0 + $0x8] sm:$0xf]
  %v42 = vld [vmem:[%s0 + $0xc] sm:$0xf]
  %v43 = vld [vmem:[%s0 + $0x10] sm:$0xf]
  %v44 = vld [vmem:[%s0 + $0x14] sm:$0xf]
  %v45 = vld [vmem:[%s0 + $0x18] sm:$0xf]
  %v46 = vld [vmem:[%s0 + $0x1c] sm:$0xf]
  %v47 = vld [vmem:[%s0 + $0x20] sm:$0xf]
  %v48 = vld [vmem:[%s0 + $0x24] sm:$0xf]
  %v49 = vld [vmem:[%s0 + $0x28] sm:$0xf]
  %v50 = vld [vmem:[%s0 + $0x2c] sm:$0xf]
  %v51 = vld [vmem:[%s0 + $0x30] sm:$0xf]
  %v52 = vld [vmem:[%s0 + $0x34] sm:$0xf]
  %v53 = vld [vmem:[%s0 + $0x38] sm:$0xf]
  %v54 = vld [vmem:[%s0 + $0x3c] sm:$0xf]
  %v55 = vld [vmem:[%s0 + $0x40] sm:$0xf]
  %v56 = vld [vmem:[%s0 + $0x44] sm:$0xf]
  %v57 = vld [vmem:[%s0 + $0x48] sm:$0xf]
  %v58 = vld [vmem:[%s0 + $0x4c] sm:$0xf]
  %v59 = vld [vmem:[%s0 + $0x50] sm:$0xf]
  %v60 = vld [vmem:[%s0 + $0x54] sm:$0xf]
  %v61 = vld [vmem:[%s0 + $0x58] sm:$0xf]
  %v62 = vld [vmem:[%s0 + $0x5c] sm:$0xf]
  %v63 = vld [vmem:[%s0 + $0x60] sm:$0xf]
  %v64 = vld [vmem:[%s0 + $0x64] sm:$0xf]
  %v65 = vld [vmem:[%s0 + $0x68] sm:$0xf]
  %v66 = vld [vmem:[%s0 + $0x6c] sm:$0xf]
  %v67 = vld [vmem:[%s0 + $0x70] sm:$0xf]
  %v68 = vld [vmem:[%s0 + $0x74] sm:$0xf]
  %v69 = vld [vmem:[%s0 + $0x78] sm:$0xf]
  %v70 = vld [vmem:[%s0 + $0x7c] sm:$0xf]
  %v71 = vld [vmem:[%s0 + $0x80] sm:$0xf]
  %v72 = vld [vmem:[%s0 + $0x84] sm:$0xf]
  %v73 = vld [vmem:[%s0 + $0x88] sm:$0xf]
  %v74 = vld [vmem:[%s0 + $0x8c] sm:$0xf]
  %v75 = vld [vmem:[%s0 + $0x90] sm:$0xf]
  %v76 = vld [vmem:[%s0 + $0x94] sm:$0xf]
  %v77 = vld [vmem:[%s0 + $0x98] sm:$0xf]
  %v78 = vld [vmem:[%s0 + $0x9c] sm:$0xf]
  %v79 = vld [vmem:[%s0 + $0xa0] sm:$0xf]
  %v80 = vld [vmem:[%s0 + $0xa4] sm:$0xf]
  %v81 = vld [vmem:[%s0 + $0xa8] sm:$0xf]
  %v82 = vld [vmem:[%s0 + $0xac] sm:$0xf]
  %v83 = vld [vmem:[%s0 + $0xb0] sm:$0xf]
  %v84 = vld [vmem:[%s0 + $0xb4] sm:$0xf]
  %v85 = vld [vmem:[%s0 + $0xb8] sm:$0xf]
  %v86 = vld [vmem:[%s0 + $0xbc] sm:$0xf]
  %v87 = vld [vmem:[%s0 + $0xc0] sm:$0xf]
  %v88 = vld [vmem:[%s0 + $0xc4] sm:$0xf]
  %v89 = vld [vmem:[%s0 + $0xc8] sm:$0xf]
  %v90 = vld [vmem:[%s0 + $0xcc] sm:$0xf]
  %v91 = vld [vmem:[%s0 + $0xd0] sm:$0xf]
  %v92 = vld [vmem:[%s0 + $0xd4] sm:$0xf]
  %v93 = vld [vmem:[%s0 + $0xd8] sm:$0xf]
  %v94 = vld [vmem:[%s0 + $0xdc] sm:$0xf]
  %v95 = vld [vmem:[%s0 + $0xe0] sm:$0xf]
  %v96 = vld [vmem:[%s0 + $0xe4] sm:$0xf]
  %v97 = vld [vmem:[%s0 + $0xe8] sm:$0xf]
  %v98 = vld [vmem:[%s0 + $0xec] sm:$0xf]
  %v99 = vld [vmem:[%s0 + $0xf0] sm:$0xf]
  %v100 = vld [vmem:[%s0 + $0xf4] sm:$0xf]
  %v101 = vld [vmem:[%s0 + $0xf8] sm:$0xf]
  %v102 = vld [vmem:[%s0 + $0xfc] sm:$0xf]
  %v103 = vld [vmem:[%s0 + $0x100] sm:$0xf]
  %v104 = vld [vmem:[%s0 + $0x104] sm:$0xf]
  %v105 = vld [vmem:[%s0 + $0x108] sm:$0xf]
  %v106 = vld [vmem:[%s0 + $0x10c] sm:$0xf]
  %v107 = vld [vmem:[%s0 + $0x110] sm:$0xf]
  %v108 = vld [vmem:[%s0 + $0x114] sm:$0xf]
  %v109 = vld [vmem:[%s0 + $0x118] sm:$0xf]
  %v110 = vld [vmem:[%s0 + $0x11c] sm:$0xf]
  %v111 = vld [vmem:[%s0 + $0x120] sm:$0xf]
  %v112 = vld [vmem:[%s0 + $0x124] sm:$0xf]
  %v113 = vld [vmem:[%s0 + $0x128] sm:$0xf]
  %v114 = vld [vmem:[%s0 + $0x12c] sm:$0xf]
  %v115 = vld [vmem:[%s0 + $0x130] sm:$0xf]
  %v116 = vld [vmem:[%s0 + $0x134] sm:$0xf]
  %v117 = vld [vmem:[%s0 + $0x138] sm:$0xf]
  %v118 = vld [vmem:[%s0 + $0x13c] sm:$0xf]
  %v119 = vld [vmem:[%s0 + $0x140] sm:$0xf]
  %v120 = vld [vmem:[%s0 + $0x144] sm:$0xf]
  %v121 = vld [vmem:[%s1] sm:$0xf]
  %v122 = vld [vmem:[%s1 + $0x4] sm:$0xf]
  %v123 = vld [vmem:[%s1 + $0x8] sm:$0xf]
  %v124 = vld [vmem:[%s1 + $0xc] sm:$0xf]
  %v125 = vld [vmem:[%s1 + $0x10] sm:$0xf]
  %v126 = vld [vmem:[%s1 + $0x14] sm:$0xf]
  %v127 = vld [vmem:[%s1 + $0x18] sm:$0xf]
  %v128 = vld [vmem:[%s1 + $0x1c] sm:$0xf]
  %v129 = vld [vmem:[%s1 + $0x20] sm:$0xf]
  %v130 = vld [vmem:[%s1 + $0x24] sm:$0xf]
  %v131 = vld [vmem:[%s1 + $0x28] sm:$0xf]
  %v132 = vld [vmem:[%s1 + $0x2c] sm:$0xf]
  %v133 = vld [vmem:[%s1 + $0x30] sm:$0xf]
  %v134 = vld [vmem:[%s1 + $0x34] sm:$0xf]
  %v135 = vld [vmem:[%s1 + $0x38] sm:$0xf]
  %v136 = vld [vmem:[%s1 + $0x3c] sm:$0xf]
  %v219 = vunpack.c.l.b16 %v39
  %v220 = vunpack.c.l.b16 %v40
  %v221 = vunpack.c.l.b16 %v41
  %v222 = vunpack.c.l.b16 %v42
  %v223 = vunpack.c.l.b16 %v43
  %v224 = vunpack.c.l.b16 %v44
  %v225 = vunpack.c.l.b16 %v45
  %v226 = vunpack.c.l.b16 %v46
  %v227 = vunpack.c.l.b16 %v47
  %v228 = vunpack.c.l.b16 %v48
  %v229 = vunpack.c.l.b16 %v49
  %v230 = vunpack.c.l.b16 %v50
  %v231 = vunpack.c.l.b16 %v51
  %v232 = vunpack.c.l.b16 %v52
  %v233 = vunpack.c.l.b16 %v53
  %v234 = vunpack.c.l.b16 %v54
  %v235 = vunpack.c.l.b16 %v55
  %v236 = vunpack.c.l.b16 %v56
  %v237 = vunpack.c.l.b16 %v57
  %v238 = vunpack.c.l.b16 %v58
  %v239 = vunpack.c.l.b16 %v59
  %v240 = vunpack.c.l.b16 %v60
  %v241 = vunpack.c.l.b16 %v61
  %v242 = vunpack.c.l.b16 %v62
  %v243 = vunpack.c.l.b16 %v63
  %v244 = vunpack.c.l.b16 %v64
  %v245 = vunpack.c.l.b16 %v65
  %v246 = vunpack.c.l.b16 %v66
  %v247 = vunpack.c.l.b16 %v67
  %v248 = vunpack.c.l.b16 %v68
  %v249 = vunpack.c.l.b16 %v69
  %v250 = vunpack.c.l.b16 %v70
  %v251 = vunpack.c.l.b16 %v71
  %v252 = vunpack.c.l.b16 %v72
  %v253 = vunpack.c.l.b16 %v73
  %v254 = vunpack.c.l.b16 %v74
  %v255 = vunpack.c.l.b16 %v75
  %v256 = vunpack.c.l.b16 %v76
  %v257 = vunpack.c.l.b16 %v77
  %v258 = vunpack.c.l.b16 %v78
  %v259 = vunpack.c.l.b16 %v79
  %v260 = vunpack.c.l.b16 %v80
  %v261 = vunpack.c.l.b16 %v81
  %v262 = vunpack.c.l.b16 %v82
  %v263 = vunpack.c.l.b16 %v83
  %v264 = vunpack.c.l.b16 %v84
  %v265 = vunpack.c.l.b16 %v85
  %v266 = vunpack.c.l.b16 %v86
  %v267 = vunpack.c.l.b16 %v87
  %v268 = vunpack.c.l.b16 %v88
  %v269 = vunpack.c.l.b16 %v89
  %v270 = vunpack.c.l.b16 %v90
  %v271 = vunpack.c.l.b16 %v91
  %v272 = vunpack.c.l.b16 %v92
  %v273 = vunpack.c.l.b16 %v93
  %v274 = vunpack.c.l.b16 %v94
  %v275 = vunpack.c.l.b16 %v95
  %v276 = vunpack.c.l.b16 %v96
  %v277 = vunpack.c.l.b16 %v97
  %v278 = vunpack.c.l.b16 %v98
  %v279 = vunpack.c.l.b16 %v99
  %v280 = vunpack.c.l.b16 %v100
  %v281 = vunpack.c.l.b16 %v101
  %v282 = vunpack.c.l.b16 %v102
  %v283 = vunpack.c.l.b16 %v103
  %v284 = vunpack.c.l.b16 %v104
  %v285 = vunpack.c.l.b16 %v105
  %v286 = vunpack.c.l.b16 %v106
  %v287 = vunpack.c.l.b16 %v107
  %v288 = vunpack.c.l.b16 %v108
  %v289 = vunpack.c.l.b16 %v109
  %v290 = vunpack.c.l.b16 %v110
  %v291 = vunpack.c.l.b16 %v111
  %v292 = vunpack.c.l.b16 %v112
  %v293 = vunpack.c.l.b16 %v113
  %v294 = vunpack.c.l.b16 %v114
  %v295 = vunpack.c.l.b16 %v115
  %v296 = vunpack.c.l.b16 %v116
  %v297 = vunpack.c.l.b16 %v117
  %v298 = vunpack.c.l.b16 %v118
  %v299 = vunpack.c.l.b16 %v119
  %v300 = vunpack.c.l.b16 %v120
  %v301 = vpack.c.b16 %v220, %v219
  %v302 = vpack.c.b16 %v222, %v221
  %v303 = vpack.c.b16 %v224, %v223
  %v304 = vpack.c.b16 %v226, %v225
  %v305 = vpack.c.b16 %v228, %v227
  %v306 = vpack.c.b16 %v230, %v229
  %v307 = vpack.c.b16 %v232, %v231
  %v308 = vpack.c.b16 %v234, %v233
  %v309 = vpack.c.b16 %v236, %v235
  %v310 = vpack.c.b16 %v238, %v237
  %v311 = vpack.c.b16 %v240, %v239
  %v312 = vpack.c.b16 %v242, %v241
  %v313 = vpack.c.b16 %v244, %v243
  %v314 = vpack.c.b16 %v246, %v245
  %v315 = vpack.c.b16 %v248, %v247
  %v316 = vpack.c.b16 %v250, %v249
  %v317 = vpack.c.b16 %v252, %v251
  %v318 = vpack.c.b16 %v254, %v253
  %v319 = vpack.c.b16 %v256, %v255
  %v320 = vpack.c.b16 %v258, %v257
  %v321 = vpack.c.b16 %v260, %v259
  %v322 = vpack.c.b16 %v262, %v261
  %v323 = vpack.c.b16 %v264, %v263
  %v324 = vpack.c.b16 %v266, %v265
  %v325 = vpack.c.b16 %v268, %v267
  %v326 = vpack.c.b16 %v270, %v269
  %v327 = vpack.c.b16 %v272, %v271
  %v328 = vpack.c.b16 %v274, %v273
  %v329 = vpack.c.b16 %v276, %v275
  %v330 = vpack.c.b16 %v278, %v277
  %v331 = vpack.c.b16 %v280, %v279
  %v332 = vpack.c.b16 %v282, %v281
  %v333 = vpack.c.b16 %v284, %v283
  %v334 = vpack.c.b16 %v286, %v285
  %v335 = vpack.c.b16 %v288, %v287
  %v336 = vpack.c.b16 %v290, %v289
  %v337 = vpack.c.b16 %v292, %v291
  %v338 = vpack.c.b16 %v294, %v293
  %v339 = vpack.c.b16 %v296, %v295
  %v340 = vpack.c.b16 %v298, %v297
  %v341 = vpack.c.b16 %v300, %v299
  %v399 = vunpack.c.l.b16 %v121
  %v400 = vunpack.c.l.b16 %v122
  %v401 = vunpack.c.l.b16 %v123
  %v402 = vunpack.c.l.b16 %v124
  %v403 = vunpack.c.l.b16 %v125
  %v404 = vunpack.c.l.b16 %v126
  %v405 = vunpack.c.l.b16 %v127
  %v406 = vunpack.c.l.b16 %v128
  %v407 = vunpack.c.l.b16 %v129
  %v408 = vunpack.c.l.b16 %v130
  %v409 = vunpack.c.l.b16 %v131
  %v410 = vunpack.c.l.b16 %v132
  %v411 = vunpack.c.l.b16 %v133
  %v412 = vunpack.c.l.b16 %v134
  %v413 = vunpack.c.l.b16 %v135
  %v414 = vunpack.c.l.b16 %v136
  %v415 = vpack.c.b16 %v400, %v399
  %v416 = vpack.c.b16 %v402, %v401
  %v417 = vpack.c.b16 %v404, %v403
  %v418 = vpack.c.b16 %v406, %v405
  %v419 = vpack.c.b16 %v408, %v407
  %v420 = vpack.c.b16 %v410, %v409
  %v421 = vpack.c.b16 %v412, %v411
  %v422 = vpack.c.b16 %v414, %v413
  %431 = vmatpush.bf16.msra.mxu0 %v422
  %432 = vmatpush.bf16.msra.mxu0 %v421
  %433 = vmatpush.bf16.msra.mxu0 %v420
  %434 = vmatpush.bf16.msra.mxu0 %v419
  %435 = vmatpush.bf16.msra.mxu0 %v418
  %436 = vmatpush.bf16.msra.mxu0 %v417
  %437 = vmatpush.bf16.msra.mxu0 %v416
  %438 = vmatpush.bf16.msra.mxu0 %v415
  %439 = vmatmul.bf16.gmra.mxu0 %v301
  %v440 = vpop.f32.mrf.mxu0
  %v441 = vadd.f32 0.0, %v440
  %v442 = vpop.f32.mrf.mxu0
  %v443 = vadd.f32 0.0, %v442
  %444 = vmatmul.bf16.gmra.mxu0 %v302
  %v445 = vpop.f32.mrf.mxu0
  %v446 = vadd.f32 0.0, %v445
  %v447 = vpop.f32.mrf.mxu0
  %v448 = vadd.f32 0.0, %v447
  %449 = vmatmul.bf16.gmra.mxu0 %v303
  %v450 = vpop.f32.mrf.mxu0
  %v451 = vadd.f32 0.0, %v450
  %v452 = vpop.f32.mrf.mxu0
  %v453 = vadd.f32 0.0, %v452
  %454 = vmatmul.bf16.gmra.mxu0 %v304
  %v455 = vpop.f32.mrf.mxu0
  %v456 = vadd.f32 0.0, %v455
  %v457 = vpop.f32.mrf.mxu0
  %v458 = vadd.f32 0.0, %v457
  %459 = vmatmul.bf16.gmra.mxu0 %v305
  %v460 = vpop.f32.mrf.mxu0
  %v461 = vadd.f32 0.0, %v460
  %v462 = vpop.f32.mrf.mxu0
  %v463 = vadd.f32 0.0, %v462
  %464 = vmatmul.bf16.gmra.mxu0 %v306
  %v465 = vpop.f32.mrf.mxu0
  %v466 = vadd.f32 0.0, %v465
  %v467 = vpop.f32.mrf.mxu0
  %v468 = vadd.f32 0.0, %v467
  %469 = vmatmul.bf16.gmra.mxu0 %v307
  %v470 = vpop.f32.mrf.mxu0
  %v471 = vadd.f32 0.0, %v470
  %v472 = vpop.f32.mrf.mxu0
  %v473 = vadd.f32 0.0, %v472
  %474 = vmatmul.bf16.gmra.mxu0 %v308
  %v475 = vpop.f32.mrf.mxu0
  %v476 = vadd.f32 0.0, %v475
  %v477 = vpop.f32.mrf.mxu0
  %v478 = vadd.f32 0.0, %v477
  %479 = vmatmul.bf16.gmra.mxu0 %v309
  %v480 = vpop.f32.mrf.mxu0
  %v481 = vadd.f32 0.0, %v480
  %v482 = vpop.f32.mrf.mxu0
  %v483 = vadd.f32 0.0, %v482
  %484 = vmatmul.bf16.gmra.mxu0 %v310
  %v485 = vpop.f32.mrf.mxu0
  %v486 = vadd.f32 0.0, %v485
  %v487 = vpop.f32.mrf.mxu0
  %v488 = vadd.f32 0.0, %v487
  %489 = vmatmul.bf16.gmra.mxu0 %v311
  %v490 = vpop.f32.mrf.mxu0
  %v491 = vadd.f32 0.0, %v490
  %v492 = vpop.f32.mrf.mxu0
  %v493 = vadd.f32 0.0, %v492
  %494 = vmatmul.bf16.gmra.mxu0 %v312
  %v495 = vpop.f32.mrf.mxu0
  %v496 = vadd.f32 0.0, %v495
  %v497 = vpop.f32.mrf.mxu0
  %v498 = vadd.f32 0.0, %v497
  %499 = vmatmul.bf16.gmra.mxu0 %v313
  %v500 = vpop.f32.mrf.mxu0
  %v501 = vadd.f32 0.0, %v500
  %v502 = vpop.f32.mrf.mxu0
  %v503 = vadd.f32 0.0, %v502
  %504 = vmatmul.bf16.gmra.mxu0 %v314
  %v505 = vpop.f32.mrf.mxu0
  %v506 = vadd.f32 0.0, %v505
  %v507 = vpop.f32.mrf.mxu0
  %v508 = vadd.f32 0.0, %v507
  %509 = vmatmul.bf16.gmra.mxu0 %v315
  %v510 = vpop.f32.mrf.mxu0
  %v511 = vadd.f32 0.0, %v510
  %v512 = vpop.f32.mrf.mxu0
  %v513 = vadd.f32 0.0, %v512
  %514 = vmatmul.bf16.gmra.mxu0 %v316
  %v515 = vpop.f32.mrf.mxu0
  %v516 = vadd.f32 0.0, %v515
  %v517 = vpop.f32.mrf.mxu0
  %v518 = vadd.f32 0.0, %v517
  %519 = vmatmul.bf16.gmra.mxu0 %v317
  %v520 = vpop.f32.mrf.mxu0
  %v521 = vadd.f32 0.0, %v520
  %v522 = vpop.f32.mrf.mxu0
  %v523 = vadd.f32 0.0, %v522
  %524 = vmatmul.bf16.gmra.mxu0 %v318
  %v525 = vpop.f32.mrf.mxu0
  %v526 = vadd.f32 0.0, %v525
  %v527 = vpop.f32.mrf.mxu0
  %v528 = vadd.f32 0.0, %v527
  %529 = vmatmul.bf16.gmra.mxu0 %v319
  %v530 = vpop.f32.mrf.mxu0
  %v531 = vadd.f32 0.0, %v530
  %v532 = vpop.f32.mrf.mxu0
  %v533 = vadd.f32 0.0, %v532
  %534 = vmatmul.bf16.gmra.mxu0 %v320
  %v535 = vpop.f32.mrf.mxu0
  %v536 = vadd.f32 0.0, %v535
  %v537 = vpop.f32.mrf.mxu0
  %v538 = vadd.f32 0.0, %v537
  %539 = vmatmul.bf16.gmra.mxu0 %v321
  %v540 = vpop.f32.mrf.mxu0
  %v541 = vadd.f32 0.0, %v540
  %v542 = vpop.f32.mrf.mxu0
  %v543 = vadd.f32 0.0, %v542
  %544 = vmatmul.bf16.gmra.mxu0 %v322
  %v545 = vpop.f32.mrf.mxu0
  %v546 = vadd.f32 0.0, %v545
  %v547 = vpop.f32.mrf.mxu0
  %v548 = vadd.f32 0.0, %v547
  %549 = vmatmul.bf16.gmra.mxu0 %v323
  %v550 = vpop.f32.mrf.mxu0
  %v551 = vadd.f32 0.0, %v550
  %v552 = vpop.f32.mrf.mxu0
  %v553 = vadd.f32 0.0, %v552
  %554 = vmatmul.bf16.gmra.mxu0 %v324
  %v555 = vpop.f32.mrf.mxu0
  %v556 = vadd.f32 0.0, %v555
  %v557 = vpop.f32.mrf.mxu0
  %v558 = vadd.f32 0.0, %v557
  %559 = vmatmul.bf16.gmra.mxu0 %v325
  %v560 = vpop.f32.mrf.mxu0
  %v561 = vadd.f32 0.0, %v560
  %v562 = vpop.f32.mrf.mxu0
  %v563 = vadd.f32 0.0, %v562
  %564 = vmatmul.bf16.gmra.mxu0 %v326
  %v565 = vpop.f32.mrf.mxu0
  %v566 = vadd.f32 0.0, %v565
  %v567 = vpop.f32.mrf.mxu0
  %v568 = vadd.f32 0.0, %v567
  %569 = vmatmul.bf16.gmra.mxu0 %v327
  %v570 = vpop.f32.mrf.mxu0
  %v571 = vadd.f32 0.0, %v570
  %v572 = vpop.f32.mrf.mxu0
  %v573 = vadd.f32 0.0, %v572
  %574 = vmatmul.bf16.gmra.mxu0 %v328
  %v575 = vpop.f32.mrf.mxu0
  %v576 = vadd.f32 0.0, %v575
  %v577 = vpop.f32.mrf.mxu0
  %v578 = vadd.f32 0.0, %v577
  %579 = vmatmul.bf16.gmra.mxu0 %v329
  %v580 = vpop.f32.mrf.mxu0
  %v581 = vadd.f32 0.0, %v580
  %v582 = vpop.f32.mrf.mxu0
  %v583 = vadd.f32 0.0, %v582
  %584 = vmatmul.bf16.gmra.mxu0 %v330
  %v585 = vpop.f32.mrf.mxu0
  %v586 = vadd.f32 0.0, %v585
  %v587 = vpop.f32.mrf.mxu0
  %v588 = vadd.f32 0.0, %v587
  %589 = vmatmul.bf16.gmra.mxu0 %v331
  %v590 = vpop.f32.mrf.mxu0
  %v591 = vadd.f32 0.0, %v590
  %v592 = vpop.f32.mrf.mxu0
  %v593 = vadd.f32 0.0, %v592
  %594 = vmatmul.bf16.gmra.mxu0 %v332
  %v595 = vpop.f32.mrf.mxu0
  %v596 = vadd.f32 0.0, %v595
  %v597 = vpop.f32.mrf.mxu0
  %v598 = vadd.f32 0.0, %v597
  %599 = vmatmul.bf16.gmra.mxu0 %v333
  %v600 = vpop.f32.mrf.mxu0
  %v601 = vadd.f32 0.0, %v600
  %v602 = vpop.f32.mrf.mxu0
  %v603 = vadd.f32 0.0, %v602
  %604 = vmatmul.bf16.gmra.mxu0 %v334
  %v605 = vpop.f32.mrf.mxu0
  %v606 = vadd.f32 0.0, %v605
  %v607 = vpop.f32.mrf.mxu0
  %v608 = vadd.f32 0.0, %v607
  %609 = vmatmul.bf16.gmra.mxu0 %v335
  %v610 = vpop.f32.mrf.mxu0
  %v611 = vadd.f32 0.0, %v610
  %v612 = vpop.f32.mrf.mxu0
  %v613 = vadd.f32 0.0, %v612
  %614 = vmatmul.bf16.gmra.mxu0 %v336
  %v615 = vpop.f32.mrf.mxu0
  %v616 = vadd.f32 0.0, %v615
  %v617 = vpop.f32.mrf.mxu0
  %v618 = vadd.f32 0.0, %v617
  %619 = vmatmul.bf16.gmra.mxu0 %v337
  %v620 = vpop.f32.mrf.mxu0
  %v621 = vadd.f32 0.0, %v620
  %v622 = vpop.f32.mrf.mxu0
  %v623 = vadd.f32 0.0, %v622
  %624 = vmatmul.bf16.gmra.mxu0 %v338
  %v625 = vpop.f32.mrf.mxu0
  %v626 = vadd.f32 0.0, %v625
  %v627 = vpop.f32.mrf.mxu0
  %v628 = vadd.f32 0.0, %v627
  %629 = vmatmul.bf16.gmra.mxu0 %v339
  %v630 = vpop.f32.mrf.mxu0
  %v631 = vadd.f32 0.0, %v630
  %v632 = vpop.f32.mrf.mxu0
  %v633 = vadd.f32 0.0, %v632
  %634 = vmatmul.bf16.gmra.mxu0 %v340
  %v635 = vpop.f32.mrf.mxu0
  %v636 = vadd.f32 0.0, %v635
  %v637 = vpop.f32.mrf.mxu0
  %v638 = vadd.f32 0.0, %v637
  %639 = vmatmul.bf16.gmra.mxu0 %v341
  %v640 = vpop.f32.mrf.mxu0
  %v641 = vadd.f32 0.0, %v640
  %v642 = vpop.f32.mrf.mxu0
  %v643 = vadd.f32 0.0, %v642
  %644 = vdwg.mxu0
  %v645 = vld [vmem:[%s7] sm:$0xff]
  %v646 = vld [vmem:[%s7 + $0x8] sm:$0xff]
  %v647 = vld [vmem:[%s7 + $0x10] sm:$0xff]
  %v648 = vld [vmem:[%s7 + $0x18] sm:$0xff]
  %v649 = vld [vmem:[%s7 + $0x20] sm:$0xff]
  %v650 = vld [vmem:[%s7 + $0x28] sm:$0xff]
  %v651 = vld [vmem:[%s7 + $0x30] sm:$0xff]
  %v652 = vld [vmem:[%s7 + $0x38] sm:$0xff]
  %v653 = vld [vmem:[%s7 + $0x40] sm:$0xff]
  %v654 = vld [vmem:[%s7 + $0x48] sm:$0xff]
  %v655 = vld [vmem:[%s7 + $0x50] sm:$0xff]
  %v656 = vld [vmem:[%s7 + $0x58] sm:$0xff]
  %v657 = vld [vmem:[%s7 + $0x60] sm:$0xff]
  %v658 = vld [vmem:[%s7 + $0x68] sm:$0xff]
  %v659 = vld [vmem:[%s7 + $0x70] sm:$0xff]
  %v660 = vld [vmem:[%s7 + $0x78] sm:$0xff]
  %v661 = vld [vmem:[%s7 + $0x80] sm:$0xff]
  %v662 = vld [vmem:[%s7 + $0x88] sm:$0xff]
  %v663 = vld [vmem:[%s7 + $0x90] sm:$0xff]
  %v664 = vld [vmem:[%s7 + $0x98] sm:$0xff]
  %v665 = vld [vmem:[%s7 + $0xa0] sm:$0xff]
  %v666 = vld [vmem:[%s7 + $0xa8] sm:$0xff]
  %v667 = vld [vmem:[%s7 + $0xb0] sm:$0xff]
  %v668 = vld [vmem:[%s7 + $0xb8] sm:$0xff]
  %v669 = vld [vmem:[%s7 + $0xc0] sm:$0xff]
  %v670 = vld [vmem:[%s7 + $0xc8] sm:$0xff]
  %v671 = vld [vmem:[%s7 + $0xd0] sm:$0xff]
  %v672 = vld [vmem:[%s7 + $0xd8] sm:$0xff]
  %v673 = vld [vmem:[%s7 + $0xe0] sm:$0xff]
  %v674 = vld [vmem:[%s7 + $0xe8] sm:$0xff]
  %v675 = vld [vmem:[%s7 + $0xf0] sm:$0xff]
  %v676 = vld [vmem:[%s7 + $0xf8] sm:$0xff]
  %v677 = vld [vmem:[%s7 + $0x100] sm:$0xff]
  %v678 = vld [vmem:[%s7 + $0x108] sm:$0xff]
  %v679 = vld [vmem:[%s7 + $0x110] sm:$0xff]
  %v680 = vld [vmem:[%s7 + $0x118] sm:$0xff]
  %v681 = vld [vmem:[%s7 + $0x120] sm:$0xff]
  %v682 = vld [vmem:[%s7 + $0x128] sm:$0xff]
  %v683 = vld [vmem:[%s7 + $0x130] sm:$0xff]
  %v684 = vld [vmem:[%s7 + $0x138] sm:$0xff]
  %v685 = vld [vmem:[%s7 + $0x140] sm:$0xff]
  %v686 = vld [vmem:[%s7 + $0x148] sm:$0xff]
  %v687 = vld [vmem:[%s7 + $0x150] sm:$0xff]
  %v688 = vld [vmem:[%s7 + $0x158] sm:$0xff]
  %v689 = vld [vmem:[%s7 + $0x160] sm:$0xff]
  %v690 = vld [vmem:[%s7 + $0x168] sm:$0xff]
  %v691 = vld [vmem:[%s7 + $0x170] sm:$0xff]
  %v692 = vld [vmem:[%s7 + $0x178] sm:$0xff]
  %v693 = vld [vmem:[%s7 + $0x180] sm:$0xff]
  %v694 = vld [vmem:[%s7 + $0x188] sm:$0xff]
  %v695 = vld [vmem:[%s7 + $0x190] sm:$0xff]
  %v696 = vld [vmem:[%s7 + $0x198] sm:$0xff]
  %v697 = vld [vmem:[%s7 + $0x1a0] sm:$0xff]
  %v698 = vld [vmem:[%s7 + $0x1a8] sm:$0xff]
  %v699 = vld [vmem:[%s7 + $0x1b0] sm:$0xff]
  %v700 = vld [vmem:[%s7 + $0x1b8] sm:$0xff]
  %v701 = vld [vmem:[%s7 + $0x1c0] sm:$0xff]
  %v702 = vld [vmem:[%s7 + $0x1c8] sm:$0xff]
  %v703 = vld [vmem:[%s7 + $0x1d0] sm:$0xff]
  %v704 = vld [vmem:[%s7 + $0x1d8] sm:$0xff]
  %v705 = vld [vmem:[%s7 + $0x1e0] sm:$0xff]
  %v706 = vld [vmem:[%s7 + $0x1e8] sm:$0xff]
  %v707 = vld [vmem:[%s7 + $0x1f0] sm:$0xff]
  %v708 = vld [vmem:[%s7 + $0x1f8] sm:$0xff]
  %v709 = vld [vmem:[%s7 + $0x200] sm:$0xff]
  %v710 = vld [vmem:[%s7 + $0x208] sm:$0xff]
  %v711 = vld [vmem:[%s7 + $0x210] sm:$0xff]
  %v712 = vld [vmem:[%s7 + $0x218] sm:$0xff]
  %v713 = vld [vmem:[%s7 + $0x220] sm:$0xff]
  %v714 = vld [vmem:[%s7 + $0x228] sm:$0xff]
  %v715 = vld [vmem:[%s7 + $0x230] sm:$0xff]
  %v716 = vld [vmem:[%s7 + $0x238] sm:$0xff]
  %v717 = vld [vmem:[%s7 + $0x240] sm:$0xff]
  %v718 = vld [vmem:[%s7 + $0x248] sm:$0xff]
  %v719 = vld [vmem:[%s7 + $0x250] sm:$0xff]
  %v720 = vld [vmem:[%s7 + $0x258] sm:$0xff]
  %v721 = vld [vmem:[%s7 + $0x260] sm:$0xff]
  %v722 = vld [vmem:[%s7 + $0x268] sm:$0xff]
  %v723 = vld [vmem:[%s7 + $0x270] sm:$0xff]
  %v724 = vld [vmem:[%s7 + $0x278] sm:$0xff]
  %v725 = vld [vmem:[%s7 + $0x280] sm:$0xff]
  %v726 = vld [vmem:[%s7 + $0x288] sm:$0xff]
  %728 = vset.pattern.permute.xlu0 0
  %729 = vperm.xlu0 %728, %v645
  %v730 = vpop.permute.xlu0 %729
  %733 = vset.pattern.permute.xlu0 0
  %734 = vperm.xlu0 %733, %v646
  %v735 = vpop.permute.xlu0 %734
  %738 = vset.pattern.permute.xlu0 0
  %739 = vperm.xlu0 %738, %v647
  %v740 = vpop.permute.xlu0 %739
  %743 = vset.pattern.permute.xlu0 0
  %744 = vperm.xlu0 %743, %v648
  %v745 = vpop.permute.xlu0 %744
  %748 = vset.pattern.permute.xlu0 0
  %749 = vperm.xlu0 %748, %v649
  %v750 = vpop.permute.xlu0 %749
  %753 = vset.pattern.permute.xlu0 0
  %754 = vperm.xlu0 %753, %v650
  %v755 = vpop.permute.xlu0 %754
  %758 = vset.pattern.permute.xlu0 0
  %759 = vperm.xlu0 %758, %v651
  %v760 = vpop.permute.xlu0 %759
  %763 = vset.pattern.permute.xlu0 0
  %764 = vperm.xlu0 %763, %v652
  %v765 = vpop.permute.xlu0 %764
  %768 = vset.pattern.permute.xlu0 0
  %769 = vperm.xlu0 %768, %v653
  %v770 = vpop.permute.xlu0 %769
  %773 = vset.pattern.permute.xlu0 0
  %774 = vperm.xlu0 %773, %v654
  %v775 = vpop.permute.xlu0 %774
  %778 = vset.pattern.permute.xlu0 0
  %779 = vperm.xlu0 %778, %v655
  %v780 = vpop.permute.xlu0 %779
  %783 = vset.pattern.permute.xlu0 0
  %784 = vperm.xlu0 %783, %v656
  %v785 = vpop.permute.xlu0 %784
  %788 = vset.pattern.permute.xlu0 0
  %789 = vperm.xlu0 %788, %v657
  %v790 = vpop.permute.xlu0 %789
  %793 = vset.pattern.permute.xlu0 0
  %794 = vperm.xlu0 %793, %v658
  %v795 = vpop.permute.xlu0 %794
  %798 = vset.pattern.permute.xlu0 0
  %799 = vperm.xlu0 %798, %v659
  %v800 = vpop.permute.xlu0 %799
  %803 = vset.pattern.permute.xlu0 0
  %804 = vperm.xlu0 %803, %v660
  %v805 = vpop.permute.xlu0 %804
  %808 = vset.pattern.permute.xlu0 0
  %809 = vperm.xlu0 %808, %v661
  %v810 = vpop.permute.xlu0 %809
  %813 = vset.pattern.permute.xlu0 0
  %814 = vperm.xlu0 %813, %v662
  %v815 = vpop.permute.xlu0 %814
  %818 = vset.pattern.permute.xlu0 0
  %819 = vperm.xlu0 %818, %v663
  %v820 = vpop.permute.xlu0 %819
  %823 = vset.pattern.permute.xlu0 0
  %824 = vperm.xlu0 %823, %v664
  %v825 = vpop.permute.xlu0 %824
  %828 = vset.pattern.permute.xlu0 0
  %829 = vperm.xlu0 %828, %v665
  %v830 = vpop.permute.xlu0 %829
  %833 = vset.pattern.permute.xlu0 0
  %834 = vperm.xlu0 %833, %v666
  %v835 = vpop.permute.xlu0 %834
  %838 = vset.pattern.permute.xlu0 0
  %839 = vperm.xlu0 %838, %v667
  %v840 = vpop.permute.xlu0 %839
  %843 = vset.pattern.permute.xlu0 0
  %844 = vperm.xlu0 %843, %v668
  %v845 = vpop.permute.xlu0 %844
  %848 = vset.pattern.permute.xlu0 0
  %849 = vperm.xlu0 %848, %v669
  %v850 = vpop.permute.xlu0 %849
  %853 = vset.pattern.permute.xlu0 0
  %854 = vperm.xlu0 %853, %v670
  %v855 = vpop.permute.xlu0 %854
  %858 = vset.pattern.permute.xlu0 0
  %859 = vperm.xlu0 %858, %v671
  %v860 = vpop.permute.xlu0 %859
  %863 = vset.pattern.permute.xlu0 0
  %864 = vperm.xlu0 %863, %v672
  %v865 = vpop.permute.xlu0 %864
  %868 = vset.pattern.permute.xlu0 0
  %869 = vperm.xlu0 %868, %v673
  %v870 = vpop.permute.xlu0 %869
  %873 = vset.pattern.permute.xlu0 0
  %874 = vperm.xlu0 %873, %v674
  %v875 = vpop.permute.xlu0 %874
  %878 = vset.pattern.permute.xlu0 0
  %879 = vperm.xlu0 %878, %v675
  %v880 = vpop.permute.xlu0 %879
  %883 = vset.pattern.permute.xlu0 0
  %884 = vperm.xlu0 %883, %v676
  %v885 = vpop.permute.xlu0 %884
  %888 = vset.pattern.permute.xlu0 0
  %889 = vperm.xlu0 %888, %v677
  %v890 = vpop.permute.xlu0 %889
  %893 = vset.pattern.permute.xlu0 0
  %894 = vperm.xlu0 %893, %v678
  %v895 = vpop.permute.xlu0 %894
  %898 = vset.pattern.permute.xlu0 0
  %899 = vperm.xlu0 %898, %v679
  %v900 = vpop.permute.xlu0 %899
  %903 = vset.pattern.permute.xlu0 0
  %904 = vperm.xlu0 %903, %v680
  %v905 = vpop.permute.xlu0 %904
  %908 = vset.pattern.permute.xlu0 0
  %909 = vperm.xlu0 %908, %v681
  %v910 = vpop.permute.xlu0 %909
  %913 = vset.pattern.permute.xlu0 0
  %914 = vperm.xlu0 %913, %v682
  %v915 = vpop.permute.xlu0 %914
  %918 = vset.pattern.permute.xlu0 0
  %919 = vperm.xlu0 %918, %v683
  %v920 = vpop.permute.xlu0 %919
  %923 = vset.pattern.permute.xlu0 0
  %924 = vperm.xlu0 %923, %v684
  %v925 = vpop.permute.xlu0 %924
  %928 = vset.pattern.permute.xlu0 0
  %929 = vperm.xlu0 %928, %v685
  %v930 = vpop.permute.xlu0 %929
  %933 = vset.pattern.permute.xlu0 0
  %934 = vperm.xlu0 %933, %v686
  %v935 = vpop.permute.xlu0 %934
  %938 = vset.pattern.permute.xlu0 0
  %939 = vperm.xlu0 %938, %v687
  %v940 = vpop.permute.xlu0 %939
  %943 = vset.pattern.permute.xlu0 0
  %944 = vperm.xlu0 %943, %v688
  %v945 = vpop.permute.xlu0 %944
  %948 = vset.pattern.permute.xlu0 0
  %949 = vperm.xlu0 %948, %v689
  %v950 = vpop.permute.xlu0 %949
  %953 = vset.pattern.permute.xlu0 0
  %954 = vperm.xlu0 %953, %v690
  %v955 = vpop.permute.xlu0 %954
  %958 = vset.pattern.permute.xlu0 0
  %959 = vperm.xlu0 %958, %v691
  %v960 = vpop.permute.xlu0 %959
  %963 = vset.pattern.permute.xlu0 0
  %964 = vperm.xlu0 %963, %v692
  %v965 = vpop.permute.xlu0 %964
  %968 = vset.pattern.permute.xlu0 0
  %969 = vperm.xlu0 %968, %v693
  %v970 = vpop.permute.xlu0 %969
  %973 = vset.pattern.permute.xlu0 0
  %974 = vperm.xlu0 %973, %v694
  %v975 = vpop.permute.xlu0 %974
  %978 = vset.pattern.permute.xlu0 0
  %979 = vperm.xlu0 %978, %v695
  %v980 = vpop.permute.xlu0 %979
  %983 = vset.pattern.permute.xlu0 0
  %984 = vperm.xlu0 %983, %v696
  %v985 = vpop.permute.xlu0 %984
  %988 = vset.pattern.permute.xlu0 0
  %989 = vperm.xlu0 %988, %v697
  %v990 = vpop.permute.xlu0 %989
  %993 = vset.pattern.permute.xlu0 0
  %994 = vperm.xlu0 %993, %v698
  %v995 = vpop.permute.xlu0 %994
  %998 = vset.pattern.permute.xlu0 0
  %999 = vperm.xlu0 %998, %v699
  %v1000 = vpop.permute.xlu0 %999
  %1003 = vset.pattern.permute.xlu0 0
  %1004 = vperm.xlu0 %1003, %v700
  %v1005 = vpop.permute.xlu0 %1004
  %1008 = vset.pattern.permute.xlu0 0
  %1009 = vperm.xlu0 %1008, %v701
  %v1010 = vpop.permute.xlu0 %1009
  %1013 = vset.pattern.permute.xlu0 0
  %1014 = vperm.xlu0 %1013, %v702
  %v1015 = vpop.permute.xlu0 %1014
  %1018 = vset.pattern.permute.xlu0 0
  %1019 = vperm.xlu0 %1018, %v703
  %v1020 = vpop.permute.xlu0 %1019
  %1023 = vset.pattern.permute.xlu0 0
  %1024 = vperm.xlu0 %1023, %v704
  %v1025 = vpop.permute.xlu0 %1024
  %1028 = vset.pattern.permute.xlu0 0
  %1029 = vperm.xlu0 %1028, %v705
  %v1030 = vpop.permute.xlu0 %1029
  %1033 = vset.pattern.permute.xlu0 0
  %1034 = vperm.xlu0 %1033, %v706
  %v1035 = vpop.permute.xlu0 %1034
  %1038 = vset.pattern.permute.xlu0 0
  %1039 = vperm.xlu0 %1038, %v707
  %v1040 = vpop.permute.xlu0 %1039
  %1043 = vset.pattern.permute.xlu0 0
  %1044 = vperm.xlu0 %1043, %v708
  %v1045 = vpop.permute.xlu0 %1044
  %1048 = vset.pattern.permute.xlu0 0
  %1049 = vperm.xlu0 %1048, %v709
  %v1050 = vpop.permute.xlu0 %1049
  %1053 = vset.pattern.permute.xlu0 0
  %1054 = vperm.xlu0 %1053, %v710
  %v1055 = vpop.permute.xlu0 %1054
  %1058 = vset.pattern.permute.xlu0 0
  %1059 = vperm.xlu0 %1058, %v711
  %v1060 = vpop.permute.xlu0 %1059
  %1063 = vset.pattern.permute.xlu0 0
  %1064 = vperm.xlu0 %1063, %v712
  %v1065 = vpop.permute.xlu0 %1064
  %1068 = vset.pattern.permute.xlu0 0
  %1069 = vperm.xlu0 %1068, %v713
  %v1070 = vpop.permute.xlu0 %1069
  %1073 = vset.pattern.permute.xlu0 0
  %1074 = vperm.xlu0 %1073, %v714
  %v1075 = vpop.permute.xlu0 %1074
  %1078 = vset.pattern.permute.xlu0 0
  %1079 = vperm.xlu0 %1078, %v715
  %v1080 = vpop.permute.xlu0 %1079
  %1083 = vset.pattern.permute.xlu0 0
  %1084 = vperm.xlu0 %1083, %v716
  %v1085 = vpop.permute.xlu0 %1084
  %1088 = vset.pattern.permute.xlu0 0
  %1089 = vperm.xlu0 %1088, %v717
  %v1090 = vpop.permute.xlu0 %1089
  %1093 = vset.pattern.permute.xlu0 0
  %1094 = vperm.xlu0 %1093, %v718
  %v1095 = vpop.permute.xlu0 %1094
  %1098 = vset.pattern.permute.xlu0 0
  %1099 = vperm.xlu0 %1098, %v719
  %v1100 = vpop.permute.xlu0 %1099
  %1103 = vset.pattern.permute.xlu0 0
  %1104 = vperm.xlu0 %1103, %v720
  %v1105 = vpop.permute.xlu0 %1104
  %1108 = vset.pattern.permute.xlu0 0
  %1109 = vperm.xlu0 %1108, %v721
  %v1110 = vpop.permute.xlu0 %1109
  %1113 = vset.pattern.permute.xlu0 0
  %1114 = vperm.xlu0 %1113, %v722
  %v1115 = vpop.permute.xlu0 %1114
  %1118 = vset.pattern.permute.xlu0 0
  %1119 = vperm.xlu0 %1118, %v723
  %v1120 = vpop.permute.xlu0 %1119
  %1123 = vset.pattern.permute.xlu0 0
  %1124 = vperm.xlu0 %1123, %v724
  %v1125 = vpop.permute.xlu0 %1124
  %1128 = vset.pattern.permute.xlu0 0
  %1129 = vperm.xlu0 %1128, %v725
  %v1130 = vpop.permute.xlu0 %1129
  %1133 = vset.pattern.permute.xlu0 0
  %1134 = vperm.xlu0 %1133, %v726
  %v1135 = vpop.permute.xlu0 %1134
  %v1137 = vmul.f32 %v441, %v730
  %v1138 = vmul.f32 %v443, %v735
  %v1139 = vmul.f32 %v446, %v740
  %v1140 = vmul.f32 %v448, %v745
  %v1141 = vmul.f32 %v451, %v750
  %v1142 = vmul.f32 %v453, %v755
  %v1143 = vmul.f32 %v456, %v760
  %v1144 = vmul.f32 %v458, %v765
  %v1145 = vmul.f32 %v461, %v770
  %v1146 = vmul.f32 %v463, %v775
  %v1147 = vmul.f32 %v466, %v780
  %v1148 = vmul.f32 %v468, %v785
  %v1149 = vmul.f32 %v471, %v790
  %v1150 = vmul.f32 %v473, %v795
  %v1151 = vmul.f32 %v476, %v800
  %v1152 = vmul.f32 %v478, %v805
  %v1153 = vmul.f32 %v481, %v810
  %v1154 = vmul.f32 %v483, %v815
  %v1155 = vmul.f32 %v486, %v820
  %v1156 = vmul.f32 %v488, %v825
  %v1157 = vmul.f32 %v491, %v830
  %v1158 = vmul.f32 %v493, %v835
  %v1159 = vmul.f32 %v496, %v840
  %v1160 = vmul.f32 %v498, %v845
  %v1161 = vmul.f32 %v501, %v850
  %v1162 = vmul.f32 %v503, %v855
  %v1163 = vmul.f32 %v506, %v860
  %v1164 = vmul.f32 %v508, %v865
  %v1165 = vmul.f32 %v511, %v870
  %v1166 = vmul.f32 %v513, %v875
  %v1167 = vmul.f32 %v516, %v880
  %v1168 = vmul.f32 %v518, %v885
  %v1169 = vmul.f32 %v521, %v890
  %v1170 = vmul.f32 %v523, %v895
  %v1171 = vmul.f32 %v526, %v900
  %v1172 = vmul.f32 %v528, %v905
  %v1173 = vmul.f32 %v531, %v910
  %v1174 = vmul.f32 %v533, %v915
  %v1175 = vmul.f32 %v536, %v920
  %v1176 = vmul.f32 %v538, %v925
  %v1177 = vmul.f32 %v541, %v930
  %v1178 = vmul.f32 %v543, %v935
  %v1179 = vmul.f32 %v546, %v940
  %v1180 = vmul.f32 %v548, %v945
  %v1181 = vmul.f32 %v551, %v950
  %v1182 = vmul.f32 %v553, %v955
  %v1183 = vmul.f32 %v556, %v960
  %v1184 = vmul.f32 %v558, %v965
  %v1185 = vmul.f32 %v561, %v970
  %v1186 = vmul.f32 %v563, %v975
  %v1187 = vmul.f32 %v566, %v980
  %v1188 = vmul.f32 %v568, %v985
  %v1189 = vmul.f32 %v571, %v990
  %v1190 = vmul.f32 %v573, %v995
  %v1191 = vmul.f32 %v576, %v1000
  %v1192 = vmul.f32 %v578, %v1005
  %v1193 = vmul.f32 %v581, %v1010
  %v1194 = vmul.f32 %v583, %v1015
  %v1195 = vmul.f32 %v586, %v1020
  %v1196 = vmul.f32 %v588, %v1025
  %v1197 = vmul.f32 %v591, %v1030
  %v1198 = vmul.f32 %v593, %v1035
  %v1199 = vmul.f32 %v596, %v1040
  %v1200 = vmul.f32 %v598, %v1045
  %v1201 = vmul.f32 %v601, %v1050
  %v1202 = vmul.f32 %v603, %v1055
  %v1203 = vmul.f32 %v606, %v1060
  %v1204 = vmul.f32 %v608, %v1065
  %v1205 = vmul.f32 %v611, %v1070
  %v1206 = vmul.f32 %v613, %v1075
  %v1207 = vmul.f32 %v616, %v1080
  %v1208 = vmul.f32 %v618, %v1085
  %v1209 = vmul.f32 %v621, %v1090
  %v1210 = vmul.f32 %v623, %v1095
  %v1211 = vmul.f32 %v626, %v1100
  %v1212 = vmul.f32 %v628, %v1105
  %v1213 = vmul.f32 %v631, %v1110
  %v1214 = vmul.f32 %v633, %v1115
  %v1215 = vmul.f32 %v636, %v1120
  %v1216 = vmul.f32 %v638, %v1125
  %v1217 = vmul.f32 %v641, %v1130
  %v1218 = vmul.f32 %v643, %v1135
  %v1219 = vadd.f32 %v1137, %v1138
  %v1220 = vadd.f32 %v1219, %v1139
  %v1221 = vadd.f32 %v1220, %v1140
  %v1222 = vadd.f32 %v1221, %v1141
  %v1223 = vadd.f32 %v1222, %v1142
  %v1224 = vadd.f32 %v1223, %v1143
  %v1225 = vadd.f32 %v1224, %v1144
  %v1226 = vadd.f32 %v1225, %v1145
  %v1227 = vadd.f32 %v1226, %v1146
  %v1228 = vadd.f32 %v1227, %v1147
  %v1229 = vadd.f32 %v1228, %v1148
  %v1230 = vadd.f32 %v1229, %v1149
  %v1231 = vadd.f32 %v1230, %v1150
  %v1232 = vadd.f32 %v1231, %v1151
  %v1233 = vadd.f32 %v1232, %v1152
  %v1234 = vadd.f32 %v1233, %v1153
  %v1235 = vadd.f32 %v1234, %v1154
  %v1236 = vadd.f32 %v1235, %v1155
  %v1237 = vadd.f32 %v1236, %v1156
  %v1238 = vadd.f32 %v1237, %v1157
  %v1239 = vadd.f32 %v1238, %v1158
  %v1240 = vadd.f32 %v1239, %v1159
  %v1241 = vadd.f32 %v1240, %v1160
  %v1242 = vadd.f32 %v1241, %v1161
  %v1243 = vadd.f32 %v1242, %v1162
  %v1244 = vadd.f32 %v1243, %v1163
  %v1245 = vadd.f32 %v1244, %v1164
  %v1246 = vadd.f32 %v1245, %v1165
  %v1247 = vadd.f32 %v1246, %v1166
  %v1248 = vadd.f32 %v1247, %v1167
  %v1249 = vadd.f32 %v1248, %v1168
  %v1250 = vadd.f32 %v1249, %v1169
  %v1251 = vadd.f32 %v1250, %v1170
  %v1252 = vadd.f32 %v1251, %v1171
  %v1253 = vadd.f32 %v1252, %v1172
  %v1254 = vadd.f32 %v1253, %v1173
  %v1255 = vadd.f32 %v1254, %v1174
  %v1256 = vadd.f32 %v1255, %v1175
  %v1257 = vadd.f32 %v1256, %v1176
  %v1258 = vadd.f32 %v1257, %v1177
  %v1259 = vadd.f32 %v1258, %v1178
  %v1260 = vadd.f32 %v1259, %v1179
  %v1261 = vadd.f32 %v1260, %v1180
  %v1262 = vadd.f32 %v1261, %v1181
  %v1263 = vadd.f32 %v1262, %v1182
  %v1264 = vadd.f32 %v1263, %v1183
  %v1265 = vadd.f32 %v1264, %v1184
  %v1266 = vadd.f32 %v1265, %v1185
  %v1267 = vadd.f32 %v1266, %v1186
  %v1268 = vadd.f32 %v1267, %v1187
  %v1269 = vadd.f32 %v1268, %v1188
  %v1270 = vadd.f32 %v1269, %v1189
  %v1271 = vadd.f32 %v1270, %v1190
  %v1272 = vadd.f32 %v1271, %v1191
  %v1273 = vadd.f32 %v1272, %v1192
  %v1274 = vadd.f32 %v1273, %v1193
  %v1275 = vadd.f32 %v1274, %v1194
  %v1276 = vadd.f32 %v1275, %v1195
  %v1277 = vadd.f32 %v1276, %v1196
  %v1278 = vadd.f32 %v1277, %v1197
  %v1279 = vadd.f32 %v1278, %v1198
  %v1280 = vadd.f32 %v1279, %v1199
  %v1281 = vadd.f32 %v1280, %v1200
  %v1282 = vadd.f32 %v1281, %v1201
  %v1283 = vadd.f32 %v1282, %v1202
  %v1284 = vadd.f32 %v1283, %v1203
  %v1285 = vadd.f32 %v1284, %v1204
  %v1286 = vadd.f32 %v1285, %v1205
  %v1287 = vadd.f32 %v1286, %v1206
  %v1288 = vadd.f32 %v1287, %v1207
  %v1289 = vadd.f32 %v1288, %v1208
  %v1290 = vadd.f32 %v1289, %v1209
  %v1291 = vadd.f32 %v1290, %v1210
  %v1292 = vadd.f32 %v1291, %v1211
  %v1293 = vadd.f32 %v1292, %v1212
  %v1294 = vadd.f32 %v1293, %v1213
  %v1295 = vadd.f32 %v1294, %v1214
  %v1296 = vadd.f32 %v1295, %v1215
  %v1297 = vadd.f32 %v1296, %v1216
  %v1298 = vadd.f32 %v1297, %v1217
  %v1299 = vadd.f32 %v1298, %v1218
  %v1300 = vrot.slane %v1299, 4
  %v1301 = vadd.f32 %v1299, %v1300
  %v1302 = vrot.slane %v1301, 2
  %v1303 = vadd.f32 %v1301, %v1302
  %v1304 = vrot.slane %v1303, 1
  %v1305 = vadd.f32 %v1303, %v1304
  %v1306 = vmul.f32 %v1305, 0.0015432099
  %v1307 = vsub.f32 %v441, %v1306
  %v1308 = vsub.f32 %v443, %v1306
  %v1309 = vsub.f32 %v446, %v1306
  %v1310 = vsub.f32 %v448, %v1306
  %v1311 = vsub.f32 %v451, %v1306
  %v1312 = vsub.f32 %v453, %v1306
  %v1313 = vsub.f32 %v456, %v1306
  %v1314 = vsub.f32 %v458, %v1306
  %v1315 = vsub.f32 %v461, %v1306
  %v1316 = vsub.f32 %v463, %v1306
  %v1317 = vsub.f32 %v466, %v1306
  %v1318 = vsub.f32 %v468, %v1306
  %v1319 = vsub.f32 %v471, %v1306
  %v1320 = vsub.f32 %v473, %v1306
  %v1321 = vsub.f32 %v476, %v1306
  %v1322 = vsub.f32 %v478, %v1306
  %v1323 = vsub.f32 %v481, %v1306
  %v1324 = vsub.f32 %v483, %v1306
  %v1325 = vsub.f32 %v486, %v1306
  %v1326 = vsub.f32 %v488, %v1306
  %v1327 = vsub.f32 %v491, %v1306
  %v1328 = vsub.f32 %v493, %v1306
  %v1329 = vsub.f32 %v496, %v1306
  %v1330 = vsub.f32 %v498, %v1306
  %v1331 = vsub.f32 %v501, %v1306
  %v1332 = vsub.f32 %v503, %v1306
  %v1333 = vsub.f32 %v506, %v1306
  %v1334 = vsub.f32 %v508, %v1306
  %v1335 = vsub.f32 %v511, %v1306
  %v1336 = vsub.f32 %v513, %v1306
  %v1337 = vsub.f32 %v516, %v1306
  %v1338 = vsub.f32 %v518, %v1306
  %v1339 = vsub.f32 %v521, %v1306
  %v1340 = vsub.f32 %v523, %v1306
  %v1341 = vsub.f32 %v526, %v1306
  %v1342 = vsub.f32 %v528, %v1306
  %v1343 = vsub.f32 %v531, %v1306
  %v1344 = vsub.f32 %v533, %v1306
  %v1345 = vsub.f32 %v536, %v1306
  %v1346 = vsub.f32 %v538, %v1306
  %v1347 = vsub.f32 %v541, %v1306
  %v1348 = vsub.f32 %v543, %v1306
  %v1349 = vsub.f32 %v546, %v1306
  %v1350 = vsub.f32 %v548, %v1306
  %v1351 = vsub.f32 %v551, %v1306
  %v1352 = vsub.f32 %v553, %v1306
  %v1353 = vsub.f32 %v556, %v1306
  %v1354 = vsub.f32 %v558, %v1306
  %v1355 = vsub.f32 %v561, %v1306
  %v1356 = vsub.f32 %v563, %v1306
  %v1357 = vsub.f32 %v566, %v1306
  %v1358 = vsub.f32 %v568, %v1306
  %v1359 = vsub.f32 %v571, %v1306
  %v1360 = vsub.f32 %v573, %v1306
  %v1361 = vsub.f32 %v576, %v1306
  %v1362 = vsub.f32 %v578, %v1306
  %v1363 = vsub.f32 %v581, %v1306
  %v1364 = vsub.f32 %v583, %v1306
  %v1365 = vsub.f32 %v586, %v1306
  %v1366 = vsub.f32 %v588, %v1306
  %v1367 = vsub.f32 %v591, %v1306
  %v1368 = vsub.f32 %v593, %v1306
  %v1369 = vsub.f32 %v596, %v1306
  %v1370 = vsub.f32 %v598, %v1306
  %v1371 = vsub.f32 %v601, %v1306
  %v1372 = vsub.f32 %v603, %v1306
  %v1373 = vsub.f32 %v606, %v1306
  %v1374 = vsub.f32 %v608, %v1306
  %v1375 = vsub.f32 %v611, %v1306
  %v1376 = vsub.f32 %v613, %v1306
  %v1377 = vsub.f32 %v616, %v1306
  %v1378 = vsub.f32 %v618, %v1306
  %v1379 = vsub.f32 %v621, %v1306
  %v1380 = vsub.f32 %v623, %v1306
  %v1381 = vsub.f32 %v626, %v1306
  %v1382 = vsub.f32 %v628, %v1306
  %v1383 = vsub.f32 %v631, %v1306
  %v1384 = vsub.f32 %v633, %v1306
  %v1385 = vsub.f32 %v636, %v1306
  %v1386 = vsub.f32 %v638, %v1306
  %v1387 = vsub.f32 %v641, %v1306
  %v1388 = vsub.f32 %v643, %v1306
  %v1389 = vmul.f32 %v1307, %v1307
  %v1390 = vmul.f32 %v1308, %v1308
  %v1391 = vmul.f32 %v1309, %v1309
  %v1392 = vmul.f32 %v1310, %v1310
  %v1393 = vmul.f32 %v1311, %v1311
  %v1394 = vmul.f32 %v1312, %v1312
  %v1395 = vmul.f32 %v1313, %v1313
  %v1396 = vmul.f32 %v1314, %v1314
  %v1397 = vmul.f32 %v1315, %v1315
  %v1398 = vmul.f32 %v1316, %v1316
  %v1399 = vmul.f32 %v1317, %v1317
  %v1400 = vmul.f32 %v1318, %v1318
  %v1401 = vmul.f32 %v1319, %v1319
  %v1402 = vmul.f32 %v1320, %v1320
  %v1403 = vmul.f32 %v1321, %v1321
  %v1404 = vmul.f32 %v1322, %v1322
  %v1405 = vmul.f32 %v1323, %v1323
  %v1406 = vmul.f32 %v1324, %v1324
  %v1407 = vmul.f32 %v1325, %v1325
  %v1408 = vmul.f32 %v1326, %v1326
  %v1409 = vmul.f32 %v1327, %v1327
  %v1410 = vmul.f32 %v1328, %v1328
  %v1411 = vmul.f32 %v1329, %v1329
  %v1412 = vmul.f32 %v1330, %v1330
  %v1413 = vmul.f32 %v1331, %v1331
  %v1414 = vmul.f32 %v1332, %v1332
  %v1415 = vmul.f32 %v1333, %v1333
  %v1416 = vmul.f32 %v1334, %v1334
  %v1417 = vmul.f32 %v1335, %v1335
  %v1418 = vmul.f32 %v1336, %v1336
  %v1419 = vmul.f32 %v1337, %v1337
  %v1420 = vmul.f32 %v1338, %v1338
  %v1421 = vmul.f32 %v1339, %v1339
  %v1422 = vmul.f32 %v1340, %v1340
  %v1423 = vmul.f32 %v1341, %v1341
  %v1424 = vmul.f32 %v1342, %v1342
  %v1425 = vmul.f32 %v1343, %v1343
  %v1426 = vmul.f32 %v1344, %v1344
  %v1427 = vmul.f32 %v1345, %v1345
  %v1428 = vmul.f32 %v1346, %v1346
  %v1429 = vmul.f32 %v1347, %v1347
  %v1430 = vmul.f32 %v1348, %v1348
  %v1431 = vmul.f32 %v1349, %v1349
  %v1432 = vmul.f32 %v1350, %v1350
  %v1433 = vmul.f32 %v1351, %v1351
  %v1434 = vmul.f32 %v1352, %v1352
  %v1435 = vmul.f32 %v1353, %v1353
  %v1436 = vmul.f32 %v1354, %v1354
  %v1437 = vmul.f32 %v1355, %v1355
  %v1438 = vmul.f32 %v1356, %v1356
  %v1439 = vmul.f32 %v1357, %v1357
  %v1440 = vmul.f32 %v1358, %v1358
  %v1441 = vmul.f32 %v1359, %v1359
  %v1442 = vmul.f32 %v1360, %v1360
  %v1443 = vmul.f32 %v1361, %v1361
  %v1444 = vmul.f32 %v1362, %v1362
  %v1445 = vmul.f32 %v1363, %v1363
  %v1446 = vmul.f32 %v1364, %v1364
  %v1447 = vmul.f32 %v1365, %v1365
  %v1448 = vmul.f32 %v1366, %v1366
  %v1449 = vmul.f32 %v1367, %v1367
  %v1450 = vmul.f32 %v1368, %v1368
  %v1451 = vmul.f32 %v1369, %v1369
  %v1452 = vmul.f32 %v1370, %v1370
  %v1453 = vmul.f32 %v1371, %v1371
  %v1454 = vmul.f32 %v1372, %v1372
  %v1455 = vmul.f32 %v1373, %v1373
  %v1456 = vmul.f32 %v1374, %v1374
  %v1457 = vmul.f32 %v1375, %v1375
  %v1458 = vmul.f32 %v1376, %v1376
  %v1459 = vmul.f32 %v1377, %v1377
  %v1460 = vmul.f32 %v1378, %v1378
  %v1461 = vmul.f32 %v1379, %v1379
  %v1462 = vmul.f32 %v1380, %v1380
  %v1463 = vmul.f32 %v1381, %v1381
  %v1464 = vmul.f32 %v1382, %v1382
  %v1465 = vmul.f32 %v1383, %v1383
  %v1466 = vmul.f32 %v1384, %v1384
  %v1467 = vmul.f32 %v1385, %v1385
  %v1468 = vmul.f32 %v1386, %v1386
  %v1469 = vmul.f32 %v1387, %v1387
  %v1470 = vmul.f32 %v1388, %v1388
  %v1471 = vmul.f32 %v1389, %v730
  %v1472 = vmul.f32 %v1390, %v735
  %v1473 = vmul.f32 %v1391, %v740
  %v1474 = vmul.f32 %v1392, %v745
  %v1475 = vmul.f32 %v1393, %v750
  %v1476 = vmul.f32 %v1394, %v755
  %v1477 = vmul.f32 %v1395, %v760
  %v1478 = vmul.f32 %v1396, %v765
  %v1479 = vmul.f32 %v1397, %v770
  %v1480 = vmul.f32 %v1398, %v775
  %v1481 = vmul.f32 %v1399, %v780
  %v1482 = vmul.f32 %v1400, %v785
  %v1483 = vmul.f32 %v1401, %v790
  %v1484 = vmul.f32 %v1402, %v795
  %v1485 = vmul.f32 %v1403, %v800
  %v1486 = vmul.f32 %v1404, %v805
  %v1487 = vmul.f32 %v1405, %v810
  %v1488 = vmul.f32 %v1406, %v815
  %v1489 = vmul.f32 %v1407, %v820
  %v1490 = vmul.f32 %v1408, %v825
  %v1491 = vmul.f32 %v1409, %v830
  %v1492 = vmul.f32 %v1410, %v835
  %v1493 = vmul.f32 %v1411, %v840
  %v1494 = vmul.f32 %v1412, %v845
  %v1495 = vmul.f32 %v1413, %v850
  %v1496 = vmul.f32 %v1414, %v855
  %v1497 = vmul.f32 %v1415, %v860
  %v1498 = vmul.f32 %v1416, %v865
  %v1499 = vmul.f32 %v1417, %v870
  %v1500 = vmul.f32 %v1418, %v875
  %v1501 = vmul.f32 %v1419, %v880
  %v1502 = vmul.f32 %v1420, %v885
  %v1503 = vmul.f32 %v1421, %v890
  %v1504 = vmul.f32 %v1422, %v895
  %v1505 = vmul.f32 %v1423, %v900
  %v1506 = vmul.f32 %v1424, %v905
  %v1507 = vmul.f32 %v1425, %v910
  %v1508 = vmul.f32 %v1426, %v915
  %v1509 = vmul.f32 %v1427, %v920
  %v1510 = vmul.f32 %v1428, %v925
  %v1511 = vmul.f32 %v1429, %v930
  %v1512 = vmul.f32 %v1430, %v935
  %v1513 = vmul.f32 %v1431, %v940
  %v1514 = vmul.f32 %v1432, %v945
  %v1515 = vmul.f32 %v1433, %v950
  %v1516 = vmul.f32 %v1434, %v955
  %v1517 = vmul.f32 %v1435, %v960
  %v1518 = vmul.f32 %v1436, %v965
  %v1519 = vmul.f32 %v1437, %v970
  %v1520 = vmul.f32 %v1438, %v975
  %v1521 = vmul.f32 %v1439, %v980
  %v1522 = vmul.f32 %v1440, %v985
  %v1523 = vmul.f32 %v1441, %v990
  %v1524 = vmul.f32 %v1442, %v995
  %v1525 = vmul.f32 %v1443, %v1000
  %v1526 = vmul.f32 %v1444, %v1005
  %v1527 = vmul.f32 %v1445, %v1010
  %v1528 = vmul.f32 %v1446, %v1015
  %v1529 = vmul.f32 %v1447, %v1020
  %v1530 = vmul.f32 %v1448, %v1025
  %v1531 = vmul.f32 %v1449, %v1030
  %v1532 = vmul.f32 %v1450, %v1035
  %v1533 = vmul.f32 %v1451, %v1040
  %v1534 = vmul.f32 %v1452, %v1045
  %v1535 = vmul.f32 %v1453, %v1050
  %v1536 = vmul.f32 %v1454, %v1055
  %v1537 = vmul.f32 %v1455, %v1060
  %v1538 = vmul.f32 %v1456, %v1065
  %v1539 = vmul.f32 %v1457, %v1070
  %v1540 = vmul.f32 %v1458, %v1075
  %v1541 = vmul.f32 %v1459, %v1080
  %v1542 = vmul.f32 %v1460, %v1085
  %v1543 = vmul.f32 %v1461, %v1090
  %v1544 = vmul.f32 %v1462, %v1095
  %v1545 = vmul.f32 %v1463, %v1100
  %v1546 = vmul.f32 %v1464, %v1105
  %v1547 = vmul.f32 %v1465, %v1110
  %v1548 = vmul.f32 %v1466, %v1115
  %v1549 = vmul.f32 %v1467, %v1120
  %v1550 = vmul.f32 %v1468, %v1125
  %v1551 = vmul.f32 %v1469, %v1130
  %v1552 = vmul.f32 %v1470, %v1135
  %v1553 = vadd.f32 %v1471, %v1472
  %v1554 = vadd.f32 %v1553, %v1473
  %v1555 = vadd.f32 %v1554, %v1474
  %v1556 = vadd.f32 %v1555, %v1475
  %v1557 = vadd.f32 %v1556, %v1476
  %v1558 = vadd.f32 %v1557, %v1477
  %v1559 = vadd.f32 %v1558, %v1478
  %v1560 = vadd.f32 %v1559, %v1479
  %v1561 = vadd.f32 %v1560, %v1480
  %v1562 = vadd.f32 %v1561, %v1481
  %v1563 = vadd.f32 %v1562, %v1482
  %v1564 = vadd.f32 %v1563, %v1483
  %v1565 = vadd.f32 %v1564, %v1484
  %v1566 = vadd.f32 %v1565, %v1485
  %v1567 = vadd.f32 %v1566, %v1486
  %v1568 = vadd.f32 %v1567, %v1487
  %v1569 = vadd.f32 %v1568, %v1488
  %v1570 = vadd.f32 %v1569, %v1489
  %v1571 = vadd.f32 %v1570, %v1490
  %v1572 = vadd.f32 %v1571, %v1491
  %v1573 = vadd.f32 %v1572, %v1492
  %v1574 = vadd.f32 %v1573, %v1493
  %v1575 = vadd.f32 %v1574, %v1494
  %v1576 = vadd.f32 %v1575, %v1495
  %v1577 = vadd.f32 %v1576, %v1496
  %v1578 = vadd.f32 %v1577, %v1497
  %v1579 = vadd.f32 %v1578, %v1498
  %v1580 = vadd.f32 %v1579, %v1499
  %v1581 = vadd.f32 %v1580, %v1500
  %v1582 = vadd.f32 %v1581, %v1501
  %v1583 = vadd.f32 %v1582, %v1502
  %v1584 = vadd.f32 %v1583, %v1503
  %v1585 = vadd.f32 %v1584, %v1504
  %v1586 = vadd.f32 %v1585, %v1505
  %v1587 = vadd.f32 %v1586, %v1506
  %v1588 = vadd.f32 %v1587, %v1507
  %v1589 = vadd.f32 %v1588, %v1508
  %v1590 = vadd.f32 %v1589, %v1509
  %v1591 = vadd.f32 %v1590, %v1510
  %v1592 = vadd.f32 %v1591, %v1511
  %v1593 = vadd.f32 %v1592, %v1512
  %v1594 = vadd.f32 %v1593, %v1513
  %v1595 = vadd.f32 %v1594, %v1514
  %v1596 = vadd.f32 %v1595, %v1515
  %v1597 = vadd.f32 %v1596, %v1516
  %v1598 = vadd.f32 %v1597, %v1517
  %v1599 = vadd.f32 %v1598, %v1518
  %v1600 = vadd.f32 %v1599, %v1519
  %v1601 = vadd.f32 %v1600, %v1520
  %v1602 = vadd.f32 %v1601, %v1521
  %v1603 = vadd.f32 %v1602, %v1522
  %v1604 = vadd.f32 %v1603, %v1523
  %v1605 = vadd.f32 %v1604, %v1524
  %v1606 = vadd.f32 %v1605, %v1525
  %v1607 = vadd.f32 %v1606, %v1526
  %v1608 = vadd.f32 %v1607, %v1527
  %v1609 = vadd.f32 %v1608, %v1528
  %v1610 = vadd.f32 %v1609, %v1529
  %v1611 = vadd.f32 %v1610, %v1530
  %v1612 = vadd.f32 %v1611, %v1531
  %v1613 = vadd.f32 %v1612, %v1532
  %v1614 = vadd.f32 %v1613, %v1533
  %v1615 = vadd.f32 %v1614, %v1534
  %v1616 = vadd.f32 %v1615, %v1535
  %v1617 = vadd.f32 %v1616, %v1536
  %v1618 = vadd.f32 %v1617, %v1537
  %v1619 = vadd.f32 %v1618, %v1538
  %v1620 = vadd.f32 %v1619, %v1539
  %v1621 = vadd.f32 %v1620, %v1540
  %v1622 = vadd.f32 %v1621, %v1541
  %v1623 = vadd.f32 %v1622, %v1542
  %v1624 = vadd.f32 %v1623, %v1543
  %v1625 = vadd.f32 %v1624, %v1544
  %v1626 = vadd.f32 %v1625, %v1545
  %v1627 = vadd.f32 %v1626, %v1546
  %v1628 = vadd.f32 %v1627, %v1547
  %v1629 = vadd.f32 %v1628, %v1548
  %v1630 = vadd.f32 %v1629, %v1549
  %v1631 = vadd.f32 %v1630, %v1550
  %v1632 = vadd.f32 %v1631, %v1551
  %v1633 = vadd.f32 %v1632, %v1552
  %v1634 = vrot.slane %v1633, 4
  %v1635 = vadd.f32 %v1633, %v1634
  %v1636 = vrot.slane %v1635, 2
  %v1637 = vadd.f32 %v1635, %v1636
  %v1638 = vrot.slane %v1637, 1
  %v1639 = vadd.f32 %v1637, %v1638
  %v1640 = vmul.f32 %v1639, 0.0015432099
  %v1641 = vadd.f32 %v1640, 1e-05
  %v1642 = vrsqrt.pop %v1641
  %v1643 = vmul.f32 %v1642, %v1641
  %v1644 = vmul.f32 %v1643, %v1642
  %v1645 = vmul.f32 0.5, %v1644
  %v1646 = vsub.f32 1.5, %v1645
  %v1647 = vmul.f32 %v1642, %v1646
  %vm1648 = vweird.f32 %v1641
  %vm1649 = vweird.f32 %v1642
  %vm1650 = vmor %vm1648, %vm1649
  %v1651 = vsel %vm1650, %v1642, %v1647
  %v1652 = vmul.f32 %v1307, %v1651
  %v1653 = vmul.f32 %v1308, %v1651
  %v1654 = vmul.f32 %v1309, %v1651
  %v1655 = vmul.f32 %v1310, %v1651
  %v1656 = vmul.f32 %v1311, %v1651
  %v1657 = vmul.f32 %v1312, %v1651
  %v1658 = vmul.f32 %v1313, %v1651
  %v1659 = vmul.f32 %v1314, %v1651
  %v1660 = vmul.f32 %v1315, %v1651
  %v1661 = vmul.f32 %v1316, %v1651
  %v1662 = vmul.f32 %v1317, %v1651
  %v1663 = vmul.f32 %v1318, %v1651
  %v1664 = vmul.f32 %v1319, %v1651
  %v1665 = vmul.f32 %v1320, %v1651
  %v1666 = vmul.f32 %v1321, %v1651
  %v1667 = vmul.f32 %v1322, %v1651
  %v1668 = vmul.f32 %v1323, %v1651
  %v1669 = vmul.f32 %v1324, %v1651
  %v1670 = vmul.f32 %v1325, %v1651
  %v1671 = vmul.f32 %v1326, %v1651
  %v1672 = vmul.f32 %v1327, %v1651
  %v1673 = vmul.f32 %v1328, %v1651
  %v1674 = vmul.f32 %v1329, %v1651
  %v1675 = vmul.f32 %v1330, %v1651
  %v1676 = vmul.f32 %v1331, %v1651
  %v1677 = vmul.f32 %v1332, %v1651
  %v1678 = vmul.f32 %v1333, %v1651
  %v1679 = vmul.f32 %v1334, %v1651
  %v1680 = vmul.f32 %v1335, %v1651
  %v1681 = vmul.f32 %v1336, %v1651
  %v1682 = vmul.f32 %v1337, %v1651
  %v1683 = vmul.f32 %v1338, %v1651
  %v1684 = vmul.f32 %v1339, %v1651
  %v1685 = vmul.f32 %v1340, %v1651
  %v1686 = vmul.f32 %v1341, %v1651
  %v1687 = vmul.f32 %v1342, %v1651
  %v1688 = vmul.f32 %v1343, %v1651
  %v1689 = vmul.f32 %v1344, %v1651
  %v1690 = vmul.f32 %v1345, %v1651
  %v1691 = vmul.f32 %v1346, %v1651
  %v1692 = vmul.f32 %v1348, %v1651
  %v1693 = vmul.f32 %v1349, %v1651
  %v1694 = vmul.f32 %v1350, %v1651
  %v1695 = vmul.f32 %v1351, %v1651
  %v1696 = vmul.f32 %v1352, %v1651
  %v1697 = vmul.f32 %v1353, %v1651
  %v1698 = vmul.f32 %v1354, %v1651
  %v1699 = vmul.f32 %v1355, %v1651
  %v1700 = vmul.f32 %v1356, %v1651
  %v1701 = vmul.f32 %v1357, %v1651
  %v1702 = vmul.f32 %v1358, %v1651
  %v1703 = vmul.f32 %v1359, %v1651
  %v1704 = vmul.f32 %v1360, %v1651
  %v1705 = vmul.f32 %v1361, %v1651
  %v1706 = vmul.f32 %v1362, %v1651
  %v1707 = vmul.f32 %v1363, %v1651
  %v1708 = vmul.f32 %v1364, %v1651
  %v1709 = vmul.f32 %v1365, %v1651
  %v1710 = vmul.f32 %v1366, %v1651
  %v1711 = vmul.f32 %v1367, %v1651
  %v1712 = vmul.f32 %v1368, %v1651
  %v1713 = vmul.f32 %v1369, %v1651
  %v1714 = vmul.f32 %v1370, %v1651
  %v1715 = vmul.f32 %v1371, %v1651
  %v1716 = vmul.f32 %v1372, %v1651
  %v1717 = vmul.f32 %v1373, %v1651
  %v1718 = vmul.f32 %v1374, %v1651
  %v1719 = vmul.f32 %v1375, %v1651
  %v1720 = vmul.f32 %v1376, %v1651
  %v1721 = vmul.f32 %v1377, %v1651
  %v1722 = vmul.f32 %v1378, %v1651
  %v1723 = vmul.f32 %v1379, %v1651
  %v1724 = vmul.f32 %v1380, %v1651
  %v1725 = vmul.f32 %v1381, %v1651
  %v1726 = vmul.f32 %v1382, %v1651
  %v1727 = vmul.f32 %v1383, %v1651
  %v1728 = vmul.f32 %v1384, %v1651
  %v1729 = vmul.f32 %v1385, %v1651
  %v1730 = vmul.f32 %v1386, %v1651
  %v1731 = vmul.f32 %v1387, %v1651
  %v1732 = vperm.slane %v38, 0
  %v1733 = vmul.f32 %v1652, %v1732
  %v1734 = vmul.f32 %v1653, %v1732
  %v1735 = vmul.f32 %v1654, %v1732
  %v1736 = vmul.f32 %v1655, %v1732
  %v1737 = vmul.f32 %v1656, %v1732
  %v1738 = vmul.f32 %v1657, %v1732
  %v1739 = vmul.f32 %v1658, %v1732
  %v1740 = vmul.f32 %v1659, %v1732
  %v1741 = vmul.f32 %v1660, %v1732
  %v1742 = vmul.f32 %v1661, %v1732
  %v1743 = vmul.f32 %v1662, %v1732
  %v1744 = vmul.f32 %v1663, %v1732
  %v1745 = vmul.f32 %v1664, %v1732
  %v1746 = vmul.f32 %v1665, %v1732
  %v1747 = vmul.f32 %v1666, %v1732
  %v1748 = vmul.f32 %v1667, %v1732
  %v1749 = vmul.f32 %v1668, %v1732
  %v1750 = vmul.f32 %v1669, %v1732
  %v1751 = vmul.f32 %v1670, %v1732
  %v1752 = vmul.f32 %v1671, %v1732
  %v1753 = vmul.f32 %v1672, %v1732
  %v1754 = vmul.f32 %v1673, %v1732
  %v1755 = vmul.f32 %v1674, %v1732
  %v1756 = vmul.f32 %v1675, %v1732
  %v1757 = vmul.f32 %v1676, %v1732
  %v1758 = vmul.f32 %v1677, %v1732
  %v1759 = vmul.f32 %v1678, %v1732
  %v1760 = vmul.f32 %v1679, %v1732
  %v1761 = vmul.f32 %v1680, %v1732
  %v1762 = vmul.f32 %v1681, %v1732
  %v1763 = vmul.f32 %v1682, %v1732
  %v1764 = vmul.f32 %v1683, %v1732
  %v1765 = vmul.f32 %v1684, %v1732
  %v1766 = vmul.f32 %v1685, %v1732
  %v1767 = vmul.f32 %v1686, %v1732
  %v1768 = vmul.f32 %v1687, %v1732
  %v1769 = vmul.f32 %v1688, %v1732
  %v1770 = vmul.f32 %v1689, %v1732
  %v1771 = vmul.f32 %v1690, %v1732
  %v1772 = vmul.f32 %v1691, %v1732
  %v1773 = vmul.f32 %v1692, %v1732
  %v1774 = vmul.f32 %v1693, %v1732
  %v1775 = vmul.f32 %v1694, %v1732
  %v1776 = vmul.f32 %v1695, %v1732
  %v1777 = vmul.f32 %v1696, %v1732
  %v1778 = vmul.f32 %v1697, %v1732
  %v1779 = vmul.f32 %v1698, %v1732
  %v1780 = vmul.f32 %v1699, %v1732
  %v1781 = vmul.f32 %v1700, %v1732
  %v1782 = vmul.f32 %v1701, %v1732
  %v1783 = vmul.f32 %v1702, %v1732
  %v1784 = vmul.f32 %v1703, %v1732
  %v1785 = vmul.f32 %v1704, %v1732
  %v1786 = vmul.f32 %v1705, %v1732
  %v1787 = vmul.f32 %v1706, %v1732
  %v1788 = vmul.f32 %v1707, %v1732
  %v1789 = vmul.f32 %v1708, %v1732
  %v1790 = vmul.f32 %v1709, %v1732
  %v1791 = vmul.f32 %v1710, %v1732
  %v1792 = vmul.f32 %v1711, %v1732
  %v1793 = vmul.f32 %v1712, %v1732
  %v1794 = vmul.f32 %v1713, %v1732
  %v1795 = vmul.f32 %v1714, %v1732
  %v1796 = vmul.f32 %v1715, %v1732
  %v1797 = vmul.f32 %v1716, %v1732
  %v1798 = vmul.f32 %v1717, %v1732
  %v1799 = vmul.f32 %v1718, %v1732
  %v1800 = vmul.f32 %v1719, %v1732
  %v1801 = vmul.f32 %v1720, %v1732
  %v1802 = vmul.f32 %v1721, %v1732
  %v1803 = vmul.f32 %v1722, %v1732
  %v1804 = vmul.f32 %v1723, %v1732
  %v1805 = vmul.f32 %v1724, %v1732
  %v1806 = vmul.f32 %v1725, %v1732
  %v1807 = vmul.f32 %v1726, %v1732
  %v1808 = vmul.f32 %v1727, %v1732
  %v1809 = vmul.f32 %v1728, %v1732
  %v1810 = vmul.f32 %v1729, %v1732
  %v1811 = vmul.f32 %v1730, %v1732
  %v1812 = vmul.f32 %v1731, %v1732
  %v1813 = vperm.slane %v38, 1
  %v1814 = vadd.f32 %v1733, %v1813
  %v1815 = vadd.f32 %v1734, %v1813
  %v1816 = vadd.f32 %v1735, %v1813
  %v1817 = vadd.f32 %v1736, %v1813
  %v1818 = vadd.f32 %v1737, %v1813
  %v1819 = vadd.f32 %v1738, %v1813
  %v1820 = vadd.f32 %v1739, %v1813
  %v1821 = vadd.f32 %v1740, %v1813
  %v1822 = vadd.f32 %v1741, %v1813
  %v1823 = vadd.f32 %v1742, %v1813
  %v1824 = vadd.f32 %v1743, %v1813
  %v1825 = vadd.f32 %v1744, %v1813
  %v1826 = vadd.f32 %v1745, %v1813
  %v1827 = vadd.f32 %v1746, %v1813
  %v1828 = vadd.f32 %v1747, %v1813
  %v1829 = vadd.f32 %v1748, %v1813
  %v1830 = vadd.f32 %v1749, %v1813
  %v1831 = vadd.f32 %v1750, %v1813
  %v1832 = vadd.f32 %v1751, %v1813
  %v1833 = vadd.f32 %v1752, %v1813
  %v1834 = vadd.f32 %v1753, %v1813
  %v1835 = vadd.f32 %v1754, %v1813
  %v1836 = vadd.f32 %v1755, %v1813
  %v1837 = vadd.f32 %v1756, %v1813
  %v1838 = vadd.f32 %v1757, %v1813
  %v1839 = vadd.f32 %v1758, %v1813
  %v1840 = vadd.f32 %v1759, %v1813
  %v1841 = vadd.f32 %v1760, %v1813
  %v1842 = vadd.f32 %v1761, %v1813
  %v1843 = vadd.f32 %v1762, %v1813
  %v1844 = vadd.f32 %v1763, %v1813
  %v1845 = vadd.f32 %v1764, %v1813
  %v1846 = vadd.f32 %v1765, %v1813
  %v1847 = vadd.f32 %v1766, %v1813
  %v1848 = vadd.f32 %v1767, %v1813
  %v1849 = vadd.f32 %v1768, %v1813
  %v1850 = vadd.f32 %v1769, %v1813
  %v1851 = vadd.f32 %v1770, %v1813
  %v1852 = vadd.f32 %v1771, %v1813
  %v1853 = vadd.f32 %v1772, %v1813
  %v1854 = vadd.f32 %v1773, %v1813
  %v1855 = vadd.f32 %v1774, %v1813
  %v1856 = vadd.f32 %v1775, %v1813
  %v1857 = vadd.f32 %v1776, %v1813
  %v1858 = vadd.f32 %v1777, %v1813
  %v1859 = vadd.f32 %v1778, %v1813
  %v1860 = vadd.f32 %v1779, %v1813
  %v1861 = vadd.f32 %v1780, %v1813
  %v1862 = vadd.f32 %v1781, %v1813
  %v1863 = vadd.f32 %v1782, %v1813
  %v1864 = vadd.f32 %v1783, %v1813
  %v1865 = vadd.f32 %v1784, %v1813
  %v1866 = vadd.f32 %v1785, %v1813
  %v1867 = vadd.f32 %v1786, %v1813
  %v1868 = vadd.f32 %v1787, %v1813
  %v1869 = vadd.f32 %v1788, %v1813
  %v1870 = vadd.f32 %v1789, %v1813
  %v1871 = vadd.f32 %v1790, %v1813
  %v1872 = vadd.f32 %v1791, %v1813
  %v1873 = vadd.f32 %v1792, %v1813
  %v1874 = vadd.f32 %v1793, %v1813
  %v1875 = vadd.f32 %v1794, %v1813
  %v1876 = vadd.f32 %v1795, %v1813
  %v1877 = vadd.f32 %v1796, %v1813
  %v1878 = vadd.f32 %v1797, %v1813
  %v1879 = vadd.f32 %v1798, %v1813
  %v1880 = vadd.f32 %v1799, %v1813
  %v1881 = vadd.f32 %v1800, %v1813
  %v1882 = vadd.f32 %v1801, %v1813
  %v1883 = vadd.f32 %v1802, %v1813
  %v1884 = vadd.f32 %v1803, %v1813
  %v1885 = vadd.f32 %v1804, %v1813
  %v1886 = vadd.f32 %v1805, %v1813
  %v1887 = vadd.f32 %v1806, %v1813
  %v1888 = vadd.f32 %v1807, %v1813
  %v1889 = vadd.f32 %v1808, %v1813
  %v1890 = vadd.f32 %v1809, %v1813
  %v1891 = vadd.f32 %v1810, %v1813
  %v1892 = vadd.f32 %v1811, %v1813
  %v1893 = vadd.f32 %v1812, %v1813
  %v1894 = vmax.f32 %v1814, 0.0
  %v1895 = vmax.f32 %v1815, 0.0
  %v1896 = vmax.f32 %v1816, 0.0
  %v1897 = vmax.f32 %v1817, 0.0
  %v1898 = vmax.f32 %v1818, 0.0
  %v1899 = vmax.f32 %v1819, 0.0
  %v1900 = vmax.f32 %v1820, 0.0
  %v1901 = vmax.f32 %v1821, 0.0
  %v1902 = vmax.f32 %v1822, 0.0
  %v1903 = vmax.f32 %v1823, 0.0
  %v1904 = vmax.f32 %v1824, 0.0
  %v1905 = vmax.f32 %v1825, 0.0
  %v1906 = vmax.f32 %v1826, 0.0
  %v1907 = vmax.f32 %v1827, 0.0
  %v1908 = vmax.f32 %v1828, 0.0
  %v1909 = vmax.f32 %v1829, 0.0
  %v1910 = vmax.f32 %v1830, 0.0
  %v1911 = vmax.f32 %v1831, 0.0
  %v1912 = vmax.f32 %v1832, 0.0
  %v1913 = vmax.f32 %v1833, 0.0
  %v1914 = vmax.f32 %v1834, 0.0
  %v1915 = vmax.f32 %v1835, 0.0
  %v1916 = vmax.f32 %v1836, 0.0
  %v1917 = vmax.f32 %v1837, 0.0
  %v1918 = vmax.f32 %v1838, 0.0
  %v1919 = vmax.f32 %v1839, 0.0
  %v1920 = vmax.f32 %v1840, 0.0
  %v1921 = vmax.f32 %v1841, 0.0
  %v1922 = vmax.f32 %v1842, 0.0
  %v1923 = vmax.f32 %v1843, 0.0
  %v1924 = vmax.f32 %v1844, 0.0
  %v1925 = vmax.f32 %v1845, 0.0
  %v1926 = vmax.f32 %v1846, 0.0
  %v1927 = vmax.f32 %v1847, 0.0
  %v1928 = vmax.f32 %v1848, 0.0
  %v1929 = vmax.f32 %v1849, 0.0
  %v1930 = vmax.f32 %v1850, 0.0
  %v1931 = vmax.f32 %v1851, 0.0
  %v1932 = vmax.f32 %v1852, 0.0
  %v1933 = vmax.f32 %v1853, 0.0
  %v1934 = vmax.f32 %v1854, 0.0
  %v1935 = vmax.f32 %v1855, 0.0
  %v1936 = vmax.f32 %v1856, 0.0
  %v1937 = vmax.f32 %v1857, 0.0
  %v1938 = vmax.f32 %v1858, 0.0
  %v1939 = vmax.f32 %v1859, 0.0
  %v1940 = vmax.f32 %v1860, 0.0
  %v1941 = vmax.f32 %v1861, 0.0
  %v1942 = vmax.f32 %v1862, 0.0
  %v1943 = vmax.f32 %v1863, 0.0
  %v1944 = vmax.f32 %v1864, 0.0
  %v1945 = vmax.f32 %v1865, 0.0
  %v1946 = vmax.f32 %v1866, 0.0
  %v1947 = vmax.f32 %v1867, 0.0
  %v1948 = vmax.f32 %v1868, 0.0
  %v1949 = vmax.f32 %v1869, 0.0
  %v1950 = vmax.f32 %v1870, 0.0
  %v1951 = vmax.f32 %v1871, 0.0
  %v1952 = vmax.f32 %v1872, 0.0
  %v1953 = vmax.f32 %v1873, 0.0
  %v1954 = vmax.f32 %v1874, 0.0
  %v1955 = vmax.f32 %v1875, 0.0
  %v1956 = vmax.f32 %v1876, 0.0
  %v1957 = vmax.f32 %v1877, 0.0
  %v1958 = vmax.f32 %v1878, 0.0
  %v1959 = vmax.f32 %v1879, 0.0
  %v1960 = vmax.f32 %v1880, 0.0
  %v1961 = vmax.f32 %v1881, 0.0
  %v1962 = vmax.f32 %v1882, 0.0
  %v1963 = vmax.f32 %v1883, 0.0
  %v1964 = vmax.f32 %v1884, 0.0
  %v1965 = vmax.f32 %v1885, 0.0
  %v1966 = vmax.f32 %v1886, 0.0
  %v1967 = vmax.f32 %v1887, 0.0
  %v1968 = vmax.f32 %v1888, 0.0
  %v1969 = vmax.f32 %v1889, 0.0
  %v1970 = vmax.f32 %v1890, 0.0
  %v1971 = vmax.f32 %v1891, 0.0
  %v1972 = vmax.f32 %v1892, 0.0
  %v1973 = vmax.f32 %v1893, 0.0
  %v1974 = vld [vmem:[%s2] sm:$0xf]
  %v1975 = vld [vmem:[%s2 + $0x4] sm:$0xf]
  %v1976 = vld [vmem:[%s2 + $0x8] sm:$0xf]
  %v1977 = vld [vmem:[%s2 + $0xc] sm:$0xf]
  %v1978 = vld [vmem:[%s2 + $0x10] sm:$0xf]
  %v1979 = vld [vmem:[%s2 + $0x14] sm:$0xf]
  %v1980 = vld [vmem:[%s2 + $0x18] sm:$0xf]
  %v1981 = vld [vmem:[%s2 + $0x1c] sm:$0xf]
  %v1982 = vld [vmem:[%s2 + $0x20] sm:$0xf]
  %v1983 = vld [vmem:[%s2 + $0x24] sm:$0xf]
  %v1984 = vld [vmem:[%s2 + $0x28] sm:$0xf]
  %v1985 = vld [vmem:[%s2 + $0x2c] sm:$0xf]
  %v1986 = vld [vmem:[%s2 + $0x30] sm:$0xf]
  %v1987 = vld [vmem:[%s2 + $0x34] sm:$0xf]
  %v1988 = vld [vmem:[%s2 + $0x38] sm:$0xf]
  %v1989 = vld [vmem:[%s2 + $0x3c] sm:$0xf]
  %v1990 = vld [vmem:[%s2 + $0x40] sm:$0xf]
  %v1991 = vld [vmem:[%s2 + $0x44] sm:$0xf]
  %v1992 = vld [vmem:[%s2 + $0x48] sm:$0xf]
  %v1993 = vld [vmem:[%s2 + $0x4c] sm:$0xf]
  %v1994 = vld [vmem:[%s2 + $0x50] sm:$0xf]
  %v1995 = vld [vmem:[%s2 + $0x54] sm:$0xf]
  %v1996 = vld [vmem:[%s2 + $0x58] sm:$0xf]
  %v1997 = vld [vmem:[%s2 + $0x5c] sm:$0xf]
  %v1998 = vld [vmem:[%s2 + $0x60] sm:$0xf]
  %v1999 = vld [vmem:[%s2 + $0x64] sm:$0xf]
  %v2000 = vld [vmem:[%s2 + $0x68] sm:$0xf]
  %v2001 = vld [vmem:[%s2 + $0x6c] sm:$0xf]
  %v2002 = vld [vmem:[%s2 + $0x70] sm:$0xf]
  %v2003 = vld [vmem:[%s2 + $0x74] sm:$0xf]
  %v2004 = vld [vmem:[%s2 + $0x78] sm:$0xf]
  %v2005 = vld [vmem:[%s2 + $0x7c] sm:$0xf]
  %v2006 = vld [vmem:[%s2 + $0x80] sm:$0xf]
  %v2007 = vld [vmem:[%s2 + $0x84] sm:$0xf]
  %v2008 = vld [vmem:[%s2 + $0x88] sm:$0xf]
  %v2009 = vld [vmem:[%s2 + $0x8c] sm:$0xf]
  %v2010 = vld [vmem:[%s2 + $0x90] sm:$0xf]
  %v2011 = vld [vmem:[%s2 + $0x94] sm:$0xf]
  %v2012 = vld [vmem:[%s2 + $0x98] sm:$0xf]
  %v2013 = vld [vmem:[%s2 + $0x9c] sm:$0xf]
  %v2014 = vld [vmem:[%s2 + $0xa0] sm:$0xf]
  %v2015 = vld [vmem:[%s2 + $0xa4] sm:$0xf]
  %v2016 = vld [vmem:[%s2 + $0xa8] sm:$0xf]
  %v2017 = vld [vmem:[%s2 + $0xac] sm:$0xf]
  %v2018 = vld [vmem:[%s2 + $0xb0] sm:$0xf]
  %v2019 = vld [vmem:[%s2 + $0xb4] sm:$0xf]
  %v2020 = vld [vmem:[%s2 + $0xb8] sm:$0xf]
  %v2021 = vld [vmem:[%s2 + $0xbc] sm:$0xf]
  %v2022 = vld [vmem:[%s2 + $0xc0] sm:$0xf]
  %v2023 = vld [vmem:[%s2 + $0xc4] sm:$0xf]
  %v2024 = vld [vmem:[%s2 + $0xc8] sm:$0xf]
  %v2025 = vld [vmem:[%s2 + $0xcc] sm:$0xf]
  %v2026 = vld [vmem:[%s2 + $0xd0] sm:$0xf]
  %v2027 = vld [vmem:[%s2 + $0xd4] sm:$0xf]
  %v2028 = vld [vmem:[%s2 + $0xd8] sm:$0xf]
  %v2029 = vld [vmem:[%s2 + $0xdc] sm:$0xf]
  %v2030 = vld [vmem:[%s2 + $0xe0] sm:$0xf]
  %v2031 = vld [vmem:[%s2 + $0xe4] sm:$0xf]
  %v2032 = vld [vmem:[%s2 + $0xe8] sm:$0xf]
  %v2033 = vld [vmem:[%s2 + $0xec] sm:$0xf]
  %v2034 = vld [vmem:[%s2 + $0xf0] sm:$0xf]
  %v2035 = vld [vmem:[%s2 + $0xf4] sm:$0xf]
  %v2036 = vld [vmem:[%s2 + $0xf8] sm:$0xf]
  %v2037 = vld [vmem:[%s2 + $0xfc] sm:$0xf]
  %v2038 = vpack.c.bf16 %v1895, %v1894
  %v2039 = vpack.c.bf16 %v1897, %v1896
  %v2040 = vpack.c.bf16 %v1899, %v1898
  %v2041 = vpack.c.bf16 %v1901, %v1900
  %v2042 = vpack.c.bf16 %v1935, %v1934
  %v2043 = vpack.c.bf16 %v1937, %v1936
  %v2044 = vpack.c.bf16 %v1939, %v1938
  %v2045 = vpack.c.bf16 %v1941, %v1940
  %v2046 = vpack.c.bf16 %v1905, %v1904
  %v2047 = vpack.c.bf16 %v1907, %v1906
  %v2048 = vpack.c.bf16 %v1909, %v1908
  %v2049 = vpack.c.bf16 %v1911, %v1910
  %vm2050 = vsmask.f32 7424
  %v2052 = vshrl.u32 %v2046, 16
  %v2054 = vshll.u32 %v2046, 16
  %v2056 = vrot.slane %v2054, 1
  %v2057 = vor.u32 %v2052, %v2056
  %v2059 = vshll.u32 %v2047, 16
  %v2061 = vrot.slane %v2059, 1
  %v2062 = vsel %vm2050, %v2057, %v2061
  %v2063 = vshrl.u32 %v2047, 16
  %v2065 = vor.u32 %v2063, %v2061
  %v2067 = vshll.u32 %v2048, 16
  %v2069 = vrot.slane %v2067, 1
  %v2070 = vsel %vm2050, %v2065, %v2069
  %v2071 = vshrl.u32 %v2048, 16
  %v2073 = vor.u32 %v2071, %v2069
  %v2075 = vshll.u32 %v2049, 16
  %v2077 = vrot.slane %v2075, 1
  %v2078 = vsel %vm2050, %v2073, %v2077
  %v2079 = vshrl.u32 %v2049, 16
  %v2081 = vor.u32 %v2079, %v2077
  %v2102 = vunpack.c.l.b16 %v1976
  %v2103 = vunpack.c.l.b16 %v1977
  %v2104 = vunpack.c.l.b16 %v1978
  %v2105 = vunpack.c.l.b16 %v1979
  %v2106 = vunpack.c.l.b16 %v1980
  %v2107 = vunpack.c.l.b16 %v1981
  %v2108 = vunpack.c.l.b16 %v1982
  %v2109 = vunpack.c.l.b16 %v1983
  %v2110 = vunpack.c.l.b16 %v1984
  %v2111 = vunpack.c.l.b16 %v1985
  %v2112 = vunpack.c.l.b16 %v1986
  %v2113 = vunpack.c.l.b16 %v1987
  %v2114 = vunpack.c.l.b16 %v1988
  %v2115 = vunpack.c.l.b16 %v1989
  %v2116 = vunpack.c.l.b16 %v1990
  %v2117 = vunpack.c.l.b16 %v1991
  %v2118 = vpack.c.b16 %v2103, %v2102
  %v2119 = vpack.c.b16 %v2105, %v2104
  %v2120 = vpack.c.b16 %v2107, %v2106
  %v2121 = vpack.c.b16 %v2109, %v2108
  %v2122 = vpack.c.b16 %v2111, %v2110
  %v2123 = vpack.c.b16 %v2113, %v2112
  %v2124 = vpack.c.b16 %v2115, %v2114
  %v2125 = vpack.c.b16 %v2117, %v2116
  %2134 = vmatpush.bf16.msra.mxu0 %v2125
  %2135 = vmatpush.bf16.msra.mxu0 %v2124
  %2136 = vmatpush.bf16.msra.mxu0 %v2123
  %2137 = vmatpush.bf16.msra.mxu0 %v2122
  %2138 = vmatpush.bf16.msra.mxu0 %v2121
  %2139 = vmatpush.bf16.msra.mxu0 %v2120
  %2140 = vmatpush.bf16.msra.mxu0 %v2119
  %2141 = vmatpush.bf16.msra.mxu0 %v2118
  %2142 = vmatmul.bf16.gmra.mxu0 %v2062
  %v2143 = vpop.f32.mrf.mxu0
  %v2144 = vadd.f32 0.0, %v2143
  %v2145 = vpop.f32.mrf.mxu0
  %v2146 = vadd.f32 0.0, %v2145
  %2147 = vmatmul.bf16.gmra.mxu0 %v2070
  %v2148 = vpop.f32.mrf.mxu0
  %v2149 = vadd.f32 0.0, %v2148
  %v2150 = vpop.f32.mrf.mxu0
  %v2151 = vadd.f32 0.0, %v2150
  %2152 = vmatmul.bf16.gmra.mxu0 %v2078
  %v2153 = vpop.f32.mrf.mxu0
  %v2154 = vadd.f32 0.0, %v2153
  %v2155 = vpop.f32.mrf.mxu0
  %v2156 = vadd.f32 0.0, %v2155
  %2157 = vmatmul.bf16.gmra.mxu0 %v2081
  %v2158 = vpop.f32.mrf.mxu0
  %v2159 = vadd.f32 0.0, %v2158
  %v2160 = vpop.f32.mrf.mxu0
  %v2161 = vadd.f32 0.0, %v2160
  %2162 = vdwg.mxu0
  %v2165 = vunpack.c.l.b16 %v1974
  %v2166 = vunpack.c.l.b16 %v1975
  %v2167 = vpack.c.b16 %v2166, %v2165
  %2169 = vmatpush.bf16.msra.mxu0 %v2124
  %2170 = vmatpush.bf16.msra.mxu0 %v2123
  %2171 = vmatpush.bf16.msra.mxu0 %v2122
  %2172 = vmatpush.bf16.msra.mxu0 %v2121
  %2173 = vmatpush.bf16.msra.mxu0 %v2120
  %2174 = vmatpush.bf16.msra.mxu0 %v2119
  %2175 = vmatpush.bf16.msra.mxu0 %v2118
  %2176 = vmatpush.bf16.msra.mxu0 %v2167
  %2177 = vmatmul.bf16.gmra.mxu0 %v2038
  %v2178 = vpop.f32.mrf.mxu0
  %v2179 = vadd.f32 %v2144, %v2178
  %v2180 = vpop.f32.mrf.mxu0
  %v2181 = vadd.f32 %v2146, %v2180
  %2182 = vmatmul.bf16.gmra.mxu0 %v2039
  %v2183 = vpop.f32.mrf.mxu0
  %v2184 = vadd.f32 %v2149, %v2183
  %v2185 = vpop.f32.mrf.mxu0
  %v2186 = vadd.f32 %v2151, %v2185
  %2187 = vmatmul.bf16.gmra.mxu0 %v2040
  %v2188 = vpop.f32.mrf.mxu0
  %v2189 = vadd.f32 %v2154, %v2188
  %v2190 = vpop.f32.mrf.mxu0
  %v2191 = vadd.f32 %v2156, %v2190
  %2192 = vmatmul.bf16.gmra.mxu0 %v2041
  %v2193 = vpop.f32.mrf.mxu0
  %v2194 = vadd.f32 %v2159, %v2193
  %v2195 = vpop.f32.mrf.mxu0
  %v2196 = vadd.f32 %v2161, %v2195
  %2197 = vdwg.mxu0
  %v2198 = vpack.c.bf16 %v1945, %v1944
  %v2199 = vpack.c.bf16 %v1947, %v1946
  %v2200 = vpack.c.bf16 %v1949, %v1948
  %v2201 = vpack.c.bf16 %v1951, %v1950
  %v2203 = vshrl.u32 %v2198, 16
  %v2205 = vshll.u32 %v2198, 16
  %v2207 = vrot.slane %v2205, 1
  %v2208 = vor.u32 %v2203, %v2207
  %v2210 = vshll.u32 %v2199, 16
  %v2212 = vrot.slane %v2210, 1
  %v2213 = vsel %vm2050, %v2208, %v2212
  %v2214 = vshrl.u32 %v2199, 16
  %v2216 = vor.u32 %v2214, %v2212
  %v2218 = vshll.u32 %v2200, 16
  %v2220 = vrot.slane %v2218, 1
  %v2221 = vsel %vm2050, %v2216, %v2220
  %v2222 = vshrl.u32 %v2200, 16
  %v2224 = vor.u32 %v2222, %v2220
  %v2226 = vshll.u32 %v2201, 16
  %v2228 = vrot.slane %v2226, 1
  %v2229 = vsel %vm2050, %v2224, %v2228
  %v2230 = vshrl.u32 %v2201, 16
  %v2232 = vor.u32 %v2230, %v2228
  %2237 = vmatpush.bf16.msra.mxu0 %v2125
  %2238 = vmatpush.bf16.msra.mxu0 %v2124
  %2239 = vmatpush.bf16.msra.mxu0 %v2123
  %2240 = vmatpush.bf16.msra.mxu0 %v2122
  %2241 = vmatpush.bf16.msra.mxu0 %v2121
  %2242 = vmatpush.bf16.msra.mxu0 %v2120
  %2243 = vmatpush.bf16.msra.mxu0 %v2119
  %2244 = vmatpush.bf16.msra.mxu0 %v2118
  %2245 = vmatmul.bf16.gmra.mxu0 %v2213
  %v2246 = vpop.f32.mrf.mxu0
  %v2247 = vadd.f32 0.0, %v2246
  %v2248 = vpop.f32.mrf.mxu0
  %v2249 = vadd.f32 0.0, %v2248
  %2250 = vmatmul.bf16.gmra.mxu0 %v2221
  %v2251 = vpop.f32.mrf.mxu0
  %v2252 = vadd.f32 0.0, %v2251
  %v2253 = vpop.f32.mrf.mxu0
  %v2254 = vadd.f32 0.0, %v2253
  %2255 = vmatmul.bf16.gmra.mxu0 %v2229
  %v2256 = vpop.f32.mrf.mxu0
  %v2257 = vadd.f32 0.0, %v2256
  %v2258 = vpop.f32.mrf.mxu0
  %v2259 = vadd.f32 0.0, %v2258
  %2260 = vmatmul.bf16.gmra.mxu0 %v2232
  %v2261 = vpop.f32.mrf.mxu0
  %v2262 = vadd.f32 0.0, %v2261
  %v2263 = vpop.f32.mrf.mxu0
  %v2264 = vadd.f32 0.0, %v2263
  %2265 = vdwg.mxu0
  %2266 = vmatpush.bf16.msra.mxu0 %v2124
  %2267 = vmatpush.bf16.msra.mxu0 %v2123
  %2268 = vmatpush.bf16.msra.mxu0 %v2122
  %2269 = vmatpush.bf16.msra.mxu0 %v2121
  %2270 = vmatpush.bf16.msra.mxu0 %v2120
  %2271 = vmatpush.bf16.msra.mxu0 %v2119
  %2272 = vmatpush.bf16.msra.mxu0 %v2118
  %2273 = vmatpush.bf16.msra.mxu0 %v2167
  %2274 = vmatmul.bf16.gmra.mxu0 %v2042
  %v2275 = vpop.f32.mrf.mxu0
  %v2276 = vadd.f32 %v2247, %v2275
  %v2277 = vpop.f32.mrf.mxu0
  %v2278 = vadd.f32 %v2249, %v2277
  %2279 = vmatmul.bf16.gmra.mxu0 %v2043
  %v2280 = vpop.f32.mrf.mxu0
  %v2281 = vadd.f32 %v2252, %v2280
  %v2282 = vpop.f32.mrf.mxu0
  %v2283 = vadd.f32 %v2254, %v2282
  %2284 = vmatmul.bf16.gmra.mxu0 %v2044
  %v2285 = vpop.f32.mrf.mxu0
  %v2286 = vadd.f32 %v2257, %v2285
  %v2287 = vpop.f32.mrf.mxu0
  %v2288 = vadd.f32 %v2259, %v2287
  %2289 = vmatmul.bf16.gmra.mxu0 %v2045
  %v2290 = vpop.f32.mrf.mxu0
  %v2291 = vadd.f32 %v2262, %v2290
  %v2292 = vpop.f32.mrf.mxu0
  %v2293 = vadd.f32 %v2264, %v2292
  %2294 = vdwg.mxu0
  %v2296 = vshrl.u32 %v2038, 16
  %v2298 = vshll.u32 %v2038, 16
  %v2300 = vrot.slane %v2298, 1
  %v2301 = vor.u32 %v2296, %v2300
  %v2303 = vshll.u32 %v2039, 16
  %v2305 = vrot.slane %v2303, 1
  %v2306 = vsel %vm2050, %v2301, %v2305
  %v2307 = vshrl.u32 %v2039, 16
  %v2309 = vor.u32 %v2307, %v2305
  %v2311 = vshll.u32 %v2040, 16
  %v2313 = vrot.slane %v2311, 1
  %v2314 = vsel %vm2050, %v2309, %v2313
  %v2315 = vshrl.u32 %v2040, 16
  %v2317 = vor.u32 %v2315, %v2313
  %v2319 = vshll.u32 %v2041, 16
  %v2321 = vrot.slane %v2319, 1
  %v2322 = vsel %vm2050, %v2317, %v2321
  %v2323 = vshrl.u32 %v2041, 16
  %v2325 = vor.u32 %v2323, %v2321
  %v2332 = vunpack.c.l.b16 %v1992
  %v2333 = vunpack.c.l.b16 %v1993
  %v2334 = vpack.c.b16 %v2333, %v2332
  %2336 = vmatpush.bf16.msra.mxu0 %v2334
  %2337 = vmatpush.bf16.msra.mxu0 %v2125
  %2338 = vmatpush.bf16.msra.mxu0 %v2124
  %2339 = vmatpush.bf16.msra.mxu0 %v2123
  %2340 = vmatpush.bf16.msra.mxu0 %v2122
  %2341 = vmatpush.bf16.msra.mxu0 %v2121
  %2342 = vmatpush.bf16.msra.mxu0 %v2120
  %2343 = vmatpush.bf16.msra.mxu0 %v2119
  %2344 = vmatmul.bf16.gmra.mxu0 %v2306
  %v2345 = vpop.f32.mrf.mxu0
  %v2346 = vadd.f32 0.0, %v2345
  %v2347 = vpop.f32.mrf.mxu0
  %v2348 = vadd.f32 0.0, %v2347
  %2349 = vmatmul.bf16.gmra.mxu0 %v2314
  %v2350 = vpop.f32.mrf.mxu0
  %v2351 = vadd.f32 0.0, %v2350
  %v2352 = vpop.f32.mrf.mxu0
  %v2353 = vadd.f32 0.0, %v2352
  %2354 = vmatmul.bf16.gmra.mxu0 %v2322
  %v2355 = vpop.f32.mrf.mxu0
  %v2356 = vadd.f32 0.0, %v2355
  %v2357 = vpop.f32.mrf.mxu0
  %v2358 = vadd.f32 0.0, %v2357
  %2359 = vmatmul.bf16.gmra.mxu0 %v2325
  %v2360 = vpop.f32.mrf.mxu0
  %v2361 = vadd.f32 0.0, %v2360
  %v2362 = vpop.f32.mrf.mxu0
  %v2363 = vadd.f32 0.0, %v2362
  %2364 = vdwg.mxu0
  %v2365 = vadd.f32 %v2179, %v2346
  %v2366 = vadd.f32 %v2181, %v2348
  %v2367 = vadd.f32 %v2184, %v2351
  %v2368 = vadd.f32 %v2186, %v2353
  %v2369 = vadd.f32 %v2189, %v2356
  %v2370 = vadd.f32 %v2191, %v2358
  %v2371 = vadd.f32 %v2194, %v2361
  %v2372 = vadd.f32 %v2196, %v2363
  %v2374 = vshrl.u32 %v2042, 16
  %v2376 = vshll.u32 %v2042, 16
  %v2378 = vrot.slane %v2376, 1
  %v2379 = vor.u32 %v2374, %v2378
  %v2381 = vshll.u32 %v2043, 16
  %v2383 = vrot.slane %v2381, 1
  %v2384 = vsel %vm2050, %v2379, %v2383
  %v2385 = vshrl.u32 %v2043, 16
  %v2387 = vor.u32 %v2385, %v2383
  %v2389 = vshll.u32 %v2044, 16
  %v2391 = vrot.slane %v2389, 1
  %v2392 = vsel %vm2050, %v2387, %v2391
  %v2393 = vshrl.u32 %v2044, 16
  %v2395 = vor.u32 %v2393, %v2391
  %v2397 = vshll.u32 %v2045, 16
  %v2399 = vrot.slane %v2397, 1
  %v2400 = vsel %vm2050, %v2395, %v2399
  %v2401 = vshrl.u32 %v2045, 16
  %v2403 = vor.u32 %v2401, %v2399
  %2408 = vmatpush.bf16.msra.mxu0 %v2334
  %2409 = vmatpush.bf16.msra.mxu0 %v2125
  %2410 = vmatpush.bf16.msra.mxu0 %v2124
  %2411 = vmatpush.bf16.msra.mxu0 %v2123
  %2412 = vmatpush.bf16.msra.mxu0 %v2122
  %2413 = vmatpush.bf16.msra.mxu0 %v2121
  %2414 = vmatpush.bf16.msra.mxu0 %v2120
  %2415 = vmatpush.bf16.msra.mxu0 %v2119
  %2416 = vmatmul.bf16.gmra.mxu0 %v2384
  %v2417 = vpop.f32.mrf.mxu0
  %v2418 = vadd.f32 0.0, %v2417
  %v2419 = vpop.f32.mrf.mxu0
  %v2420 = vadd.f32 0.0, %v2419
  %2421 = vmatmul.bf16.gmra.mxu0 %v2392
  %v2422 = vpop.f32.mrf.mxu0
  %v2423 = vadd.f32 0.0, %v2422
  %v2424 = vpop.f32.mrf.mxu0
  %v2425 = vadd.f32 0.0, %v2424
  %2426 = vmatmul.bf16.gmra.mxu0 %v2400
  %v2427 = vpop.f32.mrf.mxu0
  %v2428 = vadd.f32 0.0, %v2427
  %v2429 = vpop.f32.mrf.mxu0
  %v2430 = vadd.f32 0.0, %v2429
  %2431 = vmatmul.bf16.gmra.mxu0 %v2403
  %v2432 = vpop.f32.mrf.mxu0
  %v2433 = vadd.f32 0.0, %v2432
  %v2434 = vpop.f32.mrf.mxu0
  %v2435 = vadd.f32 0.0, %v2434
  %2436 = vdwg.mxu0
  %v2437 = vadd.f32 %v2276, %v2418
  %v2438 = vadd.f32 %v2278, %v2420
  %v2439 = vadd.f32 %v2281, %v2423
  %v2440 = vadd.f32 %v2283, %v2425
  %v2441 = vadd.f32 %v2286, %v2428
  %v2442 = vadd.f32 %v2288, %v2430
  %v2443 = vadd.f32 %v2291, %v2433
  %v2444 = vadd.f32 %v2293, %v2435
  %v2445 = vpack.c.bf16 %v1912, %v1912
  %vm2451 = vcmask 1046528
  %v2452 = vrot.slane %v2046, 1
  %v2453 = vrot.slane %v2047, 1
  %v2454 = vsel %vm2451, %v2452, %v2453
  %v2455 = vrot.slane %v2048, 1
  %v2456 = vsel %vm2451, %v2453, %v2455
  %v2457 = vrot.slane %v2049, 1
  %v2458 = vsel %vm2451, %v2455, %v2457
  %v2459 = vrot.slane %v2445, 1
  %v2460 = vsel %vm2451, %v2457, %v2459
  %v2467 = vunpack.c.l.b16 %v1994
  %v2468 = vunpack.c.l.b16 %v1995
  %v2469 = vpack.c.b16 %v2468, %v2467
  %2471 = vmatpush.bf16.msra.mxu0 %v2469
  %2472 = vmatpush.bf16.msra.mxu0 %v2334
  %2473 = vmatpush.bf16.msra.mxu0 %v2125
  %2474 = vmatpush.bf16.msra.mxu0 %v2124
  %2475 = vmatpush.bf16.msra.mxu0 %v2123
  %2476 = vmatpush.bf16.msra.mxu0 %v2122
  %2477 = vmatpush.bf16.msra.mxu0 %v2121
  %2478 = vmatpush.bf16.msra.mxu0 %v2120
  %2479 = vmatmul.bf16.gmra.mxu0 %v2454
  %v2480 = vpop.f32.mrf.mxu0
  %v2481 = vadd.f32 0.0, %v2480
  %v2482 = vpop.f32.mrf.mxu0
  %v2483 = vadd.f32 0.0, %v2482
  %2484 = vmatmul.bf16.gmra.mxu0 %v2456
  %v2485 = vpop.f32.mrf.mxu0
  %v2486 = vadd.f32 0.0, %v2485
  %v2487 = vpop.f32.mrf.mxu0
  %v2488 = vadd.f32 0.0, %v2487
  %2489 = vmatmul.bf16.gmra.mxu0 %v2458
  %v2490 = vpop.f32.mrf.mxu0
  %v2491 = vadd.f32 0.0, %v2490
  %v2492 = vpop.f32.mrf.mxu0
  %v2493 = vadd.f32 0.0, %v2492
  %2494 = vmatmul.bf16.gmra.mxu0 %v2460
  %v2495 = vpop.f32.mrf.mxu0
  %v2496 = vadd.f32 0.0, %v2495
  %v2497 = vpop.f32.mrf.mxu0
  %v2498 = vadd.f32 0.0, %v2497
  %2499 = vdwg.mxu0
  %v2500 = vadd.f32 %v2365, %v2481
  %v2501 = vadd.f32 %v2366, %v2483
  %v2502 = vadd.f32 %v2367, %v2486
  %v2503 = vadd.f32 %v2368, %v2488
  %v2504 = vadd.f32 %v2369, %v2491
  %v2505 = vadd.f32 %v2370, %v2493
  %v2506 = vadd.f32 %v2371, %v2496
  %v2507 = vadd.f32 %v2372, %v2498
  %v2508 = vpack.c.bf16 %v1952, %v1952
  %v2514 = vrot.slane %v2198, 1
  %v2515 = vrot.slane %v2199, 1
  %v2516 = vsel %vm2451, %v2514, %v2515
  %v2517 = vrot.slane %v2200, 1
  %v2518 = vsel %vm2451, %v2515, %v2517
  %v2519 = vrot.slane %v2201, 1
  %v2520 = vsel %vm2451, %v2517, %v2519
  %v2521 = vrot.slane %v2508, 1
  %v2522 = vsel %vm2451, %v2519, %v2521
  %2527 = vmatpush.bf16.msra.mxu0 %v2469
  %2528 = vmatpush.bf16.msra.mxu0 %v2334
  %2529 = vmatpush.bf16.msra.mxu0 %v2125
  %2530 = vmatpush.bf16.msra.mxu0 %v2124
  %2531 = vmatpush.bf16.msra.mxu0 %v2123
  %2532 = vmatpush.bf16.msra.mxu0 %v2122
  %2533 = vmatpush.bf16.msra.mxu0 %v2121
  %2534 = vmatpush.bf16.msra.mxu0 %v2120
  %2535 = vmatmul.bf16.gmra.mxu0 %v2516
  %v2536 = vpop.f32.mrf.mxu0
  %v2537 = vadd.f32 0.0, %v2536
  %v2538 = vpop.f32.mrf.mxu0
  %v2539 = vadd.f32 0.0, %v2538
  %2540 = vmatmul.bf16.gmra.mxu0 %v2518
  %v2541 = vpop.f32.mrf.mxu0
  %v2542 = vadd.f32 0.0, %v2541
  %v2543 = vpop.f32.mrf.mxu0
  %v2544 = vadd.f32 0.0, %v2543
  %2545 = vmatmul.bf16.gmra.mxu0 %v2520
  %v2546 = vpop.f32.mrf.mxu0
  %v2547 = vadd.f32 0.0, %v2546
  %v2548 = vpop.f32.mrf.mxu0
  %v2549 = vadd.f32 0.0, %v2548
  %2550 = vmatmul.bf16.gmra.mxu0 %v2522
  %v2551 = vpop.f32.mrf.mxu0
  %v2552 = vadd.f32 0.0, %v2551
  %v2553 = vpop.f32.mrf.mxu0
  %v2554 = vadd.f32 0.0, %v2553
  %2555 = vdwg.mxu0
  %v2556 = vadd.f32 %v2437, %v2537
  %v2557 = vadd.f32 %v2438, %v2539
  %v2558 = vadd.f32 %v2439, %v2542
  %v2559 = vadd.f32 %v2440, %v2544
  %v2560 = vadd.f32 %v2441, %v2547
  %v2561 = vadd.f32 %v2442, %v2549
  %v2562 = vadd.f32 %v2443, %v2552
  %v2563 = vadd.f32 %v2444, %v2554
  %v2564 = vpack.c.bf16 %v1902, %v1902
  %v2570 = vrot.slane %v2038, 1
  %v2571 = vrot.slane %v2039, 1
  %v2572 = vsel %vm2451, %v2570, %v2571
  %v2573 = vrot.slane %v2040, 1
  %v2574 = vsel %vm2451, %v2571, %v2573
  %v2575 = vrot.slane %v2041, 1
  %v2576 = vsel %vm2451, %v2573, %v2575
  %v2577 = vrot.slane %v2564, 1
  %v2578 = vsel %vm2451, %v2575, %v2577
  %v2585 = vunpack.c.l.b16 %v1996
  %v2586 = vunpack.c.l.b16 %v1997
  %v2587 = vpack.c.b16 %v2586, %v2585
  %2589 = vmatpush.bf16.msra.mxu0 %v2587
  %2590 = vmatpush.bf16.msra.mxu0 %v2469
  %2591 = vmatpush.bf16.msra.mxu0 %v2334
  %2592 = vmatpush.bf16.msra.mxu0 %v2125
  %2593 = vmatpush.bf16.msra.mxu0 %v2124
  %2594 = vmatpush.bf16.msra.mxu0 %v2123
  %2595 = vmatpush.bf16.msra.mxu0 %v2122
  %2596 = vmatpush.bf16.msra.mxu0 %v2121
  %2597 = vmatmul.bf16.gmra.mxu0 %v2572
  %v2598 = vpop.f32.mrf.mxu0
  %v2599 = vadd.f32 0.0, %v2598
  %v2600 = vpop.f32.mrf.mxu0
  %v2601 = vadd.f32 0.0, %v2600
  %2602 = vmatmul.bf16.gmra.mxu0 %v2574
  %v2603 = vpop.f32.mrf.mxu0
  %v2604 = vadd.f32 0.0, %v2603
  %v2605 = vpop.f32.mrf.mxu0
  %v2606 = vadd.f32 0.0, %v2605
  %2607 = vmatmul.bf16.gmra.mxu0 %v2576
  %v2608 = vpop.f32.mrf.mxu0
  %v2609 = vadd.f32 0.0, %v2608
  %v2610 = vpop.f32.mrf.mxu0
  %v2611 = vadd.f32 0.0, %v2610
  %2612 = vmatmul.bf16.gmra.mxu0 %v2578
  %v2613 = vpop.f32.mrf.mxu0
  %v2614 = vadd.f32 0.0, %v2613
  %v2615 = vpop.f32.mrf.mxu0
  %v2616 = vadd.f32 0.0, %v2615
  %2617 = vdwg.mxu0
  %v2618 = vadd.f32 %v2500, %v2599
  %v2619 = vadd.f32 %v2501, %v2601
  %v2620 = vadd.f32 %v2502, %v2604
  %v2621 = vadd.f32 %v2503, %v2606
  %v2622 = vadd.f32 %v2504, %v2609
  %v2623 = vadd.f32 %v2505, %v2611
  %v2624 = vadd.f32 %v2506, %v2614
  %v2625 = vadd.f32 %v2507, %v2616
  %v2626 = vpack.c.bf16 %v1942, %v1942
  %v2632 = vrot.slane %v2042, 1
  %v2633 = vrot.slane %v2043, 1
  %v2634 = vsel %vm2451, %v2632, %v2633
  %v2635 = vrot.slane %v2044, 1
  %v2636 = vsel %vm2451, %v2633, %v2635
  %v2637 = vrot.slane %v2045, 1
  %v2638 = vsel %vm2451, %v2635, %v2637
  %v2639 = vrot.slane %v2626, 1
  %v2640 = vsel %vm2451, %v2637, %v2639
  %2645 = vmatpush.bf16.msra.mxu0 %v2587
  %2646 = vmatpush.bf16.msra.mxu0 %v2469
  %2647 = vmatpush.bf16.msra.mxu0 %v2334
  %2648 = vmatpush.bf16.msra.mxu0 %v2125
  %2649 = vmatpush.bf16.msra.mxu0 %v2124
  %2650 = vmatpush.bf16.msra.mxu0 %v2123
  %2651 = vmatpush.bf16.msra.mxu0 %v2122
  %2652 = vmatpush.bf16.msra.mxu0 %v2121
  %2653 = vmatmul.bf16.gmra.mxu0 %v2634
  %v2654 = vpop.f32.mrf.mxu0
  %v2655 = vadd.f32 0.0, %v2654
  %v2656 = vpop.f32.mrf.mxu0
  %v2657 = vadd.f32 0.0, %v2656
  %2658 = vmatmul.bf16.gmra.mxu0 %v2636
  %v2659 = vpop.f32.mrf.mxu0
  %v2660 = vadd.f32 0.0, %v2659
  %v2661 = vpop.f32.mrf.mxu0
  %v2662 = vadd.f32 0.0, %v2661
  %2663 = vmatmul.bf16.gmra.mxu0 %v2638
  %v2664 = vpop.f32.mrf.mxu0
  %v2665 = vadd.f32 0.0, %v2664
  %v2666 = vpop.f32.mrf.mxu0
  %v2667 = vadd.f32 0.0, %v2666
  %2668 = vmatmul.bf16.gmra.mxu0 %v2640
  %v2669 = vpop.f32.mrf.mxu0
  %v2670 = vadd.f32 0.0, %v2669
  %v2671 = vpop.f32.mrf.mxu0
  %v2672 = vadd.f32 0.0, %v2671
  %2673 = vdwg.mxu0
  %v2674 = vadd.f32 %v2556, %v2655
  %v2675 = vadd.f32 %v2557, %v2657
  %v2676 = vadd.f32 %v2558, %v2660
  %v2677 = vadd.f32 %v2559, %v2662
  %v2678 = vadd.f32 %v2560, %v2665
  %v2679 = vadd.f32 %v2561, %v2667
  %v2680 = vadd.f32 %v2562, %v2670
  %v2681 = vadd.f32 %v2563, %v2672
  %v2682 = vpack.c.bf16 %v1915, %v1914
  %v2683 = vpack.c.bf16 %v1917, %v1916
  %v2684 = vpack.c.bf16 %v1919, %v1918
  %v2685 = vpack.c.bf16 %v1921, %v1920
  %v2686 = vpack.c.bf16 %v1922, %v1922
  %v2692 = vrot.slane %v2682, 1
  %v2693 = vrot.slane %v2683, 1
  %v2694 = vsel %vm2451, %v2692, %v2693
  %v2695 = vrot.slane %v2684, 1
  %v2696 = vsel %vm2451, %v2693, %v2695
  %v2697 = vrot.slane %v2685, 1
  %v2698 = vsel %vm2451, %v2695, %v2697
  %v2699 = vrot.slane %v2686, 1
  %v2700 = vsel %vm2451, %v2697, %v2699
  %v2707 = vunpack.c.l.b16 %v1998
  %v2708 = vunpack.c.l.b16 %v1999
  %v2709 = vpack.c.b16 %v2708, %v2707
  %2711 = vmatpush.bf16.msra.mxu0 %v2709
  %2712 = vmatpush.bf16.msra.mxu0 %v2587
  %2713 = vmatpush.bf16.msra.mxu0 %v2469
  %2714 = vmatpush.bf16.msra.mxu0 %v2334
  %2715 = vmatpush.bf16.msra.mxu0 %v2125
  %2716 = vmatpush.bf16.msra.mxu0 %v2124
  %2717 = vmatpush.bf16.msra.mxu0 %v2123
  %2718 = vmatpush.bf16.msra.mxu0 %v2122
  %2719 = vmatmul.bf16.gmra.mxu0 %v2694
  %v2720 = vpop.f32.mrf.mxu0
  %v2721 = vadd.f32 0.0, %v2720
  %v2722 = vpop.f32.mrf.mxu0
  %v2723 = vadd.f32 0.0, %v2722
  %2724 = vmatmul.bf16.gmra.mxu0 %v2696
  %v2725 = vpop.f32.mrf.mxu0
  %v2726 = vadd.f32 0.0, %v2725
  %v2727 = vpop.f32.mrf.mxu0
  %v2728 = vadd.f32 0.0, %v2727
  %2729 = vmatmul.bf16.gmra.mxu0 %v2698
  %v2730 = vpop.f32.mrf.mxu0
  %v2731 = vadd.f32 0.0, %v2730
  %v2732 = vpop.f32.mrf.mxu0
  %v2733 = vadd.f32 0.0, %v2732
  %2734 = vmatmul.bf16.gmra.mxu0 %v2700
  %v2735 = vpop.f32.mrf.mxu0
  %v2736 = vadd.f32 0.0, %v2735
  %v2737 = vpop.f32.mrf.mxu0
  %v2738 = vadd.f32 0.0, %v2737
  %2739 = vdwg.mxu0
  %v2740 = vadd.f32 %v2618, %v2721
  %v2741 = vadd.f32 %v2619, %v2723
  %v2742 = vadd.f32 %v2620, %v2726
  %v2743 = vadd.f32 %v2621, %v2728
  %v2744 = vadd.f32 %v2622, %v2731
  %v2745 = vadd.f32 %v2623, %v2733
  %v2746 = vadd.f32 %v2624, %v2736
  %v2747 = vadd.f32 %v2625, %v2738
  %v2748 = vpack.c.bf16 %v1955, %v1954
  %v2749 = vpack.c.bf16 %v1957, %v1956
  %v2750 = vpack.c.bf16 %v1959, %v1958
  %v2751 = vpack.c.bf16 %v1961, %v1960
  %v2752 = vpack.c.bf16 %v1962, %v1962
  %v2758 = vrot.slane %v2748, 1
  %v2759 = vrot.slane %v2749, 1
  %v2760 = vsel %vm2451, %v2758, %v2759
  %v2761 = vrot.slane %v2750, 1
  %v2762 = vsel %vm2451, %v2759, %v2761
  %v2763 = vrot.slane %v2751, 1
  %v2764 = vsel %vm2451, %v2761, %v2763
  %v2765 = vrot.slane %v2752, 1
  %v2766 = vsel %vm2451, %v2763, %v2765
  %2771 = vmatpush.bf16.msra.mxu0 %v2709
  %2772 = vmatpush.bf16.msra.mxu0 %v2587
  %2773 = vmatpush.bf16.msra.mxu0 %v2469
  %2774 = vmatpush.bf16.msra.mxu0 %v2334
  %2775 = vmatpush.bf16.msra.mxu0 %v2125
  %2776 = vmatpush.bf16.msra.mxu0 %v2124
  %2777 = vmatpush.bf16.msra.mxu0 %v2123
  %2778 = vmatpush.bf16.msra.mxu0 %v2122
  %2779 = vmatmul.bf16.gmra.mxu0 %v2760
  %v2780 = vpop.f32.mrf.mxu0
  %v2781 = vadd.f32 0.0, %v2780
  %v2782 = vpop.f32.mrf.mxu0
  %v2783 = vadd.f32 0.0, %v2782
  %2784 = vmatmul.bf16.gmra.mxu0 %v2762
  %v2785 = vpop.f32.mrf.mxu0
  %v2786 = vadd.f32 0.0, %v2785
  %v2787 = vpop.f32.mrf.mxu0
  %v2788 = vadd.f32 0.0, %v2787
  %2789 = vmatmul.bf16.gmra.mxu0 %v2764
  %v2790 = vpop.f32.mrf.mxu0
  %v2791 = vadd.f32 0.0, %v2790
  %v2792 = vpop.f32.mrf.mxu0
  %v2793 = vadd.f32 0.0, %v2792
  %2794 = vmatmul.bf16.gmra.mxu0 %v2766
  %v2795 = vpop.f32.mrf.mxu0
  %v2796 = vadd.f32 0.0, %v2795
  %v2797 = vpop.f32.mrf.mxu0
  %v2798 = vadd.f32 0.0, %v2797
  %2799 = vdwg.mxu0
  %v2800 = vadd.f32 %v2674, %v2781
  %v2801 = vadd.f32 %v2675, %v2783
  %v2802 = vadd.f32 %v2676, %v2786
  %v2803 = vadd.f32 %v2677, %v2788
  %v2804 = vadd.f32 %v2678, %v2791
  %v2805 = vadd.f32 %v2679, %v2793
  %v2806 = vadd.f32 %v2680, %v2796
  %v2807 = vadd.f32 %v2681, %v2798
  %v2808 = vpack.c.bf16 %v1925, %v1924
  %v2809 = vpack.c.bf16 %v1927, %v1926
  %v2810 = vpack.c.bf16 %v1929, %v1928
  %v2811 = vpack.c.bf16 %v1931, %v1930
  %v2812 = vpack.c.bf16 %v1932, %v1932
  %vm2813 = vsmask.f32 6400
  %v2815 = vshrl.u32 %v2808, 16
  %v2817 = vrot.slane %v2815, 1
  %v2818 = vshll.u32 %v2808, 16
  %v2820 = vrot.slane %v2818, 2
  %v2821 = vor.u32 %v2817, %v2820
  %v2823 = vshrl.u32 %v2809, 16
  %v2825 = vrot.slane %v2823, 1
  %v2826 = vshll.u32 %v2809, 16
  %v2828 = vrot.slane %v2826, 2
  %v2829 = vor.u32 %v2825, %v2828
  %v2830 = vsel %vm2813, %v2821, %v2829
  %v2832 = vshrl.u32 %v2810, 16
  %v2834 = vrot.slane %v2832, 1
  %v2835 = vshll.u32 %v2810, 16
  %v2837 = vrot.slane %v2835, 2
  %v2838 = vor.u32 %v2834, %v2837
  %v2839 = vsel %vm2813, %v2829, %v2838
  %v2841 = vshrl.u32 %v2811, 16
  %v2843 = vrot.slane %v2841, 1
  %v2844 = vshll.u32 %v2811, 16
  %v2846 = vrot.slane %v2844, 2
  %v2847 = vor.u32 %v2843, %v2846
  %v2848 = vsel %vm2813, %v2838, %v2847
  %v2850 = vshrl.u32 %v2812, 16
  %v2852 = vrot.slane %v2850, 1
  %v2853 = vshll.u32 %v2812, 16
  %v2855 = vrot.slane %v2853, 2
  %v2856 = vor.u32 %v2852, %v2855
  %v2857 = vsel %vm2813, %v2847, %v2856
  %v2864 = vunpack.c.l.b16 %v2000
  %v2865 = vunpack.c.l.b16 %v2001
  %v2866 = vpack.c.b16 %v2865, %v2864
  %2868 = vmatpush.bf16.msra.mxu0 %v2866
  %2869 = vmatpush.bf16.msra.mxu0 %v2709
  %2870 = vmatpush.bf16.msra.mxu0 %v2587
  %2871 = vmatpush.bf16.msra.mxu0 %v2469
  %2872 = vmatpush.bf16.msra.mxu0 %v2334
  %2873 = vmatpush.bf16.msra.mxu0 %v2125
  %2874 = vmatpush.bf16.msra.mxu0 %v2124
  %2875 = vmatpush.bf16.msra.mxu0 %v2123
  %2876 = vmatmul.bf16.gmra.mxu0 %v2830
  %v2877 = vpop.f32.mrf.mxu0
  %v2878 = vadd.f32 0.0, %v2877
  %v2879 = vpop.f32.mrf.mxu0
  %v2880 = vadd.f32 0.0, %v2879
  %2881 = vmatmul.bf16.gmra.mxu0 %v2839
  %v2882 = vpop.f32.mrf.mxu0
  %v2883 = vadd.f32 0.0, %v2882
  %v2884 = vpop.f32.mrf.mxu0
  %v2885 = vadd.f32 0.0, %v2884
  %2886 = vmatmul.bf16.gmra.mxu0 %v2848
  %v2887 = vpop.f32.mrf.mxu0
  %v2888 = vadd.f32 0.0, %v2887
  %v2889 = vpop.f32.mrf.mxu0
  %v2890 = vadd.f32 0.0, %v2889
  %2891 = vmatmul.bf16.gmra.mxu0 %v2857
  %v2892 = vpop.f32.mrf.mxu0
  %v2893 = vadd.f32 0.0, %v2892
  %v2894 = vpop.f32.mrf.mxu0
  %v2895 = vadd.f32 0.0, %v2894
  %2896 = vdwg.mxu0
  %v2897 = vadd.f32 %v2740, %v2878
  %v2898 = vadd.f32 %v2741, %v2880
  %v2899 = vadd.f32 %v2742, %v2883
  %v2900 = vadd.f32 %v2743, %v2885
  %v2901 = vadd.f32 %v2744, %v2888
  %v2902 = vadd.f32 %v2745, %v2890
  %v2903 = vadd.f32 %v2746, %v2893
  %v2904 = vadd.f32 %v2747, %v2895
  %v2905 = vpack.c.bf16 %v1965, %v1964
  %v2906 = vpack.c.bf16 %v1967, %v1966
  %v2907 = vpack.c.bf16 %v1969, %v1968
  %v2908 = vpack.c.bf16 %v1971, %v1970
  %v2909 = vpack.c.bf16 %v1972, %v1972
  %v2911 = vshrl.u32 %v2905, 16
  %v2913 = vrot.slane %v2911, 1
  %v2914 = vshll.u32 %v2905, 16
  %v2916 = vrot.slane %v2914, 2
  %v2917 = vor.u32 %v2913, %v2916
  %v2919 = vshrl.u32 %v2906, 16
  %v2921 = vrot.slane %v2919, 1
  %v2922 = vshll.u32 %v2906, 16
  %v2924 = vrot.slane %v2922, 2
  %v2925 = vor.u32 %v2921, %v2924
  %v2926 = vsel %vm2813, %v2917, %v2925
  %v2928 = vshrl.u32 %v2907, 16
  %v2930 = vrot.slane %v2928, 1
  %v2931 = vshll.u32 %v2907, 16
  %v2933 = vrot.slane %v2931, 2
  %v2934 = vor.u32 %v2930, %v2933
  %v2935 = vsel %vm2813, %v2925, %v2934
  %v2937 = vshrl.u32 %v2908, 16
  %v2939 = vrot.slane %v2937, 1
  %v2940 = vshll.u32 %v2908, 16
  %v2942 = vrot.slane %v2940, 2
  %v2943 = vor.u32 %v2939, %v2942
  %v2944 = vsel %vm2813, %v2934, %v2943
  %v2946 = vshrl.u32 %v2909, 16
  %v2948 = vrot.slane %v2946, 1
  %v2949 = vshll.u32 %v2909, 16
  %v2951 = vrot.slane %v2949, 2
  %v2952 = vor.u32 %v2948, %v2951
  %v2953 = vsel %vm2813, %v2943, %v2952
  %2958 = vmatpush.bf16.msra.mxu0 %v2866
  %2959 = vmatpush.bf16.msra.mxu0 %v2709
  %2960 = vmatpush.bf16.msra.mxu0 %v2587
  %2961 = vmatpush.bf16.msra.mxu0 %v2469
  %2962 = vmatpush.bf16.msra.mxu0 %v2334
  %2963 = vmatpush.bf16.msra.mxu0 %v2125
  %2964 = vmatpush.bf16.msra.mxu0 %v2124
  %2965 = vmatpush.bf16.msra.mxu0 %v2123
  %2966 = vmatmul.bf16.gmra.mxu0 %v2926
  %v2967 = vpop.f32.mrf.mxu0
  %v2968 = vadd.f32 0.0, %v2967
  %v2969 = vpop.f32.mrf.mxu0
  %v2970 = vadd.f32 0.0, %v2969
  %2971 = vmatmul.bf16.gmra.mxu0 %v2935
  %v2972 = vpop.f32.mrf.mxu0
  %v2973 = vadd.f32 0.0, %v2972
  %v2974 = vpop.f32.mrf.mxu0
  %v2975 = vadd.f32 0.0, %v2974
  %2976 = vmatmul.bf16.gmra.mxu0 %v2944
  %v2977 = vpop.f32.mrf.mxu0
  %v2978 = vadd.f32 0.0, %v2977
  %v2979 = vpop.f32.mrf.mxu0
  %v2980 = vadd.f32 0.0, %v2979
  %2981 = vmatmul.bf16.gmra.mxu0 %v2953
  %v2982 = vpop.f32.mrf.mxu0
  %v2983 = vadd.f32 0.0, %v2982
  %v2984 = vpop.f32.mrf.mxu0
  %v2985 = vadd.f32 0.0, %v2984
  %2986 = vdwg.mxu0
  %v2987 = vadd.f32 %v2800, %v2968
  %v2988 = vadd.f32 %v2801, %v2970
  %v2989 = vadd.f32 %v2802, %v2973
  %v2990 = vadd.f32 %v2803, %v2975
  %v2991 = vadd.f32 %v2804, %v2978
  %v2992 = vadd.f32 %v2805, %v2980
  %v2993 = vadd.f32 %v2806, %v2983
  %v2994 = vadd.f32 %v2807, %v2985
  %v2996 = vshrl.u32 %v2682, 16
  %v2998 = vrot.slane %v2996, 1
  %v2999 = vshll.u32 %v2682, 16
  %v3001 = vrot.slane %v2999, 2
  %v3002 = vor.u32 %v2998, %v3001
  %v3004 = vshrl.u32 %v2683, 16
  %v3006 = vrot.slane %v3004, 1
  %v3007 = vshll.u32 %v2683, 16
  %v3009 = vrot.slane %v3007, 2
  %v3010 = vor.u32 %v3006, %v3009
  %v3011 = vsel %vm2813, %v3002, %v3010
  %v3013 = vshrl.u32 %v2684, 16
  %v3015 = vrot.slane %v3013, 1
  %v3016 = vshll.u32 %v2684, 16
  %v3018 = vrot.slane %v3016, 2
  %v3019 = vor.u32 %v3015, %v3018
  %v3020 = vsel %vm2813, %v3010, %v3019
  %v3022 = vshrl.u32 %v2685, 16
  %v3024 = vrot.slane %v3022, 1
  %v3025 = vshll.u32 %v2685, 16
  %v3027 = vrot.slane %v3025, 2
  %v3028 = vor.u32 %v3024, %v3027
  %v3029 = vsel %vm2813, %v3019, %v3028
  %v3031 = vshrl.u32 %v2686, 16
  %v3033 = vrot.slane %v3031, 1
  %v3034 = vshll.u32 %v2686, 16
  %v3036 = vrot.slane %v3034, 2
  %v3037 = vor.u32 %v3033, %v3036
  %v3038 = vsel %vm2813, %v3028, %v3037
  %v3045 = vunpack.c.l.b16 %v2002
  %v3046 = vunpack.c.l.b16 %v2003
  %v3047 = vpack.c.b16 %v3046, %v3045
  %3049 = vmatpush.bf16.msra.mxu0 %v3047
  %3050 = vmatpush.bf16.msra.mxu0 %v2866
  %3051 = vmatpush.bf16.msra.mxu0 %v2709
  %3052 = vmatpush.bf16.msra.mxu0 %v2587
  %3053 = vmatpush.bf16.msra.mxu0 %v2469
  %3054 = vmatpush.bf16.msra.mxu0 %v2334
  %3055 = vmatpush.bf16.msra.mxu0 %v2125
  %3056 = vmatpush.bf16.msra.mxu0 %v2124
  %3057 = vmatmul.bf16.gmra.mxu0 %v3011
  %v3058 = vpop.f32.mrf.mxu0
  %v3059 = vadd.f32 0.0, %v3058
  %v3060 = vpop.f32.mrf.mxu0
  %v3061 = vadd.f32 0.0, %v3060
  %3062 = vmatmul.bf16.gmra.mxu0 %v3020
  %v3063 = vpop.f32.mrf.mxu0
  %v3064 = vadd.f32 0.0, %v3063
  %v3065 = vpop.f32.mrf.mxu0
  %v3066 = vadd.f32 0.0, %v3065
  %3067 = vmatmul.bf16.gmra.mxu0 %v3029
  %v3068 = vpop.f32.mrf.mxu0
  %v3069 = vadd.f32 0.0, %v3068
  %v3070 = vpop.f32.mrf.mxu0
  %v3071 = vadd.f32 0.0, %v3070
  %3072 = vmatmul.bf16.gmra.mxu0 %v3038
  %v3073 = vpop.f32.mrf.mxu0
  %v3074 = vadd.f32 0.0, %v3073
  %v3075 = vpop.f32.mrf.mxu0
  %v3076 = vadd.f32 0.0, %v3075
  %3077 = vdwg.mxu0
  %v3078 = vadd.f32 %v2897, %v3059
  %v3079 = vadd.f32 %v2898, %v3061
  %v3080 = vadd.f32 %v2899, %v3064
  %v3081 = vadd.f32 %v2900, %v3066
  %v3082 = vadd.f32 %v2901, %v3069
  %v3083 = vadd.f32 %v2902, %v3071
  %v3084 = vadd.f32 %v2903, %v3074
  %v3085 = vadd.f32 %v2904, %v3076
  %v3087 = vshrl.u32 %v2748, 16
  %v3089 = vrot.slane %v3087, 1
  %v3090 = vshll.u32 %v2748, 16
  %v3092 = vrot.slane %v3090, 2
  %v3093 = vor.u32 %v3089, %v3092
  %v3095 = vshrl.u32 %v2749, 16
  %v3097 = vrot.slane %v3095, 1
  %v3098 = vshll.u32 %v2749, 16
  %v3100 = vrot.slane %v3098, 2
  %v3101 = vor.u32 %v3097, %v3100
  %v3102 = vsel %vm2813, %v3093, %v3101
  %v3104 = vshrl.u32 %v2750, 16
  %v3106 = vrot.slane %v3104, 1
  %v3107 = vshll.u32 %v2750, 16
  %v3109 = vrot.slane %v3107, 2
  %v3110 = vor.u32 %v3106, %v3109
  %v3111 = vsel %vm2813, %v3101, %v3110
  %v3113 = vshrl.u32 %v2751, 16
  %v3115 = vrot.slane %v3113, 1
  %v3116 = vshll.u32 %v2751, 16
  %v3118 = vrot.slane %v3116, 2
  %v3119 = vor.u32 %v3115, %v3118
  %v3120 = vsel %vm2813, %v3110, %v3119
  %v3122 = vshrl.u32 %v2752, 16
  %v3124 = vrot.slane %v3122, 1
  %v3125 = vshll.u32 %v2752, 16
  %v3127 = vrot.slane %v3125, 2
  %v3128 = vor.u32 %v3124, %v3127
  %v3129 = vsel %vm2813, %v3119, %v3128
  %3134 = vmatpush.bf16.msra.mxu0 %v3047
  %3135 = vmatpush.bf16.msra.mxu0 %v2866
  %3136 = vmatpush.bf16.msra.mxu0 %v2709
  %3137 = vmatpush.bf16.msra.mxu0 %v2587
  %3138 = vmatpush.bf16.msra.mxu0 %v2469
  %3139 = vmatpush.bf16.msra.mxu0 %v2334
  %3140 = vmatpush.bf16.msra.mxu0 %v2125
  %3141 = vmatpush.bf16.msra.mxu0 %v2124
  %3142 = vmatmul.bf16.gmra.mxu0 %v3102
  %v3143 = vpop.f32.mrf.mxu0
  %v3144 = vadd.f32 0.0, %v3143
  %v3145 = vpop.f32.mrf.mxu0
  %v3146 = vadd.f32 0.0, %v3145
  %3147 = vmatmul.bf16.gmra.mxu0 %v3111
  %v3148 = vpop.f32.mrf.mxu0
  %v3149 = vadd.f32 0.0, %v3148
  %v3150 = vpop.f32.mrf.mxu0
  %v3151 = vadd.f32 0.0, %v3150
  %3152 = vmatmul.bf16.gmra.mxu0 %v3120
  %v3153 = vpop.f32.mrf.mxu0
  %v3154 = vadd.f32 0.0, %v3153
  %v3155 = vpop.f32.mrf.mxu0
  %v3156 = vadd.f32 0.0, %v3155
  %3157 = vmatmul.bf16.gmra.mxu0 %v3129
  %v3158 = vpop.f32.mrf.mxu0
  %v3159 = vadd.f32 0.0, %v3158
  %v3160 = vpop.f32.mrf.mxu0
  %v3161 = vadd.f32 0.0, %v3160
  %3162 = vdwg.mxu0
  %v3163 = vadd.f32 %v2987, %v3144
  %v3164 = vadd.f32 %v2988, %v3146
  %v3165 = vadd.f32 %v2989, %v3149
  %v3166 = vadd.f32 %v2990, %v3151
  %v3167 = vadd.f32 %v2991, %v3154
  %v3168 = vadd.f32 %v2992, %v3156
  %v3169 = vadd.f32 %v2993, %v3159
  %v3170 = vadd.f32 %v2994, %v3161
  %vm3176 = vcmask 1045504
  %v3177 = vrot.slane %v2808, 2
  %v3178 = vrot.slane %v2809, 2
  %v3179 = vsel %vm3176, %v3177, %v3178
  %v3180 = vrot.slane %v2810, 2
  %v3181 = vsel %vm3176, %v3178, %v3180
  %v3182 = vrot.slane %v2811, 2
  %v3183 = vsel %vm3176, %v3180, %v3182
  %v3184 = vrot.slane %v2812, 2
  %v3185 = vsel %vm3176, %v3182, %v3184
  %v3192 = vunpack.c.l.b16 %v2004
  %v3193 = vunpack.c.l.b16 %v2005
  %v3194 = vpack.c.b16 %v3193, %v3192
  %3196 = vmatpush.bf16.msra.mxu0 %v3194
  %3197 = vmatpush.bf16.msra.mxu0 %v3047
  %3198 = vmatpush.bf16.msra.mxu0 %v2866
  %3199 = vmatpush.bf16.msra.mxu0 %v2709
  %3200 = vmatpush.bf16.msra.mxu0 %v2587
  %3201 = vmatpush.bf16.msra.mxu0 %v2469
  %3202 = vmatpush.bf16.msra.mxu0 %v2334
  %3203 = vmatpush.bf16.msra.mxu0 %v2125
  %3204 = vmatmul.bf16.gmra.mxu0 %v3179
  %v3205 = vpop.f32.mrf.mxu0
  %v3206 = vadd.f32 0.0, %v3205
  %v3207 = vpop.f32.mrf.mxu0
  %v3208 = vadd.f32 0.0, %v3207
  %3209 = vmatmul.bf16.gmra.mxu0 %v3181
  %v3210 = vpop.f32.mrf.mxu0
  %v3211 = vadd.f32 0.0, %v3210
  %v3212 = vpop.f32.mrf.mxu0
  %v3213 = vadd.f32 0.0, %v3212
  %3214 = vmatmul.bf16.gmra.mxu0 %v3183
  %v3215 = vpop.f32.mrf.mxu0
  %v3216 = vadd.f32 0.0, %v3215
  %v3217 = vpop.f32.mrf.mxu0
  %v3218 = vadd.f32 0.0, %v3217
  %3219 = vmatmul.bf16.gmra.mxu0 %v3185
  %v3220 = vpop.f32.mrf.mxu0
  %v3221 = vadd.f32 0.0, %v3220
  %v3222 = vpop.f32.mrf.mxu0
  %v3223 = vadd.f32 0.0, %v3222
  %3224 = vdwg.mxu0
  %v3225 = vadd.f32 %v3078, %v3206
  %v3226 = vadd.f32 %v3079, %v3208
  %v3227 = vadd.f32 %v3080, %v3211
  %v3228 = vadd.f32 %v3081, %v3213
  %v3229 = vadd.f32 %v3082, %v3216
  %v3230 = vadd.f32 %v3083, %v3218
  %v3231 = vadd.f32 %v3084, %v3221
  %v3232 = vadd.f32 %v3085, %v3223
  %v3238 = vrot.slane %v2905, 2
  %v3239 = vrot.slane %v2906, 2
  %v3240 = vsel %vm3176, %v3238, %v3239
  %v3241 = vrot.slane %v2907, 2
  %v3242 = vsel %vm3176, %v3239, %v3241
  %v3243 = vrot.slane %v2908, 2
  %v3244 = vsel %vm3176, %v3241, %v3243
  %v3245 = vrot.slane %v2909, 2
  %v3246 = vsel %vm3176, %v3243, %v3245
  %3251 = vmatpush.bf16.msra.mxu0 %v3194
  %3252 = vmatpush.bf16.msra.mxu0 %v3047
  %3253 = vmatpush.bf16.msra.mxu0 %v2866
  %3254 = vmatpush.bf16.msra.mxu0 %v2709
  %3255 = vmatpush.bf16.msra.mxu0 %v2587
  %3256 = vmatpush.bf16.msra.mxu0 %v2469
  %3257 = vmatpush.bf16.msra.mxu0 %v2334
  %3258 = vmatpush.bf16.msra.mxu0 %v2125
  %3259 = vmatmul.bf16.gmra.mxu0 %v3240
  %v3260 = vpop.f32.mrf.mxu0
  %v3261 = vadd.f32 0.0, %v3260
  %v3262 = vpop.f32.mrf.mxu0
  %v3263 = vadd.f32 0.0, %v3262
  %3264 = vmatmul.bf16.gmra.mxu0 %v3242
  %v3265 = vpop.f32.mrf.mxu0
  %v3266 = vadd.f32 0.0, %v3265
  %v3267 = vpop.f32.mrf.mxu0
  %v3268 = vadd.f32 0.0, %v3267
  %3269 = vmatmul.bf16.gmra.mxu0 %v3244
  %v3270 = vpop.f32.mrf.mxu0
  %v3271 = vadd.f32 0.0, %v3270
  %v3272 = vpop.f32.mrf.mxu0
  %v3273 = vadd.f32 0.0, %v3272
  %3274 = vmatmul.bf16.gmra.mxu0 %v3246
  %v3275 = vpop.f32.mrf.mxu0
  %v3276 = vadd.f32 0.0, %v3275
  %v3277 = vpop.f32.mrf.mxu0
  %v3278 = vadd.f32 0.0, %v3277
  %3279 = vdwg.mxu0
  %v3280 = vadd.f32 %v3163, %v3261
  %v3281 = vadd.f32 %v3164, %v3263
  %v3282 = vadd.f32 %v3165, %v3266
  %v3283 = vadd.f32 %v3166, %v3268
  %v3284 = vadd.f32 %v3167, %v3271
  %v3285 = vadd.f32 %v3168, %v3273
  %v3286 = vadd.f32 %v3169, %v3276
  %v3287 = vadd.f32 %v3170, %v3278
  %v3288 = vrot.slane %v2682, 2
  %v3289 = vrot.slane %v2683, 2
  %v3290 = vsel %vm3176, %v3288, %v3289
  %v3291 = vrot.slane %v2684, 2
  %v3292 = vsel %vm3176, %v3289, %v3291
  %v3293 = vrot.slane %v2685, 2
  %v3294 = vsel %vm3176, %v3291, %v3293
  %v3295 = vrot.slane %v2686, 2
  %v3296 = vsel %vm3176, %v3293, %v3295
  %v3303 = vunpack.c.l.b16 %v2006
  %v3304 = vunpack.c.l.b16 %v2007
  %v3305 = vpack.c.b16 %v3304, %v3303
  %3307 = vmatpush.bf16.msra.mxu0 %v3305
  %3308 = vmatpush.bf16.msra.mxu0 %v3194
  %3309 = vmatpush.bf16.msra.mxu0 %v3047
  %3310 = vmatpush.bf16.msra.mxu0 %v2866
  %3311 = vmatpush.bf16.msra.mxu0 %v2709
  %3312 = vmatpush.bf16.msra.mxu0 %v2587
  %3313 = vmatpush.bf16.msra.mxu0 %v2469
  %3314 = vmatpush.bf16.msra.mxu0 %v2334
  %3315 = vmatmul.bf16.gmra.mxu0 %v3290
  %v3316 = vpop.f32.mrf.mxu0
  %v3317 = vadd.f32 0.0, %v3316
  %v3318 = vpop.f32.mrf.mxu0
  %v3319 = vadd.f32 0.0, %v3318
  %3320 = vmatmul.bf16.gmra.mxu0 %v3292
  %v3321 = vpop.f32.mrf.mxu0
  %v3322 = vadd.f32 0.0, %v3321
  %v3323 = vpop.f32.mrf.mxu0
  %v3324 = vadd.f32 0.0, %v3323
  %3325 = vmatmul.bf16.gmra.mxu0 %v3294
  %v3326 = vpop.f32.mrf.mxu0
  %v3327 = vadd.f32 0.0, %v3326
  %v3328 = vpop.f32.mrf.mxu0
  %v3329 = vadd.f32 0.0, %v3328
  %3330 = vmatmul.bf16.gmra.mxu0 %v3296
  %v3331 = vpop.f32.mrf.mxu0
  %v3332 = vadd.f32 0.0, %v3331
  %v3333 = vpop.f32.mrf.mxu0
  %v3334 = vadd.f32 0.0, %v3333
  %3335 = vdwg.mxu0
  %v3336 = vadd.f32 %v3225, %v3317
  %v3337 = vadd.f32 %v3226, %v3319
  %v3338 = vadd.f32 %v3227, %v3322
  %v3339 = vadd.f32 %v3228, %v3324
  %v3340 = vadd.f32 %v3229, %v3327
  %v3341 = vadd.f32 %v3230, %v3329
  %v3342 = vadd.f32 %v3231, %v3332
  %v3343 = vadd.f32 %v3232, %v3334
  %v3344 = vrot.slane %v2748, 2
  %v3345 = vrot.slane %v2749, 2
  %v3346 = vsel %vm3176, %v3344, %v3345
  %v3347 = vrot.slane %v2750, 2
  %v3348 = vsel %vm3176, %v3345, %v3347
  %v3349 = vrot.slane %v2751, 2
  %v3350 = vsel %vm3176, %v3347, %v3349
  %v3351 = vrot.slane %v2752, 2
  %v3352 = vsel %vm3176, %v3349, %v3351
  %3357 = vmatpush.bf16.msra.mxu0 %v3305
  %3358 = vmatpush.bf16.msra.mxu0 %v3194
  %3359 = vmatpush.bf16.msra.mxu0 %v3047
  %3360 = vmatpush.bf16.msra.mxu0 %v2866
  %3361 = vmatpush.bf16.msra.mxu0 %v2709
  %3362 = vmatpush.bf16.msra.mxu0 %v2587
  %3363 = vmatpush.bf16.msra.mxu0 %v2469
  %3364 = vmatpush.bf16.msra.mxu0 %v2334
  %3365 = vmatmul.bf16.gmra.mxu0 %v3346
  %v3366 = vpop.f32.mrf.mxu0
  %v3367 = vadd.f32 0.0, %v3366
  %v3368 = vpop.f32.mrf.mxu0
  %v3369 = vadd.f32 0.0, %v3368
  %3370 = vmatmul.bf16.gmra.mxu0 %v3348
  %v3371 = vpop.f32.mrf.mxu0
  %v3372 = vadd.f32 0.0, %v3371
  %v3373 = vpop.f32.mrf.mxu0
  %v3374 = vadd.f32 0.0, %v3373
  %3375 = vmatmul.bf16.gmra.mxu0 %v3350
  %v3376 = vpop.f32.mrf.mxu0
  %v3377 = vadd.f32 0.0, %v3376
  %v3378 = vpop.f32.mrf.mxu0
  %v3379 = vadd.f32 0.0, %v3378
  %3380 = vmatmul.bf16.gmra.mxu0 %v3352
  %v3381 = vpop.f32.mrf.mxu0
  %v3382 = vadd.f32 0.0, %v3381
  %v3383 = vpop.f32.mrf.mxu0
  %v3384 = vadd.f32 0.0, %v3383
  %3385 = vdwg.mxu0
  %v3386 = vadd.f32 %v3280, %v3367
  %v3387 = vadd.f32 %v3281, %v3369
  %v3388 = vadd.f32 %v3282, %v3372
  %v3389 = vadd.f32 %v3283, %v3374
  %v3390 = vadd.f32 %v3284, %v3377
  %v3391 = vadd.f32 %v3285, %v3379
  %v3392 = vadd.f32 %v3286, %v3382
  %v3393 = vadd.f32 %v3287, %v3384
  %v3394 = vpack.c.bf16 %v1896, %v1895
  %v3395 = vpack.c.bf16 %v1898, %v1897
  %v3396 = vpack.c.bf16 %v1900, %v1899
  %v3397 = vpack.c.bf16 %v1902, %v1901
  %v3399 = vshrl.u32 %v3394, 16
  %v3401 = vshll.u32 %v3394, 16
  %v3403 = vrot.slane %v3401, 1
  %v3404 = vor.u32 %v3399, %v3403
  %v3406 = vshll.u32 %v3395, 16
  %v3408 = vrot.slane %v3406, 1
  %v3409 = vsel %vm2050, %v3404, %v3408
  %v3410 = vshrl.u32 %v3395, 16
  %v3412 = vor.u32 %v3410, %v3408
  %v3414 = vshll.u32 %v3396, 16
  %v3416 = vrot.slane %v3414, 1
  %v3417 = vsel %vm2050, %v3412, %v3416
  %v3418 = vshrl.u32 %v3396, 16
  %v3420 = vor.u32 %v3418, %v3416
  %v3422 = vshll.u32 %v3397, 16
  %v3424 = vrot.slane %v3422, 1
  %v3425 = vsel %vm2050, %v3420, %v3424
  %v3426 = vshrl.u32 %v3397, 16
  %v3428 = vor.u32 %v3426, %v3424
  %v3435 = vunpack.c.l.b16 %v2008
  %v3436 = vunpack.c.l.b16 %v2009
  %v3437 = vpack.c.b16 %v3436, %v3435
  %3439 = vmatpush.bf16.msra.mxu0 %v3437
  %3440 = vmatpush.bf16.msra.mxu0 %v3305
  %3441 = vmatpush.bf16.msra.mxu0 %v3194
  %3442 = vmatpush.bf16.msra.mxu0 %v3047
  %3443 = vmatpush.bf16.msra.mxu0 %v2866
  %3444 = vmatpush.bf16.msra.mxu0 %v2709
  %3445 = vmatpush.bf16.msra.mxu0 %v2587
  %3446 = vmatpush.bf16.msra.mxu0 %v2469
  %3447 = vmatmul.bf16.gmra.mxu0 %v3409
  %v3448 = vpop.f32.mrf.mxu0
  %v3449 = vadd.f32 0.0, %v3448
  %v3450 = vpop.f32.mrf.mxu0
  %v3451 = vadd.f32 0.0, %v3450
  %3452 = vmatmul.bf16.gmra.mxu0 %v3417
  %v3453 = vpop.f32.mrf.mxu0
  %v3454 = vadd.f32 0.0, %v3453
  %v3455 = vpop.f32.mrf.mxu0
  %v3456 = vadd.f32 0.0, %v3455
  %3457 = vmatmul.bf16.gmra.mxu0 %v3425
  %v3458 = vpop.f32.mrf.mxu0
  %v3459 = vadd.f32 0.0, %v3458
  %v3460 = vpop.f32.mrf.mxu0
  %v3461 = vadd.f32 0.0, %v3460
  %3462 = vmatmul.bf16.gmra.mxu0 %v3428
  %v3463 = vpop.f32.mrf.mxu0
  %v3464 = vadd.f32 0.0, %v3463
  %v3465 = vpop.f32.mrf.mxu0
  %v3466 = vadd.f32 0.0, %v3465
  %3467 = vdwg.mxu0
  %v3468 = vadd.f32 %v3336, %v3449
  %v3469 = vadd.f32 %v3337, %v3451
  %v3470 = vadd.f32 %v3338, %v3454
  %v3471 = vadd.f32 %v3339, %v3456
  %v3472 = vadd.f32 %v3340, %v3459
  %v3473 = vadd.f32 %v3341, %v3461
  %v3474 = vadd.f32 %v3342, %v3464
  %v3475 = vadd.f32 %v3343, %v3466
  %v3476 = vpack.c.bf16 %v1936, %v1935
  %v3477 = vpack.c.bf16 %v1938, %v1937
  %v3478 = vpack.c.bf16 %v1940, %v1939
  %v3479 = vpack.c.bf16 %v1942, %v1941
  %v3481 = vshrl.u32 %v3476, 16
  %v3483 = vshll.u32 %v3476, 16
  %v3485 = vrot.slane %v3483, 1
  %v3486 = vor.u32 %v3481, %v3485
  %v3488 = vshll.u32 %v3477, 16
  %v3490 = vrot.slane %v3488, 1
  %v3491 = vsel %vm2050, %v3486, %v3490
  %v3492 = vshrl.u32 %v3477, 16
  %v3494 = vor.u32 %v3492, %v3490
  %v3496 = vshll.u32 %v3478, 16
  %v3498 = vrot.slane %v3496, 1
  %v3499 = vsel %vm2050, %v3494, %v3498
  %v3500 = vshrl.u32 %v3478, 16
  %v3502 = vor.u32 %v3500, %v3498
  %v3504 = vshll.u32 %v3479, 16
  %v3506 = vrot.slane %v3504, 1
  %v3507 = vsel %vm2050, %v3502, %v3506
  %v3508 = vshrl.u32 %v3479, 16
  %v3510 = vor.u32 %v3508, %v3506
  %3515 = vmatpush.bf16.msra.mxu0 %v3437
  %3516 = vmatpush.bf16.msra.mxu0 %v3305
  %3517 = vmatpush.bf16.msra.mxu0 %v3194
  %3518 = vmatpush.bf16.msra.mxu0 %v3047
  %3519 = vmatpush.bf16.msra.mxu0 %v2866
  %3520 = vmatpush.bf16.msra.mxu0 %v2709
  %3521 = vmatpush.bf16.msra.mxu0 %v2587
  %3522 = vmatpush.bf16.msra.mxu0 %v2469
  %3523 = vmatmul.bf16.gmra.mxu0 %v3491
  %v3524 = vpop.f32.mrf.mxu0
  %v3525 = vadd.f32 0.0, %v3524
  %v3526 = vpop.f32.mrf.mxu0
  %v3527 = vadd.f32 0.0, %v3526
  %3528 = vmatmul.bf16.gmra.mxu0 %v3499
  %v3529 = vpop.f32.mrf.mxu0
  %v3530 = vadd.f32 0.0, %v3529
  %v3531 = vpop.f32.mrf.mxu0
  %v3532 = vadd.f32 0.0, %v3531
  %3533 = vmatmul.bf16.gmra.mxu0 %v3507
  %v3534 = vpop.f32.mrf.mxu0
  %v3535 = vadd.f32 0.0, %v3534
  %v3536 = vpop.f32.mrf.mxu0
  %v3537 = vadd.f32 0.0, %v3536
  %3538 = vmatmul.bf16.gmra.mxu0 %v3510
  %v3539 = vpop.f32.mrf.mxu0
  %v3540 = vadd.f32 0.0, %v3539
  %v3541 = vpop.f32.mrf.mxu0
  %v3542 = vadd.f32 0.0, %v3541
  %3543 = vdwg.mxu0
  %v3544 = vadd.f32 %v3386, %v3525
  %v3545 = vadd.f32 %v3387, %v3527
  %v3546 = vadd.f32 %v3388, %v3530
  %v3547 = vadd.f32 %v3389, %v3532
  %v3548 = vadd.f32 %v3390, %v3535
  %v3549 = vadd.f32 %v3391, %v3537
  %v3550 = vadd.f32 %v3392, %v3540
  %v3551 = vadd.f32 %v3393, %v3542
  %v3552 = vpack.c.bf16 %v1906, %v1905
  %v3553 = vpack.c.bf16 %v1908, %v1907
  %v3554 = vpack.c.bf16 %v1910, %v1909
  %v3555 = vpack.c.bf16 %v1912, %v1911
  %v3556 = vpack.c.bf16 %v1913, %v1913
  %v3562 = vrot.slane %v3552, 1
  %v3563 = vrot.slane %v3553, 1
  %v3564 = vsel %vm2451, %v3562, %v3563
  %v3565 = vrot.slane %v3554, 1
  %v3566 = vsel %vm2451, %v3563, %v3565
  %v3567 = vrot.slane %v3555, 1
  %v3568 = vsel %vm2451, %v3565, %v3567
  %v3569 = vrot.slane %v3556, 1
  %v3570 = vsel %vm2451, %v3567, %v3569
  %v3577 = vunpack.c.l.b16 %v2010
  %v3578 = vunpack.c.l.b16 %v2011
  %v3579 = vpack.c.b16 %v3578, %v3577
  %3581 = vmatpush.bf16.msra.mxu0 %v3579
  %3582 = vmatpush.bf16.msra.mxu0 %v3437
  %3583 = vmatpush.bf16.msra.mxu0 %v3305
  %3584 = vmatpush.bf16.msra.mxu0 %v3194
  %3585 = vmatpush.bf16.msra.mxu0 %v3047
  %3586 = vmatpush.bf16.msra.mxu0 %v2866
  %3587 = vmatpush.bf16.msra.mxu0 %v2709
  %3588 = vmatpush.bf16.msra.mxu0 %v2587
  %3589 = vmatmul.bf16.gmra.mxu0 %v3564
  %v3590 = vpop.f32.mrf.mxu0
  %v3591 = vadd.f32 0.0, %v3590
  %v3592 = vpop.f32.mrf.mxu0
  %v3593 = vadd.f32 0.0, %v3592
  %3594 = vmatmul.bf16.gmra.mxu0 %v3566
  %v3595 = vpop.f32.mrf.mxu0
  %v3596 = vadd.f32 0.0, %v3595
  %v3597 = vpop.f32.mrf.mxu0
  %v3598 = vadd.f32 0.0, %v3597
  %3599 = vmatmul.bf16.gmra.mxu0 %v3568
  %v3600 = vpop.f32.mrf.mxu0
  %v3601 = vadd.f32 0.0, %v3600
  %v3602 = vpop.f32.mrf.mxu0
  %v3603 = vadd.f32 0.0, %v3602
  %3604 = vmatmul.bf16.gmra.mxu0 %v3570
  %v3605 = vpop.f32.mrf.mxu0
  %v3606 = vadd.f32 0.0, %v3605
  %v3607 = vpop.f32.mrf.mxu0
  %v3608 = vadd.f32 0.0, %v3607
  %3609 = vdwg.mxu0
  %v3610 = vadd.f32 %v3468, %v3591
  %v3611 = vadd.f32 %v3469, %v3593
  %v3612 = vadd.f32 %v3470, %v3596
  %v3613 = vadd.f32 %v3471, %v3598
  %v3614 = vadd.f32 %v3472, %v3601
  %v3615 = vadd.f32 %v3473, %v3603
  %v3616 = vadd.f32 %v3474, %v3606
  %v3617 = vadd.f32 %v3475, %v3608
  %v3618 = vpack.c.bf16 %v1946, %v1945
  %v3619 = vpack.c.bf16 %v1948, %v1947
  %v3620 = vpack.c.bf16 %v1950, %v1949
  %v3621 = vpack.c.bf16 %v1952, %v1951
  %v3622 = vpack.c.bf16 %v1953, %v1953
  %v3628 = vrot.slane %v3618, 1
  %v3629 = vrot.slane %v3619, 1
  %v3630 = vsel %vm2451, %v3628, %v3629
  %v3631 = vrot.slane %v3620, 1
  %v3632 = vsel %vm2451, %v3629, %v3631
  %v3633 = vrot.slane %v3621, 1
  %v3634 = vsel %vm2451, %v3631, %v3633
  %v3635 = vrot.slane %v3622, 1
  %v3636 = vsel %vm2451, %v3633, %v3635
  %3641 = vmatpush.bf16.msra.mxu0 %v3579
  %3642 = vmatpush.bf16.msra.mxu0 %v3437
  %3643 = vmatpush.bf16.msra.mxu0 %v3305
  %3644 = vmatpush.bf16.msra.mxu0 %v3194
  %3645 = vmatpush.bf16.msra.mxu0 %v3047
  %3646 = vmatpush.bf16.msra.mxu0 %v2866
  %3647 = vmatpush.bf16.msra.mxu0 %v2709
  %3648 = vmatpush.bf16.msra.mxu0 %v2587
  %3649 = vmatmul.bf16.gmra.mxu0 %v3630
  %v3650 = vpop.f32.mrf.mxu0
  %v3651 = vadd.f32 0.0, %v3650
  %v3652 = vpop.f32.mrf.mxu0
  %v3653 = vadd.f32 0.0, %v3652
  %3654 = vmatmul.bf16.gmra.mxu0 %v3632
  %v3655 = vpop.f32.mrf.mxu0
  %v3656 = vadd.f32 0.0, %v3655
  %v3657 = vpop.f32.mrf.mxu0
  %v3658 = vadd.f32 0.0, %v3657
  %3659 = vmatmul.bf16.gmra.mxu0 %v3634
  %v3660 = vpop.f32.mrf.mxu0
  %v3661 = vadd.f32 0.0, %v3660
  %v3662 = vpop.f32.mrf.mxu0
  %v3663 = vadd.f32 0.0, %v3662
  %3664 = vmatmul.bf16.gmra.mxu0 %v3636
  %v3665 = vpop.f32.mrf.mxu0
  %v3666 = vadd.f32 0.0, %v3665
  %v3667 = vpop.f32.mrf.mxu0
  %v3668 = vadd.f32 0.0, %v3667
  %3669 = vdwg.mxu0
  %v3670 = vadd.f32 %v3544, %v3651
  %v3671 = vadd.f32 %v3545, %v3653
  %v3672 = vadd.f32 %v3546, %v3656
  %v3673 = vadd.f32 %v3547, %v3658
  %v3674 = vadd.f32 %v3548, %v3661
  %v3675 = vadd.f32 %v3549, %v3663
  %v3676 = vadd.f32 %v3550, %v3666
  %v3677 = vadd.f32 %v3551, %v3668
  %v3678 = vpack.c.bf16 %v1903, %v1903
  %v3684 = vrot.slane %v3394, 1
  %v3685 = vrot.slane %v3395, 1
  %v3686 = vsel %vm2451, %v3684, %v3685
  %v3687 = vrot.slane %v3396, 1
  %v3688 = vsel %vm2451, %v3685, %v3687
  %v3689 = vrot.slane %v3397, 1
  %v3690 = vsel %vm2451, %v3687, %v3689
  %v3691 = vrot.slane %v3678, 1
  %v3692 = vsel %vm2451, %v3689, %v3691
  %v3699 = vunpack.c.l.b16 %v2012
  %v3700 = vunpack.c.l.b16 %v2013
  %v3701 = vpack.c.b16 %v3700, %v3699
  %3703 = vmatpush.bf16.msra.mxu0 %v3701
  %3704 = vmatpush.bf16.msra.mxu0 %v3579
  %3705 = vmatpush.bf16.msra.mxu0 %v3437
  %3706 = vmatpush.bf16.msra.mxu0 %v3305
  %3707 = vmatpush.bf16.msra.mxu0 %v3194
  %3708 = vmatpush.bf16.msra.mxu0 %v3047
  %3709 = vmatpush.bf16.msra.mxu0 %v2866
  %3710 = vmatpush.bf16.msra.mxu0 %v2709
  %3711 = vmatmul.bf16.gmra.mxu0 %v3686
  %v3712 = vpop.f32.mrf.mxu0
  %v3713 = vadd.f32 0.0, %v3712
  %v3714 = vpop.f32.mrf.mxu0
  %v3715 = vadd.f32 0.0, %v3714
  %3716 = vmatmul.bf16.gmra.mxu0 %v3688
  %v3717 = vpop.f32.mrf.mxu0
  %v3718 = vadd.f32 0.0, %v3717
  %v3719 = vpop.f32.mrf.mxu0
  %v3720 = vadd.f32 0.0, %v3719
  %3721 = vmatmul.bf16.gmra.mxu0 %v3690
  %v3722 = vpop.f32.mrf.mxu0
  %v3723 = vadd.f32 0.0, %v3722
  %v3724 = vpop.f32.mrf.mxu0
  %v3725 = vadd.f32 0.0, %v3724
  %3726 = vmatmul.bf16.gmra.mxu0 %v3692
  %v3727 = vpop.f32.mrf.mxu0
  %v3728 = vadd.f32 0.0, %v3727
  %v3729 = vpop.f32.mrf.mxu0
  %v3730 = vadd.f32 0.0, %v3729
  %3731 = vdwg.mxu0
  %v3732 = vadd.f32 %v3610, %v3713
  %v3733 = vadd.f32 %v3611, %v3715
  %v3734 = vadd.f32 %v3612, %v3718
  %v3735 = vadd.f32 %v3613, %v3720
  %v3736 = vadd.f32 %v3614, %v3723
  %v3737 = vadd.f32 %v3615, %v3725
  %v3738 = vadd.f32 %v3616, %v3728
  %v3739 = vadd.f32 %v3617, %v3730
  %v3740 = vpack.c.bf16 %v1943, %v1943
  %v3746 = vrot.slane %v3476, 1
  %v3747 = vrot.slane %v3477, 1
  %v3748 = vsel %vm2451, %v3746, %v3747
  %v3749 = vrot.slane %v3478, 1
  %v3750 = vsel %vm2451, %v3747, %v3749
  %v3751 = vrot.slane %v3479, 1
  %v3752 = vsel %vm2451, %v3749, %v3751
  %v3753 = vrot.slane %v3740, 1
  %v3754 = vsel %vm2451, %v3751, %v3753
  %3759 = vmatpush.bf16.msra.mxu0 %v3701
  %3760 = vmatpush.bf16.msra.mxu0 %v3579
  %3761 = vmatpush.bf16.msra.mxu0 %v3437
  %3762 = vmatpush.bf16.msra.mxu0 %v3305
  %3763 = vmatpush.bf16.msra.mxu0 %v3194
  %3764 = vmatpush.bf16.msra.mxu0 %v3047
  %3765 = vmatpush.bf16.msra.mxu0 %v2866
  %3766 = vmatpush.bf16.msra.mxu0 %v2709
  %3767 = vmatmul.bf16.gmra.mxu0 %v3748
  %v3768 = vpop.f32.mrf.mxu0
  %v3769 = vadd.f32 0.0, %v3768
  %v3770 = vpop.f32.mrf.mxu0
  %v3771 = vadd.f32 0.0, %v3770
  %3772 = vmatmul.bf16.gmra.mxu0 %v3750
  %v3773 = vpop.f32.mrf.mxu0
  %v3774 = vadd.f32 0.0, %v3773
  %v3775 = vpop.f32.mrf.mxu0
  %v3776 = vadd.f32 0.0, %v3775
  %3777 = vmatmul.bf16.gmra.mxu0 %v3752
  %v3778 = vpop.f32.mrf.mxu0
  %v3779 = vadd.f32 0.0, %v3778
  %v3780 = vpop.f32.mrf.mxu0
  %v3781 = vadd.f32 0.0, %v3780
  %3782 = vmatmul.bf16.gmra.mxu0 %v3754
  %v3783 = vpop.f32.mrf.mxu0
  %v3784 = vadd.f32 0.0, %v3783
  %v3785 = vpop.f32.mrf.mxu0
  %v3786 = vadd.f32 0.0, %v3785
  %3787 = vdwg.mxu0
  %v3788 = vadd.f32 %v3670, %v3769
  %v3789 = vadd.f32 %v3671, %v3771
  %v3790 = vadd.f32 %v3672, %v3774
  %v3791 = vadd.f32 %v3673, %v3776
  %v3792 = vadd.f32 %v3674, %v3779
  %v3793 = vadd.f32 %v3675, %v3781
  %v3794 = vadd.f32 %v3676, %v3784
  %v3795 = vadd.f32 %v3677, %v3786
  %v3797 = vshrl.u32 %v3552, 16
  %v3799 = vrot.slane %v3797, 1
  %v3800 = vshll.u32 %v3552, 16
  %v3802 = vrot.slane %v3800, 2
  %v3803 = vor.u32 %v3799, %v3802
  %v3805 = vshrl.u32 %v3553, 16
  %v3807 = vrot.slane %v3805, 1
  %v3808 = vshll.u32 %v3553, 16
  %v3810 = vrot.slane %v3808, 2
  %v3811 = vor.u32 %v3807, %v3810
  %v3812 = vsel %vm2813, %v3803, %v3811
  %v3814 = vshrl.u32 %v3554, 16
  %v3816 = vrot.slane %v3814, 1
  %v3817 = vshll.u32 %v3554, 16
  %v3819 = vrot.slane %v3817, 2
  %v3820 = vor.u32 %v3816, %v3819
  %v3821 = vsel %vm2813, %v3811, %v3820
  %v3823 = vshrl.u32 %v3555, 16
  %v3825 = vrot.slane %v3823, 1
  %v3826 = vshll.u32 %v3555, 16
  %v3828 = vrot.slane %v3826, 2
  %v3829 = vor.u32 %v3825, %v3828
  %v3830 = vsel %vm2813, %v3820, %v3829
  %v3832 = vshrl.u32 %v3556, 16
  %v3834 = vrot.slane %v3832, 1
  %v3835 = vshll.u32 %v3556, 16
  %v3837 = vrot.slane %v3835, 2
  %v3838 = vor.u32 %v3834, %v3837
  %v3839 = vsel %vm2813, %v3829, %v3838
  %v3846 = vunpack.c.l.b16 %v2014
  %v3847 = vunpack.c.l.b16 %v2015
  %v3848 = vpack.c.b16 %v3847, %v3846
  %3850 = vmatpush.bf16.msra.mxu0 %v3848
  %3851 = vmatpush.bf16.msra.mxu0 %v3701
  %3852 = vmatpush.bf16.msra.mxu0 %v3579
  %3853 = vmatpush.bf16.msra.mxu0 %v3437
  %3854 = vmatpush.bf16.msra.mxu0 %v3305
  %3855 = vmatpush.bf16.msra.mxu0 %v3194
  %3856 = vmatpush.bf16.msra.mxu0 %v3047
  %3857 = vmatpush.bf16.msra.mxu0 %v2866
  %3858 = vmatmul.bf16.gmra.mxu0 %v3812
  %v3859 = vpop.f32.mrf.mxu0
  %v3860 = vadd.f32 0.0, %v3859
  %v3861 = vpop.f32.mrf.mxu0
  %v3862 = vadd.f32 0.0, %v3861
  %3863 = vmatmul.bf16.gmra.mxu0 %v3821
  %v3864 = vpop.f32.mrf.mxu0
  %v3865 = vadd.f32 0.0, %v3864
  %v3866 = vpop.f32.mrf.mxu0
  %v3867 = vadd.f32 0.0, %v3866
  %3868 = vmatmul.bf16.gmra.mxu0 %v3830
  %v3869 = vpop.f32.mrf.mxu0
  %v3870 = vadd.f32 0.0, %v3869
  %v3871 = vpop.f32.mrf.mxu0
  %v3872 = vadd.f32 0.0, %v3871
  %3873 = vmatmul.bf16.gmra.mxu0 %v3839
  %v3874 = vpop.f32.mrf.mxu0
  %v3875 = vadd.f32 0.0, %v3874
  %v3876 = vpop.f32.mrf.mxu0
  %v3877 = vadd.f32 0.0, %v3876
  %3878 = vdwg.mxu0
  %v3879 = vadd.f32 %v3732, %v3860
  %v3880 = vadd.f32 %v3733, %v3862
  %v3881 = vadd.f32 %v3734, %v3865
  %v3882 = vadd.f32 %v3735, %v3867
  %v3883 = vadd.f32 %v3736, %v3870
  %v3884 = vadd.f32 %v3737, %v3872
  %v3885 = vadd.f32 %v3738, %v3875
  %v3886 = vadd.f32 %v3739, %v3877
  %v3888 = vshrl.u32 %v3618, 16
  %v3890 = vrot.slane %v3888, 1
  %v3891 = vshll.u32 %v3618, 16
  %v3893 = vrot.slane %v3891, 2
  %v3894 = vor.u32 %v3890, %v3893
  %v3896 = vshrl.u32 %v3619, 16
  %v3898 = vrot.slane %v3896, 1
  %v3899 = vshll.u32 %v3619, 16
  %v3901 = vrot.slane %v3899, 2
  %v3902 = vor.u32 %v3898, %v3901
  %v3903 = vsel %vm2813, %v3894, %v3902
  %v3905 = vshrl.u32 %v3620, 16
  %v3907 = vrot.slane %v3905, 1
  %v3908 = vshll.u32 %v3620, 16
  %v3910 = vrot.slane %v3908, 2
  %v3911 = vor.u32 %v3907, %v3910
  %v3912 = vsel %vm2813, %v3902, %v3911
  %v3914 = vshrl.u32 %v3621, 16
  %v3916 = vrot.slane %v3914, 1
  %v3917 = vshll.u32 %v3621, 16
  %v3919 = vrot.slane %v3917, 2
  %v3920 = vor.u32 %v3916, %v3919
  %v3921 = vsel %vm2813, %v3911, %v3920
  %v3923 = vshrl.u32 %v3622, 16
  %v3925 = vrot.slane %v3923, 1
  %v3926 = vshll.u32 %v3622, 16
  %v3928 = vrot.slane %v3926, 2
  %v3929 = vor.u32 %v3925, %v3928
  %v3930 = vsel %vm2813, %v3920, %v3929
  %3935 = vmatpush.bf16.msra.mxu0 %v3848
  %3936 = vmatpush.bf16.msra.mxu0 %v3701
  %3937 = vmatpush.bf16.msra.mxu0 %v3579
  %3938 = vmatpush.bf16.msra.mxu0 %v3437
  %3939 = vmatpush.bf16.msra.mxu0 %v3305
  %3940 = vmatpush.bf16.msra.mxu0 %v3194
  %3941 = vmatpush.bf16.msra.mxu0 %v3047
  %3942 = vmatpush.bf16.msra.mxu0 %v2866
  %3943 = vmatmul.bf16.gmra.mxu0 %v3903
  %v3944 = vpop.f32.mrf.mxu0
  %v3945 = vadd.f32 0.0, %v3944
  %v3946 = vpop.f32.mrf.mxu0
  %v3947 = vadd.f32 0.0, %v3946
  %3948 = vmatmul.bf16.gmra.mxu0 %v3912
  %v3949 = vpop.f32.mrf.mxu0
  %v3950 = vadd.f32 0.0, %v3949
  %v3951 = vpop.f32.mrf.mxu0
  %v3952 = vadd.f32 0.0, %v3951
  %3953 = vmatmul.bf16.gmra.mxu0 %v3921
  %v3954 = vpop.f32.mrf.mxu0
  %v3955 = vadd.f32 0.0, %v3954
  %v3956 = vpop.f32.mrf.mxu0
  %v3957 = vadd.f32 0.0, %v3956
  %3958 = vmatmul.bf16.gmra.mxu0 %v3930
  %v3959 = vpop.f32.mrf.mxu0
  %v3960 = vadd.f32 0.0, %v3959
  %v3961 = vpop.f32.mrf.mxu0
  %v3962 = vadd.f32 0.0, %v3961
  %3963 = vdwg.mxu0
  %v3964 = vadd.f32 %v3788, %v3945
  %v3965 = vadd.f32 %v3789, %v3947
  %v3966 = vadd.f32 %v3790, %v3950
  %v3967 = vadd.f32 %v3791, %v3952
  %v3968 = vadd.f32 %v3792, %v3955
  %v3969 = vadd.f32 %v3793, %v3957
  %v3970 = vadd.f32 %v3794, %v3960
  %v3971 = vadd.f32 %v3795, %v3962
  %v3972 = vrot.slane %v3399, 1
  %v3973 = vrot.slane %v3401, 2
  %v3974 = vor.u32 %v3972, %v3973
  %v3975 = vrot.slane %v3410, 1
  %v3976 = vrot.slane %v3406, 2
  %v3977 = vor.u32 %v3975, %v3976
  %v3978 = vsel %vm2813, %v3974, %v3977
  %v3979 = vrot.slane %v3418, 1
  %v3980 = vrot.slane %v3414, 2
  %v3981 = vor.u32 %v3979, %v3980
  %v3982 = vsel %vm2813, %v3977, %v3981
  %v3983 = vrot.slane %v3426, 1
  %v3984 = vrot.slane %v3422, 2
  %v3985 = vor.u32 %v3983, %v3984
  %v3986 = vsel %vm2813, %v3981, %v3985
  %v3988 = vshrl.u32 %v3678, 16
  %v3990 = vrot.slane %v3988, 1
  %v3991 = vshll.u32 %v3678, 16
  %v3993 = vrot.slane %v3991, 2
  %v3994 = vor.u32 %v3990, %v3993
  %v3995 = vsel %vm2813, %v3985, %v3994
  %v4002 = vunpack.c.l.b16 %v2016
  %v4003 = vunpack.c.l.b16 %v2017
  %v4004 = vpack.c.b16 %v4003, %v4002
  %4006 = vmatpush.bf16.msra.mxu0 %v4004
  %4007 = vmatpush.bf16.msra.mxu0 %v3848
  %4008 = vmatpush.bf16.msra.mxu0 %v3701
  %4009 = vmatpush.bf16.msra.mxu0 %v3579
  %4010 = vmatpush.bf16.msra.mxu0 %v3437
  %4011 = vmatpush.bf16.msra.mxu0 %v3305
  %4012 = vmatpush.bf16.msra.mxu0 %v3194
  %4013 = vmatpush.bf16.msra.mxu0 %v3047
  %4014 = vmatmul.bf16.gmra.mxu0 %v3978
  %v4015 = vpop.f32.mrf.mxu0
  %v4016 = vadd.f32 0.0, %v4015
  %v4017 = vpop.f32.mrf.mxu0
  %v4018 = vadd.f32 0.0, %v4017
  %4019 = vmatmul.bf16.gmra.mxu0 %v3982
  %v4020 = vpop.f32.mrf.mxu0
  %v4021 = vadd.f32 0.0, %v4020
  %v4022 = vpop.f32.mrf.mxu0
  %v4023 = vadd.f32 0.0, %v4022
  %4024 = vmatmul.bf16.gmra.mxu0 %v3986
  %v4025 = vpop.f32.mrf.mxu0
  %v4026 = vadd.f32 0.0, %v4025
  %v4027 = vpop.f32.mrf.mxu0
  %v4028 = vadd.f32 0.0, %v4027
  %4029 = vmatmul.bf16.gmra.mxu0 %v3995
  %v4030 = vpop.f32.mrf.mxu0
  %v4031 = vadd.f32 0.0, %v4030
  %v4032 = vpop.f32.mrf.mxu0
  %v4033 = vadd.f32 0.0, %v4032
  %4034 = vdwg.mxu0
  %v4035 = vadd.f32 %v3879, %v4016
  %v4036 = vadd.f32 %v3880, %v4018
  %v4037 = vadd.f32 %v3881, %v4021
  %v4038 = vadd.f32 %v3882, %v4023
  %v4039 = vadd.f32 %v3883, %v4026
  %v4040 = vadd.f32 %v3884, %v4028
  %v4041 = vadd.f32 %v3885, %v4031
  %v4042 = vadd.f32 %v3886, %v4033
  %v4043 = vrot.slane %v3481, 1
  %v4044 = vrot.slane %v3483, 2
  %v4045 = vor.u32 %v4043, %v4044
  %v4046 = vrot.slane %v3492, 1
  %v4047 = vrot.slane %v3488, 2
  %v4048 = vor.u32 %v4046, %v4047
  %v4049 = vsel %vm2813, %v4045, %v4048
  %v4050 = vrot.slane %v3500, 1
  %v4051 = vrot.slane %v3496, 2
  %v4052 = vor.u32 %v4050, %v4051
  %v4053 = vsel %vm2813, %v4048, %v4052
  %v4054 = vrot.slane %v3508, 1
  %v4055 = vrot.slane %v3504, 2
  %v4056 = vor.u32 %v4054, %v4055
  %v4057 = vsel %vm2813, %v4052, %v4056
  %v4059 = vshrl.u32 %v3740, 16
  %v4061 = vrot.slane %v4059, 1
  %v4062 = vshll.u32 %v3740, 16
  %v4064 = vrot.slane %v4062, 2
  %v4065 = vor.u32 %v4061, %v4064
  %v4066 = vsel %vm2813, %v4056, %v4065
  %4071 = vmatpush.bf16.msra.mxu0 %v4004
  %4072 = vmatpush.bf16.msra.mxu0 %v3848
  %4073 = vmatpush.bf16.msra.mxu0 %v3701
  %4074 = vmatpush.bf16.msra.mxu0 %v3579
  %4075 = vmatpush.bf16.msra.mxu0 %v3437
  %4076 = vmatpush.bf16.msra.mxu0 %v3305
  %4077 = vmatpush.bf16.msra.mxu0 %v3194
  %4078 = vmatpush.bf16.msra.mxu0 %v3047
  %4079 = vmatmul.bf16.gmra.mxu0 %v4049
  %v4080 = vpop.f32.mrf.mxu0
  %v4081 = vadd.f32 0.0, %v4080
  %v4082 = vpop.f32.mrf.mxu0
  %v4083 = vadd.f32 0.0, %v4082
  %4084 = vmatmul.bf16.gmra.mxu0 %v4053
  %v4085 = vpop.f32.mrf.mxu0
  %v4086 = vadd.f32 0.0, %v4085
  %v4087 = vpop.f32.mrf.mxu0
  %v4088 = vadd.f32 0.0, %v4087
  %4089 = vmatmul.bf16.gmra.mxu0 %v4057
  %v4090 = vpop.f32.mrf.mxu0
  %v4091 = vadd.f32 0.0, %v4090
  %v4092 = vpop.f32.mrf.mxu0
  %v4093 = vadd.f32 0.0, %v4092
  %4094 = vmatmul.bf16.gmra.mxu0 %v4066
  %v4095 = vpop.f32.mrf.mxu0
  %v4096 = vadd.f32 0.0, %v4095
  %v4097 = vpop.f32.mrf.mxu0
  %v4098 = vadd.f32 0.0, %v4097
  %4099 = vdwg.mxu0
  %v4100 = vadd.f32 %v3964, %v4081
  %v4101 = vadd.f32 %v3965, %v4083
  %v4102 = vadd.f32 %v3966, %v4086
  %v4103 = vadd.f32 %v3967, %v4088
  %v4104 = vadd.f32 %v3968, %v4091
  %v4105 = vadd.f32 %v3969, %v4093
  %v4106 = vadd.f32 %v3970, %v4096
  %v4107 = vadd.f32 %v3971, %v4098
  %v4108 = vpack.c.bf16 %v1916, %v1915
  %v4109 = vpack.c.bf16 %v1918, %v1917
  %v4110 = vpack.c.bf16 %v1920, %v1919
  %v4111 = vpack.c.bf16 %v1922, %v1921
  %v4112 = vpack.c.bf16 %v1923, %v1923
  %v4114 = vshrl.u32 %v4108, 16
  %v4116 = vrot.slane %v4114, 1
  %v4117 = vshll.u32 %v4108, 16
  %v4119 = vrot.slane %v4117, 2
  %v4120 = vor.u32 %v4116, %v4119
  %v4122 = vshrl.u32 %v4109, 16
  %v4124 = vrot.slane %v4122, 1
  %v4125 = vshll.u32 %v4109, 16
  %v4127 = vrot.slane %v4125, 2
  %v4128 = vor.u32 %v4124, %v4127
  %v4129 = vsel %vm2813, %v4120, %v4128
  %v4131 = vshrl.u32 %v4110, 16
  %v4133 = vrot.slane %v4131, 1
  %v4134 = vshll.u32 %v4110, 16
  %v4136 = vrot.slane %v4134, 2
  %v4137 = vor.u32 %v4133, %v4136
  %v4138 = vsel %vm2813, %v4128, %v4137
  %v4140 = vshrl.u32 %v4111, 16
  %v4142 = vrot.slane %v4140, 1
  %v4143 = vshll.u32 %v4111, 16
  %v4145 = vrot.slane %v4143, 2
  %v4146 = vor.u32 %v4142, %v4145
  %v4147 = vsel %vm2813, %v4137, %v4146
  %v4149 = vshrl.u32 %v4112, 16
  %v4151 = vrot.slane %v4149, 1
  %v4152 = vshll.u32 %v4112, 16
  %v4154 = vrot.slane %v4152, 2
  %v4155 = vor.u32 %v4151, %v4154
  %v4156 = vsel %vm2813, %v4146, %v4155
  %v4163 = vunpack.c.l.b16 %v2018
  %v4164 = vunpack.c.l.b16 %v2019
  %v4165 = vpack.c.b16 %v4164, %v4163
  %4167 = vmatpush.bf16.msra.mxu0 %v4165
  %4168 = vmatpush.bf16.msra.mxu0 %v4004
  %4169 = vmatpush.bf16.msra.mxu0 %v3848
  %4170 = vmatpush.bf16.msra.mxu0 %v3701
  %4171 = vmatpush.bf16.msra.mxu0 %v3579
  %4172 = vmatpush.bf16.msra.mxu0 %v3437
  %4173 = vmatpush.bf16.msra.mxu0 %v3305
  %4174 = vmatpush.bf16.msra.mxu0 %v3194
  %4175 = vmatmul.bf16.gmra.mxu0 %v4129
  %v4176 = vpop.f32.mrf.mxu0
  %v4177 = vadd.f32 0.0, %v4176
  %v4178 = vpop.f32.mrf.mxu0
  %v4179 = vadd.f32 0.0, %v4178
  %4180 = vmatmul.bf16.gmra.mxu0 %v4138
  %v4181 = vpop.f32.mrf.mxu0
  %v4182 = vadd.f32 0.0, %v4181
  %v4183 = vpop.f32.mrf.mxu0
  %v4184 = vadd.f32 0.0, %v4183
  %4185 = vmatmul.bf16.gmra.mxu0 %v4147
  %v4186 = vpop.f32.mrf.mxu0
  %v4187 = vadd.f32 0.0, %v4186
  %v4188 = vpop.f32.mrf.mxu0
  %v4189 = vadd.f32 0.0, %v4188
  %4190 = vmatmul.bf16.gmra.mxu0 %v4156
  %v4191 = vpop.f32.mrf.mxu0
  %v4192 = vadd.f32 0.0, %v4191
  %v4193 = vpop.f32.mrf.mxu0
  %v4194 = vadd.f32 0.0, %v4193
  %4195 = vdwg.mxu0
  %v4196 = vadd.f32 %v4035, %v4177
  %v4197 = vadd.f32 %v4036, %v4179
  %v4198 = vadd.f32 %v4037, %v4182
  %v4199 = vadd.f32 %v4038, %v4184
  %v4200 = vadd.f32 %v4039, %v4187
  %v4201 = vadd.f32 %v4040, %v4189
  %v4202 = vadd.f32 %v4041, %v4192
  %v4203 = vadd.f32 %v4042, %v4194
  %v4204 = vpack.c.bf16 %v1956, %v1955
  %v4205 = vpack.c.bf16 %v1958, %v1957
  %v4206 = vpack.c.bf16 %v1960, %v1959
  %v4207 = vpack.c.bf16 %v1962, %v1961
  %v4208 = vpack.c.bf16 %v1963, %v1963
  %v4210 = vshrl.u32 %v4204, 16
  %v4212 = vrot.slane %v4210, 1
  %v4213 = vshll.u32 %v4204, 16
  %v4215 = vrot.slane %v4213, 2
  %v4216 = vor.u32 %v4212, %v4215
  %v4218 = vshrl.u32 %v4205, 16
  %v4220 = vrot.slane %v4218, 1
  %v4221 = vshll.u32 %v4205, 16
  %v4223 = vrot.slane %v4221, 2
  %v4224 = vor.u32 %v4220, %v4223
  %v4225 = vsel %vm2813, %v4216, %v4224
  %v4227 = vshrl.u32 %v4206, 16
  %v4229 = vrot.slane %v4227, 1
  %v4230 = vshll.u32 %v4206, 16
  %v4232 = vrot.slane %v4230, 2
  %v4233 = vor.u32 %v4229, %v4232
  %v4234 = vsel %vm2813, %v4224, %v4233
  %v4236 = vshrl.u32 %v4207, 16
  %v4238 = vrot.slane %v4236, 1
  %v4239 = vshll.u32 %v4207, 16
  %v4241 = vrot.slane %v4239, 2
  %v4242 = vor.u32 %v4238, %v4241
  %v4243 = vsel %vm2813, %v4233, %v4242
  %v4245 = vshrl.u32 %v4208, 16
  %v4247 = vrot.slane %v4245, 1
  %v4248 = vshll.u32 %v4208, 16
  %v4250 = vrot.slane %v4248, 2
  %v4251 = vor.u32 %v4247, %v4250
  %v4252 = vsel %vm2813, %v4242, %v4251
  %4257 = vmatpush.bf16.msra.mxu0 %v4165
  %4258 = vmatpush.bf16.msra.mxu0 %v4004
  %4259 = vmatpush.bf16.msra.mxu0 %v3848
  %4260 = vmatpush.bf16.msra.mxu0 %v3701
  %4261 = vmatpush.bf16.msra.mxu0 %v3579
  %4262 = vmatpush.bf16.msra.mxu0 %v3437
  %4263 = vmatpush.bf16.msra.mxu0 %v3305
  %4264 = vmatpush.bf16.msra.mxu0 %v3194
  %4265 = vmatmul.bf16.gmra.mxu0 %v4225
  %v4266 = vpop.f32.mrf.mxu0
  %v4267 = vadd.f32 0.0, %v4266
  %v4268 = vpop.f32.mrf.mxu0
  %v4269 = vadd.f32 0.0, %v4268
  %4270 = vmatmul.bf16.gmra.mxu0 %v4234
  %v4271 = vpop.f32.mrf.mxu0
  %v4272 = vadd.f32 0.0, %v4271
  %v4273 = vpop.f32.mrf.mxu0
  %v4274 = vadd.f32 0.0, %v4273
  %4275 = vmatmul.bf16.gmra.mxu0 %v4243
  %v4276 = vpop.f32.mrf.mxu0
  %v4277 = vadd.f32 0.0, %v4276
  %v4278 = vpop.f32.mrf.mxu0
  %v4279 = vadd.f32 0.0, %v4278
  %4280 = vmatmul.bf16.gmra.mxu0 %v4252
  %v4281 = vpop.f32.mrf.mxu0
  %v4282 = vadd.f32 0.0, %v4281
  %v4283 = vpop.f32.mrf.mxu0
  %v4284 = vadd.f32 0.0, %v4283
  %4285 = vdwg.mxu0
  %v4286 = vadd.f32 %v4100, %v4267
  %v4287 = vadd.f32 %v4101, %v4269
  %v4288 = vadd.f32 %v4102, %v4272
  %v4289 = vadd.f32 %v4103, %v4274
  %v4290 = vadd.f32 %v4104, %v4277
  %v4291 = vadd.f32 %v4105, %v4279
  %v4292 = vadd.f32 %v4106, %v4282
  %v4293 = vadd.f32 %v4107, %v4284
  %v4294 = vpack.c.bf16 %v1926, %v1925
  %v4295 = vpack.c.bf16 %v1928, %v1927
  %v4296 = vpack.c.bf16 %v1930, %v1929
  %v4297 = vpack.c.bf16 %v1932, %v1931
  %v4298 = vpack.c.bf16 %v1933, %v1933
  %v4304 = vrot.slane %v4294, 2
  %v4305 = vrot.slane %v4295, 2
  %v4306 = vsel %vm3176, %v4304, %v4305
  %v4307 = vrot.slane %v4296, 2
  %v4308 = vsel %vm3176, %v4305, %v4307
  %v4309 = vrot.slane %v4297, 2
  %v4310 = vsel %vm3176, %v4307, %v4309
  %v4311 = vrot.slane %v4298, 2
  %v4312 = vsel %vm3176, %v4309, %v4311
  %v4319 = vunpack.c.l.b16 %v2020
  %v4320 = vunpack.c.l.b16 %v2021
  %v4321 = vpack.c.b16 %v4320, %v4319
  %4323 = vmatpush.bf16.msra.mxu0 %v4321
  %4324 = vmatpush.bf16.msra.mxu0 %v4165
  %4325 = vmatpush.bf16.msra.mxu0 %v4004
  %4326 = vmatpush.bf16.msra.mxu0 %v3848
  %4327 = vmatpush.bf16.msra.mxu0 %v3701
  %4328 = vmatpush.bf16.msra.mxu0 %v3579
  %4329 = vmatpush.bf16.msra.mxu0 %v3437
  %4330 = vmatpush.bf16.msra.mxu0 %v3305
  %4331 = vmatmul.bf16.gmra.mxu0 %v4306
  %v4332 = vpop.f32.mrf.mxu0
  %v4333 = vadd.f32 0.0, %v4332
  %v4334 = vpop.f32.mrf.mxu0
  %v4335 = vadd.f32 0.0, %v4334
  %4336 = vmatmul.bf16.gmra.mxu0 %v4308
  %v4337 = vpop.f32.mrf.mxu0
  %v4338 = vadd.f32 0.0, %v4337
  %v4339 = vpop.f32.mrf.mxu0
  %v4340 = vadd.f32 0.0, %v4339
  %4341 = vmatmul.bf16.gmra.mxu0 %v4310
  %v4342 = vpop.f32.mrf.mxu0
  %v4343 = vadd.f32 0.0, %v4342
  %v4344 = vpop.f32.mrf.mxu0
  %v4345 = vadd.f32 0.0, %v4344
  %4346 = vmatmul.bf16.gmra.mxu0 %v4312
  %v4347 = vpop.f32.mrf.mxu0
  %v4348 = vadd.f32 0.0, %v4347
  %v4349 = vpop.f32.mrf.mxu0
  %v4350 = vadd.f32 0.0, %v4349
  %4351 = vdwg.mxu0
  %v4352 = vadd.f32 %v4196, %v4333
  %v4353 = vadd.f32 %v4197, %v4335
  %v4354 = vadd.f32 %v4198, %v4338
  %v4355 = vadd.f32 %v4199, %v4340
  %v4356 = vadd.f32 %v4200, %v4343
  %v4357 = vadd.f32 %v4201, %v4345
  %v4358 = vadd.f32 %v4202, %v4348
  %v4359 = vadd.f32 %v4203, %v4350
  %v4360 = vpack.c.bf16 %v1966, %v1965
  %v4361 = vpack.c.bf16 %v1968, %v1967
  %v4362 = vpack.c.bf16 %v1970, %v1969
  %v4363 = vpack.c.bf16 %v1972, %v1971
  %v4364 = vpack.c.bf16 %v1973, %v1973
  %v4370 = vrot.slane %v4360, 2
  %v4371 = vrot.slane %v4361, 2
  %v4372 = vsel %vm3176, %v4370, %v4371
  %v4373 = vrot.slane %v4362, 2
  %v4374 = vsel %vm3176, %v4371, %v4373
  %v4375 = vrot.slane %v4363, 2
  %v4376 = vsel %vm3176, %v4373, %v4375
  %v4377 = vrot.slane %v4364, 2
  %v4378 = vsel %vm3176, %v4375, %v4377
  %4383 = vmatpush.bf16.msra.mxu0 %v4321
  %4384 = vmatpush.bf16.msra.mxu0 %v4165
  %4385 = vmatpush.bf16.msra.mxu0 %v4004
  %4386 = vmatpush.bf16.msra.mxu0 %v3848
  %4387 = vmatpush.bf16.msra.mxu0 %v3701
  %4388 = vmatpush.bf16.msra.mxu0 %v3579
  %4389 = vmatpush.bf16.msra.mxu0 %v3437
  %4390 = vmatpush.bf16.msra.mxu0 %v3305
  %4391 = vmatmul.bf16.gmra.mxu0 %v4372
  %v4392 = vpop.f32.mrf.mxu0
  %v4393 = vadd.f32 0.0, %v4392
  %v4394 = vpop.f32.mrf.mxu0
  %v4395 = vadd.f32 0.0, %v4394
  %4396 = vmatmul.bf16.gmra.mxu0 %v4374
  %v4397 = vpop.f32.mrf.mxu0
  %v4398 = vadd.f32 0.0, %v4397
  %v4399 = vpop.f32.mrf.mxu0
  %v4400 = vadd.f32 0.0, %v4399
  %4401 = vmatmul.bf16.gmra.mxu0 %v4376
  %v4402 = vpop.f32.mrf.mxu0
  %v4403 = vadd.f32 0.0, %v4402
  %v4404 = vpop.f32.mrf.mxu0
  %v4405 = vadd.f32 0.0, %v4404
  %4406 = vmatmul.bf16.gmra.mxu0 %v4378
  %v4407 = vpop.f32.mrf.mxu0
  %v4408 = vadd.f32 0.0, %v4407
  %v4409 = vpop.f32.mrf.mxu0
  %v4410 = vadd.f32 0.0, %v4409
  %4411 = vdwg.mxu0
  %v4412 = vadd.f32 %v4286, %v4393
  %v4413 = vadd.f32 %v4287, %v4395
  %v4414 = vadd.f32 %v4288, %v4398
  %v4415 = vadd.f32 %v4289, %v4400
  %v4416 = vadd.f32 %v4290, %v4403
  %v4417 = vadd.f32 %v4291, %v4405
  %v4418 = vadd.f32 %v4292, %v4408
  %v4419 = vadd.f32 %v4293, %v4410
  %v4425 = vrot.slane %v4108, 2
  %v4426 = vrot.slane %v4109, 2
  %v4427 = vsel %vm3176, %v4425, %v4426
  %v4428 = vrot.slane %v4110, 2
  %v4429 = vsel %vm3176, %v4426, %v4428
  %v4430 = vrot.slane %v4111, 2
  %v4431 = vsel %vm3176, %v4428, %v4430
  %v4432 = vrot.slane %v4112, 2
  %v4433 = vsel %vm3176, %v4430, %v4432
  %v4440 = vunpack.c.l.b16 %v2022
  %v4441 = vunpack.c.l.b16 %v2023
  %v4442 = vpack.c.b16 %v4441, %v4440
  %4444 = vmatpush.bf16.msra.mxu0 %v4442
  %4445 = vmatpush.bf16.msra.mxu0 %v4321
  %4446 = vmatpush.bf16.msra.mxu0 %v4165
  %4447 = vmatpush.bf16.msra.mxu0 %v4004
  %4448 = vmatpush.bf16.msra.mxu0 %v3848
  %4449 = vmatpush.bf16.msra.mxu0 %v3701
  %4450 = vmatpush.bf16.msra.mxu0 %v3579
  %4451 = vmatpush.bf16.msra.mxu0 %v3437
  %4452 = vmatmul.bf16.gmra.mxu0 %v4427
  %v4453 = vpop.f32.mrf.mxu0
  %v4454 = vadd.f32 0.0, %v4453
  %v4455 = vpop.f32.mrf.mxu0
  %v4456 = vadd.f32 0.0, %v4455
  %4457 = vmatmul.bf16.gmra.mxu0 %v4429
  %v4458 = vpop.f32.mrf.mxu0
  %v4459 = vadd.f32 0.0, %v4458
  %v4460 = vpop.f32.mrf.mxu0
  %v4461 = vadd.f32 0.0, %v4460
  %4462 = vmatmul.bf16.gmra.mxu0 %v4431
  %v4463 = vpop.f32.mrf.mxu0
  %v4464 = vadd.f32 0.0, %v4463
  %v4465 = vpop.f32.mrf.mxu0
  %v4466 = vadd.f32 0.0, %v4465
  %4467 = vmatmul.bf16.gmra.mxu0 %v4433
  %v4468 = vpop.f32.mrf.mxu0
  %v4469 = vadd.f32 0.0, %v4468
  %v4470 = vpop.f32.mrf.mxu0
  %v4471 = vadd.f32 0.0, %v4470
  %4472 = vdwg.mxu0
  %v4473 = vadd.f32 %v4352, %v4454
  %v4474 = vadd.f32 %v4353, %v4456
  %v4475 = vadd.f32 %v4354, %v4459
  %v4476 = vadd.f32 %v4355, %v4461
  %v4477 = vadd.f32 %v4356, %v4464
  %v4478 = vadd.f32 %v4357, %v4466
  %v4479 = vadd.f32 %v4358, %v4469
  %v4480 = vadd.f32 %v4359, %v4471
  %v4486 = vrot.slane %v4204, 2
  %v4487 = vrot.slane %v4205, 2
  %v4488 = vsel %vm3176, %v4486, %v4487
  %v4489 = vrot.slane %v4206, 2
  %v4490 = vsel %vm3176, %v4487, %v4489
  %v4491 = vrot.slane %v4207, 2
  %v4492 = vsel %vm3176, %v4489, %v4491
  %v4493 = vrot.slane %v4208, 2
  %v4494 = vsel %vm3176, %v4491, %v4493
  %4499 = vmatpush.bf16.msra.mxu0 %v4442
  %4500 = vmatpush.bf16.msra.mxu0 %v4321
  %4501 = vmatpush.bf16.msra.mxu0 %v4165
  %4502 = vmatpush.bf16.msra.mxu0 %v4004
  %4503 = vmatpush.bf16.msra.mxu0 %v3848
  %4504 = vmatpush.bf16.msra.mxu0 %v3701
  %4505 = vmatpush.bf16.msra.mxu0 %v3579
  %4506 = vmatpush.bf16.msra.mxu0 %v3437
  %4507 = vmatmul.bf16.gmra.mxu0 %v4488
  %v4508 = vpop.f32.mrf.mxu0
  %v4509 = vadd.f32 0.0, %v4508
  %v4510 = vpop.f32.mrf.mxu0
  %v4511 = vadd.f32 0.0, %v4510
  %4512 = vmatmul.bf16.gmra.mxu0 %v4490
  %v4513 = vpop.f32.mrf.mxu0
  %v4514 = vadd.f32 0.0, %v4513
  %v4515 = vpop.f32.mrf.mxu0
  %v4516 = vadd.f32 0.0, %v4515
  %4517 = vmatmul.bf16.gmra.mxu0 %v4492
  %v4518 = vpop.f32.mrf.mxu0
  %v4519 = vadd.f32 0.0, %v4518
  %v4520 = vpop.f32.mrf.mxu0
  %v4521 = vadd.f32 0.0, %v4520
  %4522 = vmatmul.bf16.gmra.mxu0 %v4494
  %v4523 = vpop.f32.mrf.mxu0
  %v4524 = vadd.f32 0.0, %v4523
  %v4525 = vpop.f32.mrf.mxu0
  %v4526 = vadd.f32 0.0, %v4525
  %4527 = vdwg.mxu0
  %v4528 = vadd.f32 %v4412, %v4509
  %v4529 = vadd.f32 %v4413, %v4511
  %v4530 = vadd.f32 %v4414, %v4514
  %v4531 = vadd.f32 %v4415, %v4516
  %v4532 = vadd.f32 %v4416, %v4519
  %v4533 = vadd.f32 %v4417, %v4521
  %v4534 = vadd.f32 %v4418, %v4524
  %v4535 = vadd.f32 %v4419, %v4526
  %vm4536 = vsmask.f32 5376
  %v4538 = vshrl.u32 %v4294, 16
  %v4540 = vrot.slane %v4538, 2
  %v4541 = vshll.u32 %v4294, 16
  %v4543 = vrot.slane %v4541, 3
  %v4544 = vor.u32 %v4540, %v4543
  %v4546 = vshrl.u32 %v4295, 16
  %v4548 = vrot.slane %v4546, 2
  %v4549 = vshll.u32 %v4295, 16
  %v4551 = vrot.slane %v4549, 3
  %v4552 = vor.u32 %v4548, %v4551
  %v4553 = vsel %vm4536, %v4544, %v4552
  %v4555 = vshrl.u32 %v4296, 16
  %v4557 = vrot.slane %v4555, 2
  %v4558 = vshll.u32 %v4296, 16
  %v4560 = vrot.slane %v4558, 3
  %v4561 = vor.u32 %v4557, %v4560
  %v4562 = vsel %vm4536, %v4552, %v4561
  %v4564 = vshrl.u32 %v4297, 16
  %v4566 = vrot.slane %v4564, 2
  %v4567 = vshll.u32 %v4297, 16
  %v4569 = vrot.slane %v4567, 3
  %v4570 = vor.u32 %v4566, %v4569
  %v4571 = vsel %vm4536, %v4561, %v4570
  %v4573 = vshrl.u32 %v4298, 16
  %v4575 = vrot.slane %v4573, 2
  %v4576 = vshll.u32 %v4298, 16
  %v4578 = vrot.slane %v4576, 3
  %v4579 = vor.u32 %v4575, %v4578
  %v4580 = vsel %vm4536, %v4570, %v4579
  %v4587 = vunpack.c.l.b16 %v2024
  %v4588 = vunpack.c.l.b16 %v2025
  %v4589 = vpack.c.b16 %v4588, %v4587
  %4591 = vmatpush.bf16.msra.mxu0 %v4589
  %4592 = vmatpush.bf16.msra.mxu0 %v4442
  %4593 = vmatpush.bf16.msra.mxu0 %v4321
  %4594 = vmatpush.bf16.msra.mxu0 %v4165
  %4595 = vmatpush.bf16.msra.mxu0 %v4004
  %4596 = vmatpush.bf16.msra.mxu0 %v3848
  %4597 = vmatpush.bf16.msra.mxu0 %v3701
  %4598 = vmatpush.bf16.msra.mxu0 %v3579
  %4599 = vmatmul.bf16.gmra.mxu0 %v4553
  %v4600 = vpop.f32.mrf.mxu0
  %v4601 = vadd.f32 0.0, %v4600
  %v4602 = vpop.f32.mrf.mxu0
  %v4603 = vadd.f32 0.0, %v4602
  %4604 = vmatmul.bf16.gmra.mxu0 %v4562
  %v4605 = vpop.f32.mrf.mxu0
  %v4606 = vadd.f32 0.0, %v4605
  %v4607 = vpop.f32.mrf.mxu0
  %v4608 = vadd.f32 0.0, %v4607
  %4609 = vmatmul.bf16.gmra.mxu0 %v4571
  %v4610 = vpop.f32.mrf.mxu0
  %v4611 = vadd.f32 0.0, %v4610
  %v4612 = vpop.f32.mrf.mxu0
  %v4613 = vadd.f32 0.0, %v4612
  %4614 = vmatmul.bf16.gmra.mxu0 %v4580
  %v4615 = vpop.f32.mrf.mxu0
  %v4616 = vadd.f32 0.0, %v4615
  %v4617 = vpop.f32.mrf.mxu0
  %v4618 = vadd.f32 0.0, %v4617
  %4619 = vdwg.mxu0
  %v4620 = vadd.f32 %v4473, %v4601
  %v4621 = vadd.f32 %v4474, %v4603
  %v4622 = vadd.f32 %v4475, %v4606
  %v4623 = vadd.f32 %v4476, %v4608
  %v4624 = vadd.f32 %v4477, %v4611
  %v4625 = vadd.f32 %v4478, %v4613
  %v4626 = vadd.f32 %v4479, %v4616
  %v4627 = vadd.f32 %v4480, %v4618
  %v4629 = vshrl.u32 %v4360, 16
  %v4631 = vrot.slane %v4629, 2
  %v4632 = vshll.u32 %v4360, 16
  %v4634 = vrot.slane %v4632, 3
  %v4635 = vor.u32 %v4631, %v4634
  %v4637 = vshrl.u32 %v4361, 16
  %v4639 = vrot.slane %v4637, 2
  %v4640 = vshll.u32 %v4361, 16
  %v4642 = vrot.slane %v4640, 3
  %v4643 = vor.u32 %v4639, %v4642
  %v4644 = vsel %vm4536, %v4635, %v4643
  %v4646 = vshrl.u32 %v4362, 16
  %v4648 = vrot.slane %v4646, 2
  %v4649 = vshll.u32 %v4362, 16
  %v4651 = vrot.slane %v4649, 3
  %v4652 = vor.u32 %v4648, %v4651
  %v4653 = vsel %vm4536, %v4643, %v4652
  %v4655 = vshrl.u32 %v4363, 16
  %v4657 = vrot.slane %v4655, 2
  %v4658 = vshll.u32 %v4363, 16
  %v4660 = vrot.slane %v4658, 3
  %v4661 = vor.u32 %v4657, %v4660
  %v4662 = vsel %vm4536, %v4652, %v4661
  %v4664 = vshrl.u32 %v4364, 16
  %v4666 = vrot.slane %v4664, 2
  %v4667 = vshll.u32 %v4364, 16
  %v4669 = vrot.slane %v4667, 3
  %v4670 = vor.u32 %v4666, %v4669
  %v4671 = vsel %vm4536, %v4661, %v4670
  %4676 = vmatpush.bf16.msra.mxu0 %v4589
  %4677 = vmatpush.bf16.msra.mxu0 %v4442
  %4678 = vmatpush.bf16.msra.mxu0 %v4321
  %4679 = vmatpush.bf16.msra.mxu0 %v4165
  %4680 = vmatpush.bf16.msra.mxu0 %v4004
  %4681 = vmatpush.bf16.msra.mxu0 %v3848
  %4682 = vmatpush.bf16.msra.mxu0 %v3701
  %4683 = vmatpush.bf16.msra.mxu0 %v3579
  %4684 = vmatmul.bf16.gmra.mxu0 %v4644
  %v4685 = vpop.f32.mrf.mxu0
  %v4686 = vadd.f32 0.0, %v4685
  %v4687 = vpop.f32.mrf.mxu0
  %v4688 = vadd.f32 0.0, %v4687
  %4689 = vmatmul.bf16.gmra.mxu0 %v4653
  %v4690 = vpop.f32.mrf.mxu0
  %v4691 = vadd.f32 0.0, %v4690
  %v4692 = vpop.f32.mrf.mxu0
  %v4693 = vadd.f32 0.0, %v4692
  %4694 = vmatmul.bf16.gmra.mxu0 %v4662
  %v4695 = vpop.f32.mrf.mxu0
  %v4696 = vadd.f32 0.0, %v4695
  %v4697 = vpop.f32.mrf.mxu0
  %v4698 = vadd.f32 0.0, %v4697
  %4699 = vmatmul.bf16.gmra.mxu0 %v4671
  %v4700 = vpop.f32.mrf.mxu0
  %v4701 = vadd.f32 0.0, %v4700
  %v4702 = vpop.f32.mrf.mxu0
  %v4703 = vadd.f32 0.0, %v4702
  %4704 = vdwg.mxu0
  %v4705 = vadd.f32 %v4528, %v4686
  %v4706 = vadd.f32 %v4529, %v4688
  %v4707 = vadd.f32 %v4530, %v4691
  %v4708 = vadd.f32 %v4531, %v4693
  %v4709 = vadd.f32 %v4532, %v4696
  %v4710 = vadd.f32 %v4533, %v4698
  %v4711 = vadd.f32 %v4534, %v4701
  %v4712 = vadd.f32 %v4535, %v4703
  %v4713 = vrot.slane %v4114, 2
  %v4714 = vrot.slane %v4117, 3
  %v4715 = vor.u32 %v4713, %v4714
  %v4716 = vrot.slane %v4122, 2
  %v4717 = vrot.slane %v4125, 3
  %v4718 = vor.u32 %v4716, %v4717
  %v4719 = vsel %vm4536, %v4715, %v4718
  %v4720 = vrot.slane %v4131, 2
  %v4721 = vrot.slane %v4134, 3
  %v4722 = vor.u32 %v4720, %v4721
  %v4723 = vsel %vm4536, %v4718, %v4722
  %v4724 = vrot.slane %v4140, 2
  %v4725 = vrot.slane %v4143, 3
  %v4726 = vor.u32 %v4724, %v4725
  %v4727 = vsel %vm4536, %v4722, %v4726
  %v4728 = vrot.slane %v4149, 2
  %v4729 = vrot.slane %v4152, 3
  %v4730 = vor.u32 %v4728, %v4729
  %v4731 = vsel %vm4536, %v4726, %v4730
  %v4738 = vunpack.c.l.b16 %v2026
  %v4739 = vunpack.c.l.b16 %v2027
  %v4740 = vpack.c.b16 %v4739, %v4738
  %4742 = vmatpush.bf16.msra.mxu0 %v4740
  %4743 = vmatpush.bf16.msra.mxu0 %v4589
  %4744 = vmatpush.bf16.msra.mxu0 %v4442
  %4745 = vmatpush.bf16.msra.mxu0 %v4321
  %4746 = vmatpush.bf16.msra.mxu0 %v4165
  %4747 = vmatpush.bf16.msra.mxu0 %v4004
  %4748 = vmatpush.bf16.msra.mxu0 %v3848
  %4749 = vmatpush.bf16.msra.mxu0 %v3701
  %4750 = vmatmul.bf16.gmra.mxu0 %v4719
  %v4751 = vpop.f32.mrf.mxu0
  %v4752 = vadd.f32 0.0, %v4751
  %v4753 = vpop.f32.mrf.mxu0
  %v4754 = vadd.f32 0.0, %v4753
  %4755 = vmatmul.bf16.gmra.mxu0 %v4723
  %v4756 = vpop.f32.mrf.mxu0
  %v4757 = vadd.f32 0.0, %v4756
  %v4758 = vpop.f32.mrf.mxu0
  %v4759 = vadd.f32 0.0, %v4758
  %4760 = vmatmul.bf16.gmra.mxu0 %v4727
  %v4761 = vpop.f32.mrf.mxu0
  %v4762 = vadd.f32 0.0, %v4761
  %v4763 = vpop.f32.mrf.mxu0
  %v4764 = vadd.f32 0.0, %v4763
  %4765 = vmatmul.bf16.gmra.mxu0 %v4731
  %v4766 = vpop.f32.mrf.mxu0
  %v4767 = vadd.f32 0.0, %v4766
  %v4768 = vpop.f32.mrf.mxu0
  %v4769 = vadd.f32 0.0, %v4768
  %4770 = vdwg.mxu0
  %v4771 = vadd.f32 %v4620, %v4752
  %v4772 = vadd.f32 %v4621, %v4754
  %v4773 = vadd.f32 %v4622, %v4757
  %v4774 = vadd.f32 %v4623, %v4759
  %v4775 = vadd.f32 %v4624, %v4762
  %v4776 = vadd.f32 %v4625, %v4764
  %v4777 = vadd.f32 %v4626, %v4767
  %v4778 = vadd.f32 %v4627, %v4769
  %v4779 = vrot.slane %v4210, 2
  %v4780 = vrot.slane %v4213, 3
  %v4781 = vor.u32 %v4779, %v4780
  %v4782 = vrot.slane %v4218, 2
  %v4783 = vrot.slane %v4221, 3
  %v4784 = vor.u32 %v4782, %v4783
  %v4785 = vsel %vm4536, %v4781, %v4784
  %v4786 = vrot.slane %v4227, 2
  %v4787 = vrot.slane %v4230, 3
  %v4788 = vor.u32 %v4786, %v4787
  %v4789 = vsel %vm4536, %v4784, %v4788
  %v4790 = vrot.slane %v4236, 2
  %v4791 = vrot.slane %v4239, 3
  %v4792 = vor.u32 %v4790, %v4791
  %v4793 = vsel %vm4536, %v4788, %v4792
  %v4794 = vrot.slane %v4245, 2
  %v4795 = vrot.slane %v4248, 3
  %v4796 = vor.u32 %v4794, %v4795
  %v4797 = vsel %vm4536, %v4792, %v4796
  %4802 = vmatpush.bf16.msra.mxu0 %v4740
  %4803 = vmatpush.bf16.msra.mxu0 %v4589
  %4804 = vmatpush.bf16.msra.mxu0 %v4442
  %4805 = vmatpush.bf16.msra.mxu0 %v4321
  %4806 = vmatpush.bf16.msra.mxu0 %v4165
  %4807 = vmatpush.bf16.msra.mxu0 %v4004
  %4808 = vmatpush.bf16.msra.mxu0 %v3848
  %4809 = vmatpush.bf16.msra.mxu0 %v3701
  %4810 = vmatmul.bf16.gmra.mxu0 %v4785
  %v4811 = vpop.f32.mrf.mxu0
  %v4812 = vadd.f32 0.0, %v4811
  %v4813 = vpop.f32.mrf.mxu0
  %v4814 = vadd.f32 0.0, %v4813
  %4815 = vmatmul.bf16.gmra.mxu0 %v4789
  %v4816 = vpop.f32.mrf.mxu0
  %v4817 = vadd.f32 0.0, %v4816
  %v4818 = vpop.f32.mrf.mxu0
  %v4819 = vadd.f32 0.0, %v4818
  %4820 = vmatmul.bf16.gmra.mxu0 %v4793
  %v4821 = vpop.f32.mrf.mxu0
  %v4822 = vadd.f32 0.0, %v4821
  %v4823 = vpop.f32.mrf.mxu0
  %v4824 = vadd.f32 0.0, %v4823
  %4825 = vmatmul.bf16.gmra.mxu0 %v4797
  %v4826 = vpop.f32.mrf.mxu0
  %v4827 = vadd.f32 0.0, %v4826
  %v4828 = vpop.f32.mrf.mxu0
  %v4829 = vadd.f32 0.0, %v4828
  %4830 = vdwg.mxu0
  %v4831 = vadd.f32 %v4705, %v4812
  %v4832 = vadd.f32 %v4706, %v4814
  %v4833 = vadd.f32 %v4707, %v4817
  %v4834 = vadd.f32 %v4708, %v4819
  %v4835 = vadd.f32 %v4709, %v4822
  %v4836 = vadd.f32 %v4710, %v4824
  %v4837 = vadd.f32 %v4711, %v4827
  %v4838 = vadd.f32 %v4712, %v4829
  %v4839 = vpack.c.bf16 %v1903, %v1902
  %v4840 = vpack.c.bf16 %v1904, %v1904
  %v4843 = vrot.slane %v4839, 1
  %v4844 = vsel %vm2451, %v2575, %v4843
  %v4845 = vrot.slane %v4840, 1
  %v4846 = vsel %vm2451, %v4843, %v4845
  %v4851 = vunpack.c.l.b16 %v2028
  %v4852 = vunpack.c.l.b16 %v2029
  %v4853 = vpack.c.b16 %v4852, %v4851
  %4855 = vmatpush.bf16.msra.mxu0 %v4853
  %4856 = vmatpush.bf16.msra.mxu0 %v4740
  %4857 = vmatpush.bf16.msra.mxu0 %v4589
  %4858 = vmatpush.bf16.msra.mxu0 %v4442
  %4859 = vmatpush.bf16.msra.mxu0 %v4321
  %4860 = vmatpush.bf16.msra.mxu0 %v4165
  %4861 = vmatpush.bf16.msra.mxu0 %v4004
  %4862 = vmatpush.bf16.msra.mxu0 %v3848
  %4863 = vmatmul.bf16.gmra.mxu0 %v2574
  %v4864 = vpop.f32.mrf.mxu0
  %v4865 = vadd.f32 0.0, %v4864
  %v4866 = vpop.f32.mrf.mxu0
  %v4867 = vadd.f32 0.0, %v4866
  %4868 = vmatmul.bf16.gmra.mxu0 %v2576
  %v4869 = vpop.f32.mrf.mxu0
  %v4870 = vadd.f32 0.0, %v4869
  %v4871 = vpop.f32.mrf.mxu0
  %v4872 = vadd.f32 0.0, %v4871
  %4873 = vmatmul.bf16.gmra.mxu0 %v4844
  %v4874 = vpop.f32.mrf.mxu0
  %v4875 = vadd.f32 0.0, %v4874
  %v4876 = vpop.f32.mrf.mxu0
  %v4877 = vadd.f32 0.0, %v4876
  %4878 = vmatmul.bf16.gmra.mxu0 %v4846
  %v4879 = vpop.f32.mrf.mxu0
  %v4880 = vadd.f32 0.0, %v4879
  %v4881 = vpop.f32.mrf.mxu0
  %v4882 = vadd.f32 0.0, %v4881
  %4883 = vdwg.mxu0
  %v4884 = vadd.f32 %v4771, %v4865
  %v4885 = vadd.f32 %v4772, %v4867
  %v4886 = vadd.f32 %v4773, %v4870
  %v4887 = vadd.f32 %v4774, %v4872
  %v4888 = vadd.f32 %v4775, %v4875
  %v4889 = vadd.f32 %v4776, %v4877
  %v4890 = vadd.f32 %v4777, %v4880
  %v4891 = vadd.f32 %v4778, %v4882
  %v4892 = vpack.c.bf16 %v1943, %v1942
  %v4893 = vpack.c.bf16 %v1944, %v1944
  %v4896 = vrot.slane %v4892, 1
  %v4897 = vsel %vm2451, %v2637, %v4896
  %v4898 = vrot.slane %v4893, 1
  %v4899 = vsel %vm2451, %v4896, %v4898
  %4902 = vmatpush.bf16.msra.mxu0 %v4853
  %4903 = vmatpush.bf16.msra.mxu0 %v4740
  %4904 = vmatpush.bf16.msra.mxu0 %v4589
  %4905 = vmatpush.bf16.msra.mxu0 %v4442
  %4906 = vmatpush.bf16.msra.mxu0 %v4321
  %4907 = vmatpush.bf16.msra.mxu0 %v4165
  %4908 = vmatpush.bf16.msra.mxu0 %v4004
  %4909 = vmatpush.bf16.msra.mxu0 %v3848
  %4910 = vmatmul.bf16.gmra.mxu0 %v2636
  %v4911 = vpop.f32.mrf.mxu0
  %v4912 = vadd.f32 0.0, %v4911
  %v4913 = vpop.f32.mrf.mxu0
  %v4914 = vadd.f32 0.0, %v4913
  %4915 = vmatmul.bf16.gmra.mxu0 %v2638
  %v4916 = vpop.f32.mrf.mxu0
  %v4917 = vadd.f32 0.0, %v4916
  %v4918 = vpop.f32.mrf.mxu0
  %v4919 = vadd.f32 0.0, %v4918
  %4920 = vmatmul.bf16.gmra.mxu0 %v4897
  %v4921 = vpop.f32.mrf.mxu0
  %v4922 = vadd.f32 0.0, %v4921
  %v4923 = vpop.f32.mrf.mxu0
  %v4924 = vadd.f32 0.0, %v4923
  %4925 = vmatmul.bf16.gmra.mxu0 %v4899
  %v4926 = vpop.f32.mrf.mxu0
  %v4927 = vadd.f32 0.0, %v4926
  %v4928 = vpop.f32.mrf.mxu0
  %v4929 = vadd.f32 0.0, %v4928
  %4930 = vdwg.mxu0
  %v4931 = vadd.f32 %v4831, %v4912
  %v4932 = vadd.f32 %v4832, %v4914
  %v4933 = vadd.f32 %v4833, %v4917
  %v4934 = vadd.f32 %v4834, %v4919
  %v4935 = vadd.f32 %v4835, %v4922
  %v4936 = vadd.f32 %v4836, %v4924
  %v4937 = vadd.f32 %v4837, %v4927
  %v4938 = vadd.f32 %v4838, %v4929
  %v4939 = vpack.c.bf16 %v1913, %v1912
  %v4940 = vpack.c.bf16 %v1914, %v1914
  %v4941 = vrot.slane %v2063, 1
  %v4942 = vrot.slane %v2059, 2
  %v4943 = vor.u32 %v4941, %v4942
  %v4944 = vrot.slane %v2071, 1
  %v4945 = vrot.slane %v2067, 2
  %v4946 = vor.u32 %v4944, %v4945
  %v4947 = vsel %vm2813, %v4943, %v4946
  %v4948 = vrot.slane %v2079, 1
  %v4949 = vrot.slane %v2075, 2
  %v4950 = vor.u32 %v4948, %v4949
  %v4951 = vsel %vm2813, %v4946, %v4950
  %v4953 = vshrl.u32 %v4939, 16
  %v4955 = vrot.slane %v4953, 1
  %v4956 = vshll.u32 %v4939, 16
  %v4958 = vrot.slane %v4956, 2
  %v4959 = vor.u32 %v4955, %v4958
  %v4960 = vsel %vm2813, %v4950, %v4959
  %v4962 = vshrl.u32 %v4940, 16
  %v4964 = vrot.slane %v4962, 1
  %v4965 = vshll.u32 %v4940, 16
  %v4967 = vrot.slane %v4965, 2
  %v4968 = vor.u32 %v4964, %v4967
  %v4969 = vsel %vm2813, %v4959, %v4968
  %v4976 = vunpack.c.l.b16 %v2030
  %v4977 = vunpack.c.l.b16 %v2031
  %v4978 = vpack.c.b16 %v4977, %v4976
  %4980 = vmatpush.bf16.msra.mxu0 %v4978
  %4981 = vmatpush.bf16.msra.mxu0 %v4853
  %4982 = vmatpush.bf16.msra.mxu0 %v4740
  %4983 = vmatpush.bf16.msra.mxu0 %v4589
  %4984 = vmatpush.bf16.msra.mxu0 %v4442
  %4985 = vmatpush.bf16.msra.mxu0 %v4321
  %4986 = vmatpush.bf16.msra.mxu0 %v4165
  %4987 = vmatpush.bf16.msra.mxu0 %v4004
  %4988 = vmatmul.bf16.gmra.mxu0 %v4947
  %v4989 = vpop.f32.mrf.mxu0
  %v4990 = vadd.f32 0.0, %v4989
  %v4991 = vpop.f32.mrf.mxu0
  %v4992 = vadd.f32 0.0, %v4991
  %4993 = vmatmul.bf16.gmra.mxu0 %v4951
  %v4994 = vpop.f32.mrf.mxu0
  %v4995 = vadd.f32 0.0, %v4994
  %v4996 = vpop.f32.mrf.mxu0
  %v4997 = vadd.f32 0.0, %v4996
  %4998 = vmatmul.bf16.gmra.mxu0 %v4960
  %v4999 = vpop.f32.mrf.mxu0
  %v5000 = vadd.f32 0.0, %v4999
  %v5001 = vpop.f32.mrf.mxu0
  %v5002 = vadd.f32 0.0, %v5001
  %5003 = vmatmul.bf16.gmra.mxu0 %v4969
  %v5004 = vpop.f32.mrf.mxu0
  %v5005 = vadd.f32 0.0, %v5004
  %v5006 = vpop.f32.mrf.mxu0
  %v5007 = vadd.f32 0.0, %v5006
  %5008 = vdwg.mxu0
  %v5009 = vadd.f32 %v4884, %v4990
  %v5010 = vadd.f32 %v4885, %v4992
  %v5011 = vadd.f32 %v4886, %v4995
  %v5012 = vadd.f32 %v4887, %v4997
  %v5013 = vadd.f32 %v4888, %v5000
  %v5014 = vadd.f32 %v4889, %v5002
  %v5015 = vadd.f32 %v4890, %v5005
  %v5016 = vadd.f32 %v4891, %v5007
  %v5017 = vpack.c.bf16 %v1953, %v1952
  %v5018 = vpack.c.bf16 %v1954, %v1954
  %v5019 = vrot.slane %v2214, 1
  %v5020 = vrot.slane %v2210, 2
  %v5021 = vor.u32 %v5019, %v5020
  %v5022 = vrot.slane %v2222, 1
  %v5023 = vrot.slane %v2218, 2
  %v5024 = vor.u32 %v5022, %v5023
  %v5025 = vsel %vm2813, %v5021, %v5024
  %v5026 = vrot.slane %v2230, 1
  %v5027 = vrot.slane %v2226, 2
  %v5028 = vor.u32 %v5026, %v5027
  %v5029 = vsel %vm2813, %v5024, %v5028
  %v5031 = vshrl.u32 %v5017, 16
  %v5033 = vrot.slane %v5031, 1
  %v5034 = vshll.u32 %v5017, 16
  %v5036 = vrot.slane %v5034, 2
  %v5037 = vor.u32 %v5033, %v5036
  %v5038 = vsel %vm2813, %v5028, %v5037
  %v5040 = vshrl.u32 %v5018, 16
  %v5042 = vrot.slane %v5040, 1
  %v5043 = vshll.u32 %v5018, 16
  %v5045 = vrot.slane %v5043, 2
  %v5046 = vor.u32 %v5042, %v5045
  %v5047 = vsel %vm2813, %v5037, %v5046
  %5052 = vmatpush.bf16.msra.mxu0 %v4978
  %5053 = vmatpush.bf16.msra.mxu0 %v4853
  %5054 = vmatpush.bf16.msra.mxu0 %v4740
  %5055 = vmatpush.bf16.msra.mxu0 %v4589
  %5056 = vmatpush.bf16.msra.mxu0 %v4442
  %5057 = vmatpush.bf16.msra.mxu0 %v4321
  %5058 = vmatpush.bf16.msra.mxu0 %v4165
  %5059 = vmatpush.bf16.msra.mxu0 %v4004
  %5060 = vmatmul.bf16.gmra.mxu0 %v5025
  %v5061 = vpop.f32.mrf.mxu0
  %v5062 = vadd.f32 0.0, %v5061
  %v5063 = vpop.f32.mrf.mxu0
  %v5064 = vadd.f32 0.0, %v5063
  %5065 = vmatmul.bf16.gmra.mxu0 %v5029
  %v5066 = vpop.f32.mrf.mxu0
  %v5067 = vadd.f32 0.0, %v5066
  %v5068 = vpop.f32.mrf.mxu0
  %v5069 = vadd.f32 0.0, %v5068
  %5070 = vmatmul.bf16.gmra.mxu0 %v5038
  %v5071 = vpop.f32.mrf.mxu0
  %v5072 = vadd.f32 0.0, %v5071
  %v5073 = vpop.f32.mrf.mxu0
  %v5074 = vadd.f32 0.0, %v5073
  %5075 = vmatmul.bf16.gmra.mxu0 %v5047
  %v5076 = vpop.f32.mrf.mxu0
  %v5077 = vadd.f32 0.0, %v5076
  %v5078 = vpop.f32.mrf.mxu0
  %v5079 = vadd.f32 0.0, %v5078
  %5080 = vdwg.mxu0
  %v5081 = vadd.f32 %v4931, %v5062
  %v5082 = vadd.f32 %v4932, %v5064
  %v5083 = vadd.f32 %v4933, %v5067
  %v5084 = vadd.f32 %v4934, %v5069
  %v5085 = vadd.f32 %v4935, %v5072
  %v5086 = vadd.f32 %v4936, %v5074
  %v5087 = vadd.f32 %v4937, %v5077
  %v5088 = vadd.f32 %v4938, %v5079
  %v5089 = vrot.slane %v2307, 1
  %v5090 = vrot.slane %v2303, 2
  %v5091 = vor.u32 %v5089, %v5090
  %v5092 = vrot.slane %v2315, 1
  %v5093 = vrot.slane %v2311, 2
  %v5094 = vor.u32 %v5092, %v5093
  %v5095 = vsel %vm2813, %v5091, %v5094
  %v5096 = vrot.slane %v2323, 1
  %v5097 = vrot.slane %v2319, 2
  %v5098 = vor.u32 %v5096, %v5097
  %v5099 = vsel %vm2813, %v5094, %v5098
  %v5101 = vshrl.u32 %v4839, 16
  %v5103 = vrot.slane %v5101, 1
  %v5104 = vshll.u32 %v4839, 16
  %v5106 = vrot.slane %v5104, 2
  %v5107 = vor.u32 %v5103, %v5106
  %v5108 = vsel %vm2813, %v5098, %v5107
  %v5110 = vshrl.u32 %v4840, 16
  %v5112 = vrot.slane %v5110, 1
  %v5113 = vshll.u32 %v4840, 16
  %v5115 = vrot.slane %v5113, 2
  %v5116 = vor.u32 %v5112, %v5115
  %v5117 = vsel %vm2813, %v5107, %v5116
  %v5124 = vunpack.c.l.b16 %v2032
  %v5125 = vunpack.c.l.b16 %v2033
  %v5126 = vpack.c.b16 %v5125, %v5124
  %5128 = vmatpush.bf16.msra.mxu0 %v5126
  %5129 = vmatpush.bf16.msra.mxu0 %v4978
  %5130 = vmatpush.bf16.msra.mxu0 %v4853
  %5131 = vmatpush.bf16.msra.mxu0 %v4740
  %5132 = vmatpush.bf16.msra.mxu0 %v4589
  %5133 = vmatpush.bf16.msra.mxu0 %v4442
  %5134 = vmatpush.bf16.msra.mxu0 %v4321
  %5135 = vmatpush.bf16.msra.mxu0 %v4165
  %5136 = vmatmul.bf16.gmra.mxu0 %v5095
  %v5137 = vpop.f32.mrf.mxu0
  %v5138 = vadd.f32 0.0, %v5137
  %v5139 = vpop.f32.mrf.mxu0
  %v5140 = vadd.f32 0.0, %v5139
  %5141 = vmatmul.bf16.gmra.mxu0 %v5099
  %v5142 = vpop.f32.mrf.mxu0
  %v5143 = vadd.f32 0.0, %v5142
  %v5144 = vpop.f32.mrf.mxu0
  %v5145 = vadd.f32 0.0, %v5144
  %5146 = vmatmul.bf16.gmra.mxu0 %v5108
  %v5147 = vpop.f32.mrf.mxu0
  %v5148 = vadd.f32 0.0, %v5147
  %v5149 = vpop.f32.mrf.mxu0
  %v5150 = vadd.f32 0.0, %v5149
  %5151 = vmatmul.bf16.gmra.mxu0 %v5117
  %v5152 = vpop.f32.mrf.mxu0
  %v5153 = vadd.f32 0.0, %v5152
  %v5154 = vpop.f32.mrf.mxu0
  %v5155 = vadd.f32 0.0, %v5154
  %5156 = vdwg.mxu0
  %v5157 = vadd.f32 %v5009, %v5138
  %v5158 = vadd.f32 %v5010, %v5140
  %v5159 = vadd.f32 %v5011, %v5143
  %v5160 = vadd.f32 %v5012, %v5145
  %v5161 = vadd.f32 %v5013, %v5148
  %v5162 = vadd.f32 %v5014, %v5150
  %v5163 = vadd.f32 %v5015, %v5153
  %v5164 = vadd.f32 %v5016, %v5155
  %v5165 = vrot.slane %v2385, 1
  %v5166 = vrot.slane %v2381, 2
  %v5167 = vor.u32 %v5165, %v5166
  %v5168 = vrot.slane %v2393, 1
  %v5169 = vrot.slane %v2389, 2
  %v5170 = vor.u32 %v5168, %v5169
  %v5171 = vsel %vm2813, %v5167, %v5170
  %v5172 = vrot.slane %v2401, 1
  %v5173 = vrot.slane %v2397, 2
  %v5174 = vor.u32 %v5172, %v5173
  %v5175 = vsel %vm2813, %v5170, %v5174
  %v5177 = vshrl.u32 %v4892, 16
  %v5179 = vrot.slane %v5177, 1
  %v5180 = vshll.u32 %v4892, 16
  %v5182 = vrot.slane %v5180, 2
  %v5183 = vor.u32 %v5179, %v5182
  %v5184 = vsel %vm2813, %v5174, %v5183
  %v5186 = vshrl.u32 %v4893, 16
  %v5188 = vrot.slane %v5186, 1
  %v5189 = vshll.u32 %v4893, 16
  %v5191 = vrot.slane %v5189, 2
  %v5192 = vor.u32 %v5188, %v5191
  %v5193 = vsel %vm2813, %v5183, %v5192
  %5198 = vmatpush.bf16.msra.mxu0 %v5126
  %5199 = vmatpush.bf16.msra.mxu0 %v4978
  %5200 = vmatpush.bf16.msra.mxu0 %v4853
  %5201 = vmatpush.bf16.msra.mxu0 %v4740
  %5202 = vmatpush.bf16.msra.mxu0 %v4589
  %5203 = vmatpush.bf16.msra.mxu0 %v4442
  %5204 = vmatpush.bf16.msra.mxu0 %v4321
  %5205 = vmatpush.bf16.msra.mxu0 %v4165
  %5206 = vmatmul.bf16.gmra.mxu0 %v5171
  %v5207 = vpop.f32.mrf.mxu0
  %v5208 = vadd.f32 0.0, %v5207
  %v5209 = vpop.f32.mrf.mxu0
  %v5210 = vadd.f32 0.0, %v5209
  %5211 = vmatmul.bf16.gmra.mxu0 %v5175
  %v5212 = vpop.f32.mrf.mxu0
  %v5213 = vadd.f32 0.0, %v5212
  %v5214 = vpop.f32.mrf.mxu0
  %v5215 = vadd.f32 0.0, %v5214
  %5216 = vmatmul.bf16.gmra.mxu0 %v5184
  %v5217 = vpop.f32.mrf.mxu0
  %v5218 = vadd.f32 0.0, %v5217
  %v5219 = vpop.f32.mrf.mxu0
  %v5220 = vadd.f32 0.0, %v5219
  %5221 = vmatmul.bf16.gmra.mxu0 %v5193
  %v5222 = vpop.f32.mrf.mxu0
  %v5223 = vadd.f32 0.0, %v5222
  %v5224 = vpop.f32.mrf.mxu0
  %v5225 = vadd.f32 0.0, %v5224
  %5226 = vdwg.mxu0
  %v5227 = vadd.f32 %v5081, %v5208
  %v5228 = vadd.f32 %v5082, %v5210
  %v5229 = vadd.f32 %v5083, %v5213
  %v5230 = vadd.f32 %v5084, %v5215
  %v5231 = vadd.f32 %v5085, %v5218
  %v5232 = vadd.f32 %v5086, %v5220
  %v5233 = vadd.f32 %v5087, %v5223
  %v5234 = vadd.f32 %v5088, %v5225
  %v5237 = vrot.slane %v2047, 2
  %v5238 = vrot.slane %v2048, 2
  %v5239 = vsel %vm3176, %v5237, %v5238
  %v5240 = vrot.slane %v2049, 2
  %v5241 = vsel %vm3176, %v5238, %v5240
  %v5242 = vrot.slane %v4939, 2
  %v5243 = vsel %vm3176, %v5240, %v5242
  %v5244 = vrot.slane %v4940, 2
  %v5245 = vsel %vm3176, %v5242, %v5244
  %v5252 = vunpack.c.l.b16 %v2034
  %v5253 = vunpack.c.l.b16 %v2035
  %v5254 = vpack.c.b16 %v5253, %v5252
  %5256 = vmatpush.bf16.msra.mxu0 %v5254
  %5257 = vmatpush.bf16.msra.mxu0 %v5126
  %5258 = vmatpush.bf16.msra.mxu0 %v4978
  %5259 = vmatpush.bf16.msra.mxu0 %v4853
  %5260 = vmatpush.bf16.msra.mxu0 %v4740
  %5261 = vmatpush.bf16.msra.mxu0 %v4589
  %5262 = vmatpush.bf16.msra.mxu0 %v4442
  %5263 = vmatpush.bf16.msra.mxu0 %v4321
  %5264 = vmatmul.bf16.gmra.mxu0 %v5239
  %v5265 = vpop.f32.mrf.mxu0
  %v5266 = vadd.f32 0.0, %v5265
  %v5267 = vpop.f32.mrf.mxu0
  %v5268 = vadd.f32 0.0, %v5267
  %5269 = vmatmul.bf16.gmra.mxu0 %v5241
  %v5270 = vpop.f32.mrf.mxu0
  %v5271 = vadd.f32 0.0, %v5270
  %v5272 = vpop.f32.mrf.mxu0
  %v5273 = vadd.f32 0.0, %v5272
  %5274 = vmatmul.bf16.gmra.mxu0 %v5243
  %v5275 = vpop.f32.mrf.mxu0
  %v5276 = vadd.f32 0.0, %v5275
  %v5277 = vpop.f32.mrf.mxu0
  %v5278 = vadd.f32 0.0, %v5277
  %5279 = vmatmul.bf16.gmra.mxu0 %v5245
  %v5280 = vpop.f32.mrf.mxu0
  %v5281 = vadd.f32 0.0, %v5280
  %v5282 = vpop.f32.mrf.mxu0
  %v5283 = vadd.f32 0.0, %v5282
  %5284 = vdwg.mxu0
  %v5285 = vadd.f32 %v5157, %v5266
  %v5286 = vadd.f32 %v5158, %v5268
  %v5287 = vadd.f32 %v5159, %v5271
  %v5288 = vadd.f32 %v5160, %v5273
  %v5289 = vadd.f32 %v5161, %v5276
  %v5290 = vadd.f32 %v5162, %v5278
  %v5291 = vadd.f32 %v5163, %v5281
  %v5292 = vadd.f32 %v5164, %v5283
  %v5295 = vrot.slane %v2199, 2
  %v5296 = vrot.slane %v2200, 2
  %v5297 = vsel %vm3176, %v5295, %v5296
  %v5298 = vrot.slane %v2201, 2
  %v5299 = vsel %vm3176, %v5296, %v5298
  %v5300 = vrot.slane %v5017, 2
  %v5301 = vsel %vm3176, %v5298, %v5300
  %v5302 = vrot.slane %v5018, 2
  %v5303 = vsel %vm3176, %v5300, %v5302
  %5308 = vmatpush.bf16.msra.mxu0 %v5254
  %5309 = vmatpush.bf16.msra.mxu0 %v5126
  %5310 = vmatpush.bf16.msra.mxu0 %v4978
  %5311 = vmatpush.bf16.msra.mxu0 %v4853
  %5312 = vmatpush.bf16.msra.mxu0 %v4740
  %5313 = vmatpush.bf16.msra.mxu0 %v4589
  %5314 = vmatpush.bf16.msra.mxu0 %v4442
  %5315 = vmatpush.bf16.msra.mxu0 %v4321
  %5316 = vmatmul.bf16.gmra.mxu0 %v5297
  %v5317 = vpop.f32.mrf.mxu0
  %v5318 = vadd.f32 0.0, %v5317
  %v5319 = vpop.f32.mrf.mxu0
  %v5320 = vadd.f32 0.0, %v5319
  %5321 = vmatmul.bf16.gmra.mxu0 %v5299
  %v5322 = vpop.f32.mrf.mxu0
  %v5323 = vadd.f32 0.0, %v5322
  %v5324 = vpop.f32.mrf.mxu0
  %v5325 = vadd.f32 0.0, %v5324
  %5326 = vmatmul.bf16.gmra.mxu0 %v5301
  %v5327 = vpop.f32.mrf.mxu0
  %v5328 = vadd.f32 0.0, %v5327
  %v5329 = vpop.f32.mrf.mxu0
  %v5330 = vadd.f32 0.0, %v5329
  %5331 = vmatmul.bf16.gmra.mxu0 %v5303
  %v5332 = vpop.f32.mrf.mxu0
  %v5333 = vadd.f32 0.0, %v5332
  %v5334 = vpop.f32.mrf.mxu0
  %v5335 = vadd.f32 0.0, %v5334
  %5336 = vdwg.mxu0
  %v5337 = vadd.f32 %v5227, %v5318
  %v5338 = vadd.f32 %v5228, %v5320
  %v5339 = vadd.f32 %v5229, %v5323
  %v5340 = vadd.f32 %v5230, %v5325
  %v5341 = vadd.f32 %v5231, %v5328
  %v5342 = vadd.f32 %v5232, %v5330
  %v5343 = vadd.f32 %v5233, %v5333
  %v5344 = vadd.f32 %v5234, %v5335
  %v5345 = vrot.slane %v2039, 2
  %v5346 = vrot.slane %v2040, 2
  %v5347 = vsel %vm3176, %v5345, %v5346
  %v5348 = vrot.slane %v2041, 2
  %v5349 = vsel %vm3176, %v5346, %v5348
  %v5350 = vrot.slane %v4839, 2
  %v5351 = vsel %vm3176, %v5348, %v5350
  %v5352 = vrot.slane %v4840, 2
  %v5353 = vsel %vm3176, %v5350, %v5352
  %v5360 = vunpack.c.l.b16 %v2036
  %v5361 = vunpack.c.l.b16 %v2037
  %v5362 = vpack.c.b16 %v5361, %v5360
  %5364 = vmatpush.bf16.msra.mxu0 %v5362
  %5365 = vmatpush.bf16.msra.mxu0 %v5254
  %5366 = vmatpush.bf16.msra.mxu0 %v5126
  %5367 = vmatpush.bf16.msra.mxu0 %v4978
  %5368 = vmatpush.bf16.msra.mxu0 %v4853
  %5369 = vmatpush.bf16.msra.mxu0 %v4740
  %5370 = vmatpush.bf16.msra.mxu0 %v4589
  %5371 = vmatpush.bf16.msra.mxu0 %v4442
  %5372 = vmatmul.bf16.gmra.mxu0 %v5347
  %v5373 = vpop.f32.mrf.mxu0
  %v5374 = vadd.f32 0.0, %v5373
  %v5375 = vpop.f32.mrf.mxu0
  %v5376 = vadd.f32 0.0, %v5375
  %5377 = vmatmul.bf16.gmra.mxu0 %v5349
  %v5378 = vpop.f32.mrf.mxu0
  %v5379 = vadd.f32 0.0, %v5378
  %v5380 = vpop.f32.mrf.mxu0
  %v5381 = vadd.f32 0.0, %v5380
  %5382 = vmatmul.bf16.gmra.mxu0 %v5351
  %v5383 = vpop.f32.mrf.mxu0
  %v5384 = vadd.f32 0.0, %v5383
  %v5385 = vpop.f32.mrf.mxu0
  %v5386 = vadd.f32 0.0, %v5385
  %5387 = vmatmul.bf16.gmra.mxu0 %v5353
  %v5388 = vpop.f32.mrf.mxu0
  %v5389 = vadd.f32 0.0, %v5388
  %v5390 = vpop.f32.mrf.mxu0
  %v5391 = vadd.f32 0.0, %v5390
  %5392 = vdwg.mxu0
  %v5393 = vadd.f32 %v5285, %v5374
  %v5394 = vadd.f32 %v5286, %v5376
  %v5395 = vadd.f32 %v5287, %v5379
  %v5396 = vadd.f32 %v5288, %v5381
  %v5397 = vadd.f32 %v5289, %v5384
  %v5398 = vadd.f32 %v5290, %v5386
  %v5399 = vadd.f32 %v5291, %v5389
  %v5400 = vadd.f32 %v5292, %v5391
  %v5401 = vrot.slane %v2043, 2
  %v5402 = vrot.slane %v2044, 2
  %v5403 = vsel %vm3176, %v5401, %v5402
  %v5404 = vrot.slane %v2045, 2
  %v5405 = vsel %vm3176, %v5402, %v5404
  %v5406 = vrot.slane %v4892, 2
  %v5407 = vsel %vm3176, %v5404, %v5406
  %v5408 = vrot.slane %v4893, 2
  %v5409 = vsel %vm3176, %v5406, %v5408
  %5414 = vmatpush.bf16.msra.mxu0 %v5362
  %5415 = vmatpush.bf16.msra.mxu0 %v5254
  %5416 = vmatpush.bf16.msra.mxu0 %v5126
  %5417 = vmatpush.bf16.msra.mxu0 %v4978
  %5418 = vmatpush.bf16.msra.mxu0 %v4853
  %5419 = vmatpush.bf16.msra.mxu0 %v4740
  %5420 = vmatpush.bf16.msra.mxu0 %v4589
  %5421 = vmatpush.bf16.msra.mxu0 %v4442
  %5422 = vmatmul.bf16.gmra.mxu0 %v5403
  %v5423 = vpop.f32.mrf.mxu0
  %v5424 = vadd.f32 0.0, %v5423
  %v5425 = vpop.f32.mrf.mxu0
  %v5426 = vadd.f32 0.0, %v5425
  %5427 = vmatmul.bf16.gmra.mxu0 %v5405
  %v5428 = vpop.f32.mrf.mxu0
  %v5429 = vadd.f32 0.0, %v5428
  %v5430 = vpop.f32.mrf.mxu0
  %v5431 = vadd.f32 0.0, %v5430
  %5432 = vmatmul.bf16.gmra.mxu0 %v5407
  %v5433 = vpop.f32.mrf.mxu0
  %v5434 = vadd.f32 0.0, %v5433
  %v5435 = vpop.f32.mrf.mxu0
  %v5436 = vadd.f32 0.0, %v5435
  %5437 = vmatmul.bf16.gmra.mxu0 %v5409
  %v5438 = vpop.f32.mrf.mxu0
  %v5439 = vadd.f32 0.0, %v5438
  %v5440 = vpop.f32.mrf.mxu0
  %v5441 = vadd.f32 0.0, %v5440
  %5442 = vdwg.mxu0
  %v5443 = vadd.f32 %v5337, %v5424
  %v5444 = vadd.f32 %v5338, %v5426
  %v5445 = vadd.f32 %v5339, %v5429
  %v5446 = vadd.f32 %v5340, %v5431
  %v5447 = vadd.f32 %v5341, %v5434
  %v5448 = vadd.f32 %v5342, %v5436
  %v5449 = vadd.f32 %v5343, %v5439
  %v5450 = vadd.f32 %v5344, %v5441
  %vm5459 = vcmask 1046528
  %v5460 = vrot.slane %v5443, 1
  %v5461 = vrot.slane %v5444, 1
  %v5462 = vsel %vm5459, %v5460, %v5461
  %v5463 = vrot.slane %v5445, 1
  %v5464 = vsel %vm5459, %v5461, %v5463
  %v5465 = vrot.slane %v5446, 1
  %v5466 = vsel %vm5459, %v5463, %v5465
  %v5467 = vrot.slane %v5447, 1
  %v5468 = vsel %vm5459, %v5465, %v5467
  %v5469 = vrot.slane %v5448, 1
  %v5470 = vsel %vm5459, %v5467, %v5469
  %v5471 = vrot.slane %v5449, 1
  %v5472 = vsel %vm5459, %v5469, %v5471
  %v5473 = vrot.slane %v5450, 1
  %v5474 = vsel %vm5459, %v5471, %v5473
  %v5484 = vsel %vm5459, %v5400, %v5460
  %v5485 = vld [vmem:[%s8] sm:$0xff]
  %v5486 = vld [vmem:[%s8 + $0x8] sm:$0xff]
  %v5487 = vld [vmem:[%s8 + $0x10] sm:$0xff]
  %v5488 = vld [vmem:[%s8 + $0x18] sm:$0xff]
  %v5489 = vld [vmem:[%s8 + $0x20] sm:$0xff]
  %v5490 = vld [vmem:[%s8 + $0x28] sm:$0xff]
  %v5491 = vld [vmem:[%s8 + $0x30] sm:$0xff]
  %v5492 = vld [vmem:[%s8 + $0x38] sm:$0xff]
  %v5493 = vld [vmem:[%s8 + $0x40] sm:$0xff]
  %v5494 = vld [vmem:[%s8 + $0x48] sm:$0xff]
  %v5495 = vld [vmem:[%s8 + $0x50] sm:$0xff]
  %v5496 = vld [vmem:[%s8 + $0x58] sm:$0xff]
  %v5497 = vld [vmem:[%s8 + $0x60] sm:$0xff]
  %v5498 = vld [vmem:[%s8 + $0x68] sm:$0xff]
  %v5499 = vld [vmem:[%s8 + $0x70] sm:$0xff]
  %v5500 = vld [vmem:[%s8 + $0x78] sm:$0x3f]
  %5502 = vset.pattern.permute.xlu0 0
  %5503 = vperm.xlu0 %5502, %v5485
  %v5504 = vpop.permute.xlu0 %5503
  %5507 = vset.pattern.permute.xlu0 0
  %5508 = vperm.xlu0 %5507, %v5486
  %v5509 = vpop.permute.xlu0 %5508
  %5512 = vset.pattern.permute.xlu0 0
  %5513 = vperm.xlu0 %5512, %v5487
  %v5514 = vpop.permute.xlu0 %5513
  %5517 = vset.pattern.permute.xlu0 0
  %5518 = vperm.xlu0 %5517, %v5488
  %v5519 = vpop.permute.xlu0 %5518
  %5522 = vset.pattern.permute.xlu0 0
  %5523 = vperm.xlu0 %5522, %v5489
  %v5524 = vpop.permute.xlu0 %5523
  %5527 = vset.pattern.permute.xlu0 0
  %5528 = vperm.xlu0 %5527, %v5490
  %v5529 = vpop.permute.xlu0 %5528
  %5532 = vset.pattern.permute.xlu0 0
  %5533 = vperm.xlu0 %5532, %v5491
  %v5534 = vpop.permute.xlu0 %5533
  %5537 = vset.pattern.permute.xlu0 0
  %5538 = vperm.xlu0 %5537, %v5492
  %v5539 = vpop.permute.xlu0 %5538
  %5542 = vset.pattern.permute.xlu0 0
  %5543 = vperm.xlu0 %5542, %v5493
  %v5544 = vpop.permute.xlu0 %5543
  %5547 = vset.pattern.permute.xlu0 0
  %5548 = vperm.xlu0 %5547, %v5494
  %v5549 = vpop.permute.xlu0 %5548
  %5552 = vset.pattern.permute.xlu0 0
  %5553 = vperm.xlu0 %5552, %v5495
  %v5554 = vpop.permute.xlu0 %5553
  %5557 = vset.pattern.permute.xlu0 0
  %5558 = vperm.xlu0 %5557, %v5496
  %v5559 = vpop.permute.xlu0 %5558
  %5562 = vset.pattern.permute.xlu0 0
  %5563 = vperm.xlu0 %5562, %v5497
  %v5564 = vpop.permute.xlu0 %5563
  %5567 = vset.pattern.permute.xlu0 0
  %5568 = vperm.xlu0 %5567, %v5498
  %v5569 = vpop.permute.xlu0 %5568
  %5572 = vset.pattern.permute.xlu0 0
  %5573 = vperm.xlu0 %5572, %v5499
  %v5574 = vpop.permute.xlu0 %5573
  %5577 = vset.pattern.permute.xlu0 0
  %5578 = vperm.xlu0 %5577, %v5500
  %v5579 = vpop.permute.xlu0 %5578
  %v5581 = vmul.f32 %v5393, %v5504
  %v5582 = vmul.f32 %v5394, %v5509
  %v5583 = vmul.f32 %v5395, %v5514
  %v5584 = vmul.f32 %v5396, %v5519
  %v5585 = vmul.f32 %v5397, %v5524
  %v5586 = vmul.f32 %v5398, %v5529
  %v5587 = vmul.f32 %v5399, %v5534
  %v5588 = vmul.f32 %v5484, %v5539
  %v5589 = vmul.f32 %v5462, %v5544
  %v5590 = vmul.f32 %v5464, %v5549
  %v5591 = vmul.f32 %v5466, %v5554
  %v5592 = vmul.f32 %v5468, %v5559
  %v5593 = vmul.f32 %v5470, %v5564
  %v5594 = vmul.f32 %v5472, %v5569
  %v5595 = vmul.f32 %v5474, %v5574
  %v5596 = vmul.f32 %v5473, %v5579
  %v5597 = vadd.f32 %v5581, %v5582
  %v5598 = vadd.f32 %v5597, %v5583
  %v5599 = vadd.f32 %v5598, %v5584
  %v5600 = vadd.f32 %v5599, %v5585
  %v5601 = vadd.f32 %v5600, %v5586
  %v5602 = vadd.f32 %v5601, %v5587
  %v5603 = vadd.f32 %v5602, %v5588
  %v5604 = vadd.f32 %v5603, %v5589
  %v5605 = vadd.f32 %v5604, %v5590
  %v5606 = vadd.f32 %v5605, %v5591
  %v5607 = vadd.f32 %v5606, %v5592
  %v5608 = vadd.f32 %v5607, %v5593
  %v5609 = vadd.f32 %v5608, %v5594
  %v5610 = vadd.f32 %v5609, %v5595
  %vm5611 = vcmask 1045504
  %v5612 = vsel %vm5611, %v5596, 0.0
  %v5613 = vadd.f32 %v5610, %v5612
  %v5614 = vrot.slane %v5613, 4
  %v5615 = vadd.f32 %v5613, %v5614
  %v5616 = vrot.slane %v5615, 2
  %v5617 = vadd.f32 %v5615, %v5616
  %v5618 = vrot.slane %v5617, 1
  %v5619 = vadd.f32 %v5617, %v5618
  %v5620 = vmul.f32 %v5619, 0.010204081
  %v5621 = vsub.f32 %v5393, %v5620
  %v5622 = vsub.f32 %v5394, %v5620
  %v5623 = vsub.f32 %v5395, %v5620
  %v5624 = vsub.f32 %v5396, %v5620
  %v5625 = vsub.f32 %v5397, %v5620
  %v5626 = vsub.f32 %v5398, %v5620
  %v5627 = vsub.f32 %v5399, %v5620
  %v5628 = vsub.f32 %v5484, %v5620
  %v5629 = vsub.f32 %v5462, %v5620
  %v5630 = vsub.f32 %v5464, %v5620
  %v5631 = vsub.f32 %v5466, %v5620
  %v5632 = vsub.f32 %v5468, %v5620
  %v5633 = vsub.f32 %v5470, %v5620
  %v5634 = vsub.f32 %v5472, %v5620
  %v5635 = vsub.f32 %v5474, %v5620
  %v5636 = vsub.f32 %v5473, %v5620
  %v5637 = vmul.f32 %v5621, %v5621
  %v5638 = vmul.f32 %v5622, %v5622
  %v5639 = vmul.f32 %v5623, %v5623
  %v5640 = vmul.f32 %v5624, %v5624
  %v5641 = vmul.f32 %v5625, %v5625
  %v5642 = vmul.f32 %v5626, %v5626
  %v5643 = vmul.f32 %v5627, %v5627
  %v5644 = vmul.f32 %v5628, %v5628
  %v5645 = vmul.f32 %v5629, %v5629
  %v5646 = vmul.f32 %v5630, %v5630
  %v5647 = vmul.f32 %v5631, %v5631
  %v5648 = vmul.f32 %v5632, %v5632
  %v5649 = vmul.f32 %v5633, %v5633
  %v5650 = vmul.f32 %v5634, %v5634
  %v5651 = vmul.f32 %v5635, %v5635
  %v5652 = vmul.f32 %v5636, %v5636
  %v5653 = vmul.f32 %v5637, %v5504
  %v5654 = vmul.f32 %v5638, %v5509
  %v5655 = vmul.f32 %v5639, %v5514
  %v5656 = vmul.f32 %v5640, %v5519
  %v5657 = vmul.f32 %v5641, %v5524
  %v5658 = vmul.f32 %v5642, %v5529
  %v5659 = vmul.f32 %v5643, %v5534
  %v5660 = vmul.f32 %v5644, %v5539
  %v5661 = vmul.f32 %v5645, %v5544
  %v5662 = vmul.f32 %v5646, %v5549
  %v5663 = vmul.f32 %v5647, %v5554
  %v5664 = vmul.f32 %v5648, %v5559
  %v5665 = vmul.f32 %v5649, %v5564
  %v5666 = vmul.f32 %v5650, %v5569
  %v5667 = vmul.f32 %v5651, %v5574
  %v5668 = vmul.f32 %v5652, %v5579
  %v5669 = vadd.f32 %v5653, %v5654
  %v5670 = vadd.f32 %v5669, %v5655
  %v5671 = vadd.f32 %v5670, %v5656
  %v5672 = vadd.f32 %v5671, %v5657
  %v5673 = vadd.f32 %v5672, %v5658
  %v5674 = vadd.f32 %v5673, %v5659
  %v5675 = vadd.f32 %v5674, %v5660
  %v5676 = vadd.f32 %v5675, %v5661
  %v5677 = vadd.f32 %v5676, %v5662
  %v5678 = vadd.f32 %v5677, %v5663
  %v5679 = vadd.f32 %v5678, %v5664
  %v5680 = vadd.f32 %v5679, %v5665
  %v5681 = vadd.f32 %v5680, %v5666
  %v5682 = vadd.f32 %v5681, %v5667
  %v5683 = vsel %vm5611, %v5668, 0.0
  %v5684 = vadd.f32 %v5682, %v5683
  %v5685 = vrot.slane %v5684, 4
  %v5686 = vadd.f32 %v5684, %v5685
  %v5687 = vrot.slane %v5686, 2
  %v5688 = vadd.f32 %v5686, %v5687
  %v5689 = vrot.slane %v5688, 1
  %v5690 = vadd.f32 %v5688, %v5689
  %v5691 = vmul.f32 %v5690, 0.010204081
  %v5692 = vadd.f32 %v5691, 1e-05
  %v5693 = vrsqrt.pop %v5692
  %v5694 = vmul.f32 %v5693, %v5692
  %v5695 = vmul.f32 %v5694, %v5693
  %v5696 = vmul.f32 0.5, %v5695
  %v5697 = vsub.f32 1.5, %v5696
  %v5698 = vmul.f32 %v5693, %v5697
  %vm5699 = vweird.f32 %v5692
  %vm5700 = vweird.f32 %v5693
  %vm5701 = vmor %vm5699, %vm5700
  %v5702 = vsel %vm5701, %v5693, %v5698
  %v5703 = vmul.f32 %v5621, %v5702
  %v5704 = vmul.f32 %v5622, %v5702
  %v5705 = vmul.f32 %v5623, %v5702
  %v5706 = vmul.f32 %v5624, %v5702
  %v5707 = vmul.f32 %v5625, %v5702
  %v5708 = vmul.f32 %v5626, %v5702
  %v5709 = vmul.f32 %v5627, %v5702
  %v5710 = vmul.f32 %v5628, %v5702
  %v5711 = vmul.f32 %v5629, %v5702
  %v5712 = vmul.f32 %v5630, %v5702
  %v5713 = vmul.f32 %v5631, %v5702
  %v5714 = vmul.f32 %v5632, %v5702
  %v5715 = vmul.f32 %v5633, %v5702
  %v5716 = vmul.f32 %v5634, %v5702
  %v5717 = vmul.f32 %v5635, %v5702
  %v5718 = vmul.f32 %v5636, %v5702
  %v5719 = vperm.slane %v38, 2
  %v5720 = vmul.f32 %v5703, %v5719
  %v5721 = vmul.f32 %v5704, %v5719
  %v5722 = vmul.f32 %v5705, %v5719
  %v5723 = vmul.f32 %v5706, %v5719
  %v5724 = vmul.f32 %v5707, %v5719
  %v5725 = vmul.f32 %v5708, %v5719
  %v5726 = vmul.f32 %v5709, %v5719
  %v5727 = vmul.f32 %v5710, %v5719
  %v5728 = vmul.f32 %v5711, %v5719
  %v5729 = vmul.f32 %v5712, %v5719
  %v5730 = vmul.f32 %v5713, %v5719
  %v5731 = vmul.f32 %v5714, %v5719
  %v5732 = vmul.f32 %v5715, %v5719
  %v5733 = vmul.f32 %v5716, %v5719
  %v5734 = vmul.f32 %v5717, %v5719
  %v5735 = vmul.f32 %v5718, %v5719
  %v5736 = vperm.slane %v38, 3
  %v5737 = vadd.f32 %v5720, %v5736
  %v5738 = vadd.f32 %v5721, %v5736
  %v5739 = vadd.f32 %v5722, %v5736
  %v5740 = vadd.f32 %v5723, %v5736
  %v5741 = vadd.f32 %v5724, %v5736
  %v5742 = vadd.f32 %v5725, %v5736
  %v5743 = vadd.f32 %v5726, %v5736
  %v5744 = vadd.f32 %v5727, %v5736
  %v5745 = vadd.f32 %v5728, %v5736
  %v5746 = vadd.f32 %v5729, %v5736
  %v5747 = vadd.f32 %v5730, %v5736
  %v5748 = vadd.f32 %v5731, %v5736
  %v5749 = vadd.f32 %v5732, %v5736
  %v5750 = vadd.f32 %v5733, %v5736
  %v5751 = vadd.f32 %v5734, %v5736
  %v5752 = vadd.f32 %v5735, %v5736
  %v5753 = vmax.f32 %v5737, 0.0
  %v5754 = vmax.f32 %v5738, 0.0
  %v5755 = vmax.f32 %v5739, 0.0
  %v5756 = vmax.f32 %v5740, 0.0
  %v5757 = vmax.f32 %v5741, 0.0
  %v5758 = vmax.f32 %v5742, 0.0
  %v5759 = vmax.f32 %v5743, 0.0
  %v5760 = vmax.f32 %v5744, 0.0
  %v5761 = vmax.f32 %v5745, 0.0
  %v5762 = vmax.f32 %v5746, 0.0
  %v5763 = vmax.f32 %v5747, 0.0
  %v5764 = vmax.f32 %v5748, 0.0
  %v5765 = vmax.f32 %v5749, 0.0
  %v5766 = vmax.f32 %v5750, 0.0
  %v5767 = vmax.f32 %v5751, 0.0
  %v5768 = vmax.f32 %v5752, 0.0
  %v5769 = vsel %vm5611, %v5768, 0.0
  %v5770 = vlaneseq
  %v5771 = vand.u32 %v5770, 127
  %v5772 = vld [vmem:[%s10] sm:$0xff]
  %v5773 = vld [vmem:[%s10 + $0x8] sm:$0xff]
  %v5774 = vld [vmem:[%s10 + $0x10] sm:$0xff]
  %v5775 = vld [vmem:[%s10 + $0x18] sm:$0xff]
  %v5776 = vld [vmem:[%s10 + $0x20] sm:$0xff]
  %v5777 = vld [vmem:[%s10 + $0x28] sm:$0xff]
  %v5778 = vld [vmem:[%s10 + $0x30] sm:$0xff]
  %v5779 = vld [vmem:[%s10 + $0x38] sm:$0xff]
  %v5780 = vld [vmem:[%s10 + $0x40] sm:$0xff]
  %v5781 = vld [vmem:[%s10 + $0x48] sm:$0xff]
  %v5782 = vld [vmem:[%s10 + $0x50] sm:$0xff]
  %v5783 = vld [vmem:[%s10 + $0x58] sm:$0xff]
  %v5784 = vld [vmem:[%s10 + $0x60] sm:$0xff]
  %v5785 = vld [vmem:[%s10 + $0x68] sm:$0xff]
  %v5786 = vld [vmem:[%s10 + $0x70] sm:$0xff]
  %v5787 = vld [vmem:[%s10 + $0x78] sm:$0xff]
  %v5788 = vld [vmem:[%s10 + $0x80] sm:$0xff]
  %v5789 = vld [vmem:[%s10 + $0x88] sm:$0xff]
  %5790 = vset.pattern.permute.xlu0 0
  %5791 = vperm.xlu0 %5790, %v5772
  %v5792 = vpop.permute.xlu0 %5791
  %5793 = vset.pattern.permute.xlu0 0
  %5794 = vperm.xlu0 %5793, %v5773
  %v5795 = vpop.permute.xlu0 %5794
  %5796 = vset.pattern.permute.xlu0 0
  %5797 = vperm.xlu0 %5796, %v5774
  %v5798 = vpop.permute.xlu0 %5797
  %5799 = vset.pattern.permute.xlu0 0
  %5800 = vperm.xlu0 %5799, %v5775
  %v5801 = vpop.permute.xlu0 %5800
  %5802 = vset.pattern.permute.xlu0 0
  %5803 = vperm.xlu0 %5802, %v5776
  %v5804 = vpop.permute.xlu0 %5803
  %5805 = vset.pattern.permute.xlu0 0
  %5806 = vperm.xlu0 %5805, %v5777
  %v5807 = vpop.permute.xlu0 %5806
  %5808 = vset.pattern.permute.xlu0 0
  %5809 = vperm.xlu0 %5808, %v5778
  %v5810 = vpop.permute.xlu0 %5809
  %5811 = vset.pattern.permute.xlu0 0
  %5812 = vperm.xlu0 %5811, %v5779
  %v5813 = vpop.permute.xlu0 %5812
  %5814 = vset.pattern.permute.xlu0 0
  %5815 = vperm.xlu0 %5814, %v5780
  %v5816 = vpop.permute.xlu0 %5815
  %5817 = vset.pattern.permute.xlu0 0
  %5818 = vperm.xlu0 %5817, %v5781
  %v5819 = vpop.permute.xlu0 %5818
  %5820 = vset.pattern.permute.xlu0 0
  %5821 = vperm.xlu0 %5820, %v5782
  %v5822 = vpop.permute.xlu0 %5821
  %5823 = vset.pattern.permute.xlu0 0
  %5824 = vperm.xlu0 %5823, %v5783
  %v5825 = vpop.permute.xlu0 %5824
  %5826 = vset.pattern.permute.xlu0 0
  %5827 = vperm.xlu0 %5826, %v5784
  %v5828 = vpop.permute.xlu0 %5827
  %5829 = vset.pattern.permute.xlu0 0
  %5830 = vperm.xlu0 %5829, %v5785
  %v5831 = vpop.permute.xlu0 %5830
  %5832 = vset.pattern.permute.xlu0 0
  %5833 = vperm.xlu0 %5832, %v5786
  %v5834 = vpop.permute.xlu0 %5833
  %5835 = vset.pattern.permute.xlu0 0
  %5836 = vperm.xlu0 %5835, %v5787
  %v5837 = vpop.permute.xlu0 %5836
  %5838 = vset.pattern.permute.xlu0 0
  %5839 = vperm.xlu0 %5838, %v5788
  %v5840 = vpop.permute.xlu0 %5839
  %5841 = vset.pattern.permute.xlu0 0
  %5842 = vperm.xlu0 %5841, %v5789
  %v5843 = vpop.permute.xlu0 %5842
  %vm5844 = vcmp.eq.s32.totalorder %v5771, %v5792
  %vm5845 = vcmp.eq.s32.totalorder %v5771, %v5795
  %vm5846 = vcmp.eq.s32.totalorder %v5771, %v5798
  %vm5847 = vcmp.eq.s32.totalorder %v5771, %v5801
  %vm5848 = vcmp.eq.s32.totalorder %v5771, %v5804
  %vm5849 = vcmp.eq.s32.totalorder %v5771, %v5807
  %vm5850 = vcmp.eq.s32.totalorder %v5771, %v5810
  %vm5851 = vcmp.eq.s32.totalorder %v5771, %v5813
  %vm5852 = vcmp.eq.s32.totalorder %v5771, %v5816
  %vm5853 = vcmp.eq.s32.totalorder %v5771, %v5819
  %vm5854 = vcmp.eq.s32.totalorder %v5771, %v5822
  %vm5855 = vcmp.eq.s32.totalorder %v5771, %v5825
  %vm5856 = vcmp.eq.s32.totalorder %v5771, %v5828
  %vm5857 = vcmp.eq.s32.totalorder %v5771, %v5831
  %vm5858 = vcmp.eq.s32.totalorder %v5771, %v5834
  %vm5859 = vcmp.eq.s32.totalorder %v5771, %v5837
  %vm5860 = vcmp.eq.s32.totalorder %v5771, %v5840
  %vm5861 = vcmp.eq.s32.totalorder %v5771, %v5843
  %v5862 = vsel %vm5844, 1.0, 0.0
  %v5863 = vsel %vm5845, 1.0, 0.0
  %v5864 = vsel %vm5846, 1.0, 0.0
  %v5865 = vsel %vm5847, 1.0, 0.0
  %v5866 = vsel %vm5848, 1.0, 0.0
  %v5867 = vsel %vm5849, 1.0, 0.0
  %v5868 = vsel %vm5850, 1.0, 0.0
  %v5869 = vsel %vm5851, 1.0, 0.0
  %v5870 = vsel %vm5852, 1.0, 0.0
  %v5871 = vsel %vm5853, 1.0, 0.0
  %v5872 = vsel %vm5854, 1.0, 0.0
  %v5873 = vsel %vm5855, 1.0, 0.0
  %v5874 = vsel %vm5856, 1.0, 0.0
  %v5875 = vsel %vm5857, 1.0, 0.0
  %v5876 = vsel %vm5858, 1.0, 0.0
  %v5877 = vsel %vm5859, 1.0, 0.0
  %v5878 = vsel %vm5860, 1.0, 0.0
  %v5879 = vsel %vm5861, 1.0, 0.0
  %v5880 = vpack.c.bf16 %v5863, %v5862
  %v5881 = vpack.c.bf16 %v5865, %v5864
  %v5882 = vpack.c.bf16 %v5867, %v5866
  %v5883 = vpack.c.bf16 %v5869, %v5868
  %v5884 = vpack.c.bf16 %v5871, %v5870
  %v5885 = vpack.c.bf16 %v5873, %v5872
  %v5886 = vpack.c.bf16 %v5875, %v5874
  %v5887 = vpack.c.bf16 %v5877, %v5876
  %v5888 = vpack.c.bf16 %v5879, %v5878
  %v5889 = vpack.c.bf16 %v5754, %v5753
  %v5890 = vpack.c.bf16 %v5756, %v5755
  %v5891 = vpack.c.bf16 %v5758, %v5757
  %v5892 = vpack.c.bf16 %v5760, %v5759
  %v5893 = vpack.c.bf16 %v5762, %v5761
  %v5894 = vpack.c.bf16 %v5764, %v5763
  %v5895 = vpack.c.bf16 %v5766, %v5765
  %v5896 = vpack.c.bf16 %v5769, %v5767
  %5897 = vmatpush.bf16.msra.mxu0 %v5896
  %5898 = vmatpush.bf16.msra.mxu0 %v5895
  %5899 = vmatpush.bf16.msra.mxu0 %v5894
  %5900 = vmatpush.bf16.msra.mxu0 %v5893
  %5901 = vmatpush.bf16.msra.mxu0 %v5892
  %5902 = vmatpush.bf16.msra.mxu0 %v5891
  %5903 = vmatpush.bf16.msra.mxu0 %v5890
  %5904 = vmatpush.bf16.msra.mxu0 %v5889
  %5905 = vmatmul.bf16.gmra.mxu0 %v5880
  %v5906 = vpop.f32.mrf.mxu0
  %v5907 = vadd.f32 0.0, %v5906
  %v5908 = vpop.f32.mrf.mxu0
  %v5909 = vadd.f32 0.0, %v5908
  %5910 = vmatmul.bf16.gmra.mxu0 %v5881
  %v5911 = vpop.f32.mrf.mxu0
  %v5912 = vadd.f32 0.0, %v5911
  %v5913 = vpop.f32.mrf.mxu0
  %v5914 = vadd.f32 0.0, %v5913
  %5915 = vmatmul.bf16.gmra.mxu0 %v5882
  %v5916 = vpop.f32.mrf.mxu0
  %v5917 = vadd.f32 0.0, %v5916
  %v5918 = vpop.f32.mrf.mxu0
  %v5919 = vadd.f32 0.0, %v5918
  %5920 = vmatmul.bf16.gmra.mxu0 %v5883
  %v5921 = vpop.f32.mrf.mxu0
  %v5922 = vadd.f32 0.0, %v5921
  %v5923 = vpop.f32.mrf.mxu0
  %v5924 = vadd.f32 0.0, %v5923
  %5925 = vmatmul.bf16.gmra.mxu0 %v5884
  %v5926 = vpop.f32.mrf.mxu0
  %v5927 = vpop.f32.mrf.mxu0
  %v5928 = vadd.f32 0.0, %v5927
  %5929 = vmatmul.bf16.gmra.mxu0 %v5885
  %v5930 = vpop.f32.mrf.mxu0
  %v5931 = vadd.f32 0.0, %v5930
  %v5932 = vpop.f32.mrf.mxu0
  %v5933 = vadd.f32 0.0, %v5932
  %5934 = vmatmul.bf16.gmra.mxu0 %v5886
  %v5935 = vpop.f32.mrf.mxu0
  %v5936 = vadd.f32 0.0, %v5935
  %v5937 = vpop.f32.mrf.mxu0
  %v5938 = vadd.f32 0.0, %v5937
  %5939 = vmatmul.bf16.gmra.mxu0 %v5887
  %v5940 = vpop.f32.mrf.mxu0
  %v5941 = vadd.f32 0.0, %v5940
  %v5942 = vpop.f32.mrf.mxu0
  %v5943 = vadd.f32 0.0, %v5942
  %5944 = vmatmul.bf16.gmra.mxu0 %v5888
  %v5945 = vpop.f32.mrf.mxu0
  %v5946 = vadd.f32 0.0, %v5945
  %v5947 = vpop.f32.mrf.mxu0
  %5948 = vdwg.mxu0
  %v5949 = vld [vmem:[%s3] sm:$0xf]
  %v5950 = vld [vmem:[%s3 + $0x4] sm:$0xf]
  %v5951 = vld [vmem:[%s3 + $0x8] sm:$0xf]
  %v5952 = vld [vmem:[%s3 + $0xc] sm:$0xf]
  %v5953 = vld [vmem:[%s3 + $0x10] sm:$0xf]
  %v5954 = vld [vmem:[%s3 + $0x14] sm:$0xf]
  %v5955 = vld [vmem:[%s3 + $0x18] sm:$0xf]
  %v5956 = vld [vmem:[%s3 + $0x1c] sm:$0xf]
  %v5957 = vld [vmem:[%s3 + $0x20] sm:$0xf]
  %v5958 = vld [vmem:[%s3 + $0x24] sm:$0xf]
  %v5959 = vld [vmem:[%s3 + $0x28] sm:$0xf]
  %v5960 = vld [vmem:[%s3 + $0x2c] sm:$0xf]
  %v5961 = vld [vmem:[%s3 + $0x30] sm:$0xf]
  %v5962 = vld [vmem:[%s3 + $0x34] sm:$0xf]
  %v5963 = vld [vmem:[%s3 + $0x38] sm:$0xf]
  %v5964 = vld [vmem:[%s3 + $0x3c] sm:$0xf]
  %v5965 = vld [vmem:[%s3 + $0x40] sm:$0xf]
  %v5966 = vld [vmem:[%s3 + $0x44] sm:$0xf]
  %v5967 = vld [vmem:[%s3 + $0x48] sm:$0xf]
  %v5968 = vld [vmem:[%s3 + $0x4c] sm:$0xf]
  %v5969 = vld [vmem:[%s3 + $0x50] sm:$0xf]
  %v5970 = vld [vmem:[%s3 + $0x54] sm:$0xf]
  %v5971 = vld [vmem:[%s3 + $0x58] sm:$0xf]
  %v5972 = vld [vmem:[%s3 + $0x5c] sm:$0xf]
  %v5973 = vld [vmem:[%s3 + $0x60] sm:$0xf]
  %v5974 = vld [vmem:[%s3 + $0x64] sm:$0xf]
  %v5975 = vld [vmem:[%s3 + $0x68] sm:$0xf]
  %v5976 = vld [vmem:[%s3 + $0x6c] sm:$0xf]
  %v5977 = vld [vmem:[%s3 + $0x70] sm:$0xf]
  %v5978 = vld [vmem:[%s3 + $0x74] sm:$0xf]
  %v5979 = vld [vmem:[%s3 + $0x78] sm:$0xf]
  %v5980 = vld [vmem:[%s3 + $0x7c] sm:$0xf]
  %v5981 = vld [vmem:[%s3 + $0x80] sm:$0xf]
  %v5982 = vld [vmem:[%s3 + $0x84] sm:$0xf]
  %v5983 = vld [vmem:[%s3 + $0x88] sm:$0xf]
  %v5984 = vld [vmem:[%s3 + $0x8c] sm:$0xf]
  %v5985 = vld [vmem:[%s3 + $0x90] sm:$0xf]
  %v5986 = vld [vmem:[%s3 + $0x94] sm:$0xf]
  %v5987 = vld [vmem:[%s3 + $0x98] sm:$0xf]
  %v5988 = vld [vmem:[%s3 + $0x9c] sm:$0xf]
  %v5989 = vld [vmem:[%s3 + $0xa0] sm:$0xf]
  %v5990 = vld [vmem:[%s3 + $0xa4] sm:$0xf]
  %v5991 = vld [vmem:[%s3 + $0xa8] sm:$0xf]
  %v5992 = vld [vmem:[%s3 + $0xac] sm:$0xf]
  %v5993 = vld [vmem:[%s3 + $0xb0] sm:$0xf]
  %v5994 = vld [vmem:[%s3 + $0xb4] sm:$0xf]
  %v5995 = vld [vmem:[%s3 + $0xb8] sm:$0xf]
  %v5996 = vld [vmem:[%s3 + $0xbc] sm:$0xf]
  %v5997 = vld [vmem:[%s3 + $0xc0] sm:$0xf]
  %v5998 = vld [vmem:[%s3 + $0xc4] sm:$0xf]
  %v5999 = vld [vmem:[%s3 + $0xc8] sm:$0xf]
  %v6000 = vld [vmem:[%s3 + $0xcc] sm:$0xf]
  %v6001 = vld [vmem:[%s3 + $0xd0] sm:$0xf]
  %v6002 = vld [vmem:[%s3 + $0xd4] sm:$0xf]
  %v6003 = vld [vmem:[%s3 + $0xd8] sm:$0xf]
  %v6004 = vld [vmem:[%s3 + $0xdc] sm:$0xf]
  %v6005 = vld [vmem:[%s3 + $0xe0] sm:$0xf]
  %v6006 = vld [vmem:[%s3 + $0xe4] sm:$0xf]
  %v6007 = vld [vmem:[%s3 + $0xe8] sm:$0xf]
  %v6008 = vld [vmem:[%s3 + $0xec] sm:$0xf]
  %v6009 = vld [vmem:[%s3 + $0xf0] sm:$0xf]
  %v6010 = vld [vmem:[%s3 + $0xf4] sm:$0xf]
  %v6011 = vld [vmem:[%s3 + $0xf8] sm:$0xf]
  %v6012 = vld [vmem:[%s3 + $0xfc] sm:$0xf]
  %v6013 = vld [vmem:[%s3 + $0x100] sm:$0xf]
  %v6014 = vld [vmem:[%s3 + $0x104] sm:$0xf]
  %v6015 = vld [vmem:[%s3 + $0x108] sm:$0xf]
  %v6016 = vld [vmem:[%s3 + $0x10c] sm:$0xf]
  %v6017 = vld [vmem:[%s3 + $0x110] sm:$0xf]
  %v6018 = vld [vmem:[%s3 + $0x114] sm:$0xf]
  %v6019 = vld [vmem:[%s3 + $0x118] sm:$0xf]
  %v6020 = vld [vmem:[%s3 + $0x11c] sm:$0xf]
  %v6021 = vld [vmem:[%s3 + $0x120] sm:$0xf]
  %v6022 = vld [vmem:[%s3 + $0x124] sm:$0xf]
  %v6023 = vld [vmem:[%s3 + $0x128] sm:$0xf]
  %v6024 = vld [vmem:[%s3 + $0x12c] sm:$0xf]
  %v6025 = vld [vmem:[%s3 + $0x130] sm:$0xf]
  %v6026 = vld [vmem:[%s3 + $0x134] sm:$0xf]
  %v6027 = vld [vmem:[%s3 + $0x138] sm:$0xf]
  %v6028 = vld [vmem:[%s3 + $0x13c] sm:$0xf]
  %v6029 = vld [vmem:[%s3 + $0x140] sm:$0xf]
  %v6030 = vld [vmem:[%s3 + $0x144] sm:$0xf]
  %v6031 = vld [vmem:[%s3 + $0x148] sm:$0xf]
  %v6032 = vld [vmem:[%s3 + $0x14c] sm:$0xf]
  %v6033 = vld [vmem:[%s3 + $0x150] sm:$0xf]
  %v6034 = vld [vmem:[%s3 + $0x154] sm:$0xf]
  %v6035 = vld [vmem:[%s3 + $0x158] sm:$0xf]
  %v6036 = vld [vmem:[%s3 + $0x15c] sm:$0xf]
  %v6037 = vld [vmem:[%s3 + $0x160] sm:$0xf]
  %v6038 = vld [vmem:[%s3 + $0x164] sm:$0xf]
  %v6039 = vld [vmem:[%s3 + $0x168] sm:$0xf]
  %v6040 = vld [vmem:[%s3 + $0x16c] sm:$0xf]
  %v6041 = vld [vmem:[%s3 + $0x170] sm:$0xf]
  %v6042 = vld [vmem:[%s3 + $0x174] sm:$0xf]
  %v6043 = vld [vmem:[%s3 + $0x178] sm:$0xf]
  %v6044 = vld [vmem:[%s3 + $0x17c] sm:$0xf]
  %v6045 = vld [vmem:[%s3 + $0x180] sm:$0xf]
  %v6046 = vld [vmem:[%s3 + $0x184] sm:$0xf]
  %v6047 = vld [vmem:[%s3 + $0x188] sm:$0xf]
  %v6048 = vld [vmem:[%s3 + $0x18c] sm:$0xf]
  %v6049 = vld [vmem:[%s3 + $0x190] sm:$0xf]
  %v6050 = vld [vmem:[%s3 + $0x194] sm:$0xf]
  %v6051 = vld [vmem:[%s3 + $0x198] sm:$0xf]
  %v6052 = vld [vmem:[%s3 + $0x19c] sm:$0xf]
  %v6053 = vld [vmem:[%s3 + $0x1a0] sm:$0xf]
  %v6054 = vld [vmem:[%s3 + $0x1a4] sm:$0xf]
  %v6055 = vld [vmem:[%s3 + $0x1a8] sm:$0xf]
  %v6056 = vld [vmem:[%s3 + $0x1ac] sm:$0xf]
  %v6057 = vld [vmem:[%s3 + $0x1b0] sm:$0xf]
  %v6058 = vld [vmem:[%s3 + $0x1b4] sm:$0xf]
  %v6059 = vld [vmem:[%s3 + $0x1b8] sm:$0xf]
  %v6060 = vld [vmem:[%s3 + $0x1bc] sm:$0xf]
  %v6061 = vpack.c.bf16 %v5907, %v5907
  %v6062 = vpack.c.bf16 %v5928, %v5928
  %v6063 = vpack.c.bf16 %v5912, %v5912
  %v6080 = vunpack.c.l.b16 %v5953
  %v6081 = vunpack.c.l.b16 %v5954
  %v6082 = vunpack.c.l.b16 %v5955
  %v6083 = vunpack.c.l.b16 %v5956
  %v6084 = vunpack.c.l.b16 %v5957
  %v6085 = vunpack.c.l.b16 %v5958
  %v6086 = vunpack.c.l.b16 %v5959
  %v6087 = vunpack.c.l.b16 %v5960
  %v6088 = vunpack.c.l.b16 %v5961
  %v6089 = vunpack.c.l.b16 %v5962
  %v6090 = vunpack.c.l.b16 %v5963
  %v6091 = vunpack.c.l.b16 %v5964
  %v6092 = vunpack.c.l.b16 %v5965
  %v6093 = vunpack.c.l.b16 %v5966
  %v6094 = vunpack.c.l.b16 %v5967
  %v6095 = vunpack.c.l.b16 %v5968
  %v6096 = vpack.c.b16 %v6081, %v6080
  %v6097 = vpack.c.b16 %v6083, %v6082
  %v6098 = vpack.c.b16 %v6085, %v6084
  %v6099 = vpack.c.b16 %v6087, %v6086
  %v6100 = vpack.c.b16 %v6089, %v6088
  %v6101 = vpack.c.b16 %v6091, %v6090
  %v6102 = vpack.c.b16 %v6093, %v6092
  %v6103 = vpack.c.b16 %v6095, %v6094
  %6112 = vmatpush.bf16.msra.mxu0 %v6103
  %6113 = vmatpush.bf16.msra.mxu0 %v6102
  %6114 = vmatpush.bf16.msra.mxu0 %v6101
  %6115 = vmatpush.bf16.msra.mxu0 %v6100
  %6116 = vmatpush.bf16.msra.mxu0 %v6099
  %6117 = vmatpush.bf16.msra.mxu0 %v6098
  %6118 = vmatpush.bf16.msra.mxu0 %v6097
  %6119 = vmatpush.bf16.msra.mxu0 %v6096
  %6120 = vmatmul.bf16.gmra.mxu0 %v6063
  %v6121 = vpop.f32.mrf.mxu0
  %v6122 = vadd.f32 0.0, %v6121
  %v6123 = vpop.f32.mrf.mxu0
  %6124 = vdwg.mxu0
  %v6129 = vunpack.c.l.b16 %v5949
  %v6130 = vunpack.c.l.b16 %v5950
  %v6131 = vunpack.c.l.b16 %v5951
  %v6132 = vunpack.c.l.b16 %v5952
  %v6133 = vpack.c.b16 %v6130, %v6129
  %v6134 = vpack.c.b16 %v6132, %v6131
  %6137 = vmatpush.bf16.msra.mxu0 %v6101
  %6138 = vmatpush.bf16.msra.mxu0 %v6100
  %6139 = vmatpush.bf16.msra.mxu0 %v6099
  %6140 = vmatpush.bf16.msra.mxu0 %v6098
  %6141 = vmatpush.bf16.msra.mxu0 %v6097
  %6142 = vmatpush.bf16.msra.mxu0 %v6096
  %6143 = vmatpush.bf16.msra.mxu0 %v6134
  %6144 = vmatpush.bf16.msra.mxu0 %v6133
  %6145 = vmatmul.bf16.gmra.mxu0 %v6061
  %v6146 = vpop.f32.mrf.mxu0
  %v6147 = vadd.f32 %v6122, %v6146
  %v6148 = vpop.f32.mrf.mxu0
  %6149 = vdwg.mxu0
  %v6150 = vpack.c.bf16 %v5933, %v5933
  %6151 = vmatpush.bf16.msra.mxu0 %v6103
  %6152 = vmatpush.bf16.msra.mxu0 %v6102
  %6153 = vmatpush.bf16.msra.mxu0 %v6101
  %6154 = vmatpush.bf16.msra.mxu0 %v6100
  %6155 = vmatpush.bf16.msra.mxu0 %v6099
  %6156 = vmatpush.bf16.msra.mxu0 %v6098
  %6157 = vmatpush.bf16.msra.mxu0 %v6097
  %6158 = vmatpush.bf16.msra.mxu0 %v6096
  %6159 = vmatmul.bf16.gmra.mxu0 %v6150
  %v6160 = vpop.f32.mrf.mxu0
  %v6161 = vadd.f32 0.0, %v6160
  %v6162 = vpop.f32.mrf.mxu0
  %6163 = vdwg.mxu0
  %6164 = vmatpush.bf16.msra.mxu0 %v6101
  %6165 = vmatpush.bf16.msra.mxu0 %v6100
  %6166 = vmatpush.bf16.msra.mxu0 %v6099
  %6167 = vmatpush.bf16.msra.mxu0 %v6098
  %6168 = vmatpush.bf16.msra.mxu0 %v6097
  %6169 = vmatpush.bf16.msra.mxu0 %v6096
  %6170 = vmatpush.bf16.msra.mxu0 %v6134
  %6171 = vmatpush.bf16.msra.mxu0 %v6133
  %6172 = vmatmul.bf16.gmra.mxu0 %v6062
  %v6173 = vpop.f32.mrf.mxu0
  %v6174 = vadd.f32 %v6161, %v6173
  %v6175 = vpop.f32.mrf.mxu0
  %6176 = vdwg.mxu0
  %v6177 = vpack.c.bf16 %v5909, %v5907
  %v6179 = vshrl.u32 %v6177, 16
  %v6181 = vshll.u32 %v6177, 16
  %v6183 = vrot.slane %v6181, 1
  %v6184 = vor.u32 %v6179, %v6183
  %v6190 = vunpack.c.l.b16 %v5969
  %v6191 = vunpack.c.l.b16 %v5970
  %v6192 = vunpack.c.l.b16 %v5971
  %v6193 = vunpack.c.l.b16 %v5972
  %v6194 = vpack.c.b16 %v6191, %v6190
  %v6195 = vpack.c.b16 %v6193, %v6192
  %6198 = vmatpush.bf16.msra.mxu0 %v6195
  %6199 = vmatpush.bf16.msra.mxu0 %v6194
  %6200 = vmatpush.bf16.msra.mxu0 %v6103
  %6201 = vmatpush.bf16.msra.mxu0 %v6102
  %6202 = vmatpush.bf16.msra.mxu0 %v6101
  %6203 = vmatpush.bf16.msra.mxu0 %v6100
  %6204 = vmatpush.bf16.msra.mxu0 %v6099
  %6205 = vmatpush.bf16.msra.mxu0 %v6098
  %6206 = vmatmul.bf16.gmra.mxu0 %v6184
  %v6207 = vpop.f32.mrf.mxu0
  %v6208 = vadd.f32 0.0, %v6207
  %v6209 = vpop.f32.mrf.mxu0
  %6210 = vdwg.mxu0
  %v6211 = vadd.f32 %v6147, %v6208
  %v6212 = vpack.c.bf16 %v5931, %v5928
  %v6214 = vshrl.u32 %v6212, 16
  %v6216 = vshll.u32 %v6212, 16
  %v6218 = vrot.slane %v6216, 1
  %v6219 = vor.u32 %v6214, %v6218
  %6221 = vmatpush.bf16.msra.mxu0 %v6195
  %6222 = vmatpush.bf16.msra.mxu0 %v6194
  %6223 = vmatpush.bf16.msra.mxu0 %v6103
  %6224 = vmatpush.bf16.msra.mxu0 %v6102
  %6225 = vmatpush.bf16.msra.mxu0 %v6101
  %6226 = vmatpush.bf16.msra.mxu0 %v6100
  %6227 = vmatpush.bf16.msra.mxu0 %v6099
  %6228 = vmatpush.bf16.msra.mxu0 %v6098
  %6229 = vmatmul.bf16.gmra.mxu0 %v6219
  %v6230 = vpop.f32.mrf.mxu0
  %v6231 = vadd.f32 0.0, %v6230
  %v6232 = vpop.f32.mrf.mxu0
  %6233 = vdwg.mxu0
  %v6234 = vadd.f32 %v6174, %v6231
  %v6235 = vpack.c.bf16 %v5914, %v5912
  %v6237 = vshrl.u32 %v6235, 16
  %v6239 = vshll.u32 %v6235, 16
  %v6241 = vrot.slane %v6239, 1
  %v6242 = vor.u32 %v6237, %v6241
  %v6248 = vunpack.c.l.b16 %v5973
  %v6249 = vunpack.c.l.b16 %v5974
  %v6250 = vunpack.c.l.b16 %v5975
  %v6251 = vunpack.c.l.b16 %v5976
  %v6252 = vpack.c.b16 %v6249, %v6248
  %v6253 = vpack.c.b16 %v6251, %v6250
  %6256 = vmatpush.bf16.msra.mxu0 %v6253
  %6257 = vmatpush.bf16.msra.mxu0 %v6252
  %6258 = vmatpush.bf16.msra.mxu0 %v6195
  %6259 = vmatpush.bf16.msra.mxu0 %v6194
  %6260 = vmatpush.bf16.msra.mxu0 %v6103
  %6261 = vmatpush.bf16.msra.mxu0 %v6102
  %6262 = vmatpush.bf16.msra.mxu0 %v6101
  %6263 = vmatpush.bf16.msra.mxu0 %v6100
  %6264 = vmatmul.bf16.gmra.mxu0 %v6242
  %v6265 = vpop.f32.mrf.mxu0
  %v6266 = vadd.f32 0.0, %v6265
  %v6267 = vpop.f32.mrf.mxu0
  %6268 = vdwg.mxu0
  %v6269 = vadd.f32 %v6211, %v6266
  %v6270 = vpack.c.bf16 %v5936, %v5933
  %v6272 = vshrl.u32 %v6270, 16
  %v6274 = vshll.u32 %v6270, 16
  %v6276 = vrot.slane %v6274, 1
  %v6277 = vor.u32 %v6272, %v6276
  %6279 = vmatpush.bf16.msra.mxu0 %v6253
  %6280 = vmatpush.bf16.msra.mxu0 %v6252
  %6281 = vmatpush.bf16.msra.mxu0 %v6195
  %6282 = vmatpush.bf16.msra.mxu0 %v6194
  %6283 = vmatpush.bf16.msra.mxu0 %v6103
  %6284 = vmatpush.bf16.msra.mxu0 %v6102
  %6285 = vmatpush.bf16.msra.mxu0 %v6101
  %6286 = vmatpush.bf16.msra.mxu0 %v6100
  %6287 = vmatmul.bf16.gmra.mxu0 %v6277
  %v6288 = vpop.f32.mrf.mxu0
  %v6289 = vadd.f32 0.0, %v6288
  %v6290 = vpop.f32.mrf.mxu0
  %6291 = vdwg.mxu0
  %v6292 = vadd.f32 %v6234, %v6289
  %v6294 = vrot.slane %v6177, 1
  %v6300 = vunpack.c.l.b16 %v5977
  %v6301 = vunpack.c.l.b16 %v5978
  %v6302 = vunpack.c.l.b16 %v5979
  %v6303 = vunpack.c.l.b16 %v5980
  %v6304 = vpack.c.b16 %v6301, %v6300
  %v6305 = vpack.c.b16 %v6303, %v6302
  %6308 = vmatpush.bf16.msra.mxu0 %v6305
  %6309 = vmatpush.bf16.msra.mxu0 %v6304
  %6310 = vmatpush.bf16.msra.mxu0 %v6253
  %6311 = vmatpush.bf16.msra.mxu0 %v6252
  %6312 = vmatpush.bf16.msra.mxu0 %v6195
  %6313 = vmatpush.bf16.msra.mxu0 %v6194
  %6314 = vmatpush.bf16.msra.mxu0 %v6103
  %6315 = vmatpush.bf16.msra.mxu0 %v6102
  %6316 = vmatmul.bf16.gmra.mxu0 %v6294
  %v6317 = vpop.f32.mrf.mxu0
  %v6318 = vadd.f32 0.0, %v6317
  %v6319 = vpop.f32.mrf.mxu0
  %6320 = vdwg.mxu0
  %v6321 = vadd.f32 %v6269, %v6318
  %v6323 = vrot.slane %v6212, 1
  %6325 = vmatpush.bf16.msra.mxu0 %v6305
  %6326 = vmatpush.bf16.msra.mxu0 %v6304
  %6327 = vmatpush.bf16.msra.mxu0 %v6253
  %6328 = vmatpush.bf16.msra.mxu0 %v6252
  %6329 = vmatpush.bf16.msra.mxu0 %v6195
  %6330 = vmatpush.bf16.msra.mxu0 %v6194
  %6331 = vmatpush.bf16.msra.mxu0 %v6103
  %6332 = vmatpush.bf16.msra.mxu0 %v6102
  %6333 = vmatmul.bf16.gmra.mxu0 %v6323
  %v6334 = vpop.f32.mrf.mxu0
  %v6335 = vadd.f32 0.0, %v6334
  %v6336 = vpop.f32.mrf.mxu0
  %6337 = vdwg.mxu0
  %v6338 = vadd.f32 %v6292, %v6335
  %v6339 = vpack.c.bf16 %v5917, %v5917
  %v6344 = vunpack.c.l.b16 %v5981
  %v6345 = vunpack.c.l.b16 %v5982
  %v6346 = vunpack.c.l.b16 %v5983
  %v6347 = vunpack.c.l.b16 %v5984
  %v6348 = vpack.c.b16 %v6345, %v6344
  %v6349 = vpack.c.b16 %v6347, %v6346
  %6352 = vmatpush.bf16.msra.mxu0 %v6349
  %6353 = vmatpush.bf16.msra.mxu0 %v6348
  %6354 = vmatpush.bf16.msra.mxu0 %v6305
  %6355 = vmatpush.bf16.msra.mxu0 %v6304
  %6356 = vmatpush.bf16.msra.mxu0 %v6253
  %6357 = vmatpush.bf16.msra.mxu0 %v6252
  %6358 = vmatpush.bf16.msra.mxu0 %v6195
  %6359 = vmatpush.bf16.msra.mxu0 %v6194
  %6360 = vmatmul.bf16.gmra.mxu0 %v6339
  %v6361 = vpop.f32.mrf.mxu0
  %v6362 = vadd.f32 0.0, %v6361
  %v6363 = vpop.f32.mrf.mxu0
  %6364 = vdwg.mxu0
  %v6365 = vadd.f32 %v6321, %v6362
  %v6366 = vpack.c.bf16 %v5938, %v5938
  %6367 = vmatpush.bf16.msra.mxu0 %v6349
  %6368 = vmatpush.bf16.msra.mxu0 %v6348
  %6369 = vmatpush.bf16.msra.mxu0 %v6305
  %6370 = vmatpush.bf16.msra.mxu0 %v6304
  %6371 = vmatpush.bf16.msra.mxu0 %v6253
  %6372 = vmatpush.bf16.msra.mxu0 %v6252
  %6373 = vmatpush.bf16.msra.mxu0 %v6195
  %6374 = vmatpush.bf16.msra.mxu0 %v6194
  %6375 = vmatmul.bf16.gmra.mxu0 %v6366
  %v6376 = vpop.f32.mrf.mxu0
  %v6377 = vadd.f32 0.0, %v6376
  %v6378 = vpop.f32.mrf.mxu0
  %6379 = vdwg.mxu0
  %v6380 = vadd.f32 %v6338, %v6377
  %v6381 = vpack.c.bf16 %v5922, %v5922
  %v6386 = vunpack.c.l.b16 %v5985
  %v6387 = vunpack.c.l.b16 %v5986
  %v6388 = vunpack.c.l.b16 %v5987
  %v6389 = vunpack.c.l.b16 %v5988
  %v6390 = vpack.c.b16 %v6387, %v6386
  %v6391 = vpack.c.b16 %v6389, %v6388
  %6394 = vmatpush.bf16.msra.mxu0 %v6391
  %6395 = vmatpush.bf16.msra.mxu0 %v6390
  %6396 = vmatpush.bf16.msra.mxu0 %v6349
  %6397 = vmatpush.bf16.msra.mxu0 %v6348
  %6398 = vmatpush.bf16.msra.mxu0 %v6305
  %6399 = vmatpush.bf16.msra.mxu0 %v6304
  %6400 = vmatpush.bf16.msra.mxu0 %v6253
  %6401 = vmatpush.bf16.msra.mxu0 %v6252
  %6402 = vmatmul.bf16.gmra.mxu0 %v6381
  %v6403 = vpop.f32.mrf.mxu0
  %v6404 = vadd.f32 0.0, %v6403
  %v6405 = vpop.f32.mrf.mxu0
  %6406 = vdwg.mxu0
  %v6407 = vadd.f32 %v6365, %v6404
  %v6408 = vpack.c.bf16 %v5943, %v5943
  %6409 = vmatpush.bf16.msra.mxu0 %v6391
  %6410 = vmatpush.bf16.msra.mxu0 %v6390
  %6411 = vmatpush.bf16.msra.mxu0 %v6349
  %6412 = vmatpush.bf16.msra.mxu0 %v6348
  %6413 = vmatpush.bf16.msra.mxu0 %v6305
  %6414 = vmatpush.bf16.msra.mxu0 %v6304
  %6415 = vmatpush.bf16.msra.mxu0 %v6253
  %6416 = vmatpush.bf16.msra.mxu0 %v6252
  %6417 = vmatmul.bf16.gmra.mxu0 %v6408
  %v6418 = vpop.f32.mrf.mxu0
  %v6419 = vadd.f32 0.0, %v6418
  %v6420 = vpop.f32.mrf.mxu0
  %6421 = vdwg.mxu0
  %v6422 = vadd.f32 %v6380, %v6419
  %v6423 = vpack.c.bf16 %v5919, %v5917
  %v6425 = vshrl.u32 %v6423, 16
  %v6427 = vshll.u32 %v6423, 16
  %v6429 = vrot.slane %v6427, 1
  %v6430 = vor.u32 %v6425, %v6429
  %v6436 = vunpack.c.l.b16 %v5989
  %v6437 = vunpack.c.l.b16 %v5990
  %v6438 = vunpack.c.l.b16 %v5991
  %v6439 = vunpack.c.l.b16 %v5992
  %v6440 = vpack.c.b16 %v6437, %v6436
  %v6441 = vpack.c.b16 %v6439, %v6438
  %6444 = vmatpush.bf16.msra.mxu0 %v6441
  %6445 = vmatpush.bf16.msra.mxu0 %v6440
  %6446 = vmatpush.bf16.msra.mxu0 %v6391
  %6447 = vmatpush.bf16.msra.mxu0 %v6390
  %6448 = vmatpush.bf16.msra.mxu0 %v6349
  %6449 = vmatpush.bf16.msra.mxu0 %v6348
  %6450 = vmatpush.bf16.msra.mxu0 %v6305
  %6451 = vmatpush.bf16.msra.mxu0 %v6304
  %6452 = vmatmul.bf16.gmra.mxu0 %v6430
  %v6453 = vpop.f32.mrf.mxu0
  %v6454 = vadd.f32 0.0, %v6453
  %v6455 = vpop.f32.mrf.mxu0
  %6456 = vdwg.mxu0
  %v6457 = vadd.f32 %v6407, %v6454
  %v6458 = vpack.c.bf16 %v5941, %v5938
  %v6460 = vshrl.u32 %v6458, 16
  %v6462 = vshll.u32 %v6458, 16
  %v6464 = vrot.slane %v6462, 1
  %v6465 = vor.u32 %v6460, %v6464
  %6467 = vmatpush.bf16.msra.mxu0 %v6441
  %6468 = vmatpush.bf16.msra.mxu0 %v6440
  %6469 = vmatpush.bf16.msra.mxu0 %v6391
  %6470 = vmatpush.bf16.msra.mxu0 %v6390
  %6471 = vmatpush.bf16.msra.mxu0 %v6349
  %6472 = vmatpush.bf16.msra.mxu0 %v6348
  %6473 = vmatpush.bf16.msra.mxu0 %v6305
  %6474 = vmatpush.bf16.msra.mxu0 %v6304
  %6475 = vmatmul.bf16.gmra.mxu0 %v6465
  %v6476 = vpop.f32.mrf.mxu0
  %v6477 = vadd.f32 0.0, %v6476
  %v6478 = vpop.f32.mrf.mxu0
  %6479 = vdwg.mxu0
  %v6480 = vadd.f32 %v6422, %v6477
  %v6481 = vpack.c.bf16 %v5924, %v5922
  %v6483 = vshrl.u32 %v6481, 16
  %v6485 = vshll.u32 %v6481, 16
  %v6487 = vrot.slane %v6485, 1
  %v6488 = vor.u32 %v6483, %v6487
  %v6494 = vunpack.c.l.b16 %v5993
  %v6495 = vunpack.c.l.b16 %v5994
  %v6496 = vunpack.c.l.b16 %v5995
  %v6497 = vunpack.c.l.b16 %v5996
  %v6498 = vpack.c.b16 %v6495, %v6494
  %v6499 = vpack.c.b16 %v6497, %v6496
  %6502 = vmatpush.bf16.msra.mxu0 %v6499
  %6503 = vmatpush.bf16.msra.mxu0 %v6498
  %6504 = vmatpush.bf16.msra.mxu0 %v6441
  %6505 = vmatpush.bf16.msra.mxu0 %v6440
  %6506 = vmatpush.bf16.msra.mxu0 %v6391
  %6507 = vmatpush.bf16.msra.mxu0 %v6390
  %6508 = vmatpush.bf16.msra.mxu0 %v6349
  %6509 = vmatpush.bf16.msra.mxu0 %v6348
  %6510 = vmatmul.bf16.gmra.mxu0 %v6488
  %v6511 = vpop.f32.mrf.mxu0
  %v6512 = vadd.f32 0.0, %v6511
  %v6513 = vpop.f32.mrf.mxu0
  %6514 = vdwg.mxu0
  %v6515 = vadd.f32 %v6457, %v6512
  %v6516 = vpack.c.bf16 %v5946, %v5943
  %v6518 = vshrl.u32 %v6516, 16
  %v6520 = vshll.u32 %v6516, 16
  %v6522 = vrot.slane %v6520, 1
  %v6523 = vor.u32 %v6518, %v6522
  %6525 = vmatpush.bf16.msra.mxu0 %v6499
  %6526 = vmatpush.bf16.msra.mxu0 %v6498
  %6527 = vmatpush.bf16.msra.mxu0 %v6441
  %6528 = vmatpush.bf16.msra.mxu0 %v6440
  %6529 = vmatpush.bf16.msra.mxu0 %v6391
  %6530 = vmatpush.bf16.msra.mxu0 %v6390
  %6531 = vmatpush.bf16.msra.mxu0 %v6349
  %6532 = vmatpush.bf16.msra.mxu0 %v6348
  %6533 = vmatmul.bf16.gmra.mxu0 %v6523
  %v6534 = vpop.f32.mrf.mxu0
  %v6535 = vadd.f32 0.0, %v6534
  %v6536 = vpop.f32.mrf.mxu0
  %6537 = vdwg.mxu0
  %v6538 = vadd.f32 %v6480, %v6535
  %v6540 = vrot.slane %v6423, 1
  %v6546 = vunpack.c.l.b16 %v5997
  %v6547 = vunpack.c.l.b16 %v5998
  %v6548 = vunpack.c.l.b16 %v5999
  %v6549 = vunpack.c.l.b16 %v6000
  %v6550 = vpack.c.b16 %v6547, %v6546
  %v6551 = vpack.c.b16 %v6549, %v6548
  %6554 = vmatpush.bf16.msra.mxu0 %v6551
  %6555 = vmatpush.bf16.msra.mxu0 %v6550
  %6556 = vmatpush.bf16.msra.mxu0 %v6499
  %6557 = vmatpush.bf16.msra.mxu0 %v6498
  %6558 = vmatpush.bf16.msra.mxu0 %v6441
  %6559 = vmatpush.bf16.msra.mxu0 %v6440
  %6560 = vmatpush.bf16.msra.mxu0 %v6391
  %6561 = vmatpush.bf16.msra.mxu0 %v6390
  %6562 = vmatmul.bf16.gmra.mxu0 %v6540
  %v6563 = vpop.f32.mrf.mxu0
  %v6564 = vadd.f32 0.0, %v6563
  %v6565 = vpop.f32.mrf.mxu0
  %6566 = vdwg.mxu0
  %v6567 = vadd.f32 %v6515, %v6564
  %v6569 = vrot.slane %v6458, 1
  %6571 = vmatpush.bf16.msra.mxu0 %v6551
  %6572 = vmatpush.bf16.msra.mxu0 %v6550
  %6573 = vmatpush.bf16.msra.mxu0 %v6499
  %6574 = vmatpush.bf16.msra.mxu0 %v6498
  %6575 = vmatpush.bf16.msra.mxu0 %v6441
  %6576 = vmatpush.bf16.msra.mxu0 %v6440
  %6577 = vmatpush.bf16.msra.mxu0 %v6391
  %6578 = vmatpush.bf16.msra.mxu0 %v6390
  %6579 = vmatmul.bf16.gmra.mxu0 %v6569
  %v6580 = vpop.f32.mrf.mxu0
  %v6581 = vadd.f32 0.0, %v6580
  %v6582 = vpop.f32.mrf.mxu0
  %6583 = vdwg.mxu0
  %v6584 = vadd.f32 %v6538, %v6581
  %v6585 = vrot.slane %v6177, 2
  %v6591 = vunpack.c.l.b16 %v6001
  %v6592 = vunpack.c.l.b16 %v6002
  %v6593 = vunpack.c.l.b16 %v6003
  %v6594 = vunpack.c.l.b16 %v6004
  %v6595 = vpack.c.b16 %v6592, %v6591
  %v6596 = vpack.c.b16 %v6594, %v6593
  %6599 = vmatpush.bf16.msra.mxu0 %v6596
  %6600 = vmatpush.bf16.msra.mxu0 %v6595
  %6601 = vmatpush.bf16.msra.mxu0 %v6551
  %6602 = vmatpush.bf16.msra.mxu0 %v6550
  %6603 = vmatpush.bf16.msra.mxu0 %v6499
  %6604 = vmatpush.bf16.msra.mxu0 %v6498
  %6605 = vmatpush.bf16.msra.mxu0 %v6441
  %6606 = vmatpush.bf16.msra.mxu0 %v6440
  %6607 = vmatmul.bf16.gmra.mxu0 %v6585
  %v6608 = vpop.f32.mrf.mxu0
  %v6609 = vadd.f32 0.0, %v6608
  %v6610 = vpop.f32.mrf.mxu0
  %6611 = vdwg.mxu0
  %v6612 = vadd.f32 %v6567, %v6609
  %v6613 = vrot.slane %v6212, 2
  %6615 = vmatpush.bf16.msra.mxu0 %v6596
  %6616 = vmatpush.bf16.msra.mxu0 %v6595
  %6617 = vmatpush.bf16.msra.mxu0 %v6551
  %6618 = vmatpush.bf16.msra.mxu0 %v6550
  %6619 = vmatpush.bf16.msra.mxu0 %v6499
  %6620 = vmatpush.bf16.msra.mxu0 %v6498
  %6621 = vmatpush.bf16.msra.mxu0 %v6441
  %6622 = vmatpush.bf16.msra.mxu0 %v6440
  %6623 = vmatmul.bf16.gmra.mxu0 %v6613
  %v6624 = vpop.f32.mrf.mxu0
  %v6625 = vadd.f32 0.0, %v6624
  %v6626 = vpop.f32.mrf.mxu0
  %6627 = vdwg.mxu0
  %v6628 = vadd.f32 %v6584, %v6625
  %v6630 = vrot.slane %v6235, 2
  %v6636 = vunpack.c.l.b16 %v6005
  %v6637 = vunpack.c.l.b16 %v6006
  %v6638 = vunpack.c.l.b16 %v6007
  %v6639 = vunpack.c.l.b16 %v6008
  %v6640 = vpack.c.b16 %v6637, %v6636
  %v6641 = vpack.c.b16 %v6639, %v6638
  %6644 = vmatpush.bf16.msra.mxu0 %v6641
  %6645 = vmatpush.bf16.msra.mxu0 %v6640
  %6646 = vmatpush.bf16.msra.mxu0 %v6596
  %6647 = vmatpush.bf16.msra.mxu0 %v6595
  %6648 = vmatpush.bf16.msra.mxu0 %v6551
  %6649 = vmatpush.bf16.msra.mxu0 %v6550
  %6650 = vmatpush.bf16.msra.mxu0 %v6499
  %6651 = vmatpush.bf16.msra.mxu0 %v6498
  %6652 = vmatmul.bf16.gmra.mxu0 %v6630
  %v6653 = vpop.f32.mrf.mxu0
  %v6654 = vadd.f32 0.0, %v6653
  %v6655 = vpop.f32.mrf.mxu0
  %6656 = vdwg.mxu0
  %v6657 = vadd.f32 %v6612, %v6654
  %v6659 = vrot.slane %v6270, 2
  %6661 = vmatpush.bf16.msra.mxu0 %v6641
  %6662 = vmatpush.bf16.msra.mxu0 %v6640
  %6663 = vmatpush.bf16.msra.mxu0 %v6596
  %6664 = vmatpush.bf16.msra.mxu0 %v6595
  %6665 = vmatpush.bf16.msra.mxu0 %v6551
  %6666 = vmatpush.bf16.msra.mxu0 %v6550
  %6667 = vmatpush.bf16.msra.mxu0 %v6499
  %6668 = vmatpush.bf16.msra.mxu0 %v6498
  %6669 = vmatmul.bf16.gmra.mxu0 %v6659
  %v6670 = vpop.f32.mrf.mxu0
  %v6671 = vadd.f32 0.0, %v6670
  %v6672 = vpop.f32.mrf.mxu0
  %6673 = vdwg.mxu0
  %v6674 = vadd.f32 %v6628, %v6671
  %v6675 = vrot.slane %v6179, 2
  %v6676 = vrot.slane %v6181, 3
  %v6677 = vor.u32 %v6675, %v6676
  %v6683 = vunpack.c.l.b16 %v6009
  %v6684 = vunpack.c.l.b16 %v6010
  %v6685 = vunpack.c.l.b16 %v6011
  %v6686 = vunpack.c.l.b16 %v6012
  %v6687 = vpack.c.b16 %v6684, %v6683
  %v6688 = vpack.c.b16 %v6686, %v6685
  %6691 = vmatpush.bf16.msra.mxu0 %v6688
  %6692 = vmatpush.bf16.msra.mxu0 %v6687
  %6693 = vmatpush.bf16.msra.mxu0 %v6641
  %6694 = vmatpush.bf16.msra.mxu0 %v6640
  %6695 = vmatpush.bf16.msra.mxu0 %v6596
  %6696 = vmatpush.bf16.msra.mxu0 %v6595
  %6697 = vmatpush.bf16.msra.mxu0 %v6551
  %6698 = vmatpush.bf16.msra.mxu0 %v6550
  %6699 = vmatmul.bf16.gmra.mxu0 %v6677
  %v6700 = vpop.f32.mrf.mxu0
  %v6701 = vadd.f32 0.0, %v6700
  %v6702 = vpop.f32.mrf.mxu0
  %6703 = vdwg.mxu0
  %v6704 = vadd.f32 %v6657, %v6701
  %v6705 = vrot.slane %v6214, 2
  %v6706 = vrot.slane %v6216, 3
  %v6707 = vor.u32 %v6705, %v6706
  %6709 = vmatpush.bf16.msra.mxu0 %v6688
  %6710 = vmatpush.bf16.msra.mxu0 %v6687
  %6711 = vmatpush.bf16.msra.mxu0 %v6641
  %6712 = vmatpush.bf16.msra.mxu0 %v6640
  %6713 = vmatpush.bf16.msra.mxu0 %v6596
  %6714 = vmatpush.bf16.msra.mxu0 %v6595
  %6715 = vmatpush.bf16.msra.mxu0 %v6551
  %6716 = vmatpush.bf16.msra.mxu0 %v6550
  %6717 = vmatmul.bf16.gmra.mxu0 %v6707
  %v6718 = vpop.f32.mrf.mxu0
  %v6719 = vadd.f32 0.0, %v6718
  %v6720 = vpop.f32.mrf.mxu0
  %6721 = vdwg.mxu0
  %v6722 = vadd.f32 %v6674, %v6719
  %v6723 = vrot.slane %v6237, 2
  %v6724 = vrot.slane %v6239, 3
  %v6725 = vor.u32 %v6723, %v6724
  %v6731 = vunpack.c.l.b16 %v6013
  %v6732 = vunpack.c.l.b16 %v6014
  %v6733 = vunpack.c.l.b16 %v6015
  %v6734 = vunpack.c.l.b16 %v6016
  %v6735 = vpack.c.b16 %v6732, %v6731
  %v6736 = vpack.c.b16 %v6734, %v6733
  %6739 = vmatpush.bf16.msra.mxu0 %v6736
  %6740 = vmatpush.bf16.msra.mxu0 %v6735
  %6741 = vmatpush.bf16.msra.mxu0 %v6688
  %6742 = vmatpush.bf16.msra.mxu0 %v6687
  %6743 = vmatpush.bf16.msra.mxu0 %v6641
  %6744 = vmatpush.bf16.msra.mxu0 %v6640
  %6745 = vmatpush.bf16.msra.mxu0 %v6596
  %6746 = vmatpush.bf16.msra.mxu0 %v6595
  %6747 = vmatmul.bf16.gmra.mxu0 %v6725
  %v6748 = vpop.f32.mrf.mxu0
  %v6749 = vadd.f32 0.0, %v6748
  %v6750 = vpop.f32.mrf.mxu0
  %6751 = vdwg.mxu0
  %v6752 = vadd.f32 %v6704, %v6749
  %v6753 = vrot.slane %v6272, 2
  %v6754 = vrot.slane %v6274, 3
  %v6755 = vor.u32 %v6753, %v6754
  %6757 = vmatpush.bf16.msra.mxu0 %v6736
  %6758 = vmatpush.bf16.msra.mxu0 %v6735
  %6759 = vmatpush.bf16.msra.mxu0 %v6688
  %6760 = vmatpush.bf16.msra.mxu0 %v6687
  %6761 = vmatpush.bf16.msra.mxu0 %v6641
  %6762 = vmatpush.bf16.msra.mxu0 %v6640
  %6763 = vmatpush.bf16.msra.mxu0 %v6596
  %6764 = vmatpush.bf16.msra.mxu0 %v6595
  %6765 = vmatmul.bf16.gmra.mxu0 %v6755
  %v6766 = vpop.f32.mrf.mxu0
  %v6767 = vadd.f32 0.0, %v6766
  %v6768 = vpop.f32.mrf.mxu0
  %6769 = vdwg.mxu0
  %v6770 = vadd.f32 %v6722, %v6767
  %v6771 = vrot.slane %v6177, 3
  %v6777 = vunpack.c.l.b16 %v6017
  %v6778 = vunpack.c.l.b16 %v6018
  %v6779 = vunpack.c.l.b16 %v6019
  %v6780 = vunpack.c.l.b16 %v6020
  %v6781 = vpack.c.b16 %v6778, %v6777
  %v6782 = vpack.c.b16 %v6780, %v6779
  %6785 = vmatpush.bf16.msra.mxu0 %v6782
  %6786 = vmatpush.bf16.msra.mxu0 %v6781
  %6787 = vmatpush.bf16.msra.mxu0 %v6736
  %6788 = vmatpush.bf16.msra.mxu0 %v6735
  %6789 = vmatpush.bf16.msra.mxu0 %v6688
  %6790 = vmatpush.bf16.msra.mxu0 %v6687
  %6791 = vmatpush.bf16.msra.mxu0 %v6641
  %6792 = vmatpush.bf16.msra.mxu0 %v6640
  %6793 = vmatmul.bf16.gmra.mxu0 %v6771
  %v6794 = vpop.f32.mrf.mxu0
  %v6795 = vadd.f32 0.0, %v6794
  %v6796 = vpop.f32.mrf.mxu0
  %6797 = vdwg.mxu0
  %v6798 = vadd.f32 %v6752, %v6795
  %v6799 = vrot.slane %v6212, 3
  %6801 = vmatpush.bf16.msra.mxu0 %v6782
  %6802 = vmatpush.bf16.msra.mxu0 %v6781
  %6803 = vmatpush.bf16.msra.mxu0 %v6736
  %6804 = vmatpush.bf16.msra.mxu0 %v6735
  %6805 = vmatpush.bf16.msra.mxu0 %v6688
  %6806 = vmatpush.bf16.msra.mxu0 %v6687
  %6807 = vmatpush.bf16.msra.mxu0 %v6641
  %6808 = vmatpush.bf16.msra.mxu0 %v6640
  %6809 = vmatmul.bf16.gmra.mxu0 %v6799
  %v6810 = vpop.f32.mrf.mxu0
  %v6811 = vadd.f32 0.0, %v6810
  %v6812 = vpop.f32.mrf.mxu0
  %6813 = vdwg.mxu0
  %v6814 = vadd.f32 %v6770, %v6811
  %v6815 = vrot.slane %v6423, 2
  %v6821 = vunpack.c.l.b16 %v6021
  %v6822 = vunpack.c.l.b16 %v6022
  %v6823 = vunpack.c.l.b16 %v6023
  %v6824 = vunpack.c.l.b16 %v6024
  %v6825 = vpack.c.b16 %v6822, %v6821
  %v6826 = vpack.c.b16 %v6824, %v6823
  %6829 = vmatpush.bf16.msra.mxu0 %v6826
  %6830 = vmatpush.bf16.msra.mxu0 %v6825
  %6831 = vmatpush.bf16.msra.mxu0 %v6782
  %6832 = vmatpush.bf16.msra.mxu0 %v6781
  %6833 = vmatpush.bf16.msra.mxu0 %v6736
  %6834 = vmatpush.bf16.msra.mxu0 %v6735
  %6835 = vmatpush.bf16.msra.mxu0 %v6688
  %6836 = vmatpush.bf16.msra.mxu0 %v6687
  %6837 = vmatmul.bf16.gmra.mxu0 %v6815
  %v6838 = vpop.f32.mrf.mxu0
  %v6839 = vadd.f32 0.0, %v6838
  %v6840 = vpop.f32.mrf.mxu0
  %6841 = vdwg.mxu0
  %v6842 = vadd.f32 %v6798, %v6839
  %v6843 = vrot.slane %v6458, 2
  %6845 = vmatpush.bf16.msra.mxu0 %v6826
  %6846 = vmatpush.bf16.msra.mxu0 %v6825
  %6847 = vmatpush.bf16.msra.mxu0 %v6782
  %6848 = vmatpush.bf16.msra.mxu0 %v6781
  %6849 = vmatpush.bf16.msra.mxu0 %v6736
  %6850 = vmatpush.bf16.msra.mxu0 %v6735
  %6851 = vmatpush.bf16.msra.mxu0 %v6688
  %6852 = vmatpush.bf16.msra.mxu0 %v6687
  %6853 = vmatmul.bf16.gmra.mxu0 %v6843
  %v6854 = vpop.f32.mrf.mxu0
  %v6855 = vadd.f32 0.0, %v6854
  %v6856 = vpop.f32.mrf.mxu0
  %6857 = vdwg.mxu0
  %v6858 = vadd.f32 %v6814, %v6855
  %v6860 = vrot.slane %v6481, 2
  %v6866 = vunpack.c.l.b16 %v6025
  %v6867 = vunpack.c.l.b16 %v6026
  %v6868 = vunpack.c.l.b16 %v6027
  %v6869 = vunpack.c.l.b16 %v6028
  %v6870 = vpack.c.b16 %v6867, %v6866
  %v6871 = vpack.c.b16 %v6869, %v6868
  %6874 = vmatpush.bf16.msra.mxu0 %v6871
  %6875 = vmatpush.bf16.msra.mxu0 %v6870
  %6876 = vmatpush.bf16.msra.mxu0 %v6826
  %6877 = vmatpush.bf16.msra.mxu0 %v6825
  %6878 = vmatpush.bf16.msra.mxu0 %v6782
  %6879 = vmatpush.bf16.msra.mxu0 %v6781
  %6880 = vmatpush.bf16.msra.mxu0 %v6736
  %6881 = vmatpush.bf16.msra.mxu0 %v6735
  %6882 = vmatmul.bf16.gmra.mxu0 %v6860
  %v6883 = vpop.f32.mrf.mxu0
  %v6884 = vadd.f32 0.0, %v6883
  %v6885 = vpop.f32.mrf.mxu0
  %6886 = vdwg.mxu0
  %v6887 = vadd.f32 %v6842, %v6884
  %v6889 = vrot.slane %v6516, 2
  %6891 = vmatpush.bf16.msra.mxu0 %v6871
  %6892 = vmatpush.bf16.msra.mxu0 %v6870
  %6893 = vmatpush.bf16.msra.mxu0 %v6826
  %6894 = vmatpush.bf16.msra.mxu0 %v6825
  %6895 = vmatpush.bf16.msra.mxu0 %v6782
  %6896 = vmatpush.bf16.msra.mxu0 %v6781
  %6897 = vmatpush.bf16.msra.mxu0 %v6736
  %6898 = vmatpush.bf16.msra.mxu0 %v6735
  %6899 = vmatmul.bf16.gmra.mxu0 %v6889
  %v6900 = vpop.f32.mrf.mxu0
  %v6901 = vadd.f32 0.0, %v6900
  %v6902 = vpop.f32.mrf.mxu0
  %6903 = vdwg.mxu0
  %v6904 = vadd.f32 %v6858, %v6901
  %v6905 = vrot.slane %v6425, 2
  %v6906 = vrot.slane %v6427, 3
  %v6907 = vor.u32 %v6905, %v6906
  %v6913 = vunpack.c.l.b16 %v6029
  %v6914 = vunpack.c.l.b16 %v6030
  %v6915 = vunpack.c.l.b16 %v6031
  %v6916 = vunpack.c.l.b16 %v6032
  %v6917 = vpack.c.b16 %v6914, %v6913
  %v6918 = vpack.c.b16 %v6916, %v6915
  %6921 = vmatpush.bf16.msra.mxu0 %v6918
  %6922 = vmatpush.bf16.msra.mxu0 %v6917
  %6923 = vmatpush.bf16.msra.mxu0 %v6871
  %6924 = vmatpush.bf16.msra.mxu0 %v6870
  %6925 = vmatpush.bf16.msra.mxu0 %v6826
  %6926 = vmatpush.bf16.msra.mxu0 %v6825
  %6927 = vmatpush.bf16.msra.mxu0 %v6782
  %6928 = vmatpush.bf16.msra.mxu0 %v6781
  %6929 = vmatmul.bf16.gmra.mxu0 %v6907
  %v6930 = vpop.f32.mrf.mxu0
  %v6931 = vadd.f32 0.0, %v6930
  %v6932 = vpop.f32.mrf.mxu0
  %6933 = vdwg.mxu0
  %v6934 = vadd.f32 %v6887, %v6931
  %v6935 = vrot.slane %v6460, 2
  %v6936 = vrot.slane %v6462, 3
  %v6937 = vor.u32 %v6935, %v6936
  %6939 = vmatpush.bf16.msra.mxu0 %v6918
  %6940 = vmatpush.bf16.msra.mxu0 %v6917
  %6941 = vmatpush.bf16.msra.mxu0 %v6871
  %6942 = vmatpush.bf16.msra.mxu0 %v6870
  %6943 = vmatpush.bf16.msra.mxu0 %v6826
  %6944 = vmatpush.bf16.msra.mxu0 %v6825
  %6945 = vmatpush.bf16.msra.mxu0 %v6782
  %6946 = vmatpush.bf16.msra.mxu0 %v6781
  %6947 = vmatmul.bf16.gmra.mxu0 %v6937
  %v6948 = vpop.f32.mrf.mxu0
  %v6949 = vadd.f32 0.0, %v6948
  %v6950 = vpop.f32.mrf.mxu0
  %6951 = vdwg.mxu0
  %v6952 = vadd.f32 %v6904, %v6949
  %v6953 = vrot.slane %v6483, 2
  %v6954 = vrot.slane %v6485, 3
  %v6955 = vor.u32 %v6953, %v6954
  %v6961 = vunpack.c.l.b16 %v6033
  %v6962 = vunpack.c.l.b16 %v6034
  %v6963 = vunpack.c.l.b16 %v6035
  %v6964 = vunpack.c.l.b16 %v6036
  %v6965 = vpack.c.b16 %v6962, %v6961
  %v6966 = vpack.c.b16 %v6964, %v6963
  %6969 = vmatpush.bf16.msra.mxu0 %v6966
  %6970 = vmatpush.bf16.msra.mxu0 %v6965
  %6971 = vmatpush.bf16.msra.mxu0 %v6918
  %6972 = vmatpush.bf16.msra.mxu0 %v6917
  %6973 = vmatpush.bf16.msra.mxu0 %v6871
  %6974 = vmatpush.bf16.msra.mxu0 %v6870
  %6975 = vmatpush.bf16.msra.mxu0 %v6826
  %6976 = vmatpush.bf16.msra.mxu0 %v6825
  %6977 = vmatmul.bf16.gmra.mxu0 %v6955
  %v6978 = vpop.f32.mrf.mxu0
  %v6979 = vadd.f32 0.0, %v6978
  %v6980 = vpop.f32.mrf.mxu0
  %6981 = vdwg.mxu0
  %v6982 = vadd.f32 %v6934, %v6979
  %v6983 = vrot.slane %v6518, 2
  %v6984 = vrot.slane %v6520, 3
  %v6985 = vor.u32 %v6983, %v6984
  %6987 = vmatpush.bf16.msra.mxu0 %v6966
  %6988 = vmatpush.bf16.msra.mxu0 %v6965
  %6989 = vmatpush.bf16.msra.mxu0 %v6918
  %6990 = vmatpush.bf16.msra.mxu0 %v6917
  %6991 = vmatpush.bf16.msra.mxu0 %v6871
  %6992 = vmatpush.bf16.msra.mxu0 %v6870
  %6993 = vmatpush.bf16.msra.mxu0 %v6826
  %6994 = vmatpush.bf16.msra.mxu0 %v6825
  %6995 = vmatmul.bf16.gmra.mxu0 %v6985
  %v6996 = vpop.f32.mrf.mxu0
  %v6997 = vadd.f32 0.0, %v6996
  %v6998 = vpop.f32.mrf.mxu0
  %6999 = vdwg.mxu0
  %v7000 = vadd.f32 %v6952, %v6997
  %v7001 = vrot.slane %v6423, 3
  %v7007 = vunpack.c.l.b16 %v6037
  %v7008 = vunpack.c.l.b16 %v6038
  %v7009 = vunpack.c.l.b16 %v6039
  %v7010 = vunpack.c.l.b16 %v6040
  %v7011 = vpack.c.b16 %v7008, %v7007
  %v7012 = vpack.c.b16 %v7010, %v7009
  %7015 = vmatpush.bf16.msra.mxu0 %v7012
  %7016 = vmatpush.bf16.msra.mxu0 %v7011
  %7017 = vmatpush.bf16.msra.mxu0 %v6966
  %7018 = vmatpush.bf16.msra.mxu0 %v6965
  %7019 = vmatpush.bf16.msra.mxu0 %v6918
  %7020 = vmatpush.bf16.msra.mxu0 %v6917
  %7021 = vmatpush.bf16.msra.mxu0 %v6871
  %7022 = vmatpush.bf16.msra.mxu0 %v6870
  %7023 = vmatmul.bf16.gmra.mxu0 %v7001
  %v7024 = vpop.f32.mrf.mxu0
  %v7025 = vadd.f32 0.0, %v7024
  %v7026 = vpop.f32.mrf.mxu0
  %7027 = vdwg.mxu0
  %v7028 = vadd.f32 %v6982, %v7025
  %v7029 = vrot.slane %v6458, 3
  %7031 = vmatpush.bf16.msra.mxu0 %v7012
  %7032 = vmatpush.bf16.msra.mxu0 %v7011
  %7033 = vmatpush.bf16.msra.mxu0 %v6966
  %7034 = vmatpush.bf16.msra.mxu0 %v6965
  %7035 = vmatpush.bf16.msra.mxu0 %v6918
  %7036 = vmatpush.bf16.msra.mxu0 %v6917
  %7037 = vmatpush.bf16.msra.mxu0 %v6871
  %7038 = vmatpush.bf16.msra.mxu0 %v6870
  %7039 = vmatmul.bf16.gmra.mxu0 %v7029
  %v7040 = vpop.f32.mrf.mxu0
  %v7041 = vadd.f32 0.0, %v7040
  %v7042 = vpop.f32.mrf.mxu0
  %7043 = vdwg.mxu0
  %v7044 = vadd.f32 %v7000, %v7041
  %v7045 = vpack.c.bf16 %v5909, %v5909
  %v7050 = vunpack.c.l.b16 %v6041
  %v7051 = vunpack.c.l.b16 %v6042
  %v7052 = vunpack.c.l.b16 %v6043
  %v7053 = vunpack.c.l.b16 %v6044
  %v7054 = vpack.c.b16 %v7051, %v7050
  %v7055 = vpack.c.b16 %v7053, %v7052
  %7058 = vmatpush.bf16.msra.mxu0 %v7055
  %7059 = vmatpush.bf16.msra.mxu0 %v7054
  %7060 = vmatpush.bf16.msra.mxu0 %v7012
  %7061 = vmatpush.bf16.msra.mxu0 %v7011
  %7062 = vmatpush.bf16.msra.mxu0 %v6966
  %7063 = vmatpush.bf16.msra.mxu0 %v6965
  %7064 = vmatpush.bf16.msra.mxu0 %v6918
  %7065 = vmatpush.bf16.msra.mxu0 %v6917
  %7066 = vmatmul.bf16.gmra.mxu0 %v7045
  %v7067 = vpop.f32.mrf.mxu0
  %v7068 = vadd.f32 0.0, %v7067
  %v7069 = vpop.f32.mrf.mxu0
  %7070 = vdwg.mxu0
  %v7071 = vadd.f32 %v7028, %v7068
  %v7072 = vpack.c.bf16 %v5931, %v5931
  %7073 = vmatpush.bf16.msra.mxu0 %v7055
  %7074 = vmatpush.bf16.msra.mxu0 %v7054
  %7075 = vmatpush.bf16.msra.mxu0 %v7012
  %7076 = vmatpush.bf16.msra.mxu0 %v7011
  %7077 = vmatpush.bf16.msra.mxu0 %v6966
  %7078 = vmatpush.bf16.msra.mxu0 %v6965
  %7079 = vmatpush.bf16.msra.mxu0 %v6918
  %7080 = vmatpush.bf16.msra.mxu0 %v6917
  %7081 = vmatmul.bf16.gmra.mxu0 %v7072
  %v7082 = vpop.f32.mrf.mxu0
  %v7083 = vadd.f32 0.0, %v7082
  %v7084 = vpop.f32.mrf.mxu0
  %7085 = vdwg.mxu0
  %v7086 = vadd.f32 %v7044, %v7083
  %v7087 = vpack.c.bf16 %v5914, %v5914
  %v7092 = vunpack.c.l.b16 %v6045
  %v7093 = vunpack.c.l.b16 %v6046
  %v7094 = vunpack.c.l.b16 %v6047
  %v7095 = vunpack.c.l.b16 %v6048
  %v7096 = vpack.c.b16 %v7093, %v7092
  %v7097 = vpack.c.b16 %v7095, %v7094
  %7100 = vmatpush.bf16.msra.mxu0 %v7097
  %7101 = vmatpush.bf16.msra.mxu0 %v7096
  %7102 = vmatpush.bf16.msra.mxu0 %v7055
  %7103 = vmatpush.bf16.msra.mxu0 %v7054
  %7104 = vmatpush.bf16.msra.mxu0 %v7012
  %7105 = vmatpush.bf16.msra.mxu0 %v7011
  %7106 = vmatpush.bf16.msra.mxu0 %v6966
  %7107 = vmatpush.bf16.msra.mxu0 %v6965
  %7108 = vmatmul.bf16.gmra.mxu0 %v7087
  %v7109 = vpop.f32.mrf.mxu0
  %v7110 = vadd.f32 0.0, %v7109
  %v7111 = vpop.f32.mrf.mxu0
  %7112 = vdwg.mxu0
  %v7113 = vadd.f32 %v7071, %v7110
  %v7114 = vpack.c.bf16 %v5936, %v5936
  %7115 = vmatpush.bf16.msra.mxu0 %v7097
  %7116 = vmatpush.bf16.msra.mxu0 %v7096
  %7117 = vmatpush.bf16.msra.mxu0 %v7055
  %7118 = vmatpush.bf16.msra.mxu0 %v7054
  %7119 = vmatpush.bf16.msra.mxu0 %v7012
  %7120 = vmatpush.bf16.msra.mxu0 %v7011
  %7121 = vmatpush.bf16.msra.mxu0 %v6966
  %7122 = vmatpush.bf16.msra.mxu0 %v6965
  %7123 = vmatmul.bf16.gmra.mxu0 %v7114
  %v7124 = vpop.f32.mrf.mxu0
  %v7125 = vadd.f32 0.0, %v7124
  %v7126 = vpop.f32.mrf.mxu0
  %7127 = vdwg.mxu0
  %v7128 = vadd.f32 %v7086, %v7125
  %v7129 = vpack.c.bf16 %v5912, %v5909
  %v7131 = vshrl.u32 %v7129, 16
  %v7133 = vshll.u32 %v7129, 16
  %v7135 = vrot.slane %v7133, 1
  %v7136 = vor.u32 %v7131, %v7135
  %v7142 = vunpack.c.l.b16 %v6049
  %v7143 = vunpack.c.l.b16 %v6050
  %v7144 = vunpack.c.l.b16 %v6051
  %v7145 = vunpack.c.l.b16 %v6052
  %v7146 = vpack.c.b16 %v7143, %v7142
  %v7147 = vpack.c.b16 %v7145, %v7144
  %7150 = vmatpush.bf16.msra.mxu0 %v7147
  %7151 = vmatpush.bf16.msra.mxu0 %v7146
  %7152 = vmatpush.bf16.msra.mxu0 %v7097
  %7153 = vmatpush.bf16.msra.mxu0 %v7096
  %7154 = vmatpush.bf16.msra.mxu0 %v7055
  %7155 = vmatpush.bf16.msra.mxu0 %v7054
  %7156 = vmatpush.bf16.msra.mxu0 %v7012
  %7157 = vmatpush.bf16.msra.mxu0 %v7011
  %7158 = vmatmul.bf16.gmra.mxu0 %v7136
  %v7159 = vpop.f32.mrf.mxu0
  %v7160 = vadd.f32 0.0, %v7159
  %v7161 = vpop.f32.mrf.mxu0
  %7162 = vdwg.mxu0
  %v7163 = vadd.f32 %v7113, %v7160
  %v7164 = vpack.c.bf16 %v5933, %v5931
  %v7166 = vshrl.u32 %v7164, 16
  %v7168 = vshll.u32 %v7164, 16
  %v7170 = vrot.slane %v7168, 1
  %v7171 = vor.u32 %v7166, %v7170
  %7173 = vmatpush.bf16.msra.mxu0 %v7147
  %7174 = vmatpush.bf16.msra.mxu0 %v7146
  %7175 = vmatpush.bf16.msra.mxu0 %v7097
  %7176 = vmatpush.bf16.msra.mxu0 %v7096
  %7177 = vmatpush.bf16.msra.mxu0 %v7055
  %7178 = vmatpush.bf16.msra.mxu0 %v7054
  %7179 = vmatpush.bf16.msra.mxu0 %v7012
  %7180 = vmatpush.bf16.msra.mxu0 %v7011
  %7181 = vmatmul.bf16.gmra.mxu0 %v7171
  %v7182 = vpop.f32.mrf.mxu0
  %v7183 = vadd.f32 0.0, %v7182
  %v7184 = vpop.f32.mrf.mxu0
  %7185 = vdwg.mxu0
  %v7186 = vadd.f32 %v7128, %v7183
  %v7187 = vpack.c.bf16 %v5917, %v5914
  %v7189 = vshrl.u32 %v7187, 16
  %v7191 = vshll.u32 %v7187, 16
  %v7193 = vrot.slane %v7191, 1
  %v7194 = vor.u32 %v7189, %v7193
  %v7200 = vunpack.c.l.b16 %v6053
  %v7201 = vunpack.c.l.b16 %v6054
  %v7202 = vunpack.c.l.b16 %v6055
  %v7203 = vunpack.c.l.b16 %v6056
  %v7204 = vpack.c.b16 %v7201, %v7200
  %v7205 = vpack.c.b16 %v7203, %v7202
  %7208 = vmatpush.bf16.msra.mxu0 %v7205
  %7209 = vmatpush.bf16.msra.mxu0 %v7204
  %7210 = vmatpush.bf16.msra.mxu0 %v7147
  %7211 = vmatpush.bf16.msra.mxu0 %v7146
  %7212 = vmatpush.bf16.msra.mxu0 %v7097
  %7213 = vmatpush.bf16.msra.mxu0 %v7096
  %7214 = vmatpush.bf16.msra.mxu0 %v7055
  %7215 = vmatpush.bf16.msra.mxu0 %v7054
  %7216 = vmatmul.bf16.gmra.mxu0 %v7194
  %v7217 = vpop.f32.mrf.mxu0
  %v7218 = vadd.f32 0.0, %v7217
  %v7219 = vpop.f32.mrf.mxu0
  %7220 = vdwg.mxu0
  %v7221 = vadd.f32 %v7163, %v7218
  %v7222 = vpack.c.bf16 %v5938, %v5936
  %v7224 = vshrl.u32 %v7222, 16
  %v7226 = vshll.u32 %v7222, 16
  %v7228 = vrot.slane %v7226, 1
  %v7229 = vor.u32 %v7224, %v7228
  %7231 = vmatpush.bf16.msra.mxu0 %v7205
  %7232 = vmatpush.bf16.msra.mxu0 %v7204
  %7233 = vmatpush.bf16.msra.mxu0 %v7147
  %7234 = vmatpush.bf16.msra.mxu0 %v7146
  %7235 = vmatpush.bf16.msra.mxu0 %v7097
  %7236 = vmatpush.bf16.msra.mxu0 %v7096
  %7237 = vmatpush.bf16.msra.mxu0 %v7055
  %7238 = vmatpush.bf16.msra.mxu0 %v7054
  %7239 = vmatmul.bf16.gmra.mxu0 %v7229
  %v7240 = vpop.f32.mrf.mxu0
  %v7241 = vadd.f32 0.0, %v7240
  %v7242 = vpop.f32.mrf.mxu0
  %7243 = vdwg.mxu0
  %v7244 = vadd.f32 %v7186, %v7241
  %v7246 = vrot.slane %v7129, 1
  %v7252 = vunpack.c.l.b16 %v6057
  %v7253 = vunpack.c.l.b16 %v6058
  %v7254 = vunpack.c.l.b16 %v6059
  %v7255 = vunpack.c.l.b16 %v6060
  %v7256 = vpack.c.b16 %v7253, %v7252
  %v7257 = vpack.c.b16 %v7255, %v7254
  %7260 = vmatpush.bf16.msra.mxu0 %v7257
  %7261 = vmatpush.bf16.msra.mxu0 %v7256
  %7262 = vmatpush.bf16.msra.mxu0 %v7205
  %7263 = vmatpush.bf16.msra.mxu0 %v7204
  %7264 = vmatpush.bf16.msra.mxu0 %v7147
  %7265 = vmatpush.bf16.msra.mxu0 %v7146
  %7266 = vmatpush.bf16.msra.mxu0 %v7097
  %7267 = vmatpush.bf16.msra.mxu0 %v7096
  %7268 = vmatmul.bf16.gmra.mxu0 %v7246
  %v7269 = vpop.f32.mrf.mxu0
  %v7270 = vadd.f32 0.0, %v7269
  %v7271 = vpop.f32.mrf.mxu0
  %7272 = vdwg.mxu0
  %v7273 = vadd.f32 %v7221, %v7270
  %v7275 = vrot.slane %v7164, 1
  %7277 = vmatpush.bf16.msra.mxu0 %v7257
  %7278 = vmatpush.bf16.msra.mxu0 %v7256
  %7279 = vmatpush.bf16.msra.mxu0 %v7205
  %7280 = vmatpush.bf16.msra.mxu0 %v7204
  %7281 = vmatpush.bf16.msra.mxu0 %v7147
  %7282 = vmatpush.bf16.msra.mxu0 %v7146
  %7283 = vmatpush.bf16.msra.mxu0 %v7097
  %7284 = vmatpush.bf16.msra.mxu0 %v7096
  %7285 = vmatmul.bf16.gmra.mxu0 %v7275
  %v7286 = vpop.f32.mrf.mxu0
  %v7287 = vadd.f32 0.0, %v7286
  %v7288 = vpop.f32.mrf.mxu0
  %7289 = vdwg.mxu0
  %v7290 = vadd.f32 %v7244, %v7287
  %v7291 = vld [vmem:[%s9] sm:$0xff]
  %v7292 = vld [vmem:[%s9 + $0x8] sm:$0xff]
  %7294 = vset.pattern.permute.xlu0 0
  %7295 = vperm.xlu0 %7294, %v7291
  %v7296 = vpop.permute.xlu0 %7295
  %7299 = vset.pattern.permute.xlu0 0
  %7300 = vperm.xlu0 %7299, %v7292
  %v7301 = vpop.permute.xlu0 %7300
  %v7303 = vmul.f32 %v7273, %v7296
  %v7304 = vmul.f32 %v7290, %v7301
  %v7305 = vadd.f32 %v7303, %v7304
  %v7306 = vrot.slane %v7305, 4
  %v7307 = vadd.f32 %v7305, %v7306
  %v7308 = vrot.slane %v7307, 2
  %v7309 = vadd.f32 %v7307, %v7308
  %v7310 = vrot.slane %v7309, 1
  %v7311 = vadd.f32 %v7309, %v7310
  %v7312 = vmul.f32 %v7311, 0.125
  %v7313 = vsub.f32 %v7273, %v7312
  %v7314 = vsub.f32 %v7290, %v7312
  %v7315 = vmul.f32 %v7313, %v7313
  %v7316 = vmul.f32 %v7314, %v7314
  %v7317 = vmul.f32 %v7315, %v7296
  %v7318 = vmul.f32 %v7316, %v7301
  %v7319 = vadd.f32 %v7317, %v7318
  %v7320 = vrot.slane %v7319, 4
  %v7321 = vadd.f32 %v7319, %v7320
  %v7322 = vrot.slane %v7321, 2
  %v7323 = vadd.f32 %v7321, %v7322
  %v7324 = vrot.slane %v7323, 1
  %v7325 = vadd.f32 %v7323, %v7324
  %v7326 = vmul.f32 %v7325, 0.125
  %v7327 = vadd.f32 %v7326, 1e-05
  %v7328 = vrsqrt.pop %v7327
  %v7329 = vmul.f32 %v7328, %v7327
  %v7330 = vmul.f32 %v7329, %v7328
  %v7331 = vmul.f32 0.5, %v7330
  %v7332 = vsub.f32 1.5, %v7331
  %v7333 = vmul.f32 %v7328, %v7332
  %vm7334 = vweird.f32 %v7327
  %vm7335 = vweird.f32 %v7328
  %vm7336 = vmor %vm7334, %vm7335
  %v7337 = vsel %vm7336, %v7328, %v7333
  %v7338 = vmul.f32 %v7313, %v7337
  %v7339 = vmul.f32 %v7314, %v7337
  %v7340 = vperm.slane %v38, 4
  %v7341 = vmul.f32 %v7338, %v7340
  %v7342 = vmul.f32 %v7339, %v7340
  %v7343 = vperm.slane %v38, 5
  %v7344 = vadd.f32 %v7341, %v7343
  %v7345 = vadd.f32 %v7342, %v7343
  %v7346 = vmax.f32 %v7344, 0.0
  %v7347 = vmax.f32 %v7345, 0.0
  %v7348 = vld [vmem:[%s4] sm:$0xf]
  %v7349 = vld [vmem:[%s4 + $0x4] sm:$0xf]
  %v7350 = vld [vmem:[%s4 + $0x8] sm:$0xf]
  %v7351 = vld [vmem:[%s4 + $0xc] sm:$0xf]
  %v7352 = vld [vmem:[%s4 + $0x10] sm:$0xf]
  %v7353 = vld [vmem:[%s4 + $0x14] sm:$0xf]
  %v7354 = vld [vmem:[%s4 + $0x18] sm:$0xf]
  %v7355 = vld [vmem:[%s4 + $0x1c] sm:$0xf]
  %v7356 = vld [vmem:[%s4 + $0x20] sm:$0xf]
  %v7357 = vld [vmem:[%s4 + $0x24] sm:$0xf]
  %v7358 = vld [vmem:[%s4 + $0x28] sm:$0xf]
  %v7359 = vld [vmem:[%s4 + $0x2c] sm:$0xf]
  %v7360 = vld [vmem:[%s4 + $0x30] sm:$0xf]
  %v7361 = vld [vmem:[%s4 + $0x34] sm:$0xf]
  %v7362 = vld [vmem:[%s4 + $0x38] sm:$0xf]
  %v7363 = vld [vmem:[%s4 + $0x3c] sm:$0xf]
  %v7364 = vld [vmem:[%s4 + $0x40] sm:$0xf]
  %v7365 = vld [vmem:[%s4 + $0x44] sm:$0xf]
  %v7366 = vld [vmem:[%s4 + $0x48] sm:$0xf]
  %v7367 = vld [vmem:[%s4 + $0x4c] sm:$0xf]
  %v7368 = vld [vmem:[%s4 + $0x50] sm:$0xf]
  %v7369 = vld [vmem:[%s4 + $0x54] sm:$0xf]
  %v7370 = vld [vmem:[%s4 + $0x58] sm:$0xf]
  %v7371 = vld [vmem:[%s4 + $0x5c] sm:$0xf]
  %v7372 = vld [vmem:[%s4 + $0x60] sm:$0xf]
  %v7373 = vld [vmem:[%s4 + $0x64] sm:$0xf]
  %v7374 = vld [vmem:[%s4 + $0x68] sm:$0xf]
  %v7375 = vld [vmem:[%s4 + $0x6c] sm:$0xf]
  %v7377 = vrot.slane %v7347, 7
  %vm7379 = vcmask 1040384
  %v7380 = vsel %vm7379, %v7346, %v7377
  %v7381 = vpack.c.bf16 %v7380, %v7380
  %v7383 = vrot.slane %v7346, 1
  %v7385 = vsel %vm7379, %v7383, %v7347
  %v7386 = vpack.c.bf16 %v7385, %v7385
  %v7403 = vunpack.c.l.b16 %v7352
  %v7404 = vunpack.c.l.b16 %v7353
  %v7405 = vunpack.c.l.b16 %v7354
  %v7406 = vunpack.c.l.b16 %v7355
  %v7407 = vunpack.c.l.b16 %v7356
  %v7408 = vunpack.c.l.b16 %v7357
  %v7409 = vunpack.c.l.b16 %v7358
  %v7410 = vunpack.c.l.b16 %v7359
  %v7411 = vunpack.c.l.b16 %v7360
  %v7412 = vunpack.c.l.b16 %v7361
  %v7413 = vunpack.c.l.b16 %v7362
  %v7414 = vunpack.c.l.b16 %v7363
  %v7415 = vunpack.c.l.b16 %v7364
  %v7416 = vunpack.c.l.b16 %v7365
  %v7417 = vunpack.c.l.b16 %v7366
  %v7418 = vunpack.c.l.b16 %v7367
  %v7419 = vpack.c.b16 %v7404, %v7403
  %v7420 = vpack.c.b16 %v7406, %v7405
  %v7421 = vpack.c.b16 %v7408, %v7407
  %v7422 = vpack.c.b16 %v7410, %v7409
  %v7423 = vpack.c.b16 %v7412, %v7411
  %v7424 = vpack.c.b16 %v7414, %v7413
  %v7425 = vpack.c.b16 %v7416, %v7415
  %v7426 = vpack.c.b16 %v7418, %v7417
  %7435 = vmatpush.bf16.msra.mxu0 %v7426
  %7436 = vmatpush.bf16.msra.mxu0 %v7425
  %7437 = vmatpush.bf16.msra.mxu0 %v7424
  %7438 = vmatpush.bf16.msra.mxu0 %v7423
  %7439 = vmatpush.bf16.msra.mxu0 %v7422
  %7440 = vmatpush.bf16.msra.mxu0 %v7421
  %7441 = vmatpush.bf16.msra.mxu0 %v7420
  %7442 = vmatpush.bf16.msra.mxu0 %v7419
  %7443 = vmatmul.bf16.gmra.mxu0 %v7386
  %v7444 = vpop.f32.mrf.mxu0
  %v7445 = vadd.f32 0.0, %v7444
  %v7446 = vpop.f32.mrf.mxu0
  %7447 = vdwg.mxu0
  %v7452 = vunpack.c.l.b16 %v7348
  %v7453 = vunpack.c.l.b16 %v7349
  %v7454 = vunpack.c.l.b16 %v7350
  %v7455 = vunpack.c.l.b16 %v7351
  %v7456 = vpack.c.b16 %v7453, %v7452
  %v7457 = vpack.c.b16 %v7455, %v7454
  %7460 = vmatpush.bf16.msra.mxu0 %v7424
  %7461 = vmatpush.bf16.msra.mxu0 %v7423
  %7462 = vmatpush.bf16.msra.mxu0 %v7422
  %7463 = vmatpush.bf16.msra.mxu0 %v7421
  %7464 = vmatpush.bf16.msra.mxu0 %v7420
  %7465 = vmatpush.bf16.msra.mxu0 %v7419
  %7466 = vmatpush.bf16.msra.mxu0 %v7457
  %7467 = vmatpush.bf16.msra.mxu0 %v7456
  %7468 = vmatmul.bf16.gmra.mxu0 %v7381
  %v7469 = vpop.f32.mrf.mxu0
  %v7470 = vadd.f32 %v7445, %v7469
  %v7471 = vpop.f32.mrf.mxu0
  %7472 = vdwg.mxu0
  %v7473 = vrot.slane %v7346, 4
  %v7475 = vrot.slane %v7347, 3
  %v7477 = vsel %vm7379, %v7473, %v7475
  %v7478 = vpack.c.bf16 %v7477, %v7477
  %v7483 = vunpack.c.l.b16 %v7368
  %v7484 = vunpack.c.l.b16 %v7369
  %v7485 = vunpack.c.l.b16 %v7370
  %v7486 = vunpack.c.l.b16 %v7371
  %v7487 = vpack.c.b16 %v7484, %v7483
  %v7488 = vpack.c.b16 %v7486, %v7485
  %7491 = vmatpush.bf16.msra.mxu0 %v7488
  %7492 = vmatpush.bf16.msra.mxu0 %v7487
  %7493 = vmatpush.bf16.msra.mxu0 %v7426
  %7494 = vmatpush.bf16.msra.mxu0 %v7425
  %7495 = vmatpush.bf16.msra.mxu0 %v7424
  %7496 = vmatpush.bf16.msra.mxu0 %v7423
  %7497 = vmatpush.bf16.msra.mxu0 %v7422
  %7498 = vmatpush.bf16.msra.mxu0 %v7421
  %7499 = vmatmul.bf16.gmra.mxu0 %v7478
  %v7500 = vpop.f32.mrf.mxu0
  %v7501 = vadd.f32 0.0, %v7500
  %v7502 = vpop.f32.mrf.mxu0
  %7503 = vdwg.mxu0
  %v7504 = vadd.f32 %v7470, %v7501
  %v7505 = vrot.slane %v7346, 5
  %v7507 = vrot.slane %v7347, 4
  %v7509 = vsel %vm7379, %v7505, %v7507
  %v7510 = vpack.c.bf16 %v7509, %v7509
  %v7515 = vunpack.c.l.b16 %v7372
  %v7516 = vunpack.c.l.b16 %v7373
  %v7517 = vunpack.c.l.b16 %v7374
  %v7518 = vunpack.c.l.b16 %v7375
  %v7519 = vpack.c.b16 %v7516, %v7515
  %v7520 = vpack.c.b16 %v7518, %v7517
  %7523 = vmatpush.bf16.msra.mxu0 %v7520
  %7524 = vmatpush.bf16.msra.mxu0 %v7519
  %7525 = vmatpush.bf16.msra.mxu0 %v7488
  %7526 = vmatpush.bf16.msra.mxu0 %v7487
  %7527 = vmatpush.bf16.msra.mxu0 %v7426
  %7528 = vmatpush.bf16.msra.mxu0 %v7425
  %7529 = vmatpush.bf16.msra.mxu0 %v7424
  %7530 = vmatpush.bf16.msra.mxu0 %v7423
  %7531 = vmatmul.bf16.gmra.mxu0 %v7510
  %v7532 = vpop.f32.mrf.mxu0
  %v7533 = vadd.f32 0.0, %v7532
  %v7534 = vpop.f32.mrf.mxu0
  %7535 = vdwg.mxu0
  %v7536 = vadd.f32 %v7504, %v7533
  %v7537 = vperm.slane %v38, 6
  %v7538 = vadd.f32 %v7536, %v7537
  %vm7539 = vcmask 1041408
  %v7540 = vsel %vm7539, %v7538, 0.0
  %v7541 = vpack.c.bf16 %v7540, %v7540
  %v7542 = vld [vmem:[%s5] sm:$0xf]
  %v7543 = vld [vmem:[%s5 + $0x4] sm:$0xf]
  %v7544 = vld [vmem:[%s5 + $0x8] sm:$0xf]
  %v7545 = vld [vmem:[%s5 + $0xc] sm:$0xf]
  %v7546 = vld [vmem:[%s5 + $0x10] sm:$0xf]
  %v7547 = vld [vmem:[%s5 + $0x14] sm:$0xf]
  %v7548 = vld [vmem:[%s5 + $0x18] sm:$0xf]
  %v7549 = vld [vmem:[%s5 + $0x1c] sm:$0xf]
  %v7550 = vld [vmem:[%s5 + $0x20] sm:$0xf]
  %v7551 = vld [vmem:[%s5 + $0x24] sm:$0xf]
  %v7552 = vld [vmem:[%s5 + $0x28] sm:$0xf]
  %v7553 = vld [vmem:[%s5 + $0x2c] sm:$0xf]
  %v7554 = vld [vmem:[%s5 + $0x30] sm:$0xf]
  %v7555 = vld [vmem:[%s5 + $0x34] sm:$0xf]
  %v7556 = vld [vmem:[%s5 + $0x38] sm:$0xf]
  %v7557 = vld [vmem:[%s5 + $0x3c] sm:$0xf]
  %v7558 = vperm.slane %v38, 7
  %v7575 = vunpack.c.l.b16 %v7542
  %v7576 = vunpack.c.l.b16 %v7543
  %v7577 = vunpack.c.l.b16 %v7544
  %v7578 = vunpack.c.l.b16 %v7545
  %v7579 = vunpack.c.l.b16 %v7546
  %v7580 = vunpack.c.l.b16 %v7547
  %v7581 = vunpack.c.l.b16 %v7548
  %v7582 = vunpack.c.l.b16 %v7549
  %v7583 = vunpack.c.l.b16 %v7550
  %v7584 = vunpack.c.l.b16 %v7551
  %v7585 = vunpack.c.l.b16 %v7552
  %v7586 = vunpack.c.l.b16 %v7553
  %v7587 = vunpack.c.l.b16 %v7554
  %v7588 = vunpack.c.l.b16 %v7555
  %v7589 = vunpack.c.l.b16 %v7556
  %v7590 = vunpack.c.l.b16 %v7557
  %v7591 = vpack.c.b16 %v7576, %v7575
  %v7592 = vpack.c.b16 %v7578, %v7577
  %v7593 = vpack.c.b16 %v7580, %v7579
  %v7594 = vpack.c.b16 %v7582, %v7581
  %v7595 = vpack.c.b16 %v7584, %v7583
  %v7596 = vpack.c.b16 %v7586, %v7585
  %v7597 = vpack.c.b16 %v7588, %v7587
  %v7598 = vpack.c.b16 %v7590, %v7589
  %7607 = vmatpush.bf16.msra.mxu0 %v7598
  %7608 = vmatpush.bf16.msra.mxu0 %v7597
  %7609 = vmatpush.bf16.msra.mxu0 %v7596
  %7610 = vmatpush.bf16.msra.mxu0 %v7595
  %7611 = vmatpush.bf16.msra.mxu0 %v7594
  %7612 = vmatpush.bf16.msra.mxu0 %v7593
  %7613 = vmatpush.bf16.msra.mxu0 %v7592
  %7614 = vmatpush.bf16.msra.mxu0 %v7591
  %7615 = vmatmul.bf16.gmra.mxu0 %v7541
  %v7616 = vpop.f32.mrf.mxu0
  %v7617 = vadd.f32 %v7558, %v7616
  %v7618 = vpop.f32.mrf.mxu0
  %7619 = vdwg.mxu0
  %7620 = vst [vmem:[%s11] sm:$0xff] %v7617
  // Predicated region
  $region46: #{forward.1} parent=0 // pred_check
    _
  $region47: #{forward.1} parent=0 // pred_check_branch
    %7622 = sbr.rel (0) target = $region49
  $region48: #{forward.1} parent=0 // pred_region
    _
  $region49: #{forward.1} parent=0 // pred_fallthru
    _
  // Predicated region
  $region50: #{forward.1} parent=0 // pred_check
    _
  $region51: #{forward.1} parent=0 // pred_check_branch
    %7624 = sbr.rel (0) target = $region53
  $region52: #{forward.1} parent=0 // pred_region
    _
  $region53: #{forward.1} parent=0 // pred_fallthru
    _

</llo_original>
